<compile_context>
chip_gen: v6e
topology: v6e:2x2x1
jax: 0.10.0
libtpu: 0.0.40
codegen_flags: <defaults>
</compile_context>

<pallas_src>
import functools
import math

import jax
import jax.numpy as jnp
from jax import lax
from jax.experimental import pallas as pl
from jax.experimental.pallas import tpu as pltpu


_LRELU_SLOPE = 0.2
_BN_EPS = 1e-5


def _round_up(x, m):
    return ((x + m - 1) // m) * m


def _pick_tile(padded, candidates):
    # `padded` is always a multiple of 128, so this always returns a divisor.
    for c in candidates:
        if padded % c == 0:
            return c
    return padded


# ----------------------------- Pallas kernels ------------------------------

def _matmul_fused_kernel(x_ref, w_ref, b_ref, *rest,
                         apply_bias, apply_lrelu, emit_stats):
    """Tiled GEMM (bf16 x bf16 -> f32 acc) with fused bias + LeakyReLU epilogue.

    If emit_stats, also writes per-tile column sum / sum-of-squares of the (pre-BN)
    activation into a (1, 8, tn) stats slab (row 0 = sum, row 1 = sum of squares).
    """
    if emit_stats:
        o_ref, stats_ref, acc_ref = rest
    else:
        o_ref, acc_ref = rest
        stats_ref = None

    @pl.when(pl.program_id(2) == 0)
    def _init():
        acc_ref[...] = jnp.zeros_like(acc_ref)

    acc_ref[...] += jnp.dot(x_ref[...], w_ref[...],
                            preferred_element_type=jnp.float32)

    @pl.when(pl.program_id(2) == pl.num_programs(2) - 1)
    def _finalize():
        acc = acc_ref[...]
        if apply_bias:
            acc = acc + b_ref[...]
        if apply_lrelu:
            acc = jnp.where(acc >= 0, acc, _LRELU_SLOPE * acc)
        o_ref[...] = acc.astype(o_ref.dtype)
        if emit_stats:
            s = jnp.sum(acc, axis=0, keepdims=True)          # (1, tn)
            sq = jnp.sum(acc * acc, axis=0, keepdims=True)   # (1, tn)
            row = lax.broadcasted_iota(jnp.int32, (8, acc.shape[1]), 0)
            pack = (jnp.where(row == 0, s, 0.0)
                    + jnp.where(row == 1, sq, 0.0))          # (8, tn)
            stats_ref[...] = pack[None].astype(stats_ref.dtype)


def _bn_apply_lrelu_kernel(x_ref, scale_ref, shift_ref, o_ref):
    """y = x * scale + shift ; LeakyReLU(0.2)."""
    y = x_ref[...].astype(jnp.float32) * scale_ref[...] + shift_ref[...]
    o_ref[...] = jnp.where(y >= 0, y, _LRELU_SLOPE * y).astype(o_ref.dtype)


# ------------------------------ Pallas wrappers -----------------------------

def _conv_gemm(cols, w, b, *, apply_bias, apply_lrelu, emit_stats, out_dtype):
    """cols: [M, K], w: [K, N], b: [1, N].

    Returns padded [Mp, Np] output (and, if emit_stats, a [Mp//tm, 8, Np] f32 array of
    per-M-tile column sums (row 0) and sums of squares (row 1))."""
    M, K = cols.shape
    _, N = w.shape
    Mp, Kp, Np = _round_up(M, 128), _round_up(K, 128), _round_up(N, 128)
    tm = _pick_tile(Mp, (512, 256, 128))
    tk = _pick_tile(Kp, (512, 256, 128))
    tn = _pick_tile(Np, (256, 128))

    xp = jnp.pad(cols.astype(jnp.bfloat16), ((0, Mp - M), (0, Kp - K)))
    wp = jnp.pad(w.astype(jnp.bfloat16), ((0, Kp - K), (0, Np - N)))
    bp = jnp.pad(b.astype(jnp.float32), ((0, 0), (0, Np - N)))

    if emit_stats:
        out_shape = [
            jax.ShapeDtypeStruct((Mp, Np), out_dtype),
            jax.ShapeDtypeStruct((Mp // tm, 8, Np), jnp.float32),
        ]
        out_specs = [
            pl.BlockSpec((tm, tn), lambda i, j, k: (i, j)),
            pl.BlockSpec((1, 8, tn), lambda i, j, k: (i, 0, j)),
        ]
    else:
        out_shape = jax.ShapeDtypeStruct((Mp, Np), out_dtype)
        out_specs = pl.BlockSpec((tm, tn), lambda i, j, k: (i, j))

    kern = functools.partial(_matmul_fused_kernel,
                             apply_bias=apply_bias,
                             apply_lrelu=apply_lrelu,
                             emit_stats=emit_stats)
    return pl.pallas_call(
        kern,
        out_shape=out_shape,
        grid_spec=pltpu.PrefetchScalarGridSpec(
            num_scalar_prefetch=0,
            grid=(Mp // tm, Np // tn, Kp // tk),
            in_specs=[
                pl.BlockSpec((tm, tk), lambda i, j, k: (i, k)),
                pl.BlockSpec((tk, tn), lambda i, j, k: (k, j)),
                pl.BlockSpec((1, tn), lambda i, j, k: (0, j)),
            ],
            out_specs=out_specs,
            scratch_shapes=[pltpu.VMEM((tm, tn), jnp.float32)],
        ),
        compiler_params=pltpu.CompilerParams(
            dimension_semantics=("parallel", "parallel", "arbitrary"),
        ),
    )(xp, wp, bp)


def _bn_apply_lrelu(x_pad, scale, shift, out_dtype):
    """y = x * scale + shift ; LeakyReLU — tiled over M, lane-dense stores."""
    Mp, Cp = x_pad.shape
    tm = _pick_tile(Mp, (512, 256, 128))
    return pl.pallas_call(
        _bn_apply_lrelu_kernel,
        out_shape=jax.ShapeDtypeStruct((Mp, Cp), out_dtype),
        grid=(Mp // tm,),
        in_specs=[
            pl.BlockSpec((tm, Cp), lambda i: (i, 0)),
            pl.BlockSpec((1, Cp), lambda i: (0, 0)),
            pl.BlockSpec((1, Cp), lambda i: (0, 0)),
        ],
        out_specs=pl.BlockSpec((tm, Cp), lambda i: (i, 0)),
        compiler_params=pltpu.CompilerParams(
            dimension_semantics=("parallel",),
        ),
    )(x_pad, scale, shift)


# ------------------------------- JAX glue ----------------------------------

def _im2col(x_nhwc, k, stride, pad):
    """x: [N, H, W, C] -> ([N*OH*OW, k*k*C], (N, OH, OW)). Patch order (kh, kw, c)."""
    x = jnp.pad(x_nhwc, ((0, 0), (pad, pad), (pad, pad), (0, 0)))
    n, h, w, c = x.shape
    oh = (h - k) // stride + 1
    ow = (w - k) // stride + 1
    patches = []
    for i in range(k):
        for j in range(k):
            patches.append(x[:, i:i + stride * oh:stride, j:j + stride * ow:stride, :])
    p = jnp.stack(patches, axis=3)  # [N, OH, OW, k*k, C]
    return p.reshape(n * oh * ow, k * k * c), (n, oh, ow)


def _bilinear_resize_nchw(x, out_h, out_w):
    """Matches F.interpolate(mode='bilinear', align_corners=False)."""
    n, c, in_h, in_w = x.shape
    if (out_h, out_w) == (in_h, in_w):
        return x

    def coords(out_size, in_size):
        scale = in_size / out_size
        d = jnp.arange(out_size, dtype=jnp.float32)
        src = jnp.maximum((d + 0.5) * scale - 0.5, 0.0)  # PyTorch clamps <0 to 0
        i0 = jnp.minimum(jnp.floor(src).astype(jnp.int32), in_size - 1)
        i1 = jnp.minimum(i0 + 1, in_size - 1)
        wgt = src - i0.astype(jnp.float32)
        return i0, i1, wgt

    y0, y1, wy = coords(out_h, in_h)
    x0, x1, wx = coords(out_w, in_w)
    wy = wy[None, None, :, None]
    wx = wx[None, None, None, :]

    top, bot = x[:, :, y0, :], x[:, :, y1, :]
    top = top[:, :, :, x0] * (1.0 - wx) + top[:, :, :, x1] * wx
    bot = bot[:, :, :, x0] * (1.0 - wx) + bot[:, :, :, x1] * wx
    return top * (1.0 - wy) + bot * wy


def _nearest_resize_nchw(x, out_h, out_w):
    """Matches F.interpolate(mode='nearest'): src = floor(dst * in/out)."""
    in_h, in_w = x.shape[2], x.shape[3]
    if (out_h, out_w) == (in_h, in_w):
        return x
    hi = (jnp.arange(out_h) * in_h) // out_h
    wi = (jnp.arange(out_w) * in_w) // out_w
    return x[:, :, hi, :][:, :, :, wi]


# ------------------------ model definition / params ------------------------

def layer_configs(input_nc=3, ndf=64, n_layers=3):
    cfgs = [dict(cin=input_nc, cout=ndf, stride=2, bias=True, bn=False, lrelu=True)]
    nf_mult = 1
    for n in range(1, n_layers):
        prev, nf_mult = nf_mult, min(2 ** n, 8)
        cfgs.append(dict(cin=ndf * prev, cout=ndf * nf_mult, stride=2,
                         bias=False, bn=True, lrelu=True))
    prev, nf_mult = nf_mult, min(2 ** n_layers, 8)
    cfgs.append(dict(cin=ndf * prev, cout=ndf * nf_mult, stride=1,
                     bias=False, bn=True, lrelu=True))
    cfgs.append(dict(cin=ndf * nf_mult, cout=1, stride=1,
                     bias=True, bn=False, lrelu=False))
    return cfgs


def make_nlayer_params(key, cfgs):
    params = []
    for li, c in enumerate(cfgs):
        kw_, kb = jax.random.split(jax.random.fold_in(key, li))
        # PyTorch Conv2d weight shape [Cout, Cin, 4, 4]; deterministic synthetic init.
        w = jax.random.normal(kw_, (c['cout'], c['cin'], 4, 4), jnp.float32) * 0.02
        w_mat = jnp.transpose(w, (2, 3, 1, 0)).reshape(4 * 4 * c['cin'], c['cout'])
        if c['bias']:
            b = jax.random.normal(kb, (c['cout'],), jnp.float32) * 0.02
        else:
            b = jnp.zeros((c['cout'],), jnp.float32)
        p = dict(w=w_mat, b=b.reshape(1, -1))
        if c['bn']:
            p['gamma'] = jnp.ones((1, c['cout']), jnp.float32)   # BatchNorm2d init
            p['beta'] = jnp.zeros((1, c['cout']), jnp.float32)
        params.append(p)
    return params


def nlayer_forward(x_nchw, cfgs, params):
    x = jnp.transpose(x_nchw, (0, 2, 3, 1)).astype(jnp.bfloat16)  # -> NHWC bf16
    n_layers = len(cfgs)
    for li, (c, p) in enumerate(zip(cfgs, params)):
        is_last = li == n_layers - 1
        cols, (n, oh, ow) = _im2col(x, 4, c['stride'], 1)
        m_valid = cols.shape[0]
        out_dtype = jnp.float32 if is_last else jnp.bfloat16

        res = _conv_gemm(cols, p['w'], p['b'],
                         apply_bias=c['bias'],
                         apply_lrelu=(c['lrelu'] and not c['bn']),
                         emit_stats=c['bn'],
                         out_dtype=out_dtype)
        if c['bn']:
            y_pad, stats = res
            Np_ = y_pad.shape[1]
            sums = jnp.sum(stats, axis=0)                  # (8, Np)
            inv_m = 1.0 / float(m_valid)
            mean = sums[0:1] * inv_m                       # (1, Np)
            var = jnp.maximum(sums[1:2] * inv_m - mean * mean, 0.0)
            gamma_p = jnp.pad(p['gamma'], ((0, 0), (0, Np_ - p['gamma'].shape[1])))
            beta_p = jnp.pad(p['beta'], ((0, 0), (0, Np_ - p['beta'].shape[1])))
            scale = gamma_p * lax.rsqrt(var + _BN_EPS)     # (1, Np)
            shift = beta_p - mean * scale                  # (1, Np)
            y_pad = _bn_apply_lrelu(y_pad, scale, shift, out_dtype)
        else:
            y_pad = res

        y = y_pad[:m_valid, :c['cout']]
        x = y.reshape(n, oh, ow, c['cout'])
    return jnp.transpose(x.astype(jnp.float32), (0, 3, 1, 2))  # -> NCHW f32


def multiscale_forward(x_nchw, scales, cfgs, params_list):
    scales = sorted(scales)
    results = []
    for p, s in zip(params_list, scales):
        oh = int(math.floor(x_nchw.shape[2] * s))
        ow = int(math.floor(x_nchw.shape[3] * s))
        tmpx = _bilinear_resize_nchw(x_nchw, oh, ow)
        results.append(nlayer_forward(tmpx, cfgs, p))
    th, tw = results[-1].shape[2], results[-1].shape[3]
    outs = [_nearest_resize_nchw(y, th, tw) for y in results]
    return jnp.concatenate(outs, axis=1)


# ---------------------------------- main ------------------------------------

if __name__ == "__main__":
    # Small config: input_nc=3, ndf=16, n_layers=3, scales=[1, 2], batch=2, 32x32.
    key = jax.random.PRNGKey(0)
    kx, kp = jax.random.split(key)
    x = jax.random.normal(kx, (2, 3, 32, 32), jnp.float32)

    scales = [1, 2]
    cfgs = layer_configs(input_nc=3, ndf=16, n_layers=3)
    params_list = [make_nlayer_params(jax.random.fold_in(kp, i), cfgs)
                   for i in range(len(scales))]

    fwd = jax.jit(lambda xx, ps: multiscale_forward(xx, scales, cfgs, ps))
    out = fwd(x, params_list)
    jax.block_until_ready(out)

    # scale-2 branch: 64 -> 32 -> 16 -> 8 -> 7 -> 6 ; concat over scales on channel dim.
    assert out.shape == (2, len(scales), 6, 6), out.shape
    assert out.dtype == jnp.float32
    assert bool(jnp.all(jnp.isfinite(out)))
    print("KERNEL_OK")
</pallas_src>

<mosaic_0001>
module attributes {stable_mosaic.version = 11 : i64} {
  func.func @_matmul_fused_kernel(%arg0: i32, %arg1: i32, %arg2: i32, %arg3: memref<512x128xbf16, #tpu.memory_space<vmem>>, %arg4: memref<128x128xbf16, #tpu.memory_space<vmem>>, %arg5: memref<1x128xf32, #tpu.memory_space<vmem>>, %arg6: memref<512x128xbf16, #tpu.memory_space<vmem>>, %arg7: memref<512x128xf32, #tpu.memory_space<vmem>>) attributes {dimension_semantics = [#tpu.dimension_semantics<parallel>, #tpu.dimension_semantics<parallel>, #tpu.dimension_semantics<arbitrary>], iteration_bounds = array<i64: 4, 1, 1>, scalar_prefetch = 0 : i64, scratch_operands = 1 : i64, tpu.core_type = #tpu.core_type<tc>, window_params = [{transform_indices = @transform_0, window_bounds = array<i64: 512, 128>}, {transform_indices = @transform_1, window_bounds = array<i64: 128, 128>}, {transform_indices = @transform_2, window_bounds = array<i64: 1, 128>}, {transform_indices = @transform_3, window_bounds = array<i64: 512, 128>}]} {
    %c0_i32 = arith.constant 0 : i32
    %0 = arith.cmpi eq, %arg2, %c0_i32 : i32
    %1 = arith.extui %0 : i1 to i32
    %c0_i32_0 = arith.constant 0 : i32
    %2 = arith.cmpi ne, %1, %c0_i32_0 : i32
    scf.if %2 {
      %cst_10 = arith.constant 0.000000e+00 : f32
      %12 = vector.broadcast %cst_10 : f32 to vector<512x128xf32>
      %c0_11 = arith.constant 0 : index
      %c0_12 = arith.constant 0 : index
      %13 = vector.load %arg7[%c0_11, %c0_12] : memref<512x128xf32, #tpu.memory_space<vmem>>, vector<512x128xf32>
      tpu.vector_store %arg7[%c0_11, %c0_12], %12 {strides = array<i32>} : memref<512x128xf32, #tpu.memory_space<vmem>>, vector<512x128xf32>,
    } else {
    }
    %c0 = arith.constant 0 : index
    %c0_1 = arith.constant 0 : index
    %3 = vector.load %arg7[%c0, %c0_1] : memref<512x128xf32, #tpu.memory_space<vmem>>, vector<512x128xf32>
    %c0_2 = arith.constant 0 : index
    %c0_3 = arith.constant 0 : index
    %4 = vector.load %arg3[%c0_2, %c0_3] : memref<512x128xbf16, #tpu.memory_space<vmem>>, vector<512x128xbf16>
    %c0_4 = arith.constant 0 : index
    %c0_5 = arith.constant 0 : index
    %5 = vector.load %arg4[%c0_4, %c0_5] : memref<128x128xbf16, #tpu.memory_space<vmem>>, vector<128x128xbf16>
    %cst = arith.constant dense<0.000000e+00> : vector<512x128xf32>
    %6 = tpu.matmul %4, %5, %cst {dimension_numbers = #tpu.dot_dimension_numbers<[1], [0], [0], [1], [0, 0, 1, 1], [], []>} : vector<512x128xbf16>, vector<128x128xbf16>, vector<512x128xf32> -> vector<512x128xf32>
    %7 = arith.addf %3, %6 : vector<512x128xf32>
    %c0_6 = arith.constant 0 : index
    %c0_7 = arith.constant 0 : index
    %8 = vector.load %arg7[%c0_6, %c0_7] : memref<512x128xf32, #tpu.memory_space<vmem>>, vector<512x128xf32>
    tpu.vector_store %arg7[%c0_6, %c0_7], %7 {strides = array<i32>} : memref<512x128xf32, #tpu.memory_space<vmem>>, vector<512x128xf32>,
    %c0_i32_8 = arith.constant 0 : i32
    %9 = arith.cmpi eq, %arg2, %c0_i32_8 : i32
    %10 = arith.extui %9 : i1 to i32
    %c0_i32_9 = arith.constant 0 : i32
    %11 = arith.cmpi ne, %10, %c0_i32_9 : i32
    scf.if %11 {
      %c0_10 = arith.constant 0 : index
      %c0_11 = arith.constant 0 : index
      %12 = vector.load %arg7[%c0_10, %c0_11] : memref<512x128xf32, #tpu.memory_space<vmem>>, vector<512x128xf32>
      %c0_12 = arith.constant 0 : index
      %c0_13 = arith.constant 0 : index
      %13 = vector.load %arg5[%c0_12, %c0_13] : memref<1x128xf32, #tpu.memory_space<vmem>>, vector<1x128xf32>
      %14 = vector.broadcast %13 : vector<1x128xf32> to vector<512x128xf32>
      %15 = arith.addf %12, %14 : vector<512x128xf32>
      %cst_14 = arith.constant 0.000000e+00 : f32
      %16 = vector.broadcast %cst_14 : f32 to vector<512x128xf32>
      %17 = arith.cmpf oge, %15, %16 : vector<512x128xf32>
      %cst_15 = arith.constant 2.000000e-01 : f32
      %18 = vector.broadcast %cst_15 : f32 to vector<512x128xf32>
      %19 = arith.mulf %18, %15 : vector<512x128xf32>
      %20 = arith.select %17, %15, %19 : vector<512x128xi1>, vector<512x128xf32>
      %21 = arith.truncf %20 : vector<512x128xf32> to vector<512x128xbf16>
      %c0_16 = arith.constant 0 : index
      %c0_17 = arith.constant 0 : index
      %22 = vector.load %arg6[%c0_16, %c0_17] : memref<512x128xbf16, #tpu.memory_space<vmem>>, vector<512x128xbf16>
      tpu.vector_store %arg6[%c0_16, %c0_17], %21 {strides = array<i32>} : memref<512x128xbf16, #tpu.memory_space<vmem>>, vector<512x128xbf16>,
    } else {
    }
    return
  }
  func.func @transform_0(%arg0: i32, %arg1: i32, %arg2: i32) -> (i32, i32) {
    %c0_i32 = arith.constant 0 : i32
    return %arg0, %arg2 : i32, i32
  }
  func.func @transform_1(%arg0: i32, %arg1: i32, %arg2: i32) -> (i32, i32) {
    %c0_i32 = arith.constant 0 : i32
    return %arg2, %arg1 : i32, i32
  }
  func.func @transform_2(%arg0: i32, %arg1: i32, %arg2: i32) -> (i32, i32) {
    %c0_i32 = arith.constant 0 : i32
    %c0_i32_0 = arith.constant 0 : i32
    return %c0_i32, %arg1 : i32, i32
  }
  func.func @transform_3(%arg0: i32, %arg1: i32, %arg2: i32) -> (i32, i32) {
    %c0_i32 = arith.constant 0 : i32
    return %arg0, %arg1 : i32, i32
  }
}

module attributes {stable_mosaic.version = 11 : i64} {
  func.func @_matmul_fused_kernel(%arg0: i32, %arg1: i32, %arg2: i32, %arg3: memref<512x256xbf16, #tpu.memory_space<vmem>>, %arg4: memref<256x128xbf16, #tpu.memory_space<vmem>>, %arg5: memref<1x128xf32, #tpu.memory_space<vmem>>, %arg6: memref<512x128xbf16, #tpu.memory_space<vmem>>, %arg7: memref<1x8x128xf32, #tpu.memory_space<vmem>>, %arg8: memref<512x128xf32, #tpu.memory_space<vmem>>) attributes {dimension_semantics = [#tpu.dimension_semantics<parallel>, #tpu.dimension_semantics<parallel>, #tpu.dimension_semantics<arbitrary>], iteration_bounds = array<i64: 1, 1, 1>, scalar_prefetch = 0 : i64, scratch_operands = 1 : i64, tpu.core_type = #tpu.core_type<tc>, window_params = [{transform_indices = @transform_0, window_bounds = array<i64: 512, 256>}, {transform_indices = @transform_1, window_bounds = array<i64: 256, 128>}, {transform_indices = @transform_2, window_bounds = array<i64: 1, 128>}, {transform_indices = @transform_3, window_bounds = array<i64: 512, 128>}, {transform_indices = @transform_4, window_bounds = array<i64: 1, 8, 128>}]} {
    %c0_i32 = arith.constant 0 : i32
    %0 = arith.cmpi eq, %arg2, %c0_i32 : i32
    %1 = arith.extui %0 : i1 to i32
    %c0_i32_0 = arith.constant 0 : i32
    %2 = arith.cmpi ne, %1, %c0_i32_0 : i32
    scf.if %2 {
      %cst_10 = arith.constant 0.000000e+00 : f32
      %12 = vector.broadcast %cst_10 : f32 to vector<512x128xf32>
      %c0_11 = arith.constant 0 : index
      %c0_12 = arith.constant 0 : index
      %13 = vector.load %arg8[%c0_11, %c0_12] : memref<512x128xf32, #tpu.memory_space<vmem>>, vector<512x128xf32>
      tpu.vector_store %arg8[%c0_11, %c0_12], %12 {strides = array<i32>} : memref<512x128xf32, #tpu.memory_space<vmem>>, vector<512x128xf32>,
    } else {
    }
    %c0 = arith.constant 0 : index
    %c0_1 = arith.constant 0 : index
    %3 = vector.load %arg8[%c0, %c0_1] : memref<512x128xf32, #tpu.memory_space<vmem>>, vector<512x128xf32>
    %c0_2 = arith.constant 0 : index
    %c0_3 = arith.constant 0 : index
    %4 = vector.load %arg3[%c0_2, %c0_3] : memref<512x256xbf16, #tpu.memory_space<vmem>>, vector<512x256xbf16>
    %c0_4 = arith.constant 0 : index
    %c0_5 = arith.constant 0 : index
    %5 = vector.load %arg4[%c0_4, %c0_5] : memref<256x128xbf16, #tpu.memory_space<vmem>>, vector<256x128xbf16>
    %cst = arith.constant dense<0.000000e+00> : vector<512x128xf32>
    %6 = tpu.matmul %4, %5, %cst {dimension_numbers = #tpu.dot_dimension_numbers<[1], [0], [0], [1], [0, 0, 1, 1], [], []>} : vector<512x256xbf16>, vector<256x128xbf16>, vector<512x128xf32> -> vector<512x128xf32>
    %7 = arith.addf %3, %6 : vector<512x128xf32>
    %c0_6 = arith.constant 0 : index
    %c0_7 = arith.constant 0 : index
    %8 = vector.load %arg8[%c0_6, %c0_7] : memref<512x128xf32, #tpu.memory_space<vmem>>, vector<512x128xf32>
    tpu.vector_store %arg8[%c0_6, %c0_7], %7 {strides = array<i32>} : memref<512x128xf32, #tpu.memory_space<vmem>>, vector<512x128xf32>,
    %c0_i32_8 = arith.constant 0 : i32
    %9 = arith.cmpi eq, %arg2, %c0_i32_8 : i32
    %10 = arith.extui %9 : i1 to i32
    %c0_i32_9 = arith.constant 0 : i32
    %11 = arith.cmpi ne, %10, %c0_i32_9 : i32
    scf.if %11 {
      %c0_10 = arith.constant 0 : index
      %c0_11 = arith.constant 0 : index
      %12 = vector.load %arg8[%c0_10, %c0_11] : memref<512x128xf32, #tpu.memory_space<vmem>>, vector<512x128xf32>
      %13 = arith.truncf %12 : vector<512x128xf32> to vector<512x128xbf16>
      %c0_12 = arith.constant 0 : index
      %c0_13 = arith.constant 0 : index
      %14 = vector.load %arg6[%c0_12, %c0_13] : memref<512x128xbf16, #tpu.memory_space<vmem>>, vector<512x128xbf16>
      tpu.vector_store %arg6[%c0_12, %c0_13], %13 {strides = array<i32>} : memref<512x128xbf16, #tpu.memory_space<vmem>>, vector<512x128xbf16>,
      %cst_14 = arith.constant dense<0.000000e+00> : vector<128xf32>
      %15 = vector.multi_reduction <add>, %12, %cst_14 [0] : vector<512x128xf32> to vector<128xf32>
      %16 = vector.shape_cast %15 : vector<128xf32> to vector<1x128xf32>
      %17 = arith.mulf %12, %12 : vector<512x128xf32>
      %cst_15 = arith.constant dense<0.000000e+00> : vector<128xf32>
      %18 = vector.multi_reduction <add>, %17, %cst_15 [0] : vector<512x128xf32> to vector<128xf32>
      %19 = vector.shape_cast %18 : vector<128xf32> to vector<1x128xf32>
      %20 = tpu.iota {dimensions = array<i32: 0>} : vector<8x128xi32>
      %c0_i32_16 = arith.constant 0 : i32
      %21 = vector.broadcast %c0_i32_16 : i32 to vector<8x128xi32>
      %22 = arith.cmpi eq, %20, %21 : vector<8x128xi32>
      %cst_17 = arith.constant 0.000000e+00 : f32
      %23 = vector.shape_cast %16 : vector<1x128xf32> to vector<1x128xf32>
      %24 = vector.broadcast %23 : vector<1x128xf32> to vector<8x128xf32>
      %25 = vector.broadcast %cst_17 : f32 to vector<8x128xf32>
      %26 = arith.select %22, %24, %25 : vector<8x128xi1>, vector<8x128xf32>
      %c1_i32 = arith.constant 1 : i32
      %27 = vector.broadcast %c1_i32 : i32 to vector<8x128xi32>
      %28 = arith.cmpi eq, %20, %27 : vector<8x128xi32>
      %cst_18 = arith.constant 0.000000e+00 : f32
      %29 = vector.shape_cast %19 : vector<1x128xf32> to vector<1x128xf32>
      %30 = vector.broadcast %29 : vector<1x128xf32> to vector<8x128xf32>
      %31 = vector.broadcast %cst_18 : f32 to vector<8x128xf32>
      %32 = arith.select %28, %30, %31 : vector<8x128xi1>, vector<8x128xf32>
      %33 = arith.addf %26, %32 : vector<8x128xf32>
      %34 = vector.shape_cast %33 : vector<8x128xf32> to vector<1x8x128xf32>
      %c0_19 = arith.constant 0 : index
      %c0_20 = arith.constant 0 : index
      %c0_21 = arith.constant 0 : index
      %35 = vector.load %arg7[%c0_19, %c0_20, %c0_21] : memref<1x8x128xf32, #tpu.memory_space<vmem>>, vector<1x8x128xf32>
      tpu.vector_store %arg7[%c0_19, %c0_20, %c0_21], %34 {strides = array<i32>} : memref<1x8x128xf32, #tpu.memory_space<vmem>>, vector<1x8x128xf32>,
    } else {
    }
    return
  }
  func.func @transform_0(%arg0: i32, %arg1: i32, %arg2: i32) -> (i32, i32) {
    %c0_i32 = arith.constant 0 : i32
    return %arg0, %arg2 : i32, i32
  }
  func.func @transform_1(%arg0: i32, %arg1: i32, %arg2: i32) -> (i32, i32) {
    %c0_i32 = arith.constant 0 : i32
    return %arg2, %arg1 : i32, i32
  }
  func.func @transform_2(%arg0: i32, %arg1: i32, %arg2: i32) -> (i32, i32) {
    %c0_i32 = arith.constant 0 : i32
    %c0_i32_0 = arith.constant 0 : i32
    return %c0_i32, %arg1 : i32, i32
  }
  func.func @transform_3(%arg0: i32, %arg1: i32, %arg2: i32) -> (i32, i32) {
    %c0_i32 = arith.constant 0 : i32
    return %arg0, %arg1 : i32, i32
  }
  func.func @transform_4(%arg0: i32, %arg1: i32, %arg2: i32) -> (i32, i32, i32) {
    %c0_i32 = arith.constant 0 : i32
    %c0_i32_0 = arith.constant 0 : i32
    return %arg0, %c0_i32, %arg1 : i32, i32, i32
  }
}

module attributes {stable_mosaic.version = 11 : i64} {
  func.func @_bn_apply_lrelu_kernel(%arg0: i32, %arg1: memref<512x128xbf16, #tpu.memory_space<vmem>>, %arg2: memref<1x128xf32, #tpu.memory_space<vmem>>, %arg3: memref<1x128xf32, #tpu.memory_space<vmem>>, %arg4: memref<512x128xbf16, #tpu.memory_space<vmem>>) attributes {dimension_semantics = [#tpu.dimension_semantics<parallel>], iteration_bounds = array<i64: 1>, scalar_prefetch = 0 : i64, scratch_operands = 0 : i64, tpu.core_type = #tpu.core_type<tc>, window_params = [{transform_indices = @transform_0, window_bounds = array<i64: 512, 128>}, {pipeline_mode = #tpu.pipeline_mode<synchronous>, transform_indices = @transform_1, window_bounds = array<i64: 1, 128>}, {pipeline_mode = #tpu.pipeline_mode<synchronous>, transform_indices = @transform_2, window_bounds = array<i64: 1, 128>}, {transform_indices = @transform_3, window_bounds = array<i64: 512, 128>}]} {
    %c0 = arith.constant 0 : index
    %c0_0 = arith.constant 0 : index
    %0 = vector.load %arg1[%c0, %c0_0] : memref<512x128xbf16, #tpu.memory_space<vmem>>, vector<512x128xbf16>
    %1 = arith.extf %0 : vector<512x128xbf16> to vector<512x128xf32>
    %c0_1 = arith.constant 0 : index
    %c0_2 = arith.constant 0 : index
    %2 = vector.load %arg2[%c0_1, %c0_2] : memref<1x128xf32, #tpu.memory_space<vmem>>, vector<1x128xf32>
    %3 = vector.broadcast %2 : vector<1x128xf32> to vector<512x128xf32>
    %4 = arith.mulf %1, %3 : vector<512x128xf32>
    %c0_3 = arith.constant 0 : index
    %c0_4 = arith.constant 0 : index
    %5 = vector.load %arg3[%c0_3, %c0_4] : memref<1x128xf32, #tpu.memory_space<vmem>>, vector<1x128xf32>
    %6 = vector.broadcast %5 : vector<1x128xf32> to vector<512x128xf32>
    %7 = arith.addf %4, %6 : vector<512x128xf32>
    %cst = arith.constant 0.000000e+00 : f32
    %8 = vector.broadcast %cst : f32 to vector<512x128xf32>
    %9 = arith.cmpf oge, %7, %8 : vector<512x128xf32>
    %cst_5 = arith.constant 2.000000e-01 : f32
    %10 = vector.broadcast %cst_5 : f32 to vector<512x128xf32>
    %11 = arith.mulf %10, %7 : vector<512x128xf32>
    %12 = arith.select %9, %7, %11 : vector<512x128xi1>, vector<512x128xf32>
    %13 = arith.truncf %12 : vector<512x128xf32> to vector<512x128xbf16>
    %c0_6 = arith.constant 0 : index
    %c0_7 = arith.constant 0 : index
    %14 = vector.load %arg4[%c0_6, %c0_7] : memref<512x128xbf16, #tpu.memory_space<vmem>>, vector<512x128xbf16>
    tpu.vector_store %arg4[%c0_6, %c0_7], %13 {strides = array<i32>} : memref<512x128xbf16, #tpu.memory_space<vmem>>, vector<512x128xbf16>,
    return
  }
  func.func @transform_0(%arg0: i32) -> (i32, i32) {
    %c0_i32 = arith.constant 0 : i32
    %c0_i32_0 = arith.constant 0 : i32
    return %arg0, %c0_i32 : i32, i32
  }
  func.func @transform_1(%arg0: i32) -> (i32, i32) {
    %c0_i32 = arith.constant 0 : i32
    %c0_i32_0 = arith.constant 0 : i32
    %c0_i32_1 = arith.constant 0 : i32
    return %c0_i32, %c0_i32_0 : i32, i32
  }
  func.func @transform_2(%arg0: i32) -> (i32, i32) {
    %c0_i32 = arith.constant 0 : i32
    %c0_i32_0 = arith.constant 0 : i32
    %c0_i32_1 = arith.constant 0 : i32
    return %c0_i32, %c0_i32_0 : i32, i32
  }
  func.func @transform_3(%arg0: i32) -> (i32, i32) {
    %c0_i32 = arith.constant 0 : i32
    %c0_i32_0 = arith.constant 0 : i32
    return %arg0, %c0_i32 : i32, i32
  }
}

module attributes {stable_mosaic.version = 11 : i64} {
  func.func @_matmul_fused_kernel(%arg0: i32, %arg1: i32, %arg2: i32, %arg3: memref<128x512xbf16, #tpu.memory_space<vmem>>, %arg4: memref<512x128xbf16, #tpu.memory_space<vmem>>, %arg5: memref<1x128xf32, #tpu.memory_space<vmem>>, %arg6: memref<128x128xbf16, #tpu.memory_space<vmem>>, %arg7: memref<1x8x128xf32, #tpu.memory_space<vmem>>, %arg8: memref<128x128xf32, #tpu.memory_space<vmem>>) attributes {dimension_semantics = [#tpu.dimension_semantics<parallel>, #tpu.dimension_semantics<parallel>, #tpu.dimension_semantics<arbitrary>], iteration_bounds = array<i64: 1, 1, 1>, scalar_prefetch = 0 : i64, scratch_operands = 1 : i64, tpu.core_type = #tpu.core_type<tc>, window_params = [{transform_indices = @transform_0, window_bounds = array<i64: 128, 512>}, {transform_indices = @transform_1, window_bounds = array<i64: 512, 128>}, {transform_indices = @transform_2, window_bounds = array<i64: 1, 128>}, {transform_indices = @transform_3, window_bounds = array<i64: 128, 128>}, {transform_indices = @transform_4, window_bounds = array<i64: 1, 8, 128>}]} {
    %c0_i32 = arith.constant 0 : i32
    %0 = arith.cmpi eq, %arg2, %c0_i32 : i32
    %1 = arith.extui %0 : i1 to i32
    %c0_i32_0 = arith.constant 0 : i32
    %2 = arith.cmpi ne, %1, %c0_i32_0 : i32
    scf.if %2 {
      %cst_10 = arith.constant 0.000000e+00 : f32
      %12 = vector.broadcast %cst_10 : f32 to vector<128x128xf32>
      %c0_11 = arith.constant 0 : index
      %c0_12 = arith.constant 0 : index
      %13 = vector.load %arg8[%c0_11, %c0_12] : memref<128x128xf32, #tpu.memory_space<vmem>>, vector<128x128xf32>
      tpu.vector_store %arg8[%c0_11, %c0_12], %12 {strides = array<i32>} : memref<128x128xf32, #tpu.memory_space<vmem>>, vector<128x128xf32>,
    } else {
    }
    %c0 = arith.constant 0 : index
    %c0_1 = arith.constant 0 : index
    %3 = vector.load %arg8[%c0, %c0_1] : memref<128x128xf32, #tpu.memory_space<vmem>>, vector<128x128xf32>
    %c0_2 = arith.constant 0 : index
    %c0_3 = arith.constant 0 : index
    %4 = vector.load %arg3[%c0_2, %c0_3] : memref<128x512xbf16, #tpu.memory_space<vmem>>, vector<128x512xbf16>
    %c0_4 = arith.constant 0 : index
    %c0_5 = arith.constant 0 : index
    %5 = vector.load %arg4[%c0_4, %c0_5] : memref<512x128xbf16, #tpu.memory_space<vmem>>, vector<512x128xbf16>
    %cst = arith.constant dense<0.000000e+00> : vector<128x128xf32>
    %6 = tpu.matmul %4, %5, %cst {dimension_numbers = #tpu.dot_dimension_numbers<[1], [0], [0], [1], [0, 0, 1, 1], [], []>} : vector<128x512xbf16>, vector<512x128xbf16>, vector<128x128xf32> -> vector<128x128xf32>
    %7 = arith.addf %3, %6 : vector<128x128xf32>
    %c0_6 = arith.constant 0 : index
    %c0_7 = arith.constant 0 : index
    %8 = vector.load %arg8[%c0_6, %c0_7] : memref<128x128xf32, #tpu.memory_space<vmem>>, vector<128x128xf32>
    tpu.vector_store %arg8[%c0_6, %c0_7], %7 {strides = array<i32>} : memref<128x128xf32, #tpu.memory_space<vmem>>, vector<128x128xf32>,
    %c0_i32_8 = arith.constant 0 : i32
    %9 = arith.cmpi eq, %arg2, %c0_i32_8 : i32
    %10 = arith.extui %9 : i1 to i32
    %c0_i32_9 = arith.constant 0 : i32
    %11 = arith.cmpi ne, %10, %c0_i32_9 : i32
    scf.if %11 {
      %c0_10 = arith.constant 0 : index
      %c0_11 = arith.constant 0 : index
      %12 = vector.load %arg8[%c0_10, %c0_11] : memref<128x128xf32, #tpu.memory_space<vmem>>, vector<128x128xf32>
      %13 = arith.truncf %12 : vector<128x128xf32> to vector<128x128xbf16>
      %c0_12 = arith.constant 0 : index
      %c0_13 = arith.constant 0 : index
      %14 = vector.load %arg6[%c0_12, %c0_13] : memref<128x128xbf16, #tpu.memory_space<vmem>>, vector<128x128xbf16>
      tpu.vector_store %arg6[%c0_12, %c0_13], %13 {strides = array<i32>} : memref<128x128xbf16, #tpu.memory_space<vmem>>, vector<128x128xbf16>,
      %cst_14 = arith.constant dense<0.000000e+00> : vector<128xf32>
      %15 = vector.multi_reduction <add>, %12, %cst_14 [0] : vector<128x128xf32> to vector<128xf32>
      %16 = vector.shape_cast %15 : vector<128xf32> to vector<1x128xf32>
      %17 = arith.mulf %12, %12 : vector<128x128xf32>
      %cst_15 = arith.constant dense<0.000000e+00> : vector<128xf32>
      %18 = vector.multi_reduction <add>, %17, %cst_15 [0] : vector<128x128xf32> to vector<128xf32>
      %19 = vector.shape_cast %18 : vector<128xf32> to vector<1x128xf32>
      %20 = tpu.iota {dimensions = array<i32: 0>} : vector<8x128xi32>
      %c0_i32_16 = arith.constant 0 : i32
      %21 = vector.broadcast %c0_i32_16 : i32 to vector<8x128xi32>
      %22 = arith.cmpi eq, %20, %21 : vector<8x128xi32>
      %cst_17 = arith.constant 0.000000e+00 : f32
      %23 = vector.shape_cast %16 : vector<1x128xf32> to vector<1x128xf32>
      %24 = vector.broadcast %23 : vector<1x128xf32> to vector<8x128xf32>
      %25 = vector.broadcast %cst_17 : f32 to vector<8x128xf32>
      %26 = arith.select %22, %24, %25 : vector<8x128xi1>, vector<8x128xf32>
      %c1_i32 = arith.constant 1 : i32
      %27 = vector.broadcast %c1_i32 : i32 to vector<8x128xi32>
      %28 = arith.cmpi eq, %20, %27 : vector<8x128xi32>
      %cst_18 = arith.constant 0.000000e+00 : f32
      %29 = vector.shape_cast %19 : vector<1x128xf32> to vector<1x128xf32>
      %30 = vector.broadcast %29 : vector<1x128xf32> to vector<8x128xf32>
      %31 = vector.broadcast %cst_18 : f32 to vector<8x128xf32>
      %32 = arith.select %28, %30, %31 : vector<8x128xi1>, vector<8x128xf32>
      %33 = arith.addf %26, %32 : vector<8x128xf32>
      %34 = vector.shape_cast %33 : vector<8x128xf32> to vector<1x8x128xf32>
      %c0_19 = arith.constant 0 : index
      %c0_20 = arith.constant 0 : index
      %c0_21 = arith.constant 0 : index
      %35 = vector.load %arg7[%c0_19, %c0_20, %c0_21] : memref<1x8x128xf32, #tpu.memory_space<vmem>>, vector<1x8x128xf32>
      tpu.vector_store %arg7[%c0_19, %c0_20, %c0_21], %34 {strides = array<i32>} : memref<1x8x128xf32, #tpu.memory_space<vmem>>, vector<1x8x128xf32>,
    } else {
    }
    return
  }
  func.func @transform_0(%arg0: i32, %arg1: i32, %arg2: i32) -> (i32, i32) {
    %c0_i32 = arith.constant 0 : i32
    return %arg0, %arg2 : i32, i32
  }
  func.func @transform_1(%arg0: i32, %arg1: i32, %arg2: i32) -> (i32, i32) {
    %c0_i32 = arith.constant 0 : i32
    return %arg2, %arg1 : i32, i32
  }
  func.func @transform_2(%arg0: i32, %arg1: i32, %arg2: i32) -> (i32, i32) {
    %c0_i32 = arith.constant 0 : i32
    %c0_i32_0 = arith.constant 0 : i32
    return %c0_i32, %arg1 : i32, i32
  }
  func.func @transform_3(%arg0: i32, %arg1: i32, %arg2: i32) -> (i32, i32) {
    %c0_i32 = arith.constant 0 : i32
    return %arg0, %arg1 : i32, i32
  }
  func.func @transform_4(%arg0: i32, %arg1: i32, %arg2: i32) -> (i32, i32, i32) {
    %c0_i32 = arith.constant 0 : i32
    %c0_i32_0 = arith.constant 0 : i32
    return %arg0, %c0_i32, %arg1 : i32, i32, i32
  }
}

module attributes {stable_mosaic.version = 11 : i64} {
  func.func @_bn_apply_lrelu_kernel(%arg0: i32, %arg1: memref<128x128xbf16, #tpu.memory_space<vmem>>, %arg2: memref<1x128xf32, #tpu.memory_space<vmem>>, %arg3: memref<1x128xf32, #tpu.memory_space<vmem>>, %arg4: memref<128x128xbf16, #tpu.memory_space<vmem>>) attributes {dimension_semantics = [#tpu.dimension_semantics<parallel>], iteration_bounds = array<i64: 1>, scalar_prefetch = 0 : i64, scratch_operands = 0 : i64, tpu.core_type = #tpu.core_type<tc>, window_params = [{transform_indices = @transform_0, window_bounds = array<i64: 128, 128>}, {pipeline_mode = #tpu.pipeline_mode<synchronous>, transform_indices = @transform_1, window_bounds = array<i64: 1, 128>}, {pipeline_mode = #tpu.pipeline_mode<synchronous>, transform_indices = @transform_2, window_bounds = array<i64: 1, 128>}, {transform_indices = @transform_3, window_bounds = array<i64: 128, 128>}]} {
    %c0 = arith.constant 0 : index
    %c0_0 = arith.constant 0 : index
    %0 = vector.load %arg1[%c0, %c0_0] : memref<128x128xbf16, #tpu.memory_space<vmem>>, vector<128x128xbf16>
    %1 = arith.extf %0 : vector<128x128xbf16> to vector<128x128xf32>
    %c0_1 = arith.constant 0 : index
    %c0_2 = arith.constant 0 : index
    %2 = vector.load %arg2[%c0_1, %c0_2] : memref<1x128xf32, #tpu.memory_space<vmem>>, vector<1x128xf32>
    %3 = vector.broadcast %2 : vector<1x128xf32> to vector<128x128xf32>
    %4 = arith.mulf %1, %3 : vector<128x128xf32>
    %c0_3 = arith.constant 0 : index
    %c0_4 = arith.constant 0 : index
    %5 = vector.load %arg3[%c0_3, %c0_4] : memref<1x128xf32, #tpu.memory_space<vmem>>, vector<1x128xf32>
    %6 = vector.broadcast %5 : vector<1x128xf32> to vector<128x128xf32>
    %7 = arith.addf %4, %6 : vector<128x128xf32>
    %cst = arith.constant 0.000000e+00 : f32
    %8 = vector.broadcast %cst : f32 to vector<128x128xf32>
    %9 = arith.cmpf oge, %7, %8 : vector<128x128xf32>
    %cst_5 = arith.constant 2.000000e-01 : f32
    %10 = vector.broadcast %cst_5 : f32 to vector<128x128xf32>
    %11 = arith.mulf %10, %7 : vector<128x128xf32>
    %12 = arith.select %9, %7, %11 : vector<128x128xi1>, vector<128x128xf32>
    %13 = arith.truncf %12 : vector<128x128xf32> to vector<128x128xbf16>
    %c0_6 = arith.constant 0 : index
    %c0_7 = arith.constant 0 : index
    %14 = vector.load %arg4[%c0_6, %c0_7] : memref<128x128xbf16, #tpu.memory_space<vmem>>, vector<128x128xbf16>
    tpu.vector_store %arg4[%c0_6, %c0_7], %13 {strides = array<i32>} : memref<128x128xbf16, #tpu.memory_space<vmem>>, vector<128x128xbf16>,
    return
  }
  func.func @transform_0(%arg0: i32) -> (i32, i32) {
    %c0_i32 = arith.constant 0 : i32
    %c0_i32_0 = arith.constant 0 : i32
    return %arg0, %c0_i32 : i32, i32
  }
  func.func @transform_1(%arg0: i32) -> (i32, i32) {
    %c0_i32 = arith.constant 0 : i32
    %c0_i32_0 = arith.constant 0 : i32
    %c0_i32_1 = arith.constant 0 : i32
    return %c0_i32, %c0_i32_0 : i32, i32
  }
  func.func @transform_2(%arg0: i32) -> (i32, i32) {
    %c0_i32 = arith.constant 0 : i32
    %c0_i32_0 = arith.constant 0 : i32
    %c0_i32_1 = arith.constant 0 : i32
    return %c0_i32, %c0_i32_0 : i32, i32
  }
  func.func @transform_3(%arg0: i32) -> (i32, i32) {
    %c0_i32 = arith.constant 0 : i32
    %c0_i32_0 = arith.constant 0 : i32
    return %arg0, %c0_i32 : i32, i32
  }
}

module attributes {stable_mosaic.version = 11 : i64} {
  func.func @_matmul_fused_kernel(%arg0: i32, %arg1: i32, %arg2: i32, %arg3: memref<128x512xbf16, #tpu.memory_space<vmem>>, %arg4: memref<512x128xbf16, #tpu.memory_space<vmem>>, %arg5: memref<1x128xf32, #tpu.memory_space<vmem>>, %arg6: memref<128x128xbf16, #tpu.memory_space<vmem>>, %arg7: memref<1x8x128xf32, #tpu.memory_space<vmem>>, %arg8: memref<128x128xf32, #tpu.memory_space<vmem>>) attributes {dimension_semantics = [#tpu.dimension_semantics<parallel>, #tpu.dimension_semantics<parallel>, #tpu.dimension_semantics<arbitrary>], iteration_bounds = array<i64: 1, 1, 2>, scalar_prefetch = 0 : i64, scratch_operands = 1 : i64, tpu.core_type = #tpu.core_type<tc>, window_params = [{transform_indices = @transform_0, window_bounds = array<i64: 128, 512>}, {transform_indices = @transform_1, window_bounds = array<i64: 512, 128>}, {transform_indices = @transform_2, window_bounds = array<i64: 1, 128>}, {transform_indices = @transform_3, window_bounds = array<i64: 128, 128>}, {transform_indices = @transform_4, window_bounds = array<i64: 1, 8, 128>}]} {
    %c0_i32 = arith.constant 0 : i32
    %0 = arith.cmpi eq, %arg2, %c0_i32 : i32
    %1 = arith.extui %0 : i1 to i32
    %c0_i32_0 = arith.constant 0 : i32
    %2 = arith.cmpi ne, %1, %c0_i32_0 : i32
    scf.if %2 {
      %cst_9 = arith.constant 0.000000e+00 : f32
      %12 = vector.broadcast %cst_9 : f32 to vector<128x128xf32>
      %c0_10 = arith.constant 0 : index
      %c0_11 = arith.constant 0 : index
      %13 = vector.load %arg8[%c0_10, %c0_11] : memref<128x128xf32, #tpu.memory_space<vmem>>, vector<128x128xf32>
      tpu.vector_store %arg8[%c0_10, %c0_11], %12 {strides = array<i32>} : memref<128x128xf32, #tpu.memory_space<vmem>>, vector<128x128xf32>,
    } else {
    }
    %c0 = arith.constant 0 : index
    %c0_1 = arith.constant 0 : index
    %3 = vector.load %arg8[%c0, %c0_1] : memref<128x128xf32, #tpu.memory_space<vmem>>, vector<128x128xf32>
    %c0_2 = arith.constant 0 : index
    %c0_3 = arith.constant 0 : index
    %4 = vector.load %arg3[%c0_2, %c0_3] : memref<128x512xbf16, #tpu.memory_space<vmem>>, vector<128x512xbf16>
    %c0_4 = arith.constant 0 : index
    %c0_5 = arith.constant 0 : index
    %5 = vector.load %arg4[%c0_4, %c0_5] : memref<512x128xbf16, #tpu.memory_space<vmem>>, vector<512x128xbf16>
    %cst = arith.constant dense<0.000000e+00> : vector<128x128xf32>
    %6 = tpu.matmul %4, %5, %cst {dimension_numbers = #tpu.dot_dimension_numbers<[1], [0], [0], [1], [0, 0, 1, 1], [], []>} : vector<128x512xbf16>, vector<512x128xbf16>, vector<128x128xf32> -> vector<128x128xf32>
    %7 = arith.addf %3, %6 : vector<128x128xf32>
    %c0_6 = arith.constant 0 : index
    %c0_7 = arith.constant 0 : index
    %8 = vector.load %arg8[%c0_6, %c0_7] : memref<128x128xf32, #tpu.memory_space<vmem>>, vector<128x128xf32>
    tpu.vector_store %arg8[%c0_6, %c0_7], %7 {strides = array<i32>} : memref<128x128xf32, #tpu.memory_space<vmem>>, vector<128x128xf32>,
    %c1_i32 = arith.constant 1 : i32
    %9 = arith.cmpi eq, %arg2, %c1_i32 : i32
    %10 = arith.extui %9 : i1 to i32
    %c0_i32_8 = arith.constant 0 : i32
    %11 = arith.cmpi ne, %10, %c0_i32_8 : i32
    scf.if %11 {
      %c0_9 = arith.constant 0 : index
      %c0_10 = arith.constant 0 : index
      %12 = vector.load %arg8[%c0_9, %c0_10] : memref<128x128xf32, #tpu.memory_space<vmem>>, vector<128x128xf32>
      %13 = arith.truncf %12 : vector<128x128xf32> to vector<128x128xbf16>
      %c0_11 = arith.constant 0 : index
      %c0_12 = arith.constant 0 : index
      %14 = vector.load %arg6[%c0_11, %c0_12] : memref<128x128xbf16, #tpu.memory_space<vmem>>, vector<128x128xbf16>
      tpu.vector_store %arg6[%c0_11, %c0_12], %13 {strides = array<i32>} : memref<128x128xbf16, #tpu.memory_space<vmem>>, vector<128x128xbf16>,
      %cst_13 = arith.constant dense<0.000000e+00> : vector<128xf32>
      %15 = vector.multi_reduction <add>, %12, %cst_13 [0] : vector<128x128xf32> to vector<128xf32>
      %16 = vector.shape_cast %15 : vector<128xf32> to vector<1x128xf32>
      %17 = arith.mulf %12, %12 : vector<128x128xf32>
      %cst_14 = arith.constant dense<0.000000e+00> : vector<128xf32>
      %18 = vector.multi_reduction <add>, %17, %cst_14 [0] : vector<128x128xf32> to vector<128xf32>
      %19 = vector.shape_cast %18 : vector<128xf32> to vector<1x128xf32>
      %20 = tpu.iota {dimensions = array<i32: 0>} : vector<8x128xi32>
      %c0_i32_15 = arith.constant 0 : i32
      %21 = vector.broadcast %c0_i32_15 : i32 to vector<8x128xi32>
      %22 = arith.cmpi eq, %20, %21 : vector<8x128xi32>
      %cst_16 = arith.constant 0.000000e+00 : f32
      %23 = vector.shape_cast %16 : vector<1x128xf32> to vector<1x128xf32>
      %24 = vector.broadcast %23 : vector<1x128xf32> to vector<8x128xf32>
      %25 = vector.broadcast %cst_16 : f32 to vector<8x128xf32>
      %26 = arith.select %22, %24, %25 : vector<8x128xi1>, vector<8x128xf32>
      %c1_i32_17 = arith.constant 1 : i32
      %27 = vector.broadcast %c1_i32_17 : i32 to vector<8x128xi32>
      %28 = arith.cmpi eq, %20, %27 : vector<8x128xi32>
      %cst_18 = arith.constant 0.000000e+00 : f32
      %29 = vector.shape_cast %19 : vector<1x128xf32> to vector<1x128xf32>
      %30 = vector.broadcast %29 : vector<1x128xf32> to vector<8x128xf32>
      %31 = vector.broadcast %cst_18 : f32 to vector<8x128xf32>
      %32 = arith.select %28, %30, %31 : vector<8x128xi1>, vector<8x128xf32>
      %33 = arith.addf %26, %32 : vector<8x128xf32>
      %34 = vector.shape_cast %33 : vector<8x128xf32> to vector<1x8x128xf32>
      %c0_19 = arith.constant 0 : index
      %c0_20 = arith.constant 0 : index
      %c0_21 = arith.constant 0 : index
      %35 = vector.load %arg7[%c0_19, %c0_20, %c0_21] : memref<1x8x128xf32, #tpu.memory_space<vmem>>, vector<1x8x128xf32>
      tpu.vector_store %arg7[%c0_19, %c0_20, %c0_21], %34 {strides = array<i32>} : memref<1x8x128xf32, #tpu.memory_space<vmem>>, vector<1x8x128xf32>,
    } else {
    }
    return
  }
  func.func @transform_0(%arg0: i32, %arg1: i32, %arg2: i32) -> (i32, i32) {
    %c0_i32 = arith.constant 0 : i32
    return %arg0, %arg2 : i32, i32
  }
  func.func @transform_1(%arg0: i32, %arg1: i32, %arg2: i32) -> (i32, i32) {
    %c0_i32 = arith.constant 0 : i32
    return %arg2, %arg1 : i32, i32
  }
  func.func @transform_2(%arg0: i32, %arg1: i32, %arg2: i32) -> (i32, i32) {
    %c0_i32 = arith.constant 0 : i32
    %c0_i32_0 = arith.constant 0 : i32
    return %c0_i32, %arg1 : i32, i32
  }
  func.func @transform_3(%arg0: i32, %arg1: i32, %arg2: i32) -> (i32, i32) {
    %c0_i32 = arith.constant 0 : i32
    return %arg0, %arg1 : i32, i32
  }
  func.func @transform_4(%arg0: i32, %arg1: i32, %arg2: i32) -> (i32, i32, i32) {
    %c0_i32 = arith.constant 0 : i32
    %c0_i32_0 = arith.constant 0 : i32
    return %arg0, %c0_i32, %arg1 : i32, i32, i32
  }
}

module attributes {stable_mosaic.version = 11 : i64} {
  func.func @_matmul_fused_kernel(%arg0: i32, %arg1: i32, %arg2: i32, %arg3: memref<128x512xbf16, #tpu.memory_space<vmem>>, %arg4: memref<512x128xbf16, #tpu.memory_space<vmem>>, %arg5: memref<1x128xf32, #tpu.memory_space<vmem>>, %arg6: memref<128x128xf32, #tpu.memory_space<vmem>>, %arg7: memref<128x128xf32, #tpu.memory_space<vmem>>) attributes {dimension_semantics = [#tpu.dimension_semantics<parallel>, #tpu.dimension_semantics<parallel>, #tpu.dimension_semantics<arbitrary>], iteration_bounds = array<i64: 1, 1, 4>, scalar_prefetch = 0 : i64, scratch_operands = 1 : i64, tpu.core_type = #tpu.core_type<tc>, window_params = [{transform_indices = @transform_0, window_bounds = array<i64: 128, 512>}, {transform_indices = @transform_1, window_bounds = array<i64: 512, 128>}, {transform_indices = @transform_2, window_bounds = array<i64: 1, 128>}, {transform_indices = @transform_3, window_bounds = array<i64: 128, 128>}]} {
    %c0_i32 = arith.constant 0 : i32
    %0 = arith.cmpi eq, %arg2, %c0_i32 : i32
    %1 = arith.extui %0 : i1 to i32
    %c0_i32_0 = arith.constant 0 : i32
    %2 = arith.cmpi ne, %1, %c0_i32_0 : i32
    scf.if %2 {
      %cst_9 = arith.constant 0.000000e+00 : f32
      %12 = vector.broadcast %cst_9 : f32 to vector<128x128xf32>
      %c0_10 = arith.constant 0 : index
      %c0_11 = arith.constant 0 : index
      %13 = vector.load %arg7[%c0_10, %c0_11] : memref<128x128xf32, #tpu.memory_space<vmem>>, vector<128x128xf32>
      tpu.vector_store %arg7[%c0_10, %c0_11], %12 {strides = array<i32>} : memref<128x128xf32, #tpu.memory_space<vmem>>, vector<128x128xf32>,
    } else {
    }
    %c0 = arith.constant 0 : index
    %c0_1 = arith.constant 0 : index
    %3 = vector.load %arg7[%c0, %c0_1] : memref<128x128xf32, #tpu.memory_space<vmem>>, vector<128x128xf32>
    %c0_2 = arith.constant 0 : index
    %c0_3 = arith.constant 0 : index
    %4 = vector.load %arg3[%c0_2, %c0_3] : memref<128x512xbf16, #tpu.memory_space<vmem>>, vector<128x512xbf16>
    %c0_4 = arith.constant 0 : index
    %c0_5 = arith.constant 0 : index
    %5 = vector.load %arg4[%c0_4, %c0_5] : memref<512x128xbf16, #tpu.memory_space<vmem>>, vector<512x128xbf16>
    %cst = arith.constant dense<0.000000e+00> : vector<128x128xf32>
    %6 = tpu.matmul %4, %5, %cst {dimension_numbers = #tpu.dot_dimension_numbers<[1], [0], [0], [1], [0, 0, 1, 1], [], []>} : vector<128x512xbf16>, vector<512x128xbf16>, vector<128x128xf32> -> vector<128x128xf32>
    %7 = arith.addf %3, %6 : vector<128x128xf32>
    %c0_6 = arith.constant 0 : index
    %c0_7 = arith.constant 0 : index
    %8 = vector.load %arg7[%c0_6, %c0_7] : memref<128x128xf32, #tpu.memory_space<vmem>>, vector<128x128xf32>
    tpu.vector_store %arg7[%c0_6, %c0_7], %7 {strides = array<i32>} : memref<128x128xf32, #tpu.memory_space<vmem>>, vector<128x128xf32>,
    %c3_i32 = arith.constant 3 : i32
    %9 = arith.cmpi eq, %arg2, %c3_i32 : i32
    %10 = arith.extui %9 : i1 to i32
    %c0_i32_8 = arith.constant 0 : i32
    %11 = arith.cmpi ne, %10, %c0_i32_8 : i32
    scf.if %11 {
      %c0_9 = arith.constant 0 : index
      %c0_10 = arith.constant 0 : index
      %12 = vector.load %arg7[%c0_9, %c0_10] : memref<128x128xf32, #tpu.memory_space<vmem>>, vector<128x128xf32>
      %c0_11 = arith.constant 0 : index
      %c0_12 = arith.constant 0 : index
      %13 = vector.load %arg5[%c0_11, %c0_12] : memref<1x128xf32, #tpu.memory_space<vmem>>, vector<1x128xf32>
      %14 = vector.broadcast %13 : vector<1x128xf32> to vector<128x128xf32>
      %15 = arith.addf %12, %14 : vector<128x128xf32>
      %c0_13 = arith.constant 0 : index
      %c0_14 = arith.constant 0 : index
      %16 = vector.load %arg6[%c0_13, %c0_14] : memref<128x128xf32, #tpu.memory_space<vmem>>, vector<128x128xf32>
      tpu.vector_store %arg6[%c0_13, %c0_14], %15 {strides = array<i32>} : memref<128x128xf32, #tpu.memory_space<vmem>>, vector<128x128xf32>,
    } else {
    }
    return
  }
  func.func @transform_0(%arg0: i32, %arg1: i32, %arg2: i32) -> (i32, i32) {
    %c0_i32 = arith.constant 0 : i32
    return %arg0, %arg2 : i32, i32
  }
  func.func @transform_1(%arg0: i32, %arg1: i32, %arg2: i32) -> (i32, i32) {
    %c0_i32 = arith.constant 0 : i32
    return %arg2, %arg1 : i32, i32
  }
  func.func @transform_2(%arg0: i32, %arg1: i32, %arg2: i32) -> (i32, i32) {
    %c0_i32 = arith.constant 0 : i32
    %c0_i32_0 = arith.constant 0 : i32
    return %c0_i32, %arg1 : i32, i32
  }
  func.func @transform_3(%arg0: i32, %arg1: i32, %arg2: i32) -> (i32, i32) {
    %c0_i32 = arith.constant 0 : i32
    return %arg0, %arg1 : i32, i32
  }
}

module attributes {stable_mosaic.version = 11 : i64} {
  func.func @_matmul_fused_kernel(%arg0: i32, %arg1: i32, %arg2: i32, %arg3: memref<512x128xbf16, #tpu.memory_space<vmem>>, %arg4: memref<128x128xbf16, #tpu.memory_space<vmem>>, %arg5: memref<1x128xf32, #tpu.memory_space<vmem>>, %arg6: memref<512x128xbf16, #tpu.memory_space<vmem>>, %arg7: memref<512x128xf32, #tpu.memory_space<vmem>>) attributes {dimension_semantics = [#tpu.dimension_semantics<parallel>, #tpu.dimension_semantics<parallel>, #tpu.dimension_semantics<arbitrary>], iteration_bounds = array<i64: 1, 1, 1>, scalar_prefetch = 0 : i64, scratch_operands = 1 : i64, tpu.core_type = #tpu.core_type<tc>, window_params = [{transform_indices = @transform_0, window_bounds = array<i64: 512, 128>}, {transform_indices = @transform_1, window_bounds = array<i64: 128, 128>}, {transform_indices = @transform_2, window_bounds = array<i64: 1, 128>}, {transform_indices = @transform_3, window_bounds = array<i64: 512, 128>}]} {
    %c0_i32 = arith.constant 0 : i32
    %0 = arith.cmpi eq, %arg2, %c0_i32 : i32
    %1 = arith.extui %0 : i1 to i32
    %c0_i32_0 = arith.constant 0 : i32
    %2 = arith.cmpi ne, %1, %c0_i32_0 : i32
    scf.if %2 {
      %cst_10 = arith.constant 0.000000e+00 : f32
      %12 = vector.broadcast %cst_10 : f32 to vector<512x128xf32>
      %c0_11 = arith.constant 0 : index
      %c0_12 = arith.constant 0 : index
      %13 = vector.load %arg7[%c0_11, %c0_12] : memref<512x128xf32, #tpu.memory_space<vmem>>, vector<512x128xf32>
      tpu.vector_store %arg7[%c0_11, %c0_12], %12 {strides = array<i32>} : memref<512x128xf32, #tpu.memory_space<vmem>>, vector<512x128xf32>,
    } else {
    }
    %c0 = arith.constant 0 : index
    %c0_1 = arith.constant 0 : index
    %3 = vector.load %arg7[%c0, %c0_1] : memref<512x128xf32, #tpu.memory_space<vmem>>, vector<512x128xf32>
    %c0_2 = arith.constant 0 : index
    %c0_3 = arith.constant 0 : index
    %4 = vector.load %arg3[%c0_2, %c0_3] : memref<512x128xbf16, #tpu.memory_space<vmem>>, vector<512x128xbf16>
    %c0_4 = arith.constant 0 : index
    %c0_5 = arith.constant 0 : index
    %5 = vector.load %arg4[%c0_4, %c0_5] : memref<128x128xbf16, #tpu.memory_space<vmem>>, vector<128x128xbf16>
    %cst = arith.constant dense<0.000000e+00> : vector<512x128xf32>
    %6 = tpu.matmul %4, %5, %cst {dimension_numbers = #tpu.dot_dimension_numbers<[1], [0], [0], [1], [0, 0, 1, 1], [], []>} : vector<512x128xbf16>, vector<128x128xbf16>, vector<512x128xf32> -> vector<512x128xf32>
    %7 = arith.addf %3, %6 : vector<512x128xf32>
    %c0_6 = arith.constant 0 : index
    %c0_7 = arith.constant 0 : index
    %8 = vector.load %arg7[%c0_6, %c0_7] : memref<512x128xf32, #tpu.memory_space<vmem>>, vector<512x128xf32>
    tpu.vector_store %arg7[%c0_6, %c0_7], %7 {strides = array<i32>} : memref<512x128xf32, #tpu.memory_space<vmem>>, vector<512x128xf32>,
    %c0_i32_8 = arith.constant 0 : i32
    %9 = arith.cmpi eq, %arg2, %c0_i32_8 : i32
    %10 = arith.extui %9 : i1 to i32
    %c0_i32_9 = arith.constant 0 : i32
    %11 = arith.cmpi ne, %10, %c0_i32_9 : i32
    scf.if %11 {
      %c0_10 = arith.constant 0 : index
      %c0_11 = arith.constant 0 : index
      %12 = vector.load %arg7[%c0_10, %c0_11] : memref<512x128xf32, #tpu.memory_space<vmem>>, vector<512x128xf32>
      %c0_12 = arith.constant 0 : index
      %c0_13 = arith.constant 0 : index
      %13 = vector.load %arg5[%c0_12, %c0_13] : memref<1x128xf32, #tpu.memory_space<vmem>>, vector<1x128xf32>
      %14 = vector.broadcast %13 : vector<1x128xf32> to vector<512x128xf32>
      %15 = arith.addf %12, %14 : vector<512x128xf32>
      %cst_14 = arith.constant 0.000000e+00 : f32
      %16 = vector.broadcast %cst_14 : f32 to vector<512x128xf32>
      %17 = arith.cmpf oge, %15, %16 : vector<512x128xf32>
      %cst_15 = arith.constant 2.000000e-01 : f32
      %18 = vector.broadcast %cst_15 : f32 to vector<512x128xf32>
      %19 = arith.mulf %18, %15 : vector<512x128xf32>
      %20 = arith.select %17, %15, %19 : vector<512x128xi1>, vector<512x128xf32>
      %21 = arith.truncf %20 : vector<512x128xf32> to vector<512x128xbf16>
      %c0_16 = arith.constant 0 : index
      %c0_17 = arith.constant 0 : index
      %22 = vector.load %arg6[%c0_16, %c0_17] : memref<512x128xbf16, #tpu.memory_space<vmem>>, vector<512x128xbf16>
      tpu.vector_store %arg6[%c0_16, %c0_17], %21 {strides = array<i32>} : memref<512x128xbf16, #tpu.memory_space<vmem>>, vector<512x128xbf16>,
    } else {
    }
    return
  }
  func.func @transform_0(%arg0: i32, %arg1: i32, %arg2: i32) -> (i32, i32) {
    %c0_i32 = arith.constant 0 : i32
    return %arg0, %arg2 : i32, i32
  }
  func.func @transform_1(%arg0: i32, %arg1: i32, %arg2: i32) -> (i32, i32) {
    %c0_i32 = arith.constant 0 : i32
    return %arg2, %arg1 : i32, i32
  }
  func.func @transform_2(%arg0: i32, %arg1: i32, %arg2: i32) -> (i32, i32) {
    %c0_i32 = arith.constant 0 : i32
    %c0_i32_0 = arith.constant 0 : i32
    return %c0_i32, %arg1 : i32, i32
  }
  func.func @transform_3(%arg0: i32, %arg1: i32, %arg2: i32) -> (i32, i32) {
    %c0_i32 = arith.constant 0 : i32
    return %arg0, %arg1 : i32, i32
  }
}

module attributes {stable_mosaic.version = 11 : i64} {
  func.func @_matmul_fused_kernel(%arg0: i32, %arg1: i32, %arg2: i32, %arg3: memref<128x256xbf16, #tpu.memory_space<vmem>>, %arg4: memref<256x128xbf16, #tpu.memory_space<vmem>>, %arg5: memref<1x128xf32, #tpu.memory_space<vmem>>, %arg6: memref<128x128xbf16, #tpu.memory_space<vmem>>, %arg7: memref<1x8x128xf32, #tpu.memory_space<vmem>>, %arg8: memref<128x128xf32, #tpu.memory_space<vmem>>) attributes {dimension_semantics = [#tpu.dimension_semantics<parallel>, #tpu.dimension_semantics<parallel>, #tpu.dimension_semantics<arbitrary>], iteration_bounds = array<i64: 1, 1, 1>, scalar_prefetch = 0 : i64, scratch_operands = 1 : i64, tpu.core_type = #tpu.core_type<tc>, window_params = [{transform_indices = @transform_0, window_bounds = array<i64: 128, 256>}, {transform_indices = @transform_1, window_bounds = array<i64: 256, 128>}, {transform_indices = @transform_2, window_bounds = array<i64: 1, 128>}, {transform_indices = @transform_3, window_bounds = array<i64: 128, 128>}, {transform_indices = @transform_4, window_bounds = array<i64: 1, 8, 128>}]} {
    %c0_i32 = arith.constant 0 : i32
    %0 = arith.cmpi eq, %arg2, %c0_i32 : i32
    %1 = arith.extui %0 : i1 to i32
    %c0_i32_0 = arith.constant 0 : i32
    %2 = arith.cmpi ne, %1, %c0_i32_0 : i32
    scf.if %2 {
      %cst_10 = arith.constant 0.000000e+00 : f32
      %12 = vector.broadcast %cst_10 : f32 to vector<128x128xf32>
      %c0_11 = arith.constant 0 : index
      %c0_12 = arith.constant 0 : index
      %13 = vector.load %arg8[%c0_11, %c0_12] : memref<128x128xf32, #tpu.memory_space<vmem>>, vector<128x128xf32>
      tpu.vector_store %arg8[%c0_11, %c0_12], %12 {strides = array<i32>} : memref<128x128xf32, #tpu.memory_space<vmem>>, vector<128x128xf32>,
    } else {
    }
    %c0 = arith.constant 0 : index
    %c0_1 = arith.constant 0 : index
    %3 = vector.load %arg8[%c0, %c0_1] : memref<128x128xf32, #tpu.memory_space<vmem>>, vector<128x128xf32>
    %c0_2 = arith.constant 0 : index
    %c0_3 = arith.constant 0 : index
    %4 = vector.load %arg3[%c0_2, %c0_3] : memref<128x256xbf16, #tpu.memory_space<vmem>>, vector<128x256xbf16>
    %c0_4 = arith.constant 0 : index
    %c0_5 = arith.constant 0 : index
    %5 = vector.load %arg4[%c0_4, %c0_5] : memref<256x128xbf16, #tpu.memory_space<vmem>>, vector<256x128xbf16>
    %cst = arith.constant dense<0.000000e+00> : vector<128x128xf32>
    %6 = tpu.matmul %4, %5, %cst {dimension_numbers = #tpu.dot_dimension_numbers<[1], [0], [0], [1], [0, 0, 1, 1], [], []>} : vector<128x256xbf16>, vector<256x128xbf16>, vector<128x128xf32> -> vector<128x128xf32>
    %7 = arith.addf %3, %6 : vector<128x128xf32>
    %c0_6 = arith.constant 0 : index
    %c0_7 = arith.constant 0 : index
    %8 = vector.load %arg8[%c0_6, %c0_7] : memref<128x128xf32, #tpu.memory_space<vmem>>, vector<128x128xf32>
    tpu.vector_store %arg8[%c0_6, %c0_7], %7 {strides = array<i32>} : memref<128x128xf32, #tpu.memory_space<vmem>>, vector<128x128xf32>,
    %c0_i32_8 = arith.constant 0 : i32
    %9 = arith.cmpi eq, %arg2, %c0_i32_8 : i32
    %10 = arith.extui %9 : i1 to i32
    %c0_i32_9 = arith.constant 0 : i32
    %11 = arith.cmpi ne, %10, %c0_i32_9 : i32
    scf.if %11 {
      %c0_10 = arith.constant 0 : index
      %c0_11 = arith.constant 0 : index
      %12 = vector.load %arg8[%c0_10, %c0_11] : memref<128x128xf32, #tpu.memory_space<vmem>>, vector<128x128xf32>
      %13 = arith.truncf %12 : vector<128x128xf32> to vector<128x128xbf16>
      %c0_12 = arith.constant 0 : index
      %c0_13 = arith.constant 0 : index
      %14 = vector.load %arg6[%c0_12, %c0_13] : memref<128x128xbf16, #tpu.memory_space<vmem>>, vector<128x128xbf16>
      tpu.vector_store %arg6[%c0_12, %c0_13], %13 {strides = array<i32>} : memref<128x128xbf16, #tpu.memory_space<vmem>>, vector<128x128xbf16>,
      %cst_14 = arith.constant dense<0.000000e+00> : vector<128xf32>
      %15 = vector.multi_reduction <add>, %12, %cst_14 [0] : vector<128x128xf32> to vector<128xf32>
      %16 = vector.shape_cast %15 : vector<128xf32> to vector<1x128xf32>
      %17 = arith.mulf %12, %12 : vector<128x128xf32>
      %cst_15 = arith.constant dense<0.000000e+00> : vector<128xf32>
      %18 = vector.multi_reduction <add>, %17, %cst_15 [0] : vector<128x128xf32> to vector<128xf32>
      %19 = vector.shape_cast %18 : vector<128xf32> to vector<1x128xf32>
      %20 = tpu.iota {dimensions = array<i32: 0>} : vector<8x128xi32>
      %c0_i32_16 = arith.constant 0 : i32
      %21 = vector.broadcast %c0_i32_16 : i32 to vector<8x128xi32>
      %22 = arith.cmpi eq, %20, %21 : vector<8x128xi32>
      %cst_17 = arith.constant 0.000000e+00 : f32
      %23 = vector.shape_cast %16 : vector<1x128xf32> to vector<1x128xf32>
      %24 = vector.broadcast %23 : vector<1x128xf32> to vector<8x128xf32>
      %25 = vector.broadcast %cst_17 : f32 to vector<8x128xf32>
      %26 = arith.select %22, %24, %25 : vector<8x128xi1>, vector<8x128xf32>
      %c1_i32 = arith.constant 1 : i32
      %27 = vector.broadcast %c1_i32 : i32 to vector<8x128xi32>
      %28 = arith.cmpi eq, %20, %27 : vector<8x128xi32>
      %cst_18 = arith.constant 0.000000e+00 : f32
      %29 = vector.shape_cast %19 : vector<1x128xf32> to vector<1x128xf32>
      %30 = vector.broadcast %29 : vector<1x128xf32> to vector<8x128xf32>
      %31 = vector.broadcast %cst_18 : f32 to vector<8x128xf32>
      %32 = arith.select %28, %30, %31 : vector<8x128xi1>, vector<8x128xf32>
      %33 = arith.addf %26, %32 : vector<8x128xf32>
      %34 = vector.shape_cast %33 : vector<8x128xf32> to vector<1x8x128xf32>
      %c0_19 = arith.constant 0 : index
      %c0_20 = arith.constant 0 : index
      %c0_21 = arith.constant 0 : index
      %35 = vector.load %arg7[%c0_19, %c0_20, %c0_21] : memref<1x8x128xf32, #tpu.memory_space<vmem>>, vector<1x8x128xf32>
      tpu.vector_store %arg7[%c0_19, %c0_20, %c0_21], %34 {strides = array<i32>} : memref<1x8x128xf32, #tpu.memory_space<vmem>>, vector<1x8x128xf32>,
    } else {
    }
    return
  }
  func.func @transform_0(%arg0: i32, %arg1: i32, %arg2: i32) -> (i32, i32) {
    %c0_i32 = arith.constant 0 : i32
    return %arg0, %arg2 : i32, i32
  }
  func.func @transform_1(%arg0: i32, %arg1: i32, %arg2: i32) -> (i32, i32) {
    %c0_i32 = arith.constant 0 : i32
    return %arg2, %arg1 : i32, i32
  }
  func.func @transform_2(%arg0: i32, %arg1: i32, %arg2: i32) -> (i32, i32) {
    %c0_i32 = arith.constant 0 : i32
    %c0_i32_0 = arith.constant 0 : i32
    return %c0_i32, %arg1 : i32, i32
  }
  func.func @transform_3(%arg0: i32, %arg1: i32, %arg2: i32) -> (i32, i32) {
    %c0_i32 = arith.constant 0 : i32
    return %arg0, %arg1 : i32, i32
  }
  func.func @transform_4(%arg0: i32, %arg1: i32, %arg2: i32) -> (i32, i32, i32) {
    %c0_i32 = arith.constant 0 : i32
    %c0_i32_0 = arith.constant 0 : i32
    return %arg0, %c0_i32, %arg1 : i32, i32, i32
  }
}

</mosaic_0001>

<llo_original>
// kernel: _lambda_.24
$region0: #{_lambda_.24}
  #allocation0 [shape = 'u32[]', space=smem, size = 0x4, offset = 0x4, fixed_abs, tag = 'smem constant byte address 0x4 - core index']
  #allocation1 [shape = 'u32[144,128]{1,0:T(1,128)}', space=vmem, size = 0x12000, scoped, tag = 'internal scratch']
  #allocation2 [shape = 'f32[512,128]{1,0:T(8,128)}', space=vmem, size = 0x40000, scoped, tag = 'scratch operand']
  %s0 = inlined_call_operand.vmem [shape: bf16[2048,128], index: 0, kind: input, shape index: {}]
  %s1 = inlined_call_operand.vmem [shape: bf16[128,128], index: 1, kind: input, shape index: {}]
  %s2 = inlined_call_operand.vmem [shape: f32[1,128], index: 2, kind: input, shape index: {}]
  %s3 = inlined_call_operand.vmem [shape: bf16[2048,128], index: 3, kind: output, shape index: {}]
  %s4 = sld [smem:[#allocation0]]
  $region53: #{_lambda_.24} parent=0
    _
  %s6 = ssub.s32 1, %s4
  %s7 = scalar_select 0, %s6, %s4
  loop: start=0, step=1, limit=6
  $region2: #{_lambda_.24} parent=0 // loop_pre_header
    _
  $region3: #{_lambda_.24} parent=0 // loop_header
    %s9 = sphi 0, %s13
    %p10 = scmp.ge.s32.totalorder %s9, 6
    %s16 = sphi 0, %s35
    %s17 = sphi 0, %s31
    %s18 = sphi 0, %s27
    %s19 = sphi 0, %s16
    %s20 = sphi 0, %s17
    %s21 = sphi 0, %s18
    %s22 = sphi 0, %s19
    %s23 = sphi 0, %s20
    %s24 = sphi 0, %s21
    %s40 = sphi 0, %s42
    %s43 = sphi 0, %s40
    %s44 = sphi 0, %s43
    %s60 = sphi 0, %s44
    %s68 = sphi 0, %s70
    %s71 = sphi 0, %s68
    %s72 = sphi 0, %s71
    %s88 = sphi 0, %s72
    %s94 = sphi 0, %s96
    %s97 = sphi 0, %s94
    %s98 = sphi 0, %s97
    %s114 = sphi 0, %s98
    %s122 = sphi 0, %s124
    %s125 = sphi 0, %s122
    %s126 = sphi 0, %s125
    %s142 = sphi 0, %s126
  $region4: #{_lambda_.24} parent=0 // loop_header_branch
    %12 = sbr.rel (%p10) target = $region8
  $region5: #{_lambda_.24} parent=0 // loop_body
    %s14 = ssub.s32 %s9, 1
    %s15 = ssub.s32 %s9, 2
    %s25 = sadd.s32 1, %s18
    %p26 = scmp.ge.s32.totalorder %s25, 1
    %s27 = scalar_select %p26, 0, %s25
    %s28 = sadd.s32 1, %s17
    %s29 = scalar_select %p26, %s28, %s17
    %p30 = scmp.ge.s32.totalorder %s29, 1
    %s31 = scalar_select %p30, 0, %s29
    %s32 = sadd.s32 1, %s16
    %s33 = scalar_select %p30, %s32, %s16
    %p34 = scmp.ge.s32.totalorder %s33, 4
    %s35 = scalar_select %p34, 0, %s33
    %s36 = ssub.s32 %s16, %s35
    %s37 = ssub.s32 %s18, %s27
    %s38 = sor.u32 %s36, %s37
    %p39 = scmp.eq.s32.totalorder %s38, 0
    %s41 = sadd.s32 %s40, 1
    %s42 = scalar_select %p39, %s40, %s41
    %p45 = pneg %p39
    %p46 = scmp.eq.s32.totalorder %s9, 3
    %p47 = por %p45, %p46
    %p48 = scmp.ne.s32.totalorder %s40, %s43
    %p49 = scmp.eq.s32.totalorder %s9, 0
    %p50 = por %p48, %p49
    %p51 = scmp.ne.s32.totalorder %s40, %s43
    %p52 = scmp.eq.s32.totalorder %s14, 3
    %p53 = por %p51, %p52
    %p54 = scmp.ne.s32.totalorder %s43, %s44
    %p55 = scmp.eq.s32.totalorder %s14, 0
    %p56 = por %p54, %p55
    %p57 = scmp.ne.s32.totalorder %s43, %s44
    %p58 = scmp.eq.s32.totalorder %s15, 3
    %p59 = por %p57, %p58
    %p61 = scmp.ne.s32.totalorder %s44, %s60
    %p62 = scmp.eq.s32.totalorder %s15, 0
    %p63 = por %p61, %p62
    %s64 = ssub.s32 %s18, %s27
    %s65 = ssub.s32 %s17, %s31
    %s66 = sor.u32 %s64, %s65
    %p67 = scmp.eq.s32.totalorder %s66, 0
    %s69 = sadd.s32 %s68, 1
    %s70 = scalar_select %p67, %s68, %s69
    %p73 = pneg %p67
    %p74 = scmp.eq.s32.totalorder %s9, 3
    %p75 = por %p73, %p74
    %p76 = scmp.ne.s32.totalorder %s68, %s71
    %p77 = scmp.eq.s32.totalorder %s9, 0
    %p78 = por %p76, %p77
    %p79 = scmp.ne.s32.totalorder %s68, %s71
    %p80 = scmp.eq.s32.totalorder %s14, 3
    %p81 = por %p79, %p80
    %p82 = scmp.ne.s32.totalorder %s71, %s72
    %p83 = scmp.eq.s32.totalorder %s14, 0
    %p84 = por %p82, %p83
    %p85 = scmp.ne.s32.totalorder %s71, %s72
    %p86 = scmp.eq.s32.totalorder %s15, 3
    %p87 = por %p85, %p86
    %p89 = scmp.ne.s32.totalorder %s72, %s88
    %p90 = scmp.eq.s32.totalorder %s15, 0
    %p91 = por %p89, %p90
    %s92 = ssub.s32 %s17, %s31
    %p93 = scmp.eq.s32.totalorder %s92, 0
    %s95 = sadd.s32 %s94, 1
    %s96 = scalar_select %p93, %s94, %s95
    %p99 = pneg %p93
    %p100 = scmp.eq.s32.totalorder %s9, 3
    %p101 = por %p99, %p100
    %p102 = scmp.ne.s32.totalorder %s94, %s97
    %p103 = scmp.eq.s32.totalorder %s9, 0
    %p104 = por %p102, %p103
    %p105 = scmp.ne.s32.totalorder %s94, %s97
    %p106 = scmp.eq.s32.totalorder %s14, 3
    %p107 = por %p105, %p106
    %p108 = scmp.ne.s32.totalorder %s97, %s98
    %p109 = scmp.eq.s32.totalorder %s14, 0
    %p110 = por %p108, %p109
    %p111 = scmp.ne.s32.totalorder %s97, %s98
    %p112 = scmp.eq.s32.totalorder %s15, 3
    %p113 = por %p111, %p112
    %p115 = scmp.ne.s32.totalorder %s98, %s114
    %p116 = scmp.eq.s32.totalorder %s15, 0
    %p117 = por %p115, %p116
    %s118 = ssub.s32 %s16, %s35
    %s119 = ssub.s32 %s17, %s31
    %s120 = sor.u32 %s118, %s119
    %p121 = scmp.eq.s32.totalorder %s120, 0
    %s123 = sadd.s32 %s122, 1
    %s124 = scalar_select %p121, %s122, %s123
    %p127 = pneg %p121
    %p128 = scmp.eq.s32.totalorder %s9, 3
    %p129 = por %p127, %p128
    %p130 = scmp.ne.s32.totalorder %s122, %s125
    %p131 = scmp.eq.s32.totalorder %s9, 0
    %p132 = por %p130, %p131
    %p133 = scmp.ne.s32.totalorder %s122, %s125
    %p134 = scmp.eq.s32.totalorder %s14, 3
    %p135 = por %p133, %p134
    %p136 = scmp.ne.s32.totalorder %s125, %s126
    %p137 = scmp.eq.s32.totalorder %s14, 0
    %p138 = por %p136, %p137
    %p139 = scmp.ne.s32.totalorder %s125, %s126
    %p140 = scmp.eq.s32.totalorder %s15, 3
    %p141 = por %p139, %p140
    %p143 = scmp.ne.s32.totalorder %s126, %s142
    %p144 = scmp.eq.s32.totalorder %s15, 0
    %p145 = por %p143, %p144
    %p146 = scmp.le.s32.totalorder 1, %s9
    %p147 = scmp.lt.s32.totalorder %s9, 5
    %p148 = pnand %p146, %p147
    %p149 = pneg %p148
    // Predicated region
    $region9: #{_lambda_.24} parent=5 // pred_check
      _
    $region10: #{_lambda_.24} parent=5 // pred_check_branch
      %151 = sbr.rel (%p148) target = $region12
    $region11: #{_lambda_.24} parent=5 // pred_region
      %s152 = ssub.s32 %s9, 1
      // Predicated region
      $region13: #{_lambda_.24} parent=11 // pred_check
        %p153 = pneg %p84
      $region14: #{_lambda_.24} parent=11 // pred_check_branch
        %155 = sbr.rel (%p153) target = $region16
      $region15: #{_lambda_.24} parent=11 // pred_region
        %s156 = smul.u32 16, %s21
        %p157 = scmp.lt.s32.totalorder %s156, 15
        %s158 = scalar_select %p157, %s156, 15
        %p159 = scmp.lt.s32.totalorder %s20, 0
        %s160 = scalar_select %p159, %s20, 0
        %s161 = sadd.s32 %s160, %s158
        %s162 = smul.addr %s161, 4
        %s163 = scalar_lea.vmem %s1, %s162
        %s164 = smul.u32 16, %s21
      $region16: #{_lambda_.24} parent=11 // pred_fallthru
        _
      // Predicated region
      $region17: #{_lambda_.24} parent=11 // pred_check
        %p165 = pneg %p110
      $region18: #{_lambda_.24} parent=11 // pred_check_branch
        %167 = sbr.rel (%p165) target = $region20
      $region19: #{_lambda_.24} parent=11 // pred_region
        %p168 = scmp.lt.s32.totalorder %s20, 0
        %s169 = scalar_select %p168, %s20, 0
        %s170 = scalar_lea.vmem %s2, %s169
      $region20: #{_lambda_.24} parent=11 // pred_fallthru
        _
    $region12: #{_lambda_.24} parent=5 // pred_fallthru
      _
    %p171 = scmp.lt.s32.totalorder %s9, 4
    // Predicated region
    $region21: #{_lambda_.24} parent=5 // pred_check
      %p172 = pneg %p171
    $region22: #{_lambda_.24} parent=5 // pred_check_branch
      %174 = sbr.rel (%p172) target = $region24
    $region23: #{_lambda_.24} parent=5 // pred_region
      // Predicated region
      $region25: #{_lambda_.24} parent=23 // pred_check
        %p175 = pneg %p50
      $region26: #{_lambda_.24} parent=23 // pred_check_branch
        %177 = sbr.rel (%p175) target = $region28
      $region27: #{_lambda_.24} parent=23 // pred_region
        %s178 = smul.u32 64, %s16
        %p179 = scmp.lt.s32.totalorder %s178, 255
        %s180 = scalar_select %p179, %s178, 255
        %p181 = scmp.lt.s32.totalorder %s18, 0
        %s182 = scalar_select %p181, %s18, 0
        %s183 = sadd.s32 %s182, %s180
        %s184 = smul.addr %s183, 4
        %s185 = scalar_lea.vmem %s0, %s184
        %s186 = smul.u32 64, %s16
      $region28: #{_lambda_.24} parent=23 // pred_fallthru
        _
    $region24: #{_lambda_.24} parent=5 // pred_fallthru
      _
    %p187 = scmp.le.s32.totalorder 1, %s9
    %p188 = scmp.lt.s32.totalorder %s9, 5
    %p189 = pnand %p187, %p188
    %p190 = pneg %p189
    // Predicated region
    $region29: #{_lambda_.24} parent=5 // pred_check
      _
    $region30: #{_lambda_.24} parent=5 // pred_check_branch
      %192 = sbr.rel (%p189) target = $region32
    $region31: #{_lambda_.24} parent=5 // pred_region
      %s193 = ssub.s32 %s9, 1
      %s194 = smul.u32 64, %s19
      %p195 = scmp.lt.s32.totalorder %s194, 255
      %s196 = scalar_select %p195, %s194, 255
      %p197 = scmp.lt.s32.totalorder %s21, 0
      %s198 = scalar_select %p197, %s21, 0
      %s199 = sadd.s32 %s198, %s196
      %s200 = smul.addr %s199, 4
      %s201 = scalar_lea.vmem %s0, %s200
      %p202 = pneg %p56
      %p203 = pneg %p53
      %s204 = smul.u32 16, %s21
      %p205 = scmp.lt.s32.totalorder %s204, 15
      %s206 = scalar_select %p205, %s204, 15
      %p207 = scmp.lt.s32.totalorder %s20, 0
      %s208 = scalar_select %p207, %s20, 0
      %s209 = sadd.s32 %s208, %s206
      %s210 = smul.addr %s209, 4
      %s211 = scalar_lea.vmem %s1, %s210
      %p212 = pneg %p84
      %p213 = pneg %p81
      %p214 = scmp.lt.s32.totalorder %s20, 0
      %s215 = scalar_select %p214, %s20, 0
      %s216 = scalar_lea.vmem %s2, %s215
      %p217 = pneg %p110
      %p218 = pneg %p107
      %p219 = pneg %p138
      %p220 = pneg %p135
      %s221 = smul.u32 64, %s19
      %p222 = scmp.lt.s32.totalorder %s221, 255
      %s223 = scalar_select %p222, %s221, 255
      %p224 = scmp.lt.s32.totalorder %s20, 0
      %s225 = scalar_select %p224, %s20, 0
      %s226 = sadd.s32 %s225, %s223
      %s227 = smul.addr %s226, 4
      %s228 = scalar_lea.vmem %s3, %s227
      %s229 = smul.u32 64, %s19
      %p230 = scmp.lt.s32.totalorder %s229, 255
      %s231 = scalar_select %p230, %s229, 255
      %p232 = scmp.lt.s32.totalorder %s21, 0
      %s233 = scalar_select %p232, %s21, 0
      %s234 = sadd.s32 %s233, %s231
      %s235 = smul.addr %s234, 4
      %s236 = scalar_lea.vmem %s0, %s235
      %s237 = smul.u32 64, %s19
      %s238 = smul.u32 16, %s21
      %p239 = scmp.lt.s32.totalorder %s238, 15
      %s240 = scalar_select %p239, %s238, 15
      %p241 = scmp.lt.s32.totalorder %s20, 0
      %s242 = scalar_select %p241, %s20, 0
      %s243 = sadd.s32 %s242, %s240
      %s244 = smul.addr %s243, 4
      %s245 = scalar_lea.vmem %s1, %s244
      %s246 = smul.u32 16, %s21
      %p247 = scmp.lt.s32.totalorder %s20, 0
      %s248 = scalar_select %p247, %s20, 0
      %s249 = scalar_lea.vmem %s2, %s248
      %s250 = smul.u32 64, %s19
      %p251 = scmp.lt.s32.totalorder %s250, 255
      %s252 = scalar_select %p251, %s250, 255
      %p253 = scmp.lt.s32.totalorder %s20, 0
      %s254 = scalar_select %p253, %s20, 0
      %s255 = sadd.s32 %s254, %s252
      %s256 = smul.addr %s255, 4
      %s257 = scalar_lea.vmem %s3, %s256
      %s258 = smul.u32 64, %s19
      %p260 = scmp.eq.s32.totalorder %s21, 0
      // Predicated region
      $region33: #{_lambda_.24} parent=31 // pred_check
        %p261 = pneg %p260
      $region34: #{_lambda_.24} parent=31 // pred_check_branch
        %263 = sbr.rel (%p261) target = $region36
      $region35: #{_lambda_.24} parent=31 // pred_region
        %264 = vst [vmem:[#allocation2] sm:$0xff] 0.0
        %265 = vst [vmem:[#allocation2 + $0x8] sm:$0xff] 0.0
        %266 = vst [vmem:[#allocation2 + $0x10] sm:$0xff] 0.0
        %267 = vst [vmem:[#allocation2 + $0x18] sm:$0xff] 0.0
        %268 = vst [vmem:[#allocation2 + $0x20] sm:$0xff] 0.0
        %269 = vst [vmem:[#allocation2 + $0x28] sm:$0xff] 0.0
        %270 = vst [vmem:[#allocation2 + $0x30] sm:$0xff] 0.0
        %271 = vst [vmem:[#allocation2 + $0x38] sm:$0xff] 0.0
        %272 = vst [vmem:[#allocation2 + $0x40] sm:$0xff] 0.0
        %273 = vst [vmem:[#allocation2 + $0x48] sm:$0xff] 0.0
        %274 = vst [vmem:[#allocation2 + $0x50] sm:$0xff] 0.0
        %275 = vst [vmem:[#allocation2 + $0x58] sm:$0xff] 0.0
        %276 = vst [vmem:[#allocation2 + $0x60] sm:$0xff] 0.0
        %277 = vst [vmem:[#allocation2 + $0x68] sm:$0xff] 0.0
        %278 = vst [vmem:[#allocation2 + $0x70] sm:$0xff] 0.0
        %279 = vst [vmem:[#allocation2 + $0x78] sm:$0xff] 0.0
        %280 = vst [vmem:[#allocation2 + $0x80] sm:$0xff] 0.0
        %281 = vst [vmem:[#allocation2 + $0x88] sm:$0xff] 0.0
        %282 = vst [vmem:[#allocation2 + $0x90] sm:$0xff] 0.0
        %283 = vst [vmem:[#allocation2 + $0x98] sm:$0xff] 0.0
        %284 = vst [vmem:[#allocation2 + $0xa0] sm:$0xff] 0.0
        %285 = vst [vmem:[#allocation2 + $0xa8] sm:$0xff] 0.0
        %286 = vst [vmem:[#allocation2 + $0xb0] sm:$0xff] 0.0
        %287 = vst [vmem:[#allocation2 + $0xb8] sm:$0xff] 0.0
        %288 = vst [vmem:[#allocation2 + $0xc0] sm:$0xff] 0.0
        %289 = vst [vmem:[#allocation2 + $0xc8] sm:$0xff] 0.0
        %290 = vst [vmem:[#allocation2 + $0xd0] sm:$0xff] 0.0
        %291 = vst [vmem:[#allocation2 + $0xd8] sm:$0xff] 0.0
        %292 = vst [vmem:[#allocation2 + $0xe0] sm:$0xff] 0.0
        %293 = vst [vmem:[#allocation2 + $0xe8] sm:$0xff] 0.0
        %294 = vst [vmem:[#allocation2 + $0xf0] sm:$0xff] 0.0
        %295 = vst [vmem:[#allocation2 + $0xf8] sm:$0xff] 0.0
        %296 = vst [vmem:[#allocation2 + $0x100] sm:$0xff] 0.0
        %297 = vst [vmem:[#allocation2 + $0x108] sm:$0xff] 0.0
        %298 = vst [vmem:[#allocation2 + $0x110] sm:$0xff] 0.0
        %299 = vst [vmem:[#allocation2 + $0x118] sm:$0xff] 0.0
        %300 = vst [vmem:[#allocation2 + $0x120] sm:$0xff] 0.0
        %301 = vst [vmem:[#allocation2 + $0x128] sm:$0xff] 0.0
        %302 = vst [vmem:[#allocation2 + $0x130] sm:$0xff] 0.0
        %303 = vst [vmem:[#allocation2 + $0x138] sm:$0xff] 0.0
        %304 = vst [vmem:[#allocation2 + $0x140] sm:$0xff] 0.0
        %305 = vst [vmem:[#allocation2 + $0x148] sm:$0xff] 0.0
        %306 = vst [vmem:[#allocation2 + $0x150] sm:$0xff] 0.0
        %307 = vst [vmem:[#allocation2 + $0x158] sm:$0xff] 0.0
        %308 = vst [vmem:[#allocation2 + $0x160] sm:$0xff] 0.0
        %309 = vst [vmem:[#allocation2 + $0x168] sm:$0xff] 0.0
        %310 = vst [vmem:[#allocation2 + $0x170] sm:$0xff] 0.0
        %311 = vst [vmem:[#allocation2 + $0x178] sm:$0xff] 0.0
        %312 = vst [vmem:[#allocation2 + $0x180] sm:$0xff] 0.0
        %313 = vst [vmem:[#allocation2 + $0x188] sm:$0xff] 0.0
        %314 = vst [vmem:[#allocation2 + $0x190] sm:$0xff] 0.0
        %315 = vst [vmem:[#allocation2 + $0x198] sm:$0xff] 0.0
        %316 = vst [vmem:[#allocation2 + $0x1a0] sm:$0xff] 0.0
        %317 = vst [vmem:[#allocation2 + $0x1a8] sm:$0xff] 0.0
        %318 = vst [vmem:[#allocation2 + $0x1b0] sm:$0xff] 0.0
        %319 = vst [vmem:[#allocation2 + $0x1b8] sm:$0xff] 0.0
        %320 = vst [vmem:[#allocation2 + $0x1c0] sm:$0xff] 0.0
        %321 = vst [vmem:[#allocation2 + $0x1c8] sm:$0xff] 0.0
        %322 = vst [vmem:[#allocation2 + $0x1d0] sm:$0xff] 0.0
        %323 = vst [vmem:[#allocation2 + $0x1d8] sm:$0xff] 0.0
        %324 = vst [vmem:[#allocation2 + $0x1e0] sm:$0xff] 0.0
        %325 = vst [vmem:[#allocation2 + $0x1e8] sm:$0xff] 0.0
        %326 = vst [vmem:[#allocation2 + $0x1f0] sm:$0xff] 0.0
        %327 = vst [vmem:[#allocation2 + $0x1f8] sm:$0xff] 0.0
      $region36: #{_lambda_.24} parent=31 // pred_fallthru
        _
      %v328 = vld [vmem:[#allocation2] sm:$0xff]
      %v329 = vld [vmem:[#allocation2 + $0x8] sm:$0xff]
      %v330 = vld [vmem:[#allocation2 + $0x10] sm:$0xff]
      %v331 = vld [vmem:[#allocation2 + $0x18] sm:$0xff]
      %v332 = vld [vmem:[#allocation2 + $0x20] sm:$0xff]
      %v333 = vld [vmem:[#allocation2 + $0x28] sm:$0xff]
      %v334 = vld [vmem:[#allocation2 + $0x30] sm:$0xff]
      %v335 = vld [vmem:[#allocation2 + $0x38] sm:$0xff]
      %v336 = vld [vmem:[#allocation2 + $0x40] sm:$0xff]
      %v337 = vld [vmem:[#allocation2 + $0x48] sm:$0xff]
      %v338 = vld [vmem:[#allocation2 + $0x50] sm:$0xff]
      %v339 = vld [vmem:[#allocation2 + $0x58] sm:$0xff]
      %v340 = vld [vmem:[#allocation2 + $0x60] sm:$0xff]
      %v341 = vld [vmem:[#allocation2 + $0x68] sm:$0xff]
      %v342 = vld [vmem:[#allocation2 + $0x70] sm:$0xff]
      %v343 = vld [vmem:[#allocation2 + $0x78] sm:$0xff]
      %v344 = vld [vmem:[#allocation2 + $0x80] sm:$0xff]
      %v345 = vld [vmem:[#allocation2 + $0x88] sm:$0xff]
      %v346 = vld [vmem:[#allocation2 + $0x90] sm:$0xff]
      %v347 = vld [vmem:[#allocation2 + $0x98] sm:$0xff]
      %v348 = vld [vmem:[#allocation2 + $0xa0] sm:$0xff]
      %v349 = vld [vmem:[#allocation2 + $0xa8] sm:$0xff]
      %v350 = vld [vmem:[#allocation2 + $0xb0] sm:$0xff]
      %v351 = vld [vmem:[#allocation2 + $0xb8] sm:$0xff]
      %v352 = vld [vmem:[#allocation2 + $0xc0] sm:$0xff]
      %v353 = vld [vmem:[#allocation2 + $0xc8] sm:$0xff]
      %v354 = vld [vmem:[#allocation2 + $0xd0] sm:$0xff]
      %v355 = vld [vmem:[#allocation2 + $0xd8] sm:$0xff]
      %v356 = vld [vmem:[#allocation2 + $0xe0] sm:$0xff]
      %v357 = vld [vmem:[#allocation2 + $0xe8] sm:$0xff]
      %v358 = vld [vmem:[#allocation2 + $0xf0] sm:$0xff]
      %v359 = vld [vmem:[#allocation2 + $0xf8] sm:$0xff]
      %v360 = vld [vmem:[#allocation2 + $0x100] sm:$0xff]
      %v361 = vld [vmem:[#allocation2 + $0x108] sm:$0xff]
      %v362 = vld [vmem:[#allocation2 + $0x110] sm:$0xff]
      %v363 = vld [vmem:[#allocation2 + $0x118] sm:$0xff]
      %v364 = vld [vmem:[#allocation2 + $0x120] sm:$0xff]
      %v365 = vld [vmem:[#allocation2 + $0x128] sm:$0xff]
      %v366 = vld [vmem:[#allocation2 + $0x130] sm:$0xff]
      %v367 = vld [vmem:[#allocation2 + $0x138] sm:$0xff]
      %v368 = vld [vmem:[#allocation2 + $0x140] sm:$0xff]
      %v369 = vld [vmem:[#allocation2 + $0x148] sm:$0xff]
      %v370 = vld [vmem:[#allocation2 + $0x150] sm:$0xff]
      %v371 = vld [vmem:[#allocation2 + $0x158] sm:$0xff]
      %v372 = vld [vmem:[#allocation2 + $0x160] sm:$0xff]
      %v373 = vld [vmem:[#allocation2 + $0x168] sm:$0xff]
      %v374 = vld [vmem:[#allocation2 + $0x170] sm:$0xff]
      %v375 = vld [vmem:[#allocation2 + $0x178] sm:$0xff]
      %v376 = vld [vmem:[#allocation2 + $0x180] sm:$0xff]
      %v377 = vld [vmem:[#allocation2 + $0x188] sm:$0xff]
      %v378 = vld [vmem:[#allocation2 + $0x190] sm:$0xff]
      %v379 = vld [vmem:[#allocation2 + $0x198] sm:$0xff]
      %v380 = vld [vmem:[#allocation2 + $0x1a0] sm:$0xff]
      %v381 = vld [vmem:[#allocation2 + $0x1a8] sm:$0xff]
      %v382 = vld [vmem:[#allocation2 + $0x1b0] sm:$0xff]
      %v383 = vld [vmem:[#allocation2 + $0x1b8] sm:$0xff]
      %v384 = vld [vmem:[#allocation2 + $0x1c0] sm:$0xff]
      %v385 = vld [vmem:[#allocation2 + $0x1c8] sm:$0xff]
      %v386 = vld [vmem:[#allocation2 + $0x1d0] sm:$0xff]
      %v387 = vld [vmem:[#allocation2 + $0x1d8] sm:$0xff]
      %v388 = vld [vmem:[#allocation2 + $0x1e0] sm:$0xff]
      %v389 = vld [vmem:[#allocation2 + $0x1e8] sm:$0xff]
      %v390 = vld [vmem:[#allocation2 + $0x1f0] sm:$0xff]
      %v391 = vld [vmem:[#allocation2 + $0x1f8] sm:$0xff]
      %v392 = vld [vmem:[%s236] sm:$0xf]
      %v393 = vld [vmem:[%s236 + $0x4] sm:$0xf]
      %v394 = vld [vmem:[%s236 + $0x8] sm:$0xf]
      %v395 = vld [vmem:[%s236 + $0xc] sm:$0xf]
      %v396 = vld [vmem:[%s236 + $0x10] sm:$0xf]
      %v397 = vld [vmem:[%s236 + $0x14] sm:$0xf]
      %v398 = vld [vmem:[%s236 + $0x18] sm:$0xf]
      %v399 = vld [vmem:[%s236 + $0x1c] sm:$0xf]
      %v400 = vld [vmem:[%s236 + $0x20] sm:$0xf]
      %v401 = vld [vmem:[%s236 + $0x24] sm:$0xf]
      %v402 = vld [vmem:[%s236 + $0x28] sm:$0xf]
      %v403 = vld [vmem:[%s236 + $0x2c] sm:$0xf]
      %v404 = vld [vmem:[%s236 + $0x30] sm:$0xf]
      %v405 = vld [vmem:[%s236 + $0x34] sm:$0xf]
      %v406 = vld [vmem:[%s236 + $0x38] sm:$0xf]
      %v407 = vld [vmem:[%s236 + $0x3c] sm:$0xf]
      %v408 = vld [vmem:[%s236 + $0x40] sm:$0xf]
      %v409 = vld [vmem:[%s236 + $0x44] sm:$0xf]
      %v410 = vld [vmem:[%s236 + $0x48] sm:$0xf]
      %v411 = vld [vmem:[%s236 + $0x4c] sm:$0xf]
      %v412 = vld [vmem:[%s236 + $0x50] sm:$0xf]
      %v413 = vld [vmem:[%s236 + $0x54] sm:$0xf]
      %v414 = vld [vmem:[%s236 + $0x58] sm:$0xf]
      %v415 = vld [vmem:[%s236 + $0x5c] sm:$0xf]
      %v416 = vld [vmem:[%s236 + $0x60] sm:$0xf]
      %v417 = vld [vmem:[%s236 + $0x64] sm:$0xf]
      %v418 = vld [vmem:[%s236 + $0x68] sm:$0xf]
      %v419 = vld [vmem:[%s236 + $0x6c] sm:$0xf]
      %v420 = vld [vmem:[%s236 + $0x70] sm:$0xf]
      %v421 = vld [vmem:[%s236 + $0x74] sm:$0xf]
      %v422 = vld [vmem:[%s236 + $0x78] sm:$0xf]
      %v423 = vld [vmem:[%s236 + $0x7c] sm:$0xf]
      %v424 = vld [vmem:[%s236 + $0x80] sm:$0xf]
      %v425 = vld [vmem:[%s236 + $0x84] sm:$0xf]
      %v426 = vld [vmem:[%s236 + $0x88] sm:$0xf]
      %v427 = vld [vmem:[%s236 + $0x8c] sm:$0xf]
      %v428 = vld [vmem:[%s236 + $0x90] sm:$0xf]
      %v429 = vld [vmem:[%s236 + $0x94] sm:$0xf]
      %v430 = vld [vmem:[%s236 + $0x98] sm:$0xf]
      %v431 = vld [vmem:[%s236 + $0x9c] sm:$0xf]
      %v432 = vld [vmem:[%s236 + $0xa0] sm:$0xf]
      %v433 = vld [vmem:[%s236 + $0xa4] sm:$0xf]
      %v434 = vld [vmem:[%s236 + $0xa8] sm:$0xf]
      %v435 = vld [vmem:[%s236 + $0xac] sm:$0xf]
      %v436 = vld [vmem:[%s236 + $0xb0] sm:$0xf]
      %v437 = vld [vmem:[%s236 + $0xb4] sm:$0xf]
      %v438 = vld [vmem:[%s236 + $0xb8] sm:$0xf]
      %v439 = vld [vmem:[%s236 + $0xbc] sm:$0xf]
      %v440 = vld [vmem:[%s236 + $0xc0] sm:$0xf]
      %v441 = vld [vmem:[%s236 + $0xc4] sm:$0xf]
      %v442 = vld [vmem:[%s236 + $0xc8] sm:$0xf]
      %v443 = vld [vmem:[%s236 + $0xcc] sm:$0xf]
      %v444 = vld [vmem:[%s236 + $0xd0] sm:$0xf]
      %v445 = vld [vmem:[%s236 + $0xd4] sm:$0xf]
      %v446 = vld [vmem:[%s236 + $0xd8] sm:$0xf]
      %v447 = vld [vmem:[%s236 + $0xdc] sm:$0xf]
      %v448 = vld [vmem:[%s236 + $0xe0] sm:$0xf]
      %v449 = vld [vmem:[%s236 + $0xe4] sm:$0xf]
      %v450 = vld [vmem:[%s236 + $0xe8] sm:$0xf]
      %v451 = vld [vmem:[%s236 + $0xec] sm:$0xf]
      %v452 = vld [vmem:[%s236 + $0xf0] sm:$0xf]
      %v453 = vld [vmem:[%s236 + $0xf4] sm:$0xf]
      %v454 = vld [vmem:[%s236 + $0xf8] sm:$0xf]
      %v455 = vld [vmem:[%s236 + $0xfc] sm:$0xf]
      %v456 = vld [vmem:[%s245] sm:$0xf]
      %v457 = vld [vmem:[%s245 + $0x4] sm:$0xf]
      %v458 = vld [vmem:[%s245 + $0x8] sm:$0xf]
      %v459 = vld [vmem:[%s245 + $0xc] sm:$0xf]
      %v460 = vld [vmem:[%s245 + $0x10] sm:$0xf]
      %v461 = vld [vmem:[%s245 + $0x14] sm:$0xf]
      %v462 = vld [vmem:[%s245 + $0x18] sm:$0xf]
      %v463 = vld [vmem:[%s245 + $0x1c] sm:$0xf]
      %v464 = vld [vmem:[%s245 + $0x20] sm:$0xf]
      %v465 = vld [vmem:[%s245 + $0x24] sm:$0xf]
      %v466 = vld [vmem:[%s245 + $0x28] sm:$0xf]
      %v467 = vld [vmem:[%s245 + $0x2c] sm:$0xf]
      %v468 = vld [vmem:[%s245 + $0x30] sm:$0xf]
      %v469 = vld [vmem:[%s245 + $0x34] sm:$0xf]
      %v470 = vld [vmem:[%s245 + $0x38] sm:$0xf]
      %v471 = vld [vmem:[%s245 + $0x3c] sm:$0xf]
      %v536 = vunpack.c.l.b16 %v392
      %v537 = vunpack.c.l.b16 %v393
      %v538 = vunpack.c.l.b16 %v394
      %v539 = vunpack.c.l.b16 %v395
      %v540 = vunpack.c.l.b16 %v396
      %v541 = vunpack.c.l.b16 %v397
      %v542 = vunpack.c.l.b16 %v398
      %v543 = vunpack.c.l.b16 %v399
      %v544 = vunpack.c.l.b16 %v400
      %v545 = vunpack.c.l.b16 %v401
      %v546 = vunpack.c.l.b16 %v402
      %v547 = vunpack.c.l.b16 %v403
      %v548 = vunpack.c.l.b16 %v404
      %v549 = vunpack.c.l.b16 %v405
      %v550 = vunpack.c.l.b16 %v406
      %v551 = vunpack.c.l.b16 %v407
      %v552 = vunpack.c.l.b16 %v408
      %v553 = vunpack.c.l.b16 %v409
      %v554 = vunpack.c.l.b16 %v410
      %v555 = vunpack.c.l.b16 %v411
      %v556 = vunpack.c.l.b16 %v412
      %v557 = vunpack.c.l.b16 %v413
      %v558 = vunpack.c.l.b16 %v414
      %v559 = vunpack.c.l.b16 %v415
      %v560 = vunpack.c.l.b16 %v416
      %v561 = vunpack.c.l.b16 %v417
      %v562 = vunpack.c.l.b16 %v418
      %v563 = vunpack.c.l.b16 %v419
      %v564 = vunpack.c.l.b16 %v420
      %v565 = vunpack.c.l.b16 %v421
      %v566 = vunpack.c.l.b16 %v422
      %v567 = vunpack.c.l.b16 %v423
      %v568 = vunpack.c.l.b16 %v424
      %v569 = vunpack.c.l.b16 %v425
      %v570 = vunpack.c.l.b16 %v426
      %v571 = vunpack.c.l.b16 %v427
      %v572 = vunpack.c.l.b16 %v428
      %v573 = vunpack.c.l.b16 %v429
      %v574 = vunpack.c.l.b16 %v430
      %v575 = vunpack.c.l.b16 %v431
      %v576 = vunpack.c.l.b16 %v432
      %v577 = vunpack.c.l.b16 %v433
      %v578 = vunpack.c.l.b16 %v434
      %v579 = vunpack.c.l.b16 %v435
      %v580 = vunpack.c.l.b16 %v436
      %v581 = vunpack.c.l.b16 %v437
      %v582 = vunpack.c.l.b16 %v438
      %v583 = vunpack.c.l.b16 %v439
      %v584 = vunpack.c.l.b16 %v440
      %v585 = vunpack.c.l.b16 %v441
      %v586 = vunpack.c.l.b16 %v442
      %v587 = vunpack.c.l.b16 %v443
      %v588 = vunpack.c.l.b16 %v444
      %v589 = vunpack.c.l.b16 %v445
      %v590 = vunpack.c.l.b16 %v446
      %v591 = vunpack.c.l.b16 %v447
      %v592 = vunpack.c.l.b16 %v448
      %v593 = vunpack.c.l.b16 %v449
      %v594 = vunpack.c.l.b16 %v450
      %v595 = vunpack.c.l.b16 %v451
      %v596 = vunpack.c.l.b16 %v452
      %v597 = vunpack.c.l.b16 %v453
      %v598 = vunpack.c.l.b16 %v454
      %v599 = vunpack.c.l.b16 %v455
      %v600 = vpack.c.b16 %v537, %v536
      %v601 = vpack.c.b16 %v539, %v538
      %v602 = vpack.c.b16 %v541, %v540
      %v603 = vpack.c.b16 %v543, %v542
      %v604 = vpack.c.b16 %v545, %v544
      %v605 = vpack.c.b16 %v547, %v546
      %v606 = vpack.c.b16 %v549, %v548
      %v607 = vpack.c.b16 %v551, %v550
      %v608 = vpack.c.b16 %v553, %v552
      %v609 = vpack.c.b16 %v555, %v554
      %v610 = vpack.c.b16 %v557, %v556
      %v611 = vpack.c.b16 %v559, %v558
      %v612 = vpack.c.b16 %v561, %v560
      %v613 = vpack.c.b16 %v563, %v562
      %v614 = vpack.c.b16 %v565, %v564
      %v615 = vpack.c.b16 %v567, %v566
      %v616 = vpack.c.b16 %v569, %v568
      %v617 = vpack.c.b16 %v571, %v570
      %v618 = vpack.c.b16 %v573, %v572
      %v619 = vpack.c.b16 %v575, %v574
      %v620 = vpack.c.b16 %v577, %v576
      %v621 = vpack.c.b16 %v579, %v578
      %v622 = vpack.c.b16 %v581, %v580
      %v623 = vpack.c.b16 %v583, %v582
      %v624 = vpack.c.b16 %v585, %v584
      %v625 = vpack.c.b16 %v587, %v586
      %v626 = vpack.c.b16 %v589, %v588
      %v627 = vpack.c.b16 %v591, %v590
      %v628 = vpack.c.b16 %v593, %v592
      %v629 = vpack.c.b16 %v595, %v594
      %v630 = vpack.c.b16 %v597, %v596
      %v631 = vpack.c.b16 %v599, %v598
      %v680 = vunpack.c.l.b16 %v456
      %v681 = vunpack.c.l.b16 %v457
      %v682 = vunpack.c.l.b16 %v458
      %v683 = vunpack.c.l.b16 %v459
      %v684 = vunpack.c.l.b16 %v460
      %v685 = vunpack.c.l.b16 %v461
      %v686 = vunpack.c.l.b16 %v462
      %v687 = vunpack.c.l.b16 %v463
      %v688 = vunpack.c.l.b16 %v464
      %v689 = vunpack.c.l.b16 %v465
      %v690 = vunpack.c.l.b16 %v466
      %v691 = vunpack.c.l.b16 %v467
      %v692 = vunpack.c.l.b16 %v468
      %v693 = vunpack.c.l.b16 %v469
      %v694 = vunpack.c.l.b16 %v470
      %v695 = vunpack.c.l.b16 %v471
      %v696 = vpack.c.b16 %v681, %v680
      %v697 = vpack.c.b16 %v683, %v682
      %v698 = vpack.c.b16 %v685, %v684
      %v699 = vpack.c.b16 %v687, %v686
      %v700 = vpack.c.b16 %v689, %v688
      %v701 = vpack.c.b16 %v691, %v690
      %v702 = vpack.c.b16 %v693, %v692
      %v703 = vpack.c.b16 %v695, %v694
      %712 = vmatprep.subr.bf16.mxu0 0
      %713 = vmatpush1.bf16.msra.mxu0 %v703
      %714 = vmatprep.subr.bf16.mxu0 0
      %715 = vmatpush1.bf16.msra.mxu0 %v702
      %716 = vmatprep.subr.bf16.mxu0 0
      %717 = vmatpush1.bf16.msra.mxu0 %v701
      %718 = vmatprep.subr.bf16.mxu0 0
      %719 = vmatpush1.bf16.msra.mxu0 %v700
      %720 = vmatprep.subr.bf16.mxu0 0
      %721 = vmatpush1.bf16.msra.mxu0 %v699
      %722 = vmatprep.subr.bf16.mxu0 0
      %723 = vmatpush1.bf16.msra.mxu0 %v698
      %724 = vmatprep.subr.bf16.mxu0 0
      %725 = vmatpush1.bf16.msra.mxu0 %v697
      %726 = vmatprep.subr.bf16.mxu0 0
      %727 = vmatpush1.bf16.msra.mxu0 %v696
      %728 = vmatprep.subr.bf16.mxu0 0
      %729 = vmatpush2.bf16.msra.mxu0 0
      %730 = vmatprep.subr.bf16.mxu0 0
      %731 = vmatpush2.bf16.msra.mxu0 0
      %732 = vmatprep.subr.bf16.mxu0 0
      %733 = vmatpush2.bf16.msra.mxu0 0
      %734 = vmatprep.subr.bf16.mxu0 0
      %735 = vmatpush2.bf16.msra.mxu0 0
      %736 = vmatprep.subr.bf16.mxu0 0
      %737 = vmatpush2.bf16.msra.mxu0 0
      %738 = vmatprep.subr.bf16.mxu0 0
      %739 = vmatpush2.bf16.msra.mxu0 0
      %740 = vmatprep.subr.bf16.mxu0 0
      %741 = vmatpush2.bf16.msra.mxu0 0
      %742 = vmatprep.subr.bf16.mxu0 0
      %743 = vmatpush2.bf16.msra.mxu0 0
      %744 = vmatprep.mubr.bf16.mxu0 0
      %745 = vmatmul.mubr.bf16.gmra.mxu0 %v600
      %v746 = vpop.f32.mrf.mxu0
      %v747 = vadd.f32 0.0, %v746
      %v748 = vpop.f32.mrf.mxu0
      %v749 = vpop.f32.mrf.mxu0
      %v750 = vadd.f32 0.0, %v749
      %v751 = vpop.f32.mrf.mxu0
      %752 = vmatprep.mubr.bf16.mxu0 0
      %753 = vmatmul.mubr.bf16.gmra.mxu0 %v601
      %v754 = vpop.f32.mrf.mxu0
      %v755 = vadd.f32 0.0, %v754
      %v756 = vpop.f32.mrf.mxu0
      %v757 = vpop.f32.mrf.mxu0
      %v758 = vadd.f32 0.0, %v757
      %v759 = vpop.f32.mrf.mxu0
      %760 = vmatprep.mubr.bf16.mxu0 0
      %761 = vmatmul.mubr.bf16.gmra.mxu0 %v602
      %v762 = vpop.f32.mrf.mxu0
      %v763 = vadd.f32 0.0, %v762
      %v764 = vpop.f32.mrf.mxu0
      %v765 = vpop.f32.mrf.mxu0
      %v766 = vadd.f32 0.0, %v765
      %v767 = vpop.f32.mrf.mxu0
      %768 = vmatprep.mubr.bf16.mxu0 0
      %769 = vmatmul.mubr.bf16.gmra.mxu0 %v603
      %v770 = vpop.f32.mrf.mxu0
      %v771 = vadd.f32 0.0, %v770
      %v772 = vpop.f32.mrf.mxu0
      %v773 = vpop.f32.mrf.mxu0
      %v774 = vadd.f32 0.0, %v773
      %v775 = vpop.f32.mrf.mxu0
      %776 = vmatprep.mubr.bf16.mxu0 0
      %777 = vmatmul.mubr.bf16.gmra.mxu0 %v604
      %v778 = vpop.f32.mrf.mxu0
      %v779 = vadd.f32 0.0, %v778
      %v780 = vpop.f32.mrf.mxu0
      %v781 = vpop.f32.mrf.mxu0
      %v782 = vadd.f32 0.0, %v781
      %v783 = vpop.f32.mrf.mxu0
      %784 = vmatprep.mubr.bf16.mxu0 0
      %785 = vmatmul.mubr.bf16.gmra.mxu0 %v605
      %v786 = vpop.f32.mrf.mxu0
      %v787 = vadd.f32 0.0, %v786
      %v788 = vpop.f32.mrf.mxu0
      %v789 = vpop.f32.mrf.mxu0
      %v790 = vadd.f32 0.0, %v789
      %v791 = vpop.f32.mrf.mxu0
      %792 = vmatprep.mubr.bf16.mxu0 0
      %793 = vmatmul.mubr.bf16.gmra.mxu0 %v606
      %v794 = vpop.f32.mrf.mxu0
      %v795 = vadd.f32 0.0, %v794
      %v796 = vpop.f32.mrf.mxu0
      %v797 = vpop.f32.mrf.mxu0
      %v798 = vadd.f32 0.0, %v797
      %v799 = vpop.f32.mrf.mxu0
      %800 = vmatprep.mubr.bf16.mxu0 0
      %801 = vmatmul.mubr.bf16.gmra.mxu0 %v607
      %v802 = vpop.f32.mrf.mxu0
      %v803 = vadd.f32 0.0, %v802
      %v804 = vpop.f32.mrf.mxu0
      %v805 = vpop.f32.mrf.mxu0
      %v806 = vadd.f32 0.0, %v805
      %v807 = vpop.f32.mrf.mxu0
      %808 = vmatprep.mubr.bf16.mxu0 0
      %809 = vmatmul.mubr.bf16.gmra.mxu0 %v608
      %v810 = vpop.f32.mrf.mxu0
      %v811 = vadd.f32 0.0, %v810
      %v812 = vpop.f32.mrf.mxu0
      %v813 = vpop.f32.mrf.mxu0
      %v814 = vadd.f32 0.0, %v813
      %v815 = vpop.f32.mrf.mxu0
      %816 = vmatprep.mubr.bf16.mxu0 0
      %817 = vmatmul.mubr.bf16.gmra.mxu0 %v609
      %v818 = vpop.f32.mrf.mxu0
      %v819 = vadd.f32 0.0, %v818
      %v820 = vpop.f32.mrf.mxu0
      %v821 = vpop.f32.mrf.mxu0
      %v822 = vadd.f32 0.0, %v821
      %v823 = vpop.f32.mrf.mxu0
      %824 = vmatprep.mubr.bf16.mxu0 0
      %825 = vmatmul.mubr.bf16.gmra.mxu0 %v610
      %v826 = vpop.f32.mrf.mxu0
      %v827 = vadd.f32 0.0, %v826
      %v828 = vpop.f32.mrf.mxu0
      %v829 = vpop.f32.mrf.mxu0
      %v830 = vadd.f32 0.0, %v829
      %v831 = vpop.f32.mrf.mxu0
      %832 = vmatprep.mubr.bf16.mxu0 0
      %833 = vmatmul.mubr.bf16.gmra.mxu0 %v611
      %v834 = vpop.f32.mrf.mxu0
      %v835 = vadd.f32 0.0, %v834
      %v836 = vpop.f32.mrf.mxu0
      %v837 = vpop.f32.mrf.mxu0
      %v838 = vadd.f32 0.0, %v837
      %v839 = vpop.f32.mrf.mxu0
      %840 = vmatprep.mubr.bf16.mxu0 0
      %841 = vmatmul.mubr.bf16.gmra.mxu0 %v612
      %v842 = vpop.f32.mrf.mxu0
      %v843 = vadd.f32 0.0, %v842
      %v844 = vpop.f32.mrf.mxu0
      %v845 = vpop.f32.mrf.mxu0
      %v846 = vadd.f32 0.0, %v845
      %v847 = vpop.f32.mrf.mxu0
      %848 = vmatprep.mubr.bf16.mxu0 0
      %849 = vmatmul.mubr.bf16.gmra.mxu0 %v613
      %v850 = vpop.f32.mrf.mxu0
      %v851 = vadd.f32 0.0, %v850
      %v852 = vpop.f32.mrf.mxu0
      %v853 = vpop.f32.mrf.mxu0
      %v854 = vadd.f32 0.0, %v853
      %v855 = vpop.f32.mrf.mxu0
      %856 = vmatprep.mubr.bf16.mxu0 0
      %857 = vmatmul.mubr.bf16.gmra.mxu0 %v614
      %v858 = vpop.f32.mrf.mxu0
      %v859 = vadd.f32 0.0, %v858
      %v860 = vpop.f32.mrf.mxu0
      %v861 = vpop.f32.mrf.mxu0
      %v862 = vadd.f32 0.0, %v861
      %v863 = vpop.f32.mrf.mxu0
      %864 = vmatprep.mubr.bf16.mxu0 0
      %865 = vmatmul.mubr.bf16.gmra.mxu0 %v615
      %v866 = vpop.f32.mrf.mxu0
      %v867 = vadd.f32 0.0, %v866
      %v868 = vpop.f32.mrf.mxu0
      %v869 = vpop.f32.mrf.mxu0
      %v870 = vadd.f32 0.0, %v869
      %v871 = vpop.f32.mrf.mxu0
      %872 = vmatprep.mubr.bf16.mxu0 0
      %873 = vmatmul.mubr.bf16.gmra.mxu0 %v616
      %v874 = vpop.f32.mrf.mxu0
      %v875 = vadd.f32 0.0, %v874
      %v876 = vpop.f32.mrf.mxu0
      %v877 = vpop.f32.mrf.mxu0
      %v878 = vadd.f32 0.0, %v877
      %v879 = vpop.f32.mrf.mxu0
      %880 = vmatprep.mubr.bf16.mxu0 0
      %881 = vmatmul.mubr.bf16.gmra.mxu0 %v617
      %v882 = vpop.f32.mrf.mxu0
      %v883 = vadd.f32 0.0, %v882
      %v884 = vpop.f32.mrf.mxu0
      %v885 = vpop.f32.mrf.mxu0
      %v886 = vadd.f32 0.0, %v885
      %v887 = vpop.f32.mrf.mxu0
      %888 = vmatprep.mubr.bf16.mxu0 0
      %889 = vmatmul.mubr.bf16.gmra.mxu0 %v618
      %v890 = vpop.f32.mrf.mxu0
      %v891 = vadd.f32 0.0, %v890
      %v892 = vpop.f32.mrf.mxu0
      %v893 = vpop.f32.mrf.mxu0
      %v894 = vadd.f32 0.0, %v893
      %v895 = vpop.f32.mrf.mxu0
      %896 = vmatprep.mubr.bf16.mxu0 0
      %897 = vmatmul.mubr.bf16.gmra.mxu0 %v619
      %v898 = vpop.f32.mrf.mxu0
      %v899 = vadd.f32 0.0, %v898
      %v900 = vpop.f32.mrf.mxu0
      %v901 = vpop.f32.mrf.mxu0
      %v902 = vadd.f32 0.0, %v901
      %v903 = vpop.f32.mrf.mxu0
      %904 = vmatprep.mubr.bf16.mxu0 0
      %905 = vmatmul.mubr.bf16.gmra.mxu0 %v620
      %v906 = vpop.f32.mrf.mxu0
      %v907 = vadd.f32 0.0, %v906
      %v908 = vpop.f32.mrf.mxu0
      %v909 = vpop.f32.mrf.mxu0
      %v910 = vadd.f32 0.0, %v909
      %v911 = vpop.f32.mrf.mxu0
      %912 = vmatprep.mubr.bf16.mxu0 0
      %913 = vmatmul.mubr.bf16.gmra.mxu0 %v621
      %v914 = vpop.f32.mrf.mxu0
      %v915 = vadd.f32 0.0, %v914
      %v916 = vpop.f32.mrf.mxu0
      %v917 = vpop.f32.mrf.mxu0
      %v918 = vadd.f32 0.0, %v917
      %v919 = vpop.f32.mrf.mxu0
      %920 = vmatprep.mubr.bf16.mxu0 0
      %921 = vmatmul.mubr.bf16.gmra.mxu0 %v622
      %v922 = vpop.f32.mrf.mxu0
      %v923 = vadd.f32 0.0, %v922
      %v924 = vpop.f32.mrf.mxu0
      %v925 = vpop.f32.mrf.mxu0
      %v926 = vadd.f32 0.0, %v925
      %v927 = vpop.f32.mrf.mxu0
      %928 = vmatprep.mubr.bf16.mxu0 0
      %929 = vmatmul.mubr.bf16.gmra.mxu0 %v623
      %v930 = vpop.f32.mrf.mxu0
      %v931 = vadd.f32 0.0, %v930
      %v932 = vpop.f32.mrf.mxu0
      %v933 = vpop.f32.mrf.mxu0
      %v934 = vadd.f32 0.0, %v933
      %v935 = vpop.f32.mrf.mxu0
      %936 = vmatprep.mubr.bf16.mxu0 0
      %937 = vmatmul.mubr.bf16.gmra.mxu0 %v624
      %v938 = vpop.f32.mrf.mxu0
      %v939 = vadd.f32 0.0, %v938
      %v940 = vpop.f32.mrf.mxu0
      %v941 = vpop.f32.mrf.mxu0
      %v942 = vadd.f32 0.0, %v941
      %v943 = vpop.f32.mrf.mxu0
      %944 = vmatprep.mubr.bf16.mxu0 0
      %945 = vmatmul.mubr.bf16.gmra.mxu0 %v625
      %v946 = vpop.f32.mrf.mxu0
      %v947 = vadd.f32 0.0, %v946
      %v948 = vpop.f32.mrf.mxu0
      %v949 = vpop.f32.mrf.mxu0
      %v950 = vadd.f32 0.0, %v949
      %v951 = vpop.f32.mrf.mxu0
      %952 = vmatprep.mubr.bf16.mxu0 0
      %953 = vmatmul.mubr.bf16.gmra.mxu0 %v626
      %v954 = vpop.f32.mrf.mxu0
      %v955 = vadd.f32 0.0, %v954
      %v956 = vpop.f32.mrf.mxu0
      %v957 = vpop.f32.mrf.mxu0
      %v958 = vadd.f32 0.0, %v957
      %v959 = vpop.f32.mrf.mxu0
      %960 = vmatprep.mubr.bf16.mxu0 0
      %961 = vmatmul.mubr.bf16.gmra.mxu0 %v627
      %v962 = vpop.f32.mrf.mxu0
      %v963 = vadd.f32 0.0, %v962
      %v964 = vpop.f32.mrf.mxu0
      %v965 = vpop.f32.mrf.mxu0
      %v966 = vadd.f32 0.0, %v965
      %v967 = vpop.f32.mrf.mxu0
      %968 = vmatprep.mubr.bf16.mxu0 0
      %969 = vmatmul.mubr.bf16.gmra.mxu0 %v628
      %v970 = vpop.f32.mrf.mxu0
      %v971 = vadd.f32 0.0, %v970
      %v972 = vpop.f32.mrf.mxu0
      %v973 = vpop.f32.mrf.mxu0
      %v974 = vadd.f32 0.0, %v973
      %v975 = vpop.f32.mrf.mxu0
      %976 = vmatprep.mubr.bf16.mxu0 0
      %977 = vmatmul.mubr.bf16.gmra.mxu0 %v629
      %v978 = vpop.f32.mrf.mxu0
      %v979 = vadd.f32 0.0, %v978
      %v980 = vpop.f32.mrf.mxu0
      %v981 = vpop.f32.mrf.mxu0
      %v982 = vadd.f32 0.0, %v981
      %v983 = vpop.f32.mrf.mxu0
      %984 = vmatprep.mubr.bf16.mxu0 0
      %985 = vmatmul.mubr.bf16.gmra.mxu0 %v630
      %v986 = vpop.f32.mrf.mxu0
      %v987 = vadd.f32 0.0, %v986
      %v988 = vpop.f32.mrf.mxu0
      %v989 = vpop.f32.mrf.mxu0
      %v990 = vadd.f32 0.0, %v989
      %v991 = vpop.f32.mrf.mxu0
      %992 = vmatprep.mubr.bf16.mxu0 0
      %993 = vmatmul.mubr.bf16.gmra.mxu0 %v631
      %v994 = vpop.f32.mrf.mxu0
      %v995 = vadd.f32 0.0, %v994
      %v996 = vpop.f32.mrf.mxu0
      %v997 = vpop.f32.mrf.mxu0
      %v998 = vadd.f32 0.0, %v997
      %v999 = vpop.f32.mrf.mxu0
      %1000 = vdwg.mxu0
      %v1001 = vadd.f32 %v328, %v747
      %v1002 = vadd.f32 %v329, %v750
      %v1003 = vadd.f32 %v330, %v755
      %v1004 = vadd.f32 %v331, %v758
      %v1005 = vadd.f32 %v332, %v763
      %v1006 = vadd.f32 %v333, %v766
      %v1007 = vadd.f32 %v334, %v771
      %v1008 = vadd.f32 %v335, %v774
      %v1009 = vadd.f32 %v336, %v779
      %v1010 = vadd.f32 %v337, %v782
      %v1011 = vadd.f32 %v338, %v787
      %v1012 = vadd.f32 %v339, %v790
      %v1013 = vadd.f32 %v340, %v795
      %v1014 = vadd.f32 %v341, %v798
      %v1015 = vadd.f32 %v342, %v803
      %v1016 = vadd.f32 %v343, %v806
      %v1017 = vadd.f32 %v344, %v811
      %v1018 = vadd.f32 %v345, %v814
      %v1019 = vadd.f32 %v346, %v819
      %v1020 = vadd.f32 %v347, %v822
      %v1021 = vadd.f32 %v348, %v827
      %v1022 = vadd.f32 %v349, %v830
      %v1023 = vadd.f32 %v350, %v835
      %v1024 = vadd.f32 %v351, %v838
      %v1025 = vadd.f32 %v352, %v843
      %v1026 = vadd.f32 %v353, %v846
      %v1027 = vadd.f32 %v354, %v851
      %v1028 = vadd.f32 %v355, %v854
      %v1029 = vadd.f32 %v356, %v859
      %v1030 = vadd.f32 %v357, %v862
      %v1031 = vadd.f32 %v358, %v867
      %v1032 = vadd.f32 %v359, %v870
      %v1033 = vadd.f32 %v360, %v875
      %v1034 = vadd.f32 %v361, %v878
      %v1035 = vadd.f32 %v362, %v883
      %v1036 = vadd.f32 %v363, %v886
      %v1037 = vadd.f32 %v364, %v891
      %v1038 = vadd.f32 %v365, %v894
      %v1039 = vadd.f32 %v366, %v899
      %v1040 = vadd.f32 %v367, %v902
      %v1041 = vadd.f32 %v368, %v907
      %v1042 = vadd.f32 %v369, %v910
      %v1043 = vadd.f32 %v370, %v915
      %v1044 = vadd.f32 %v371, %v918
      %v1045 = vadd.f32 %v372, %v923
      %v1046 = vadd.f32 %v373, %v926
      %v1047 = vadd.f32 %v374, %v931
      %v1048 = vadd.f32 %v375, %v934
      %v1049 = vadd.f32 %v376, %v939
      %v1050 = vadd.f32 %v377, %v942
      %v1051 = vadd.f32 %v378, %v947
      %v1052 = vadd.f32 %v379, %v950
      %v1053 = vadd.f32 %v380, %v955
      %v1054 = vadd.f32 %v381, %v958
      %v1055 = vadd.f32 %v382, %v963
      %v1056 = vadd.f32 %v383, %v966
      %v1057 = vadd.f32 %v384, %v971
      %v1058 = vadd.f32 %v385, %v974
      %v1059 = vadd.f32 %v386, %v979
      %v1060 = vadd.f32 %v387, %v982
      %v1061 = vadd.f32 %v388, %v987
      %v1062 = vadd.f32 %v389, %v990
      %v1063 = vadd.f32 %v390, %v995
      %v1064 = vadd.f32 %v391, %v998
      %1065 = vst [vmem:[#allocation2] sm:$0xff] %v1001
      %1066 = vst [vmem:[#allocation2 + $0x8] sm:$0xff] %v1002
      %1067 = vst [vmem:[#allocation2 + $0x10] sm:$0xff] %v1003
      %1068 = vst [vmem:[#allocation2 + $0x18] sm:$0xff] %v1004
      %1069 = vst [vmem:[#allocation2 + $0x20] sm:$0xff] %v1005
      %1070 = vst [vmem:[#allocation2 + $0x28] sm:$0xff] %v1006
      %1071 = vst [vmem:[#allocation2 + $0x30] sm:$0xff] %v1007
      %1072 = vst [vmem:[#allocation2 + $0x38] sm:$0xff] %v1008
      %1073 = vst [vmem:[#allocation2 + $0x40] sm:$0xff] %v1009
      %1074 = vst [vmem:[#allocation2 + $0x48] sm:$0xff] %v1010
      %1075 = vst [vmem:[#allocation2 + $0x50] sm:$0xff] %v1011
      %1076 = vst [vmem:[#allocation2 + $0x58] sm:$0xff] %v1012
      %1077 = vst [vmem:[#allocation2 + $0x60] sm:$0xff] %v1013
      %1078 = vst [vmem:[#allocation2 + $0x68] sm:$0xff] %v1014
      %1079 = vst [vmem:[#allocation2 + $0x70] sm:$0xff] %v1015
      %1080 = vst [vmem:[#allocation2 + $0x78] sm:$0xff] %v1016
      %1081 = vst [vmem:[#allocation2 + $0x80] sm:$0xff] %v1017
      %1082 = vst [vmem:[#allocation2 + $0x88] sm:$0xff] %v1018
      %1083 = vst [vmem:[#allocation2 + $0x90] sm:$0xff] %v1019
      %1084 = vst [vmem:[#allocation2 + $0x98] sm:$0xff] %v1020
      %1085 = vst [vmem:[#allocation2 + $0xa0] sm:$0xff] %v1021
      %1086 = vst [vmem:[#allocation2 + $0xa8] sm:$0xff] %v1022
      %1087 = vst [vmem:[#allocation2 + $0xb0] sm:$0xff] %v1023
      %1088 = vst [vmem:[#allocation2 + $0xb8] sm:$0xff] %v1024
      %1089 = vst [vmem:[#allocation2 + $0xc0] sm:$0xff] %v1025
      %1090 = vst [vmem:[#allocation2 + $0xc8] sm:$0xff] %v1026
      %1091 = vst [vmem:[#allocation2 + $0xd0] sm:$0xff] %v1027
      %1092 = vst [vmem:[#allocation2 + $0xd8] sm:$0xff] %v1028
      %1093 = vst [vmem:[#allocation2 + $0xe0] sm:$0xff] %v1029
      %1094 = vst [vmem:[#allocation2 + $0xe8] sm:$0xff] %v1030
      %1095 = vst [vmem:[#allocation2 + $0xf0] sm:$0xff] %v1031
      %1096 = vst [vmem:[#allocation2 + $0xf8] sm:$0xff] %v1032
      %1097 = vst [vmem:[#allocation2 + $0x100] sm:$0xff] %v1033
      %1098 = vst [vmem:[#allocation2 + $0x108] sm:$0xff] %v1034
      %1099 = vst [vmem:[#allocation2 + $0x110] sm:$0xff] %v1035
      %1100 = vst [vmem:[#allocation2 + $0x118] sm:$0xff] %v1036
      %1101 = vst [vmem:[#allocation2 + $0x120] sm:$0xff] %v1037
      %1102 = vst [vmem:[#allocation2 + $0x128] sm:$0xff] %v1038
      %1103 = vst [vmem:[#allocation2 + $0x130] sm:$0xff] %v1039
      %1104 = vst [vmem:[#allocation2 + $0x138] sm:$0xff] %v1040
      %1105 = vst [vmem:[#allocation2 + $0x140] sm:$0xff] %v1041
      %1106 = vst [vmem:[#allocation2 + $0x148] sm:$0xff] %v1042
      %1107 = vst [vmem:[#allocation2 + $0x150] sm:$0xff] %v1043
      %1108 = vst [vmem:[#allocation2 + $0x158] sm:$0xff] %v1044
      %1109 = vst [vmem:[#allocation2 + $0x160] sm:$0xff] %v1045
      %1110 = vst [vmem:[#allocation2 + $0x168] sm:$0xff] %v1046
      %1111 = vst [vmem:[#allocation2 + $0x170] sm:$0xff] %v1047
      %1112 = vst [vmem:[#allocation2 + $0x178] sm:$0xff] %v1048
      %1113 = vst [vmem:[#allocation2 + $0x180] sm:$0xff] %v1049
      %1114 = vst [vmem:[#allocation2 + $0x188] sm:$0xff] %v1050
      %1115 = vst [vmem:[#allocation2 + $0x190] sm:$0xff] %v1051
      %1116 = vst [vmem:[#allocation2 + $0x198] sm:$0xff] %v1052
      %1117 = vst [vmem:[#allocation2 + $0x1a0] sm:$0xff] %v1053
      %1118 = vst [vmem:[#allocation2 + $0x1a8] sm:$0xff] %v1054
      %1119 = vst [vmem:[#allocation2 + $0x1b0] sm:$0xff] %v1055
      %1120 = vst [vmem:[#allocation2 + $0x1b8] sm:$0xff] %v1056
      %1121 = vst [vmem:[#allocation2 + $0x1c0] sm:$0xff] %v1057
      %1122 = vst [vmem:[#allocation2 + $0x1c8] sm:$0xff] %v1058
      %1123 = vst [vmem:[#allocation2 + $0x1d0] sm:$0xff] %v1059
      %1124 = vst [vmem:[#allocation2 + $0x1d8] sm:$0xff] %v1060
      %1125 = vst [vmem:[#allocation2 + $0x1e0] sm:$0xff] %v1061
      %1126 = vst [vmem:[#allocation2 + $0x1e8] sm:$0xff] %v1062
      %1127 = vst [vmem:[#allocation2 + $0x1f0] sm:$0xff] %v1063
      %1128 = vst [vmem:[#allocation2 + $0x1f8] sm:$0xff] %v1064
      // Predicated region
      $region37: #{_lambda_.24} parent=31 // pred_check
        %p1129 = pneg %p260
      $region38: #{_lambda_.24} parent=31 // pred_check_branch
        %1131 = sbr.rel (%p1129) target = $region40
      $region39: #{_lambda_.24} parent=31 // pred_region
        %v1132 = vld [vmem:[#allocation2] sm:$0xff]
        %v1133 = vld [vmem:[#allocation2 + $0x8] sm:$0xff]
        %v1134 = vld [vmem:[#allocation2 + $0x10] sm:$0xff]
        %v1135 = vld [vmem:[#allocation2 + $0x18] sm:$0xff]
        %v1136 = vld [vmem:[#allocation2 + $0x20] sm:$0xff]
        %v1137 = vld [vmem:[#allocation2 + $0x28] sm:$0xff]
        %v1138 = vld [vmem:[#allocation2 + $0x30] sm:$0xff]
        %v1139 = vld [vmem:[#allocation2 + $0x38] sm:$0xff]
        %v1140 = vld [vmem:[#allocation2 + $0x40] sm:$0xff]
        %v1141 = vld [vmem:[#allocation2 + $0x48] sm:$0xff]
        %v1142 = vld [vmem:[#allocation2 + $0x50] sm:$0xff]
        %v1143 = vld [vmem:[#allocation2 + $0x58] sm:$0xff]
        %v1144 = vld [vmem:[#allocation2 + $0x60] sm:$0xff]
        %v1145 = vld [vmem:[#allocation2 + $0x68] sm:$0xff]
        %v1146 = vld [vmem:[#allocation2 + $0x70] sm:$0xff]
        %v1147 = vld [vmem:[#allocation2 + $0x78] sm:$0xff]
        %v1148 = vld [vmem:[#allocation2 + $0x80] sm:$0xff]
        %v1149 = vld [vmem:[#allocation2 + $0x88] sm:$0xff]
        %v1150 = vld [vmem:[#allocation2 + $0x90] sm:$0xff]
        %v1151 = vld [vmem:[#allocation2 + $0x98] sm:$0xff]
        %v1152 = vld [vmem:[#allocation2 + $0xa0] sm:$0xff]
        %v1153 = vld [vmem:[#allocation2 + $0xa8] sm:$0xff]
        %v1154 = vld [vmem:[#allocation2 + $0xb0] sm:$0xff]
        %v1155 = vld [vmem:[#allocation2 + $0xb8] sm:$0xff]
        %v1156 = vld [vmem:[#allocation2 + $0xc0] sm:$0xff]
        %v1157 = vld [vmem:[#allocation2 + $0xc8] sm:$0xff]
        %v1158 = vld [vmem:[#allocation2 + $0xd0] sm:$0xff]
        %v1159 = vld [vmem:[#allocation2 + $0xd8] sm:$0xff]
        %v1160 = vld [vmem:[#allocation2 + $0xe0] sm:$0xff]
        %v1161 = vld [vmem:[#allocation2 + $0xe8] sm:$0xff]
        %v1162 = vld [vmem:[#allocation2 + $0xf0] sm:$0xff]
        %v1163 = vld [vmem:[#allocation2 + $0xf8] sm:$0xff]
        %v1164 = vld [vmem:[#allocation2 + $0x100] sm:$0xff]
        %v1165 = vld [vmem:[#allocation2 + $0x108] sm:$0xff]
        %v1166 = vld [vmem:[#allocation2 + $0x110] sm:$0xff]
        %v1167 = vld [vmem:[#allocation2 + $0x118] sm:$0xff]
        %v1168 = vld [vmem:[#allocation2 + $0x120] sm:$0xff]
        %v1169 = vld [vmem:[#allocation2 + $0x128] sm:$0xff]
        %v1170 = vld [vmem:[#allocation2 + $0x130] sm:$0xff]
        %v1171 = vld [vmem:[#allocation2 + $0x138] sm:$0xff]
        %v1172 = vld [vmem:[#allocation2 + $0x140] sm:$0xff]
        %v1173 = vld [vmem:[#allocation2 + $0x148] sm:$0xff]
        %v1174 = vld [vmem:[#allocation2 + $0x150] sm:$0xff]
        %v1175 = vld [vmem:[#allocation2 + $0x158] sm:$0xff]
        %v1176 = vld [vmem:[#allocation2 + $0x160] sm:$0xff]
        %v1177 = vld [vmem:[#allocation2 + $0x168] sm:$0xff]
        %v1178 = vld [vmem:[#allocation2 + $0x170] sm:$0xff]
        %v1179 = vld [vmem:[#allocation2 + $0x178] sm:$0xff]
        %v1180 = vld [vmem:[#allocation2 + $0x180] sm:$0xff]
        %v1181 = vld [vmem:[#allocation2 + $0x188] sm:$0xff]
        %v1182 = vld [vmem:[#allocation2 + $0x190] sm:$0xff]
        %v1183 = vld [vmem:[#allocation2 + $0x198] sm:$0xff]
        %v1184 = vld [vmem:[#allocation2 + $0x1a0] sm:$0xff]
        %v1185 = vld [vmem:[#allocation2 + $0x1a8] sm:$0xff]
        %v1186 = vld [vmem:[#allocation2 + $0x1b0] sm:$0xff]
        %v1187 = vld [vmem:[#allocation2 + $0x1b8] sm:$0xff]
        %v1188 = vld [vmem:[#allocation2 + $0x1c0] sm:$0xff]
        %v1189 = vld [vmem:[#allocation2 + $0x1c8] sm:$0xff]
        %v1190 = vld [vmem:[#allocation2 + $0x1d0] sm:$0xff]
        %v1191 = vld [vmem:[#allocation2 + $0x1d8] sm:$0xff]
        %v1192 = vld [vmem:[#allocation2 + $0x1e0] sm:$0xff]
        %v1193 = vld [vmem:[#allocation2 + $0x1e8] sm:$0xff]
        %v1194 = vld [vmem:[#allocation2 + $0x1f0] sm:$0xff]
        %v1195 = vld [vmem:[#allocation2 + $0x1f8] sm:$0xff]
        %v1196 = vld [vmem:[%s249] sm:$0x1]
        %v1198 = vlaneseq
        %v1199 = vshrl.u32 %v1198, 7
        %v1200 = vsub.s32 0, %v1199
        %v1201 = vrot.slane %v1196, %v1200
        %v1203 = vadd.f32 %v1132, %v1201
        %v1204 = vadd.f32 %v1133, %v1201
        %v1205 = vadd.f32 %v1134, %v1201
        %v1206 = vadd.f32 %v1135, %v1201
        %v1207 = vadd.f32 %v1136, %v1201
        %v1208 = vadd.f32 %v1137, %v1201
        %v1209 = vadd.f32 %v1138, %v1201
        %v1210 = vadd.f32 %v1139, %v1201
        %v1211 = vadd.f32 %v1140, %v1201
        %v1212 = vadd.f32 %v1141, %v1201
        %v1213 = vadd.f32 %v1142, %v1201
        %v1214 = vadd.f32 %v1143, %v1201
        %v1215 = vadd.f32 %v1144, %v1201
        %v1216 = vadd.f32 %v1145, %v1201
        %v1217 = vadd.f32 %v1146, %v1201
        %v1218 = vadd.f32 %v1147, %v1201
        %v1219 = vadd.f32 %v1148, %v1201
        %v1220 = vadd.f32 %v1149, %v1201
        %v1221 = vadd.f32 %v1150, %v1201
        %v1222 = vadd.f32 %v1151, %v1201
        %v1223 = vadd.f32 %v1152, %v1201
        %v1224 = vadd.f32 %v1153, %v1201
        %v1225 = vadd.f32 %v1154, %v1201
        %v1226 = vadd.f32 %v1155, %v1201
        %v1227 = vadd.f32 %v1156, %v1201
        %v1228 = vadd.f32 %v1157, %v1201
        %v1229 = vadd.f32 %v1158, %v1201
        %v1230 = vadd.f32 %v1159, %v1201
        %v1231 = vadd.f32 %v1160, %v1201
        %v1232 = vadd.f32 %v1161, %v1201
        %v1233 = vadd.f32 %v1162, %v1201
        %v1234 = vadd.f32 %v1163, %v1201
        %v1235 = vadd.f32 %v1164, %v1201
        %v1236 = vadd.f32 %v1165, %v1201
        %v1237 = vadd.f32 %v1166, %v1201
        %v1238 = vadd.f32 %v1167, %v1201
        %v1239 = vadd.f32 %v1168, %v1201
        %v1240 = vadd.f32 %v1169, %v1201
        %v1241 = vadd.f32 %v1170, %v1201
        %v1242 = vadd.f32 %v1171, %v1201
        %v1243 = vadd.f32 %v1172, %v1201
        %v1244 = vadd.f32 %v1173, %v1201
        %v1245 = vadd.f32 %v1174, %v1201
        %v1246 = vadd.f32 %v1175, %v1201
        %v1247 = vadd.f32 %v1176, %v1201
        %v1248 = vadd.f32 %v1177, %v1201
        %v1249 = vadd.f32 %v1178, %v1201
        %v1250 = vadd.f32 %v1179, %v1201
        %v1251 = vadd.f32 %v1180, %v1201
        %v1252 = vadd.f32 %v1181, %v1201
        %v1253 = vadd.f32 %v1182, %v1201
        %v1254 = vadd.f32 %v1183, %v1201
        %v1255 = vadd.f32 %v1184, %v1201
        %v1256 = vadd.f32 %v1185, %v1201
        %v1257 = vadd.f32 %v1186, %v1201
        %v1258 = vadd.f32 %v1187, %v1201
        %v1259 = vadd.f32 %v1188, %v1201
        %v1260 = vadd.f32 %v1189, %v1201
        %v1261 = vadd.f32 %v1190, %v1201
        %v1262 = vadd.f32 %v1191, %v1201
        %v1263 = vadd.f32 %v1192, %v1201
        %v1264 = vadd.f32 %v1193, %v1201
        %v1265 = vadd.f32 %v1194, %v1201
        %v1266 = vadd.f32 %v1195, %v1201
        %vm1267 = vcmp.ge.f32.partialorder %v1203, 0.0
        %vm1268 = vcmp.ge.f32.partialorder %v1204, 0.0
        %vm1269 = vcmp.ge.f32.partialorder %v1205, 0.0
        %vm1270 = vcmp.ge.f32.partialorder %v1206, 0.0
        %vm1271 = vcmp.ge.f32.partialorder %v1207, 0.0
        %vm1272 = vcmp.ge.f32.partialorder %v1208, 0.0
        %vm1273 = vcmp.ge.f32.partialorder %v1209, 0.0
        %vm1274 = vcmp.ge.f32.partialorder %v1210, 0.0
        %vm1275 = vcmp.ge.f32.partialorder %v1211, 0.0
        %vm1276 = vcmp.ge.f32.partialorder %v1212, 0.0
        %vm1277 = vcmp.ge.f32.partialorder %v1213, 0.0
        %vm1278 = vcmp.ge.f32.partialorder %v1214, 0.0
        %vm1279 = vcmp.ge.f32.partialorder %v1215, 0.0
        %vm1280 = vcmp.ge.f32.partialorder %v1216, 0.0
        %vm1281 = vcmp.ge.f32.partialorder %v1217, 0.0
        %vm1282 = vcmp.ge.f32.partialorder %v1218, 0.0
        %vm1283 = vcmp.ge.f32.partialorder %v1219, 0.0
        %vm1284 = vcmp.ge.f32.partialorder %v1220, 0.0
        %vm1285 = vcmp.ge.f32.partialorder %v1221, 0.0
        %vm1286 = vcmp.ge.f32.partialorder %v1222, 0.0
        %vm1287 = vcmp.ge.f32.partialorder %v1223, 0.0
        %vm1288 = vcmp.ge.f32.partialorder %v1224, 0.0
        %vm1289 = vcmp.ge.f32.partialorder %v1225, 0.0
        %vm1290 = vcmp.ge.f32.partialorder %v1226, 0.0
        %vm1291 = vcmp.ge.f32.partialorder %v1227, 0.0
        %vm1292 = vcmp.ge.f32.partialorder %v1228, 0.0
        %vm1293 = vcmp.ge.f32.partialorder %v1229, 0.0
        %vm1294 = vcmp.ge.f32.partialorder %v1230, 0.0
        %vm1295 = vcmp.ge.f32.partialorder %v1231, 0.0
        %vm1296 = vcmp.ge.f32.partialorder %v1232, 0.0
        %vm1297 = vcmp.ge.f32.partialorder %v1233, 0.0
        %vm1298 = vcmp.ge.f32.partialorder %v1234, 0.0
        %vm1299 = vcmp.ge.f32.partialorder %v1235, 0.0
        %vm1300 = vcmp.ge.f32.partialorder %v1236, 0.0
        %vm1301 = vcmp.ge.f32.partialorder %v1237, 0.0
        %vm1302 = vcmp.ge.f32.partialorder %v1238, 0.0
        %vm1303 = vcmp.ge.f32.partialorder %v1239, 0.0
        %vm1304 = vcmp.ge.f32.partialorder %v1240, 0.0
        %vm1305 = vcmp.ge.f32.partialorder %v1241, 0.0
        %vm1306 = vcmp.ge.f32.partialorder %v1242, 0.0
        %vm1307 = vcmp.ge.f32.partialorder %v1243, 0.0
        %vm1308 = vcmp.ge.f32.partialorder %v1244, 0.0
        %vm1309 = vcmp.ge.f32.partialorder %v1245, 0.0
        %vm1310 = vcmp.ge.f32.partialorder %v1246, 0.0
        %vm1311 = vcmp.ge.f32.partialorder %v1247, 0.0
        %vm1312 = vcmp.ge.f32.partialorder %v1248, 0.0
        %vm1313 = vcmp.ge.f32.partialorder %v1249, 0.0
        %vm1314 = vcmp.ge.f32.partialorder %v1250, 0.0
        %vm1315 = vcmp.ge.f32.partialorder %v1251, 0.0
        %vm1316 = vcmp.ge.f32.partialorder %v1252, 0.0
        %vm1317 = vcmp.ge.f32.partialorder %v1253, 0.0
        %vm1318 = vcmp.ge.f32.partialorder %v1254, 0.0
        %vm1319 = vcmp.ge.f32.partialorder %v1255, 0.0
        %vm1320 = vcmp.ge.f32.partialorder %v1256, 0.0
        %vm1321 = vcmp.ge.f32.partialorder %v1257, 0.0
        %vm1322 = vcmp.ge.f32.partialorder %v1258, 0.0
        %vm1323 = vcmp.ge.f32.partialorder %v1259, 0.0
        %vm1324 = vcmp.ge.f32.partialorder %v1260, 0.0
        %vm1325 = vcmp.ge.f32.partialorder %v1261, 0.0
        %vm1326 = vcmp.ge.f32.partialorder %v1262, 0.0
        %vm1327 = vcmp.ge.f32.partialorder %v1263, 0.0
        %vm1328 = vcmp.ge.f32.partialorder %v1264, 0.0
        %vm1329 = vcmp.ge.f32.partialorder %v1265, 0.0
        %vm1330 = vcmp.ge.f32.partialorder %v1266, 0.0
        %v1331 = vmul.f32 %v1203, 0.2
        %v1332 = vmul.f32 %v1204, 0.2
        %v1333 = vmul.f32 %v1205, 0.2
        %v1334 = vmul.f32 %v1206, 0.2
        %v1335 = vmul.f32 %v1207, 0.2
        %v1336 = vmul.f32 %v1208, 0.2
        %v1337 = vmul.f32 %v1209, 0.2
        %v1338 = vmul.f32 %v1210, 0.2
        %v1339 = vmul.f32 %v1211, 0.2
        %v1340 = vmul.f32 %v1212, 0.2
        %v1341 = vmul.f32 %v1213, 0.2
        %v1342 = vmul.f32 %v1214, 0.2
        %v1343 = vmul.f32 %v1215, 0.2
        %v1344 = vmul.f32 %v1216, 0.2
        %v1345 = vmul.f32 %v1217, 0.2
        %v1346 = vmul.f32 %v1218, 0.2
        %v1347 = vmul.f32 %v1219, 0.2
        %v1348 = vmul.f32 %v1220, 0.2
        %v1349 = vmul.f32 %v1221, 0.2
        %v1350 = vmul.f32 %v1222, 0.2
        %v1351 = vmul.f32 %v1223, 0.2
        %v1352 = vmul.f32 %v1224, 0.2
        %v1353 = vmul.f32 %v1225, 0.2
        %v1354 = vmul.f32 %v1226, 0.2
        %v1355 = vmul.f32 %v1227, 0.2
        %v1356 = vmul.f32 %v1228, 0.2
        %v1357 = vmul.f32 %v1229, 0.2
        %v1358 = vmul.f32 %v1230, 0.2
        %v1359 = vmul.f32 %v1231, 0.2
        %v1360 = vmul.f32 %v1232, 0.2
        %v1361 = vmul.f32 %v1233, 0.2
        %v1362 = vmul.f32 %v1234, 0.2
        %v1363 = vmul.f32 %v1235, 0.2
        %v1364 = vmul.f32 %v1236, 0.2
        %v1365 = vmul.f32 %v1237, 0.2
        %v1366 = vmul.f32 %v1238, 0.2
        %v1367 = vmul.f32 %v1239, 0.2
        %v1368 = vmul.f32 %v1240, 0.2
        %v1369 = vmul.f32 %v1241, 0.2
        %v1370 = vmul.f32 %v1242, 0.2
        %v1371 = vmul.f32 %v1243, 0.2
        %v1372 = vmul.f32 %v1244, 0.2
        %v1373 = vmul.f32 %v1245, 0.2
        %v1374 = vmul.f32 %v1246, 0.2
        %v1375 = vmul.f32 %v1247, 0.2
        %v1376 = vmul.f32 %v1248, 0.2
        %v1377 = vmul.f32 %v1249, 0.2
        %v1378 = vmul.f32 %v1250, 0.2
        %v1379 = vmul.f32 %v1251, 0.2
        %v1380 = vmul.f32 %v1252, 0.2
        %v1381 = vmul.f32 %v1253, 0.2
        %v1382 = vmul.f32 %v1254, 0.2
        %v1383 = vmul.f32 %v1255, 0.2
        %v1384 = vmul.f32 %v1256, 0.2
        %v1385 = vmul.f32 %v1257, 0.2
        %v1386 = vmul.f32 %v1258, 0.2
        %v1387 = vmul.f32 %v1259, 0.2
        %v1388 = vmul.f32 %v1260, 0.2
        %v1389 = vmul.f32 %v1261, 0.2
        %v1390 = vmul.f32 %v1262, 0.2
        %v1391 = vmul.f32 %v1263, 0.2
        %v1392 = vmul.f32 %v1264, 0.2
        %v1393 = vmul.f32 %v1265, 0.2
        %v1394 = vmul.f32 %v1266, 0.2
        %v1395 = vsel %vm1267, %v1203, %v1331
        %v1396 = vsel %vm1268, %v1204, %v1332
        %v1397 = vsel %vm1269, %v1205, %v1333
        %v1398 = vsel %vm1270, %v1206, %v1334
        %v1399 = vsel %vm1271, %v1207, %v1335
        %v1400 = vsel %vm1272, %v1208, %v1336
        %v1401 = vsel %vm1273, %v1209, %v1337
        %v1402 = vsel %vm1274, %v1210, %v1338
        %v1403 = vsel %vm1275, %v1211, %v1339
        %v1404 = vsel %vm1276, %v1212, %v1340
        %v1405 = vsel %vm1277, %v1213, %v1341
        %v1406 = vsel %vm1278, %v1214, %v1342
        %v1407 = vsel %vm1279, %v1215, %v1343
        %v1408 = vsel %vm1280, %v1216, %v1344
        %v1409 = vsel %vm1281, %v1217, %v1345
        %v1410 = vsel %vm1282, %v1218, %v1346
        %v1411 = vsel %vm1283, %v1219, %v1347
        %v1412 = vsel %vm1284, %v1220, %v1348
        %v1413 = vsel %vm1285, %v1221, %v1349
        %v1414 = vsel %vm1286, %v1222, %v1350
        %v1415 = vsel %vm1287, %v1223, %v1351
        %v1416 = vsel %vm1288, %v1224, %v1352
        %v1417 = vsel %vm1289, %v1225, %v1353
        %v1418 = vsel %vm1290, %v1226, %v1354
        %v1419 = vsel %vm1291, %v1227, %v1355
        %v1420 = vsel %vm1292, %v1228, %v1356
        %v1421 = vsel %vm1293, %v1229, %v1357
        %v1422 = vsel %vm1294, %v1230, %v1358
        %v1423 = vsel %vm1295, %v1231, %v1359
        %v1424 = vsel %vm1296, %v1232, %v1360
        %v1425 = vsel %vm1297, %v1233, %v1361
        %v1426 = vsel %vm1298, %v1234, %v1362
        %v1427 = vsel %vm1299, %v1235, %v1363
        %v1428 = vsel %vm1300, %v1236, %v1364
        %v1429 = vsel %vm1301, %v1237, %v1365
        %v1430 = vsel %vm1302, %v1238, %v1366
        %v1431 = vsel %vm1303, %v1239, %v1367
        %v1432 = vsel %vm1304, %v1240, %v1368
        %v1433 = vsel %vm1305, %v1241, %v1369
        %v1434 = vsel %vm1306, %v1242, %v1370
        %v1435 = vsel %vm1307, %v1243, %v1371
        %v1436 = vsel %vm1308, %v1244, %v1372
        %v1437 = vsel %vm1309, %v1245, %v1373
        %v1438 = vsel %vm1310, %v1246, %v1374
        %v1439 = vsel %vm1311, %v1247, %v1375
        %v1440 = vsel %vm1312, %v1248, %v1376
        %v1441 = vsel %vm1313, %v1249, %v1377
        %v1442 = vsel %vm1314, %v1250, %v1378
        %v1443 = vsel %vm1315, %v1251, %v1379
        %v1444 = vsel %vm1316, %v1252, %v1380
        %v1445 = vsel %vm1317, %v1253, %v1381
        %v1446 = vsel %vm1318, %v1254, %v1382
        %v1447 = vsel %vm1319, %v1255, %v1383
        %v1448 = vsel %vm1320, %v1256, %v1384
        %v1449 = vsel %vm1321, %v1257, %v1385
        %v1450 = vsel %vm1322, %v1258, %v1386
        %v1451 = vsel %vm1323, %v1259, %v1387
        %v1452 = vsel %vm1324, %v1260, %v1388
        %v1453 = vsel %vm1325, %v1261, %v1389
        %v1454 = vsel %vm1326, %v1262, %v1390
        %v1455 = vsel %vm1327, %v1263, %v1391
        %v1456 = vsel %vm1328, %v1264, %v1392
        %v1457 = vsel %vm1329, %v1265, %v1393
        %v1458 = vsel %vm1330, %v1266, %v1394
        %v1459 = vpack.c.bf16 %v1396, %v1395
        %v1460 = vpack.c.bf16 %v1398, %v1397
        %v1461 = vpack.c.bf16 %v1400, %v1399
        %v1462 = vpack.c.bf16 %v1402, %v1401
        %v1463 = vpack.c.bf16 %v1404, %v1403
        %v1464 = vpack.c.bf16 %v1406, %v1405
        %v1465 = vpack.c.bf16 %v1408, %v1407
        %v1466 = vpack.c.bf16 %v1410, %v1409
        %v1467 = vpack.c.bf16 %v1412, %v1411
        %v1468 = vpack.c.bf16 %v1414, %v1413
        %v1469 = vpack.c.bf16 %v1416, %v1415
        %v1470 = vpack.c.bf16 %v1418, %v1417
        %v1471 = vpack.c.bf16 %v1420, %v1419
        %v1472 = vpack.c.bf16 %v1422, %v1421
        %v1473 = vpack.c.bf16 %v1424, %v1423
        %v1474 = vpack.c.bf16 %v1426, %v1425
        %v1475 = vpack.c.bf16 %v1428, %v1427
        %v1476 = vpack.c.bf16 %v1430, %v1429
        %v1477 = vpack.c.bf16 %v1432, %v1431
        %v1478 = vpack.c.bf16 %v1434, %v1433
        %v1479 = vpack.c.bf16 %v1436, %v1435
        %v1480 = vpack.c.bf16 %v1438, %v1437
        %v1481 = vpack.c.bf16 %v1440, %v1439
        %v1482 = vpack.c.bf16 %v1442, %v1441
        %v1483 = vpack.c.bf16 %v1444, %v1443
        %v1484 = vpack.c.bf16 %v1446, %v1445
        %v1485 = vpack.c.bf16 %v1448, %v1447
        %v1486 = vpack.c.bf16 %v1450, %v1449
        %v1487 = vpack.c.bf16 %v1452, %v1451
        %v1488 = vpack.c.bf16 %v1454, %v1453
        %v1489 = vpack.c.bf16 %v1456, %v1455
        %v1490 = vpack.c.bf16 %v1458, %v1457
        %v1523 = vunpack.c.l.b16 %v1459
        %v1524 = vunpack.c.h.b16 %v1459
        %v1525 = vunpack.c.l.b16 %v1460
        %v1526 = vunpack.c.h.b16 %v1460
        %v1527 = vunpack.c.l.b16 %v1461
        %v1528 = vunpack.c.h.b16 %v1461
        %v1529 = vunpack.c.l.b16 %v1462
        %v1530 = vunpack.c.h.b16 %v1462
        %v1531 = vunpack.c.l.b16 %v1463
        %v1532 = vunpack.c.h.b16 %v1463
        %v1533 = vunpack.c.l.b16 %v1464
        %v1534 = vunpack.c.h.b16 %v1464
        %v1535 = vunpack.c.l.b16 %v1465
        %v1536 = vunpack.c.h.b16 %v1465
        %v1537 = vunpack.c.l.b16 %v1466
        %v1538 = vunpack.c.h.b16 %v1466
        %v1539 = vunpack.c.l.b16 %v1467
        %v1540 = vunpack.c.h.b16 %v1467
        %v1541 = vunpack.c.l.b16 %v1468
        %v1542 = vunpack.c.h.b16 %v1468
        %v1543 = vunpack.c.l.b16 %v1469
        %v1544 = vunpack.c.h.b16 %v1469
        %v1545 = vunpack.c.l.b16 %v1470
        %v1546 = vunpack.c.h.b16 %v1470
        %v1547 = vunpack.c.l.b16 %v1471
        %v1548 = vunpack.c.h.b16 %v1471
        %v1549 = vunpack.c.l.b16 %v1472
        %v1550 = vunpack.c.h.b16 %v1472
        %v1551 = vunpack.c.l.b16 %v1473
        %v1552 = vunpack.c.h.b16 %v1473
        %v1553 = vunpack.c.l.b16 %v1474
        %v1554 = vunpack.c.h.b16 %v1474
        %v1555 = vunpack.c.l.b16 %v1475
        %v1556 = vunpack.c.h.b16 %v1475
        %v1557 = vunpack.c.l.b16 %v1476
        %v1558 = vunpack.c.h.b16 %v1476
        %v1559 = vunpack.c.l.b16 %v1477
        %v1560 = vunpack.c.h.b16 %v1477
        %v1561 = vunpack.c.l.b16 %v1478
        %v1562 = vunpack.c.h.b16 %v1478
        %v1563 = vunpack.c.l.b16 %v1479
        %v1564 = vunpack.c.h.b16 %v1479
        %v1565 = vunpack.c.l.b16 %v1480
        %v1566 = vunpack.c.h.b16 %v1480
        %v1567 = vunpack.c.l.b16 %v1481
        %v1568 = vunpack.c.h.b16 %v1481
        %v1569 = vunpack.c.l.b16 %v1482
        %v1570 = vunpack.c.h.b16 %v1482
        %v1571 = vunpack.c.l.b16 %v1483
        %v1572 = vunpack.c.h.b16 %v1483
        %v1573 = vunpack.c.l.b16 %v1484
        %v1574 = vunpack.c.h.b16 %v1484
        %v1575 = vunpack.c.l.b16 %v1485
        %v1576 = vunpack.c.h.b16 %v1485
        %v1577 = vunpack.c.l.b16 %v1486
        %v1578 = vunpack.c.h.b16 %v1486
        %v1579 = vunpack.c.l.b16 %v1487
        %v1580 = vunpack.c.h.b16 %v1487
        %v1581 = vunpack.c.l.b16 %v1488
        %v1582 = vunpack.c.h.b16 %v1488
        %v1583 = vunpack.c.l.b16 %v1489
        %v1584 = vunpack.c.h.b16 %v1489
        %v1585 = vunpack.c.l.b16 %v1490
        %v1586 = vunpack.c.h.b16 %v1490
        %v1587 = vpack.c.b16 %v1523, %v1523
        %v1588 = vpack.c.b16 %v1524, %v1524
        %v1589 = vpack.c.b16 %v1525, %v1525
        %v1590 = vpack.c.b16 %v1526, %v1526
        %v1591 = vpack.c.b16 %v1527, %v1527
        %v1592 = vpack.c.b16 %v1528, %v1528
        %v1593 = vpack.c.b16 %v1529, %v1529
        %v1594 = vpack.c.b16 %v1530, %v1530
        %v1595 = vpack.c.b16 %v1531, %v1531
        %v1596 = vpack.c.b16 %v1532, %v1532
        %v1597 = vpack.c.b16 %v1533, %v1533
        %v1598 = vpack.c.b16 %v1534, %v1534
        %v1599 = vpack.c.b16 %v1535, %v1535
        %v1600 = vpack.c.b16 %v1536, %v1536
        %v1601 = vpack.c.b16 %v1537, %v1537
        %v1602 = vpack.c.b16 %v1538, %v1538
        %v1603 = vpack.c.b16 %v1539, %v1539
        %v1604 = vpack.c.b16 %v1540, %v1540
        %v1605 = vpack.c.b16 %v1541, %v1541
        %v1606 = vpack.c.b16 %v1542, %v1542
        %v1607 = vpack.c.b16 %v1543, %v1543
        %v1608 = vpack.c.b16 %v1544, %v1544
        %v1609 = vpack.c.b16 %v1545, %v1545
        %v1610 = vpack.c.b16 %v1546, %v1546
        %v1611 = vpack.c.b16 %v1547, %v1547
        %v1612 = vpack.c.b16 %v1548, %v1548
        %v1613 = vpack.c.b16 %v1549, %v1549
        %v1614 = vpack.c.b16 %v1550, %v1550
        %v1615 = vpack.c.b16 %v1551, %v1551
        %v1616 = vpack.c.b16 %v1552, %v1552
        %v1617 = vpack.c.b16 %v1553, %v1553
        %v1618 = vpack.c.b16 %v1554, %v1554
        %v1619 = vpack.c.b16 %v1555, %v1555
        %v1620 = vpack.c.b16 %v1556, %v1556
        %v1621 = vpack.c.b16 %v1557, %v1557
        %v1622 = vpack.c.b16 %v1558, %v1558
        %v1623 = vpack.c.b16 %v1559, %v1559
        %v1624 = vpack.c.b16 %v1560, %v1560
        %v1625 = vpack.c.b16 %v1561, %v1561
        %v1626 = vpack.c.b16 %v1562, %v1562
        %v1627 = vpack.c.b16 %v1563, %v1563
        %v1628 = vpack.c.b16 %v1564, %v1564
        %v1629 = vpack.c.b16 %v1565, %v1565
        %v1630 = vpack.c.b16 %v1566, %v1566
        %v1631 = vpack.c.b16 %v1567, %v1567
        %v1632 = vpack.c.b16 %v1568, %v1568
        %v1633 = vpack.c.b16 %v1569, %v1569
        %v1634 = vpack.c.b16 %v1570, %v1570
        %v1635 = vpack.c.b16 %v1571, %v1571
        %v1636 = vpack.c.b16 %v1572, %v1572
        %v1637 = vpack.c.b16 %v1573, %v1573
        %v1638 = vpack.c.b16 %v1574, %v1574
        %v1639 = vpack.c.b16 %v1575, %v1575
        %v1640 = vpack.c.b16 %v1576, %v1576
        %v1641 = vpack.c.b16 %v1577, %v1577
        %v1642 = vpack.c.b16 %v1578, %v1578
        %v1643 = vpack.c.b16 %v1579, %v1579
        %v1644 = vpack.c.b16 %v1580, %v1580
        %v1645 = vpack.c.b16 %v1581, %v1581
        %v1646 = vpack.c.b16 %v1582, %v1582
        %v1647 = vpack.c.b16 %v1583, %v1583
        %v1648 = vpack.c.b16 %v1584, %v1584
        %v1649 = vpack.c.b16 %v1585, %v1585
        %v1650 = vpack.c.b16 %v1586, %v1586
        %1715 = vst [vmem:[%s257] sm:$0xf] %v1587
        %1716 = vst [vmem:[%s257 + $0x4] sm:$0xf] %v1588
        %1717 = vst [vmem:[%s257 + $0x8] sm:$0xf] %v1589
        %1718 = vst [vmem:[%s257 + $0xc] sm:$0xf] %v1590
        %1719 = vst [vmem:[%s257 + $0x10] sm:$0xf] %v1591
        %1720 = vst [vmem:[%s257 + $0x14] sm:$0xf] %v1592
        %1721 = vst [vmem:[%s257 + $0x18] sm:$0xf] %v1593
        %1722 = vst [vmem:[%s257 + $0x1c] sm:$0xf] %v1594
        %1723 = vst [vmem:[%s257 + $0x20] sm:$0xf] %v1595
        %1724 = vst [vmem:[%s257 + $0x24] sm:$0xf] %v1596
        %1725 = vst [vmem:[%s257 + $0x28] sm:$0xf] %v1597
        %1726 = vst [vmem:[%s257 + $0x2c] sm:$0xf] %v1598
        %1727 = vst [vmem:[%s257 + $0x30] sm:$0xf] %v1599
        %1728 = vst [vmem:[%s257 + $0x34] sm:$0xf] %v1600
        %1729 = vst [vmem:[%s257 + $0x38] sm:$0xf] %v1601
        %1730 = vst [vmem:[%s257 + $0x3c] sm:$0xf] %v1602
        %1731 = vst [vmem:[%s257 + $0x40] sm:$0xf] %v1603
        %1732 = vst [vmem:[%s257 + $0x44] sm:$0xf] %v1604
        %1733 = vst [vmem:[%s257 + $0x48] sm:$0xf] %v1605
        %1734 = vst [vmem:[%s257 + $0x4c] sm:$0xf] %v1606
        %1735 = vst [vmem:[%s257 + $0x50] sm:$0xf] %v1607
        %1736 = vst [vmem:[%s257 + $0x54] sm:$0xf] %v1608
        %1737 = vst [vmem:[%s257 + $0x58] sm:$0xf] %v1609
        %1738 = vst [vmem:[%s257 + $0x5c] sm:$0xf] %v1610
        %1739 = vst [vmem:[%s257 + $0x60] sm:$0xf] %v1611
        %1740 = vst [vmem:[%s257 + $0x64] sm:$0xf] %v1612
        %1741 = vst [vmem:[%s257 + $0x68] sm:$0xf] %v1613
        %1742 = vst [vmem:[%s257 + $0x6c] sm:$0xf] %v1614
        %1743 = vst [vmem:[%s257 + $0x70] sm:$0xf] %v1615
        %1744 = vst [vmem:[%s257 + $0x74] sm:$0xf] %v1616
        %1745 = vst [vmem:[%s257 + $0x78] sm:$0xf] %v1617
        %1746 = vst [vmem:[%s257 + $0x7c] sm:$0xf] %v1618
        %1747 = vst [vmem:[%s257 + $0x80] sm:$0xf] %v1619
        %1748 = vst [vmem:[%s257 + $0x84] sm:$0xf] %v1620
        %1749 = vst [vmem:[%s257 + $0x88] sm:$0xf] %v1621
        %1750 = vst [vmem:[%s257 + $0x8c] sm:$0xf] %v1622
        %1751 = vst [vmem:[%s257 + $0x90] sm:$0xf] %v1623
        %1752 = vst [vmem:[%s257 + $0x94] sm:$0xf] %v1624
        %1753 = vst [vmem:[%s257 + $0x98] sm:$0xf] %v1625
        %1754 = vst [vmem:[%s257 + $0x9c] sm:$0xf] %v1626
        %1755 = vst [vmem:[%s257 + $0xa0] sm:$0xf] %v1627
        %1756 = vst [vmem:[%s257 + $0xa4] sm:$0xf] %v1628
        %1757 = vst [vmem:[%s257 + $0xa8] sm:$0xf] %v1629
        %1758 = vst [vmem:[%s257 + $0xac] sm:$0xf] %v1630
        %1759 = vst [vmem:[%s257 + $0xb0] sm:$0xf] %v1631
        %1760 = vst [vmem:[%s257 + $0xb4] sm:$0xf] %v1632
        %1761 = vst [vmem:[%s257 + $0xb8] sm:$0xf] %v1633
        %1762 = vst [vmem:[%s257 + $0xbc] sm:$0xf] %v1634
        %1763 = vst [vmem:[%s257 + $0xc0] sm:$0xf] %v1635
        %1764 = vst [vmem:[%s257 + $0xc4] sm:$0xf] %v1636
        %1765 = vst [vmem:[%s257 + $0xc8] sm:$0xf] %v1637
        %1766 = vst [vmem:[%s257 + $0xcc] sm:$0xf] %v1638
        %1767 = vst [vmem:[%s257 + $0xd0] sm:$0xf] %v1639
        %1768 = vst [vmem:[%s257 + $0xd4] sm:$0xf] %v1640
        %1769 = vst [vmem:[%s257 + $0xd8] sm:$0xf] %v1641
        %1770 = vst [vmem:[%s257 + $0xdc] sm:$0xf] %v1642
        %1771 = vst [vmem:[%s257 + $0xe0] sm:$0xf] %v1643
        %1772 = vst [vmem:[%s257 + $0xe4] sm:$0xf] %v1644
        %1773 = vst [vmem:[%s257 + $0xe8] sm:$0xf] %v1645
        %1774 = vst [vmem:[%s257 + $0xec] sm:$0xf] %v1646
        %1775 = vst [vmem:[%s257 + $0xf0] sm:$0xf] %v1647
        %1776 = vst [vmem:[%s257 + $0xf4] sm:$0xf] %v1648
        %1777 = vst [vmem:[%s257 + $0xf8] sm:$0xf] %v1649
        %1778 = vst [vmem:[%s257 + $0xfc] sm:$0xf] %v1650
      $region40: #{_lambda_.24} parent=31 // pred_fallthru
        _
      %s1779 = smul.u32 64, %s19
      %p1780 = scmp.lt.s32.totalorder %s1779, 255
      %s1781 = scalar_select %p1780, %s1779, 255
      %p1782 = scmp.lt.s32.totalorder %s20, 0
      %s1783 = scalar_select %p1782, %s20, 0
      %s1784 = sadd.s32 %s1783, %s1781
      %s1785 = smul.addr %s1784, 4
      %s1786 = scalar_lea.vmem %s3, %s1785
      // Predicated region
      $region41: #{_lambda_.24} parent=31 // pred_check
        %p1787 = pneg %p135
      $region42: #{_lambda_.24} parent=31 // pred_check_branch
        %1789 = sbr.rel (%p1787) target = $region44
      $region43: #{_lambda_.24} parent=31 // pred_region
        %s1790 = smul.u32 64, %s19
      $region44: #{_lambda_.24} parent=31 // pred_fallthru
        _
    $region32: #{_lambda_.24} parent=5 // pred_fallthru
      _
    %p1791 = scmp.le.s32.totalorder 2, %s9
    // Predicated region
    $region45: #{_lambda_.24} parent=5 // pred_check
      %p1792 = pneg %p1791
    $region46: #{_lambda_.24} parent=5 // pred_check_branch
      %1794 = sbr.rel (%p1792) target = $region48
    $region47: #{_lambda_.24} parent=5 // pred_region
      %s1795 = ssub.s32 %s9, 2
      // Predicated region
      $region49: #{_lambda_.24} parent=47 // pred_check
        %p1796 = pneg %p141
      $region50: #{_lambda_.24} parent=47 // pred_check_branch
        %1798 = sbr.rel (%p1796) target = $region52
      $region51: #{_lambda_.24} parent=47 // pred_region
        %s1799 = smul.u32 64, %s22
        %p1800 = scmp.lt.s32.totalorder %s1799, 255
        %s1801 = scalar_select %p1800, %s1799, 255
        %p1802 = scmp.lt.s32.totalorder %s23, 0
        %s1803 = scalar_select %p1802, %s23, 0
        %s1804 = sadd.s32 %s1803, %s1801
        %s1805 = smul.addr %s1804, 4
        %s1806 = scalar_lea.vmem %s3, %s1805
      $region52: #{_lambda_.24} parent=47 // pred_fallthru
        _
    $region48: #{_lambda_.24} parent=5 // pred_fallthru
      _
  $region6: #{_lambda_.24} parent=0 // loop_footer
    %s13 = sadd.s32 1, %s9
  $region7: #{_lambda_.24} parent=0 // loop_footer_branch
    %8 = sbr.rel target = $region3
  $region8: #{_lambda_.24} parent=0 // loop_exit
    _

// kernel: _lambda_.25
$region0: #{_lambda_.25}
  #allocation0 [shape = 'u32[]', space=smem, size = 0x4, offset = 0x4, fixed_abs, tag = 'smem constant byte address 0x4 - core index']
  #allocation1 [shape = 'u32[144,128]{1,0:T(1,128)}', space=vmem, size = 0x12000, scoped, tag = 'internal scratch']
  #allocation2 [shape = 'f32[512,128]{1,0:T(8,128)}', space=vmem, size = 0x40000, scoped, tag = 'scratch operand']
  %s0 = inlined_call_operand.vmem [shape: bf16[512,256], index: 0, kind: input, shape index: {}]
  %s1 = inlined_call_operand.vmem [shape: bf16[256,128], index: 1, kind: input, shape index: {}]
  %s2 = inlined_call_operand.vmem [shape: f32[1,128], index: 2, kind: input, shape index: {}]
  %s3 = inlined_call_operand.vmem [shape: bf16[512,128], index: 3, kind: output, shape index: {0}]
  %s4 = inlined_call_operand.vmem [shape: f32[1,8,128], index: 4, kind: output, shape index: {1}]
  %5 = xla_tuple %s3, %s4
  %s6 = sld [smem:[#allocation0]]
  $region38: #{_lambda_.25} parent=0
    _
  %s8 = ssub.s32 1, %s6
  %s9 = scalar_select 0, %s8, %s6
  // Predicated region
  $region2: #{_lambda_.25} parent=0 // pred_check
    _
  $region3: #{_lambda_.25} parent=0 // pred_check_branch
    %11 = sbr.rel (0) target = $region5
  $region4: #{_lambda_.25} parent=0 // pred_region
    _
  $region5: #{_lambda_.25} parent=0 // pred_fallthru
    _
  // Predicated region
  $region6: #{_lambda_.25} parent=0 // pred_check
    _
  $region7: #{_lambda_.25} parent=0 // pred_check_branch
    %13 = sbr.rel (0) target = $region9
  $region8: #{_lambda_.25} parent=0 // pred_region
    _
  $region9: #{_lambda_.25} parent=0 // pred_fallthru
    _
  // Predicated region
  $region10: #{_lambda_.25} parent=0 // pred_check
    _
  $region11: #{_lambda_.25} parent=0 // pred_check_branch
    %15 = sbr.rel (0) target = $region13
  $region12: #{_lambda_.25} parent=0 // pred_region
    _
  $region13: #{_lambda_.25} parent=0 // pred_fallthru
    _
  %p17 = scmp.eq.s32.totalorder 0, 0
  // Predicated region
  $region14: #{_lambda_.25} parent=0 // pred_check
    %p18 = pneg %p17
  $region15: #{_lambda_.25} parent=0 // pred_check_branch
    %20 = sbr.rel (%p18) target = $region17
  $region16: #{_lambda_.25} parent=0 // pred_region
    %21 = vst [vmem:[#allocation2] sm:$0xff] 0.0
    %22 = vst [vmem:[#allocation2 + $0x8] sm:$0xff] 0.0
    %23 = vst [vmem:[#allocation2 + $0x10] sm:$0xff] 0.0
    %24 = vst [vmem:[#allocation2 + $0x18] sm:$0xff] 0.0
    %25 = vst [vmem:[#allocation2 + $0x20] sm:$0xff] 0.0
    %26 = vst [vmem:[#allocation2 + $0x28] sm:$0xff] 0.0
    %27 = vst [vmem:[#allocation2 + $0x30] sm:$0xff] 0.0
    %28 = vst [vmem:[#allocation2 + $0x38] sm:$0xff] 0.0
    %29 = vst [vmem:[#allocation2 + $0x40] sm:$0xff] 0.0
    %30 = vst [vmem:[#allocation2 + $0x48] sm:$0xff] 0.0
    %31 = vst [vmem:[#allocation2 + $0x50] sm:$0xff] 0.0
    %32 = vst [vmem:[#allocation2 + $0x58] sm:$0xff] 0.0
    %33 = vst [vmem:[#allocation2 + $0x60] sm:$0xff] 0.0
    %34 = vst [vmem:[#allocation2 + $0x68] sm:$0xff] 0.0
    %35 = vst [vmem:[#allocation2 + $0x70] sm:$0xff] 0.0
    %36 = vst [vmem:[#allocation2 + $0x78] sm:$0xff] 0.0
    %37 = vst [vmem:[#allocation2 + $0x80] sm:$0xff] 0.0
    %38 = vst [vmem:[#allocation2 + $0x88] sm:$0xff] 0.0
    %39 = vst [vmem:[#allocation2 + $0x90] sm:$0xff] 0.0
    %40 = vst [vmem:[#allocation2 + $0x98] sm:$0xff] 0.0
    %41 = vst [vmem:[#allocation2 + $0xa0] sm:$0xff] 0.0
    %42 = vst [vmem:[#allocation2 + $0xa8] sm:$0xff] 0.0
    %43 = vst [vmem:[#allocation2 + $0xb0] sm:$0xff] 0.0
    %44 = vst [vmem:[#allocation2 + $0xb8] sm:$0xff] 0.0
    %45 = vst [vmem:[#allocation2 + $0xc0] sm:$0xff] 0.0
    %46 = vst [vmem:[#allocation2 + $0xc8] sm:$0xff] 0.0
    %47 = vst [vmem:[#allocation2 + $0xd0] sm:$0xff] 0.0
    %48 = vst [vmem:[#allocation2 + $0xd8] sm:$0xff] 0.0
    %49 = vst [vmem:[#allocation2 + $0xe0] sm:$0xff] 0.0
    %50 = vst [vmem:[#allocation2 + $0xe8] sm:$0xff] 0.0
    %51 = vst [vmem:[#allocation2 + $0xf0] sm:$0xff] 0.0
    %52 = vst [vmem:[#allocation2 + $0xf8] sm:$0xff] 0.0
    %53 = vst [vmem:[#allocation2 + $0x100] sm:$0xff] 0.0
    %54 = vst [vmem:[#allocation2 + $0x108] sm:$0xff] 0.0
    %55 = vst [vmem:[#allocation2 + $0x110] sm:$0xff] 0.0
    %56 = vst [vmem:[#allocation2 + $0x118] sm:$0xff] 0.0
    %57 = vst [vmem:[#allocation2 + $0x120] sm:$0xff] 0.0
    %58 = vst [vmem:[#allocation2 + $0x128] sm:$0xff] 0.0
    %59 = vst [vmem:[#allocation2 + $0x130] sm:$0xff] 0.0
    %60 = vst [vmem:[#allocation2 + $0x138] sm:$0xff] 0.0
    %61 = vst [vmem:[#allocation2 + $0x140] sm:$0xff] 0.0
    %62 = vst [vmem:[#allocation2 + $0x148] sm:$0xff] 0.0
    %63 = vst [vmem:[#allocation2 + $0x150] sm:$0xff] 0.0
    %64 = vst [vmem:[#allocation2 + $0x158] sm:$0xff] 0.0
    %65 = vst [vmem:[#allocation2 + $0x160] sm:$0xff] 0.0
    %66 = vst [vmem:[#allocation2 + $0x168] sm:$0xff] 0.0
    %67 = vst [vmem:[#allocation2 + $0x170] sm:$0xff] 0.0
    %68 = vst [vmem:[#allocation2 + $0x178] sm:$0xff] 0.0
    %69 = vst [vmem:[#allocation2 + $0x180] sm:$0xff] 0.0
    %70 = vst [vmem:[#allocation2 + $0x188] sm:$0xff] 0.0
    %71 = vst [vmem:[#allocation2 + $0x190] sm:$0xff] 0.0
    %72 = vst [vmem:[#allocation2 + $0x198] sm:$0xff] 0.0
    %73 = vst [vmem:[#allocation2 + $0x1a0] sm:$0xff] 0.0
    %74 = vst [vmem:[#allocation2 + $0x1a8] sm:$0xff] 0.0
    %75 = vst [vmem:[#allocation2 + $0x1b0] sm:$0xff] 0.0
    %76 = vst [vmem:[#allocation2 + $0x1b8] sm:$0xff] 0.0
    %77 = vst [vmem:[#allocation2 + $0x1c0] sm:$0xff] 0.0
    %78 = vst [vmem:[#allocation2 + $0x1c8] sm:$0xff] 0.0
    %79 = vst [vmem:[#allocation2 + $0x1d0] sm:$0xff] 0.0
    %80 = vst [vmem:[#allocation2 + $0x1d8] sm:$0xff] 0.0
    %81 = vst [vmem:[#allocation2 + $0x1e0] sm:$0xff] 0.0
    %82 = vst [vmem:[#allocation2 + $0x1e8] sm:$0xff] 0.0
    %83 = vst [vmem:[#allocation2 + $0x1f0] sm:$0xff] 0.0
    %84 = vst [vmem:[#allocation2 + $0x1f8] sm:$0xff] 0.0
  $region17: #{_lambda_.25} parent=0 // pred_fallthru
    _
  %v85 = vld [vmem:[#allocation2] sm:$0xff]
  %v86 = vld [vmem:[#allocation2 + $0x8] sm:$0xff]
  %v87 = vld [vmem:[#allocation2 + $0x10] sm:$0xff]
  %v88 = vld [vmem:[#allocation2 + $0x18] sm:$0xff]
  %v89 = vld [vmem:[#allocation2 + $0x20] sm:$0xff]
  %v90 = vld [vmem:[#allocation2 + $0x28] sm:$0xff]
  %v91 = vld [vmem:[#allocation2 + $0x30] sm:$0xff]
  %v92 = vld [vmem:[#allocation2 + $0x38] sm:$0xff]
  %v93 = vld [vmem:[#allocation2 + $0x40] sm:$0xff]
  %v94 = vld [vmem:[#allocation2 + $0x48] sm:$0xff]
  %v95 = vld [vmem:[#allocation2 + $0x50] sm:$0xff]
  %v96 = vld [vmem:[#allocation2 + $0x58] sm:$0xff]
  %v97 = vld [vmem:[#allocation2 + $0x60] sm:$0xff]
  %v98 = vld [vmem:[#allocation2 + $0x68] sm:$0xff]
  %v99 = vld [vmem:[#allocation2 + $0x70] sm:$0xff]
  %v100 = vld [vmem:[#allocation2 + $0x78] sm:$0xff]
  %v101 = vld [vmem:[#allocation2 + $0x80] sm:$0xff]
  %v102 = vld [vmem:[#allocation2 + $0x88] sm:$0xff]
  %v103 = vld [vmem:[#allocation2 + $0x90] sm:$0xff]
  %v104 = vld [vmem:[#allocation2 + $0x98] sm:$0xff]
  %v105 = vld [vmem:[#allocation2 + $0xa0] sm:$0xff]
  %v106 = vld [vmem:[#allocation2 + $0xa8] sm:$0xff]
  %v107 = vld [vmem:[#allocation2 + $0xb0] sm:$0xff]
  %v108 = vld [vmem:[#allocation2 + $0xb8] sm:$0xff]
  %v109 = vld [vmem:[#allocation2 + $0xc0] sm:$0xff]
  %v110 = vld [vmem:[#allocation2 + $0xc8] sm:$0xff]
  %v111 = vld [vmem:[#allocation2 + $0xd0] sm:$0xff]
  %v112 = vld [vmem:[#allocation2 + $0xd8] sm:$0xff]
  %v113 = vld [vmem:[#allocation2 + $0xe0] sm:$0xff]
  %v114 = vld [vmem:[#allocation2 + $0xe8] sm:$0xff]
  %v115 = vld [vmem:[#allocation2 + $0xf0] sm:$0xff]
  %v116 = vld [vmem:[#allocation2 + $0xf8] sm:$0xff]
  %v117 = vld [vmem:[#allocation2 + $0x100] sm:$0xff]
  %v118 = vld [vmem:[#allocation2 + $0x108] sm:$0xff]
  %v119 = vld [vmem:[#allocation2 + $0x110] sm:$0xff]
  %v120 = vld [vmem:[#allocation2 + $0x118] sm:$0xff]
  %v121 = vld [vmem:[#allocation2 + $0x120] sm:$0xff]
  %v122 = vld [vmem:[#allocation2 + $0x128] sm:$0xff]
  %v123 = vld [vmem:[#allocation2 + $0x130] sm:$0xff]
  %v124 = vld [vmem:[#allocation2 + $0x138] sm:$0xff]
  %v125 = vld [vmem:[#allocation2 + $0x140] sm:$0xff]
  %v126 = vld [vmem:[#allocation2 + $0x148] sm:$0xff]
  %v127 = vld [vmem:[#allocation2 + $0x150] sm:$0xff]
  %v128 = vld [vmem:[#allocation2 + $0x158] sm:$0xff]
  %v129 = vld [vmem:[#allocation2 + $0x160] sm:$0xff]
  %v130 = vld [vmem:[#allocation2 + $0x168] sm:$0xff]
  %v131 = vld [vmem:[#allocation2 + $0x170] sm:$0xff]
  %v132 = vld [vmem:[#allocation2 + $0x178] sm:$0xff]
  %v133 = vld [vmem:[#allocation2 + $0x180] sm:$0xff]
  %v134 = vld [vmem:[#allocation2 + $0x188] sm:$0xff]
  %v135 = vld [vmem:[#allocation2 + $0x190] sm:$0xff]
  %v136 = vld [vmem:[#allocation2 + $0x198] sm:$0xff]
  %v137 = vld [vmem:[#allocation2 + $0x1a0] sm:$0xff]
  %v138 = vld [vmem:[#allocation2 + $0x1a8] sm:$0xff]
  %v139 = vld [vmem:[#allocation2 + $0x1b0] sm:$0xff]
  %v140 = vld [vmem:[#allocation2 + $0x1b8] sm:$0xff]
  %v141 = vld [vmem:[#allocation2 + $0x1c0] sm:$0xff]
  %v142 = vld [vmem:[#allocation2 + $0x1c8] sm:$0xff]
  %v143 = vld [vmem:[#allocation2 + $0x1d0] sm:$0xff]
  %v144 = vld [vmem:[#allocation2 + $0x1d8] sm:$0xff]
  %v145 = vld [vmem:[#allocation2 + $0x1e0] sm:$0xff]
  %v146 = vld [vmem:[#allocation2 + $0x1e8] sm:$0xff]
  %v147 = vld [vmem:[#allocation2 + $0x1f0] sm:$0xff]
  %v148 = vld [vmem:[#allocation2 + $0x1f8] sm:$0xff]
  %v149 = vld [vmem:[%s0] sm:$0xff]
  %v150 = vld [vmem:[%s0 + $0x8] sm:$0xff]
  %v151 = vld [vmem:[%s0 + $0x10] sm:$0xff]
  %v152 = vld [vmem:[%s0 + $0x18] sm:$0xff]
  %v153 = vld [vmem:[%s0 + $0x20] sm:$0xff]
  %v154 = vld [vmem:[%s0 + $0x28] sm:$0xff]
  %v155 = vld [vmem:[%s0 + $0x30] sm:$0xff]
  %v156 = vld [vmem:[%s0 + $0x38] sm:$0xff]
  %v157 = vld [vmem:[%s0 + $0x40] sm:$0xff]
  %v158 = vld [vmem:[%s0 + $0x48] sm:$0xff]
  %v159 = vld [vmem:[%s0 + $0x50] sm:$0xff]
  %v160 = vld [vmem:[%s0 + $0x58] sm:$0xff]
  %v161 = vld [vmem:[%s0 + $0x60] sm:$0xff]
  %v162 = vld [vmem:[%s0 + $0x68] sm:$0xff]
  %v163 = vld [vmem:[%s0 + $0x70] sm:$0xff]
  %v164 = vld [vmem:[%s0 + $0x78] sm:$0xff]
  %v165 = vld [vmem:[%s0 + $0x80] sm:$0xff]
  %v166 = vld [vmem:[%s0 + $0x88] sm:$0xff]
  %v167 = vld [vmem:[%s0 + $0x90] sm:$0xff]
  %v168 = vld [vmem:[%s0 + $0x98] sm:$0xff]
  %v169 = vld [vmem:[%s0 + $0xa0] sm:$0xff]
  %v170 = vld [vmem:[%s0 + $0xa8] sm:$0xff]
  %v171 = vld [vmem:[%s0 + $0xb0] sm:$0xff]
  %v172 = vld [vmem:[%s0 + $0xb8] sm:$0xff]
  %v173 = vld [vmem:[%s0 + $0xc0] sm:$0xff]
  %v174 = vld [vmem:[%s0 + $0xc8] sm:$0xff]
  %v175 = vld [vmem:[%s0 + $0xd0] sm:$0xff]
  %v176 = vld [vmem:[%s0 + $0xd8] sm:$0xff]
  %v177 = vld [vmem:[%s0 + $0xe0] sm:$0xff]
  %v178 = vld [vmem:[%s0 + $0xe8] sm:$0xff]
  %v179 = vld [vmem:[%s0 + $0xf0] sm:$0xff]
  %v180 = vld [vmem:[%s0 + $0xf8] sm:$0xff]
  %v181 = vld [vmem:[%s0 + $0x100] sm:$0xff]
  %v182 = vld [vmem:[%s0 + $0x108] sm:$0xff]
  %v183 = vld [vmem:[%s0 + $0x110] sm:$0xff]
  %v184 = vld [vmem:[%s0 + $0x118] sm:$0xff]
  %v185 = vld [vmem:[%s0 + $0x120] sm:$0xff]
  %v186 = vld [vmem:[%s0 + $0x128] sm:$0xff]
  %v187 = vld [vmem:[%s0 + $0x130] sm:$0xff]
  %v188 = vld [vmem:[%s0 + $0x138] sm:$0xff]
  %v189 = vld [vmem:[%s0 + $0x140] sm:$0xff]
  %v190 = vld [vmem:[%s0 + $0x148] sm:$0xff]
  %v191 = vld [vmem:[%s0 + $0x150] sm:$0xff]
  %v192 = vld [vmem:[%s0 + $0x158] sm:$0xff]
  %v193 = vld [vmem:[%s0 + $0x160] sm:$0xff]
  %v194 = vld [vmem:[%s0 + $0x168] sm:$0xff]
  %v195 = vld [vmem:[%s0 + $0x170] sm:$0xff]
  %v196 = vld [vmem:[%s0 + $0x178] sm:$0xff]
  %v197 = vld [vmem:[%s0 + $0x180] sm:$0xff]
  %v198 = vld [vmem:[%s0 + $0x188] sm:$0xff]
  %v199 = vld [vmem:[%s0 + $0x190] sm:$0xff]
  %v200 = vld [vmem:[%s0 + $0x198] sm:$0xff]
  %v201 = vld [vmem:[%s0 + $0x1a0] sm:$0xff]
  %v202 = vld [vmem:[%s0 + $0x1a8] sm:$0xff]
  %v203 = vld [vmem:[%s0 + $0x1b0] sm:$0xff]
  %v204 = vld [vmem:[%s0 + $0x1b8] sm:$0xff]
  %v205 = vld [vmem:[%s0 + $0x1c0] sm:$0xff]
  %v206 = vld [vmem:[%s0 + $0x1c8] sm:$0xff]
  %v207 = vld [vmem:[%s0 + $0x1d0] sm:$0xff]
  %v208 = vld [vmem:[%s0 + $0x1d8] sm:$0xff]
  %v209 = vld [vmem:[%s0 + $0x1e0] sm:$0xff]
  %v210 = vld [vmem:[%s0 + $0x1e8] sm:$0xff]
  %v211 = vld [vmem:[%s0 + $0x1f0] sm:$0xff]
  %v212 = vld [vmem:[%s0 + $0x1f8] sm:$0xff]
  %v213 = vld [vmem:[%s1] sm:$0xf]
  %v214 = vld [vmem:[%s1 + $0x4] sm:$0xf]
  %v215 = vld [vmem:[%s1 + $0x8] sm:$0xf]
  %v216 = vld [vmem:[%s1 + $0xc] sm:$0xf]
  %v217 = vld [vmem:[%s1 + $0x10] sm:$0xf]
  %v218 = vld [vmem:[%s1 + $0x14] sm:$0xf]
  %v219 = vld [vmem:[%s1 + $0x18] sm:$0xf]
  %v220 = vld [vmem:[%s1 + $0x1c] sm:$0xf]
  %v221 = vld [vmem:[%s1 + $0x20] sm:$0xf]
  %v222 = vld [vmem:[%s1 + $0x24] sm:$0xf]
  %v223 = vld [vmem:[%s1 + $0x28] sm:$0xf]
  %v224 = vld [vmem:[%s1 + $0x2c] sm:$0xf]
  %v225 = vld [vmem:[%s1 + $0x30] sm:$0xf]
  %v226 = vld [vmem:[%s1 + $0x34] sm:$0xf]
  %v227 = vld [vmem:[%s1 + $0x38] sm:$0xf]
  %v228 = vld [vmem:[%s1 + $0x3c] sm:$0xf]
  %v229 = vld [vmem:[%s1 + $0x40] sm:$0xf]
  %v230 = vld [vmem:[%s1 + $0x44] sm:$0xf]
  %v231 = vld [vmem:[%s1 + $0x48] sm:$0xf]
  %v232 = vld [vmem:[%s1 + $0x4c] sm:$0xf]
  %v233 = vld [vmem:[%s1 + $0x50] sm:$0xf]
  %v234 = vld [vmem:[%s1 + $0x54] sm:$0xf]
  %v235 = vld [vmem:[%s1 + $0x58] sm:$0xf]
  %v236 = vld [vmem:[%s1 + $0x5c] sm:$0xf]
  %v237 = vld [vmem:[%s1 + $0x60] sm:$0xf]
  %v238 = vld [vmem:[%s1 + $0x64] sm:$0xf]
  %v239 = vld [vmem:[%s1 + $0x68] sm:$0xf]
  %v240 = vld [vmem:[%s1 + $0x6c] sm:$0xf]
  %v241 = vld [vmem:[%s1 + $0x70] sm:$0xf]
  %v242 = vld [vmem:[%s1 + $0x74] sm:$0xf]
  %v243 = vld [vmem:[%s1 + $0x78] sm:$0xf]
  %v244 = vld [vmem:[%s1 + $0x7c] sm:$0xf]
  %v309 = vunpack.c.l.b16 %v149
  %v310 = vunpack.c.h.b16 %v149
  %v311 = vunpack.c.l.b16 %v150
  %v312 = vunpack.c.h.b16 %v150
  %v313 = vunpack.c.l.b16 %v151
  %v314 = vunpack.c.h.b16 %v151
  %v315 = vunpack.c.l.b16 %v152
  %v316 = vunpack.c.h.b16 %v152
  %v317 = vunpack.c.l.b16 %v153
  %v318 = vunpack.c.h.b16 %v153
  %v319 = vunpack.c.l.b16 %v154
  %v320 = vunpack.c.h.b16 %v154
  %v321 = vunpack.c.l.b16 %v155
  %v322 = vunpack.c.h.b16 %v155
  %v323 = vunpack.c.l.b16 %v156
  %v324 = vunpack.c.h.b16 %v156
  %v325 = vunpack.c.l.b16 %v157
  %v326 = vunpack.c.h.b16 %v157
  %v327 = vunpack.c.l.b16 %v158
  %v328 = vunpack.c.h.b16 %v158
  %v329 = vunpack.c.l.b16 %v159
  %v330 = vunpack.c.h.b16 %v159
  %v331 = vunpack.c.l.b16 %v160
  %v332 = vunpack.c.h.b16 %v160
  %v333 = vunpack.c.l.b16 %v161
  %v334 = vunpack.c.h.b16 %v161
  %v335 = vunpack.c.l.b16 %v162
  %v336 = vunpack.c.h.b16 %v162
  %v337 = vunpack.c.l.b16 %v163
  %v338 = vunpack.c.h.b16 %v163
  %v339 = vunpack.c.l.b16 %v164
  %v340 = vunpack.c.h.b16 %v164
  %v341 = vunpack.c.l.b16 %v165
  %v342 = vunpack.c.h.b16 %v165
  %v343 = vunpack.c.l.b16 %v166
  %v344 = vunpack.c.h.b16 %v166
  %v345 = vunpack.c.l.b16 %v167
  %v346 = vunpack.c.h.b16 %v167
  %v347 = vunpack.c.l.b16 %v168
  %v348 = vunpack.c.h.b16 %v168
  %v349 = vunpack.c.l.b16 %v169
  %v350 = vunpack.c.h.b16 %v169
  %v351 = vunpack.c.l.b16 %v170
  %v352 = vunpack.c.h.b16 %v170
  %v353 = vunpack.c.l.b16 %v171
  %v354 = vunpack.c.h.b16 %v171
  %v355 = vunpack.c.l.b16 %v172
  %v356 = vunpack.c.h.b16 %v172
  %v357 = vunpack.c.l.b16 %v173
  %v358 = vunpack.c.h.b16 %v173
  %v359 = vunpack.c.l.b16 %v174
  %v360 = vunpack.c.h.b16 %v174
  %v361 = vunpack.c.l.b16 %v175
  %v362 = vunpack.c.h.b16 %v175
  %v363 = vunpack.c.l.b16 %v176
  %v364 = vunpack.c.h.b16 %v176
  %v365 = vunpack.c.l.b16 %v177
  %v366 = vunpack.c.h.b16 %v177
  %v367 = vunpack.c.l.b16 %v178
  %v368 = vunpack.c.h.b16 %v178
  %v369 = vunpack.c.l.b16 %v179
  %v370 = vunpack.c.h.b16 %v179
  %v371 = vunpack.c.l.b16 %v180
  %v372 = vunpack.c.h.b16 %v180
  %v373 = vunpack.c.l.b16 %v181
  %v374 = vunpack.c.h.b16 %v181
  %v375 = vunpack.c.l.b16 %v182
  %v376 = vunpack.c.h.b16 %v182
  %v377 = vunpack.c.l.b16 %v183
  %v378 = vunpack.c.h.b16 %v183
  %v379 = vunpack.c.l.b16 %v184
  %v380 = vunpack.c.h.b16 %v184
  %v381 = vunpack.c.l.b16 %v185
  %v382 = vunpack.c.h.b16 %v185
  %v383 = vunpack.c.l.b16 %v186
  %v384 = vunpack.c.h.b16 %v186
  %v385 = vunpack.c.l.b16 %v187
  %v386 = vunpack.c.h.b16 %v187
  %v387 = vunpack.c.l.b16 %v188
  %v388 = vunpack.c.h.b16 %v188
  %v389 = vunpack.c.l.b16 %v189
  %v390 = vunpack.c.h.b16 %v189
  %v391 = vunpack.c.l.b16 %v190
  %v392 = vunpack.c.h.b16 %v190
  %v393 = vunpack.c.l.b16 %v191
  %v394 = vunpack.c.h.b16 %v191
  %v395 = vunpack.c.l.b16 %v192
  %v396 = vunpack.c.h.b16 %v192
  %v397 = vunpack.c.l.b16 %v193
  %v398 = vunpack.c.h.b16 %v193
  %v399 = vunpack.c.l.b16 %v194
  %v400 = vunpack.c.h.b16 %v194
  %v401 = vunpack.c.l.b16 %v195
  %v402 = vunpack.c.h.b16 %v195
  %v403 = vunpack.c.l.b16 %v196
  %v404 = vunpack.c.h.b16 %v196
  %v405 = vunpack.c.l.b16 %v197
  %v406 = vunpack.c.h.b16 %v197
  %v407 = vunpack.c.l.b16 %v198
  %v408 = vunpack.c.h.b16 %v198
  %v409 = vunpack.c.l.b16 %v199
  %v410 = vunpack.c.h.b16 %v199
  %v411 = vunpack.c.l.b16 %v200
  %v412 = vunpack.c.h.b16 %v200
  %v413 = vunpack.c.l.b16 %v201
  %v414 = vunpack.c.h.b16 %v201
  %v415 = vunpack.c.l.b16 %v202
  %v416 = vunpack.c.h.b16 %v202
  %v417 = vunpack.c.l.b16 %v203
  %v418 = vunpack.c.h.b16 %v203
  %v419 = vunpack.c.l.b16 %v204
  %v420 = vunpack.c.h.b16 %v204
  %v421 = vunpack.c.l.b16 %v205
  %v422 = vunpack.c.h.b16 %v205
  %v423 = vunpack.c.l.b16 %v206
  %v424 = vunpack.c.h.b16 %v206
  %v425 = vunpack.c.l.b16 %v207
  %v426 = vunpack.c.h.b16 %v207
  %v427 = vunpack.c.l.b16 %v208
  %v428 = vunpack.c.h.b16 %v208
  %v429 = vunpack.c.l.b16 %v209
  %v430 = vunpack.c.h.b16 %v209
  %v431 = vunpack.c.l.b16 %v210
  %v432 = vunpack.c.h.b16 %v210
  %v433 = vunpack.c.l.b16 %v211
  %v434 = vunpack.c.h.b16 %v211
  %v435 = vunpack.c.l.b16 %v212
  %v436 = vunpack.c.h.b16 %v212
  %v437 = vpack.c.b16 %v311, %v309
  %v438 = vpack.c.b16 %v312, %v310
  %v439 = vpack.c.b16 %v315, %v313
  %v440 = vpack.c.b16 %v316, %v314
  %v441 = vpack.c.b16 %v319, %v317
  %v442 = vpack.c.b16 %v320, %v318
  %v443 = vpack.c.b16 %v323, %v321
  %v444 = vpack.c.b16 %v324, %v322
  %v445 = vpack.c.b16 %v327, %v325
  %v446 = vpack.c.b16 %v328, %v326
  %v447 = vpack.c.b16 %v331, %v329
  %v448 = vpack.c.b16 %v332, %v330
  %v449 = vpack.c.b16 %v335, %v333
  %v450 = vpack.c.b16 %v336, %v334
  %v451 = vpack.c.b16 %v339, %v337
  %v452 = vpack.c.b16 %v340, %v338
  %v453 = vpack.c.b16 %v343, %v341
  %v454 = vpack.c.b16 %v344, %v342
  %v455 = vpack.c.b16 %v347, %v345
  %v456 = vpack.c.b16 %v348, %v346
  %v457 = vpack.c.b16 %v351, %v349
  %v458 = vpack.c.b16 %v352, %v350
  %v459 = vpack.c.b16 %v355, %v353
  %v460 = vpack.c.b16 %v356, %v354
  %v461 = vpack.c.b16 %v359, %v357
  %v462 = vpack.c.b16 %v360, %v358
  %v463 = vpack.c.b16 %v363, %v361
  %v464 = vpack.c.b16 %v364, %v362
  %v465 = vpack.c.b16 %v367, %v365
  %v466 = vpack.c.b16 %v368, %v366
  %v467 = vpack.c.b16 %v371, %v369
  %v468 = vpack.c.b16 %v372, %v370
  %v469 = vpack.c.b16 %v375, %v373
  %v470 = vpack.c.b16 %v376, %v374
  %v471 = vpack.c.b16 %v379, %v377
  %v472 = vpack.c.b16 %v380, %v378
  %v473 = vpack.c.b16 %v383, %v381
  %v474 = vpack.c.b16 %v384, %v382
  %v475 = vpack.c.b16 %v387, %v385
  %v476 = vpack.c.b16 %v388, %v386
  %v477 = vpack.c.b16 %v391, %v389
  %v478 = vpack.c.b16 %v392, %v390
  %v479 = vpack.c.b16 %v395, %v393
  %v480 = vpack.c.b16 %v396, %v394
  %v481 = vpack.c.b16 %v399, %v397
  %v482 = vpack.c.b16 %v400, %v398
  %v483 = vpack.c.b16 %v403, %v401
  %v484 = vpack.c.b16 %v404, %v402
  %v485 = vpack.c.b16 %v407, %v405
  %v486 = vpack.c.b16 %v408, %v406
  %v487 = vpack.c.b16 %v411, %v409
  %v488 = vpack.c.b16 %v412, %v410
  %v489 = vpack.c.b16 %v415, %v413
  %v490 = vpack.c.b16 %v416, %v414
  %v491 = vpack.c.b16 %v419, %v417
  %v492 = vpack.c.b16 %v420, %v418
  %v493 = vpack.c.b16 %v423, %v421
  %v494 = vpack.c.b16 %v424, %v422
  %v495 = vpack.c.b16 %v427, %v425
  %v496 = vpack.c.b16 %v428, %v426
  %v497 = vpack.c.b16 %v431, %v429
  %v498 = vpack.c.b16 %v432, %v430
  %v499 = vpack.c.b16 %v435, %v433
  %v500 = vpack.c.b16 %v436, %v434
  %v597 = vunpack.c.l.b16 %v213
  %v598 = vunpack.c.l.b16 %v214
  %v599 = vunpack.c.l.b16 %v215
  %v600 = vunpack.c.l.b16 %v216
  %v601 = vunpack.c.l.b16 %v217
  %v602 = vunpack.c.l.b16 %v218
  %v603 = vunpack.c.l.b16 %v219
  %v604 = vunpack.c.l.b16 %v220
  %v605 = vunpack.c.l.b16 %v221
  %v606 = vunpack.c.l.b16 %v222
  %v607 = vunpack.c.l.b16 %v223
  %v608 = vunpack.c.l.b16 %v224
  %v609 = vunpack.c.l.b16 %v225
  %v610 = vunpack.c.l.b16 %v226
  %v611 = vunpack.c.l.b16 %v227
  %v612 = vunpack.c.l.b16 %v228
  %v613 = vunpack.c.l.b16 %v229
  %v614 = vunpack.c.l.b16 %v230
  %v615 = vunpack.c.l.b16 %v231
  %v616 = vunpack.c.l.b16 %v232
  %v617 = vunpack.c.l.b16 %v233
  %v618 = vunpack.c.l.b16 %v234
  %v619 = vunpack.c.l.b16 %v235
  %v620 = vunpack.c.l.b16 %v236
  %v621 = vunpack.c.l.b16 %v237
  %v622 = vunpack.c.l.b16 %v238
  %v623 = vunpack.c.l.b16 %v239
  %v624 = vunpack.c.l.b16 %v240
  %v625 = vunpack.c.l.b16 %v241
  %v626 = vunpack.c.l.b16 %v242
  %v627 = vunpack.c.l.b16 %v243
  %v628 = vunpack.c.l.b16 %v244
  %v629 = vpack.c.b16 %v598, %v597
  %v630 = vpack.c.b16 %v600, %v599
  %v631 = vpack.c.b16 %v602, %v601
  %v632 = vpack.c.b16 %v604, %v603
  %v633 = vpack.c.b16 %v606, %v605
  %v634 = vpack.c.b16 %v608, %v607
  %v635 = vpack.c.b16 %v610, %v609
  %v636 = vpack.c.b16 %v612, %v611
  %v637 = vpack.c.b16 %v614, %v613
  %v638 = vpack.c.b16 %v616, %v615
  %v639 = vpack.c.b16 %v618, %v617
  %v640 = vpack.c.b16 %v620, %v619
  %v641 = vpack.c.b16 %v622, %v621
  %v642 = vpack.c.b16 %v624, %v623
  %v643 = vpack.c.b16 %v626, %v625
  %v644 = vpack.c.b16 %v628, %v627
  %661 = vmatprep.subr.bf16.mxu0 0
  %662 = vmatpush1.bf16.msra.mxu0 %v636
  %663 = vmatprep.subr.bf16.mxu0 0
  %664 = vmatpush1.bf16.msra.mxu0 %v635
  %665 = vmatprep.subr.bf16.mxu0 0
  %666 = vmatpush1.bf16.msra.mxu0 %v634
  %667 = vmatprep.subr.bf16.mxu0 0
  %668 = vmatpush1.bf16.msra.mxu0 %v633
  %669 = vmatprep.subr.bf16.mxu0 0
  %670 = vmatpush1.bf16.msra.mxu0 %v632
  %671 = vmatprep.subr.bf16.mxu0 0
  %672 = vmatpush1.bf16.msra.mxu0 %v631
  %673 = vmatprep.subr.bf16.mxu0 0
  %674 = vmatpush1.bf16.msra.mxu0 %v630
  %675 = vmatprep.subr.bf16.mxu0 0
  %676 = vmatpush1.bf16.msra.mxu0 %v629
  %677 = vmatprep.subr.bf16.mxu0 0
  %678 = vmatpush2.bf16.msra.mxu0 %v644
  %679 = vmatprep.subr.bf16.mxu0 0
  %680 = vmatpush2.bf16.msra.mxu0 %v643
  %681 = vmatprep.subr.bf16.mxu0 0
  %682 = vmatpush2.bf16.msra.mxu0 %v642
  %683 = vmatprep.subr.bf16.mxu0 0
  %684 = vmatpush2.bf16.msra.mxu0 %v641
  %685 = vmatprep.subr.bf16.mxu0 0
  %686 = vmatpush2.bf16.msra.mxu0 %v640
  %687 = vmatprep.subr.bf16.mxu0 0
  %688 = vmatpush2.bf16.msra.mxu0 %v639
  %689 = vmatprep.subr.bf16.mxu0 0
  %690 = vmatpush2.bf16.msra.mxu0 %v638
  %691 = vmatprep.subr.bf16.mxu0 0
  %692 = vmatpush2.bf16.msra.mxu0 %v637
  %693 = vmatprep.mubr.bf16.mxu0 %v438
  %694 = vmatmul.mubr.bf16.gmra.mxu0 %v437
  %v695 = vpop.f32.mrf.mxu0
  %v696 = vadd.f32 0.0, %v695
  %v697 = vpop.f32.mrf.mxu0
  %v698 = vpop.f32.mrf.mxu0
  %v699 = vadd.f32 0.0, %v698
  %v700 = vpop.f32.mrf.mxu0
  %701 = vmatprep.mubr.bf16.mxu0 %v440
  %702 = vmatmul.mubr.bf16.gmra.mxu0 %v439
  %v703 = vpop.f32.mrf.mxu0
  %v704 = vadd.f32 0.0, %v703
  %v705 = vpop.f32.mrf.mxu0
  %v706 = vpop.f32.mrf.mxu0
  %v707 = vadd.f32 0.0, %v706
  %v708 = vpop.f32.mrf.mxu0
  %709 = vmatprep.mubr.bf16.mxu0 %v442
  %710 = vmatmul.mubr.bf16.gmra.mxu0 %v441
  %v711 = vpop.f32.mrf.mxu0
  %v712 = vadd.f32 0.0, %v711
  %v713 = vpop.f32.mrf.mxu0
  %v714 = vpop.f32.mrf.mxu0
  %v715 = vadd.f32 0.0, %v714
  %v716 = vpop.f32.mrf.mxu0
  %717 = vmatprep.mubr.bf16.mxu0 %v444
  %718 = vmatmul.mubr.bf16.gmra.mxu0 %v443
  %v719 = vpop.f32.mrf.mxu0
  %v720 = vadd.f32 0.0, %v719
  %v721 = vpop.f32.mrf.mxu0
  %v722 = vpop.f32.mrf.mxu0
  %v723 = vadd.f32 0.0, %v722
  %v724 = vpop.f32.mrf.mxu0
  %725 = vmatprep.mubr.bf16.mxu0 %v446
  %726 = vmatmul.mubr.bf16.gmra.mxu0 %v445
  %v727 = vpop.f32.mrf.mxu0
  %v728 = vadd.f32 0.0, %v727
  %v729 = vpop.f32.mrf.mxu0
  %v730 = vpop.f32.mrf.mxu0
  %v731 = vadd.f32 0.0, %v730
  %v732 = vpop.f32.mrf.mxu0
  %733 = vmatprep.mubr.bf16.mxu0 %v448
  %734 = vmatmul.mubr.bf16.gmra.mxu0 %v447
  %v735 = vpop.f32.mrf.mxu0
  %v736 = vadd.f32 0.0, %v735
  %v737 = vpop.f32.mrf.mxu0
  %v738 = vpop.f32.mrf.mxu0
  %v739 = vadd.f32 0.0, %v738
  %v740 = vpop.f32.mrf.mxu0
  %741 = vmatprep.mubr.bf16.mxu0 %v450
  %742 = vmatmul.mubr.bf16.gmra.mxu0 %v449
  %v743 = vpop.f32.mrf.mxu0
  %v744 = vadd.f32 0.0, %v743
  %v745 = vpop.f32.mrf.mxu0
  %v746 = vpop.f32.mrf.mxu0
  %v747 = vadd.f32 0.0, %v746
  %v748 = vpop.f32.mrf.mxu0
  %749 = vmatprep.mubr.bf16.mxu0 %v452
  %750 = vmatmul.mubr.bf16.gmra.mxu0 %v451
  %v751 = vpop.f32.mrf.mxu0
  %v752 = vadd.f32 0.0, %v751
  %v753 = vpop.f32.mrf.mxu0
  %v754 = vpop.f32.mrf.mxu0
  %v755 = vadd.f32 0.0, %v754
  %v756 = vpop.f32.mrf.mxu0
  %757 = vmatprep.mubr.bf16.mxu0 %v454
  %758 = vmatmul.mubr.bf16.gmra.mxu0 %v453
  %v759 = vpop.f32.mrf.mxu0
  %v760 = vadd.f32 0.0, %v759
  %v761 = vpop.f32.mrf.mxu0
  %v762 = vpop.f32.mrf.mxu0
  %v763 = vadd.f32 0.0, %v762
  %v764 = vpop.f32.mrf.mxu0
  %765 = vmatprep.mubr.bf16.mxu0 %v456
  %766 = vmatmul.mubr.bf16.gmra.mxu0 %v455
  %v767 = vpop.f32.mrf.mxu0
  %v768 = vadd.f32 0.0, %v767
  %v769 = vpop.f32.mrf.mxu0
  %v770 = vpop.f32.mrf.mxu0
  %v771 = vadd.f32 0.0, %v770
  %v772 = vpop.f32.mrf.mxu0
  %773 = vmatprep.mubr.bf16.mxu0 %v458
  %774 = vmatmul.mubr.bf16.gmra.mxu0 %v457
  %v775 = vpop.f32.mrf.mxu0
  %v776 = vadd.f32 0.0, %v775
  %v777 = vpop.f32.mrf.mxu0
  %v778 = vpop.f32.mrf.mxu0
  %v779 = vadd.f32 0.0, %v778
  %v780 = vpop.f32.mrf.mxu0
  %781 = vmatprep.mubr.bf16.mxu0 %v460
  %782 = vmatmul.mubr.bf16.gmra.mxu0 %v459
  %v783 = vpop.f32.mrf.mxu0
  %v784 = vadd.f32 0.0, %v783
  %v785 = vpop.f32.mrf.mxu0
  %v786 = vpop.f32.mrf.mxu0
  %v787 = vadd.f32 0.0, %v786
  %v788 = vpop.f32.mrf.mxu0
  %789 = vmatprep.mubr.bf16.mxu0 %v462
  %790 = vmatmul.mubr.bf16.gmra.mxu0 %v461
  %v791 = vpop.f32.mrf.mxu0
  %v792 = vadd.f32 0.0, %v791
  %v793 = vpop.f32.mrf.mxu0
  %v794 = vpop.f32.mrf.mxu0
  %v795 = vadd.f32 0.0, %v794
  %v796 = vpop.f32.mrf.mxu0
  %797 = vmatprep.mubr.bf16.mxu0 %v464
  %798 = vmatmul.mubr.bf16.gmra.mxu0 %v463
  %v799 = vpop.f32.mrf.mxu0
  %v800 = vadd.f32 0.0, %v799
  %v801 = vpop.f32.mrf.mxu0
  %v802 = vpop.f32.mrf.mxu0
  %v803 = vadd.f32 0.0, %v802
  %v804 = vpop.f32.mrf.mxu0
  %805 = vmatprep.mubr.bf16.mxu0 %v466
  %806 = vmatmul.mubr.bf16.gmra.mxu0 %v465
  %v807 = vpop.f32.mrf.mxu0
  %v808 = vadd.f32 0.0, %v807
  %v809 = vpop.f32.mrf.mxu0
  %v810 = vpop.f32.mrf.mxu0
  %v811 = vadd.f32 0.0, %v810
  %v812 = vpop.f32.mrf.mxu0
  %813 = vmatprep.mubr.bf16.mxu0 %v468
  %814 = vmatmul.mubr.bf16.gmra.mxu0 %v467
  %v815 = vpop.f32.mrf.mxu0
  %v816 = vadd.f32 0.0, %v815
  %v817 = vpop.f32.mrf.mxu0
  %v818 = vpop.f32.mrf.mxu0
  %v819 = vadd.f32 0.0, %v818
  %v820 = vpop.f32.mrf.mxu0
  %821 = vmatprep.mubr.bf16.mxu0 %v470
  %822 = vmatmul.mubr.bf16.gmra.mxu0 %v469
  %v823 = vpop.f32.mrf.mxu0
  %v824 = vadd.f32 0.0, %v823
  %v825 = vpop.f32.mrf.mxu0
  %v826 = vpop.f32.mrf.mxu0
  %v827 = vadd.f32 0.0, %v826
  %v828 = vpop.f32.mrf.mxu0
  %829 = vmatprep.mubr.bf16.mxu0 %v472
  %830 = vmatmul.mubr.bf16.gmra.mxu0 %v471
  %v831 = vpop.f32.mrf.mxu0
  %v832 = vadd.f32 0.0, %v831
  %v833 = vpop.f32.mrf.mxu0
  %v834 = vpop.f32.mrf.mxu0
  %v835 = vadd.f32 0.0, %v834
  %v836 = vpop.f32.mrf.mxu0
  %837 = vmatprep.mubr.bf16.mxu0 %v474
  %838 = vmatmul.mubr.bf16.gmra.mxu0 %v473
  %v839 = vpop.f32.mrf.mxu0
  %v840 = vadd.f32 0.0, %v839
  %v841 = vpop.f32.mrf.mxu0
  %v842 = vpop.f32.mrf.mxu0
  %v843 = vadd.f32 0.0, %v842
  %v844 = vpop.f32.mrf.mxu0
  %845 = vmatprep.mubr.bf16.mxu0 %v476
  %846 = vmatmul.mubr.bf16.gmra.mxu0 %v475
  %v847 = vpop.f32.mrf.mxu0
  %v848 = vadd.f32 0.0, %v847
  %v849 = vpop.f32.mrf.mxu0
  %v850 = vpop.f32.mrf.mxu0
  %v851 = vadd.f32 0.0, %v850
  %v852 = vpop.f32.mrf.mxu0
  %853 = vmatprep.mubr.bf16.mxu0 %v478
  %854 = vmatmul.mubr.bf16.gmra.mxu0 %v477
  %v855 = vpop.f32.mrf.mxu0
  %v856 = vadd.f32 0.0, %v855
  %v857 = vpop.f32.mrf.mxu0
  %v858 = vpop.f32.mrf.mxu0
  %v859 = vadd.f32 0.0, %v858
  %v860 = vpop.f32.mrf.mxu0
  %861 = vmatprep.mubr.bf16.mxu0 %v480
  %862 = vmatmul.mubr.bf16.gmra.mxu0 %v479
  %v863 = vpop.f32.mrf.mxu0
  %v864 = vadd.f32 0.0, %v863
  %v865 = vpop.f32.mrf.mxu0
  %v866 = vpop.f32.mrf.mxu0
  %v867 = vadd.f32 0.0, %v866
  %v868 = vpop.f32.mrf.mxu0
  %869 = vmatprep.mubr.bf16.mxu0 %v482
  %870 = vmatmul.mubr.bf16.gmra.mxu0 %v481
  %v871 = vpop.f32.mrf.mxu0
  %v872 = vadd.f32 0.0, %v871
  %v873 = vpop.f32.mrf.mxu0
  %v874 = vpop.f32.mrf.mxu0
  %v875 = vadd.f32 0.0, %v874
  %v876 = vpop.f32.mrf.mxu0
  %877 = vmatprep.mubr.bf16.mxu0 %v484
  %878 = vmatmul.mubr.bf16.gmra.mxu0 %v483
  %v879 = vpop.f32.mrf.mxu0
  %v880 = vadd.f32 0.0, %v879
  %v881 = vpop.f32.mrf.mxu0
  %v882 = vpop.f32.mrf.mxu0
  %v883 = vadd.f32 0.0, %v882
  %v884 = vpop.f32.mrf.mxu0
  %885 = vmatprep.mubr.bf16.mxu0 %v486
  %886 = vmatmul.mubr.bf16.gmra.mxu0 %v485
  %v887 = vpop.f32.mrf.mxu0
  %v888 = vadd.f32 0.0, %v887
  %v889 = vpop.f32.mrf.mxu0
  %v890 = vpop.f32.mrf.mxu0
  %v891 = vadd.f32 0.0, %v890
  %v892 = vpop.f32.mrf.mxu0
  %893 = vmatprep.mubr.bf16.mxu0 %v488
  %894 = vmatmul.mubr.bf16.gmra.mxu0 %v487
  %v895 = vpop.f32.mrf.mxu0
  %v896 = vadd.f32 0.0, %v895
  %v897 = vpop.f32.mrf.mxu0
  %v898 = vpop.f32.mrf.mxu0
  %v899 = vadd.f32 0.0, %v898
  %v900 = vpop.f32.mrf.mxu0
  %901 = vmatprep.mubr.bf16.mxu0 %v490
  %902 = vmatmul.mubr.bf16.gmra.mxu0 %v489
  %v903 = vpop.f32.mrf.mxu0
  %v904 = vadd.f32 0.0, %v903
  %v905 = vpop.f32.mrf.mxu0
  %v906 = vpop.f32.mrf.mxu0
  %v907 = vadd.f32 0.0, %v906
  %v908 = vpop.f32.mrf.mxu0
  %909 = vmatprep.mubr.bf16.mxu0 %v492
  %910 = vmatmul.mubr.bf16.gmra.mxu0 %v491
  %v911 = vpop.f32.mrf.mxu0
  %v912 = vadd.f32 0.0, %v911
  %v913 = vpop.f32.mrf.mxu0
  %v914 = vpop.f32.mrf.mxu0
  %v915 = vadd.f32 0.0, %v914
  %v916 = vpop.f32.mrf.mxu0
  %917 = vmatprep.mubr.bf16.mxu0 %v494
  %918 = vmatmul.mubr.bf16.gmra.mxu0 %v493
  %v919 = vpop.f32.mrf.mxu0
  %v920 = vadd.f32 0.0, %v919
  %v921 = vpop.f32.mrf.mxu0
  %v922 = vpop.f32.mrf.mxu0
  %v923 = vadd.f32 0.0, %v922
  %v924 = vpop.f32.mrf.mxu0
  %925 = vmatprep.mubr.bf16.mxu0 %v496
  %926 = vmatmul.mubr.bf16.gmra.mxu0 %v495
  %v927 = vpop.f32.mrf.mxu0
  %v928 = vadd.f32 0.0, %v927
  %v929 = vpop.f32.mrf.mxu0
  %v930 = vpop.f32.mrf.mxu0
  %v931 = vadd.f32 0.0, %v930
  %v932 = vpop.f32.mrf.mxu0
  %933 = vmatprep.mubr.bf16.mxu0 %v498
  %934 = vmatmul.mubr.bf16.gmra.mxu0 %v497
  %v935 = vpop.f32.mrf.mxu0
  %v936 = vadd.f32 0.0, %v935
  %v937 = vpop.f32.mrf.mxu0
  %v938 = vpop.f32.mrf.mxu0
  %v939 = vadd.f32 0.0, %v938
  %v940 = vpop.f32.mrf.mxu0
  %941 = vmatprep.mubr.bf16.mxu0 %v500
  %942 = vmatmul.mubr.bf16.gmra.mxu0 %v499
  %v943 = vpop.f32.mrf.mxu0
  %v944 = vadd.f32 0.0, %v943
  %v945 = vpop.f32.mrf.mxu0
  %v946 = vpop.f32.mrf.mxu0
  %v947 = vadd.f32 0.0, %v946
  %v948 = vpop.f32.mrf.mxu0
  %949 = vdwg.mxu0
  %v950 = vadd.f32 %v85, %v696
  %v951 = vadd.f32 %v86, %v699
  %v952 = vadd.f32 %v87, %v704
  %v953 = vadd.f32 %v88, %v707
  %v954 = vadd.f32 %v89, %v712
  %v955 = vadd.f32 %v90, %v715
  %v956 = vadd.f32 %v91, %v720
  %v957 = vadd.f32 %v92, %v723
  %v958 = vadd.f32 %v93, %v728
  %v959 = vadd.f32 %v94, %v731
  %v960 = vadd.f32 %v95, %v736
  %v961 = vadd.f32 %v96, %v739
  %v962 = vadd.f32 %v97, %v744
  %v963 = vadd.f32 %v98, %v747
  %v964 = vadd.f32 %v99, %v752
  %v965 = vadd.f32 %v100, %v755
  %v966 = vadd.f32 %v101, %v760
  %v967 = vadd.f32 %v102, %v763
  %v968 = vadd.f32 %v103, %v768
  %v969 = vadd.f32 %v104, %v771
  %v970 = vadd.f32 %v105, %v776
  %v971 = vadd.f32 %v106, %v779
  %v972 = vadd.f32 %v107, %v784
  %v973 = vadd.f32 %v108, %v787
  %v974 = vadd.f32 %v109, %v792
  %v975 = vadd.f32 %v110, %v795
  %v976 = vadd.f32 %v111, %v800
  %v977 = vadd.f32 %v112, %v803
  %v978 = vadd.f32 %v113, %v808
  %v979 = vadd.f32 %v114, %v811
  %v980 = vadd.f32 %v115, %v816
  %v981 = vadd.f32 %v116, %v819
  %v982 = vadd.f32 %v117, %v824
  %v983 = vadd.f32 %v118, %v827
  %v984 = vadd.f32 %v119, %v832
  %v985 = vadd.f32 %v120, %v835
  %v986 = vadd.f32 %v121, %v840
  %v987 = vadd.f32 %v122, %v843
  %v988 = vadd.f32 %v123, %v848
  %v989 = vadd.f32 %v124, %v851
  %v990 = vadd.f32 %v125, %v856
  %v991 = vadd.f32 %v126, %v859
  %v992 = vadd.f32 %v127, %v864
  %v993 = vadd.f32 %v128, %v867
  %v994 = vadd.f32 %v129, %v872
  %v995 = vadd.f32 %v130, %v875
  %v996 = vadd.f32 %v131, %v880
  %v997 = vadd.f32 %v132, %v883
  %v998 = vadd.f32 %v133, %v888
  %v999 = vadd.f32 %v134, %v891
  %v1000 = vadd.f32 %v135, %v896
  %v1001 = vadd.f32 %v136, %v899
  %v1002 = vadd.f32 %v137, %v904
  %v1003 = vadd.f32 %v138, %v907
  %v1004 = vadd.f32 %v139, %v912
  %v1005 = vadd.f32 %v140, %v915
  %v1006 = vadd.f32 %v141, %v920
  %v1007 = vadd.f32 %v142, %v923
  %v1008 = vadd.f32 %v143, %v928
  %v1009 = vadd.f32 %v144, %v931
  %v1010 = vadd.f32 %v145, %v936
  %v1011 = vadd.f32 %v146, %v939
  %v1012 = vadd.f32 %v147, %v944
  %v1013 = vadd.f32 %v148, %v947
  %1014 = vst [vmem:[#allocation2] sm:$0xff] %v950
  %1015 = vst [vmem:[#allocation2 + $0x8] sm:$0xff] %v951
  %1016 = vst [vmem:[#allocation2 + $0x10] sm:$0xff] %v952
  %1017 = vst [vmem:[#allocation2 + $0x18] sm:$0xff] %v953
  %1018 = vst [vmem:[#allocation2 + $0x20] sm:$0xff] %v954
  %1019 = vst [vmem:[#allocation2 + $0x28] sm:$0xff] %v955
  %1020 = vst [vmem:[#allocation2 + $0x30] sm:$0xff] %v956
  %1021 = vst [vmem:[#allocation2 + $0x38] sm:$0xff] %v957
  %1022 = vst [vmem:[#allocation2 + $0x40] sm:$0xff] %v958
  %1023 = vst [vmem:[#allocation2 + $0x48] sm:$0xff] %v959
  %1024 = vst [vmem:[#allocation2 + $0x50] sm:$0xff] %v960
  %1025 = vst [vmem:[#allocation2 + $0x58] sm:$0xff] %v961
  %1026 = vst [vmem:[#allocation2 + $0x60] sm:$0xff] %v962
  %1027 = vst [vmem:[#allocation2 + $0x68] sm:$0xff] %v963
  %1028 = vst [vmem:[#allocation2 + $0x70] sm:$0xff] %v964
  %1029 = vst [vmem:[#allocation2 + $0x78] sm:$0xff] %v965
  %1030 = vst [vmem:[#allocation2 + $0x80] sm:$0xff] %v966
  %1031 = vst [vmem:[#allocation2 + $0x88] sm:$0xff] %v967
  %1032 = vst [vmem:[#allocation2 + $0x90] sm:$0xff] %v968
  %1033 = vst [vmem:[#allocation2 + $0x98] sm:$0xff] %v969
  %1034 = vst [vmem:[#allocation2 + $0xa0] sm:$0xff] %v970
  %1035 = vst [vmem:[#allocation2 + $0xa8] sm:$0xff] %v971
  %1036 = vst [vmem:[#allocation2 + $0xb0] sm:$0xff] %v972
  %1037 = vst [vmem:[#allocation2 + $0xb8] sm:$0xff] %v973
  %1038 = vst [vmem:[#allocation2 + $0xc0] sm:$0xff] %v974
  %1039 = vst [vmem:[#allocation2 + $0xc8] sm:$0xff] %v975
  %1040 = vst [vmem:[#allocation2 + $0xd0] sm:$0xff] %v976
  %1041 = vst [vmem:[#allocation2 + $0xd8] sm:$0xff] %v977
  %1042 = vst [vmem:[#allocation2 + $0xe0] sm:$0xff] %v978
  %1043 = vst [vmem:[#allocation2 + $0xe8] sm:$0xff] %v979
  %1044 = vst [vmem:[#allocation2 + $0xf0] sm:$0xff] %v980
  %1045 = vst [vmem:[#allocation2 + $0xf8] sm:$0xff] %v981
  %1046 = vst [vmem:[#allocation2 + $0x100] sm:$0xff] %v982
  %1047 = vst [vmem:[#allocation2 + $0x108] sm:$0xff] %v983
  %1048 = vst [vmem:[#allocation2 + $0x110] sm:$0xff] %v984
  %1049 = vst [vmem:[#allocation2 + $0x118] sm:$0xff] %v985
  %1050 = vst [vmem:[#allocation2 + $0x120] sm:$0xff] %v986
  %1051 = vst [vmem:[#allocation2 + $0x128] sm:$0xff] %v987
  %1052 = vst [vmem:[#allocation2 + $0x130] sm:$0xff] %v988
  %1053 = vst [vmem:[#allocation2 + $0x138] sm:$0xff] %v989
  %1054 = vst [vmem:[#allocation2 + $0x140] sm:$0xff] %v990
  %1055 = vst [vmem:[#allocation2 + $0x148] sm:$0xff] %v991
  %1056 = vst [vmem:[#allocation2 + $0x150] sm:$0xff] %v992
  %1057 = vst [vmem:[#allocation2 + $0x158] sm:$0xff] %v993
  %1058 = vst [vmem:[#allocation2 + $0x160] sm:$0xff] %v994
  %1059 = vst [vmem:[#allocation2 + $0x168] sm:$0xff] %v995
  %1060 = vst [vmem:[#allocation2 + $0x170] sm:$0xff] %v996
  %1061 = vst [vmem:[#allocation2 + $0x178] sm:$0xff] %v997
  %1062 = vst [vmem:[#allocation2 + $0x180] sm:$0xff] %v998
  %1063 = vst [vmem:[#allocation2 + $0x188] sm:$0xff] %v999
  %1064 = vst [vmem:[#allocation2 + $0x190] sm:$0xff] %v1000
  %1065 = vst [vmem:[#allocation2 + $0x198] sm:$0xff] %v1001
  %1066 = vst [vmem:[#allocation2 + $0x1a0] sm:$0xff] %v1002
  %1067 = vst [vmem:[#allocation2 + $0x1a8] sm:$0xff] %v1003
  %1068 = vst [vmem:[#allocation2 + $0x1b0] sm:$0xff] %v1004
  %1069 = vst [vmem:[#allocation2 + $0x1b8] sm:$0xff] %v1005
  %1070 = vst [vmem:[#allocation2 + $0x1c0] sm:$0xff] %v1006
  %1071 = vst [vmem:[#allocation2 + $0x1c8] sm:$0xff] %v1007
  %1072 = vst [vmem:[#allocation2 + $0x1d0] sm:$0xff] %v1008
  %1073 = vst [vmem:[#allocation2 + $0x1d8] sm:$0xff] %v1009
  %1074 = vst [vmem:[#allocation2 + $0x1e0] sm:$0xff] %v1010
  %1075 = vst [vmem:[#allocation2 + $0x1e8] sm:$0xff] %v1011
  %1076 = vst [vmem:[#allocation2 + $0x1f0] sm:$0xff] %v1012
  %1077 = vst [vmem:[#allocation2 + $0x1f8] sm:$0xff] %v1013
  // Predicated region
  $region18: #{_lambda_.25} parent=0 // pred_check
    %p1078 = pneg %p17
  $region19: #{_lambda_.25} parent=0 // pred_check_branch
    %1080 = sbr.rel (%p1078) target = $region21
  $region20: #{_lambda_.25} parent=0 // pred_region
    %v1081 = vld [vmem:[#allocation2] sm:$0xff]
    %v1082 = vld [vmem:[#allocation2 + $0x8] sm:$0xff]
    %v1083 = vld [vmem:[#allocation2 + $0x10] sm:$0xff]
    %v1084 = vld [vmem:[#allocation2 + $0x18] sm:$0xff]
    %v1085 = vld [vmem:[#allocation2 + $0x20] sm:$0xff]
    %v1086 = vld [vmem:[#allocation2 + $0x28] sm:$0xff]
    %v1087 = vld [vmem:[#allocation2 + $0x30] sm:$0xff]
    %v1088 = vld [vmem:[#allocation2 + $0x38] sm:$0xff]
    %v1089 = vld [vmem:[#allocation2 + $0x40] sm:$0xff]
    %v1090 = vld [vmem:[#allocation2 + $0x48] sm:$0xff]
    %v1091 = vld [vmem:[#allocation2 + $0x50] sm:$0xff]
    %v1092 = vld [vmem:[#allocation2 + $0x58] sm:$0xff]
    %v1093 = vld [vmem:[#allocation2 + $0x60] sm:$0xff]
    %v1094 = vld [vmem:[#allocation2 + $0x68] sm:$0xff]
    %v1095 = vld [vmem:[#allocation2 + $0x70] sm:$0xff]
    %v1096 = vld [vmem:[#allocation2 + $0x78] sm:$0xff]
    %v1097 = vld [vmem:[#allocation2 + $0x80] sm:$0xff]
    %v1098 = vld [vmem:[#allocation2 + $0x88] sm:$0xff]
    %v1099 = vld [vmem:[#allocation2 + $0x90] sm:$0xff]
    %v1100 = vld [vmem:[#allocation2 + $0x98] sm:$0xff]
    %v1101 = vld [vmem:[#allocation2 + $0xa0] sm:$0xff]
    %v1102 = vld [vmem:[#allocation2 + $0xa8] sm:$0xff]
    %v1103 = vld [vmem:[#allocation2 + $0xb0] sm:$0xff]
    %v1104 = vld [vmem:[#allocation2 + $0xb8] sm:$0xff]
    %v1105 = vld [vmem:[#allocation2 + $0xc0] sm:$0xff]
    %v1106 = vld [vmem:[#allocation2 + $0xc8] sm:$0xff]
    %v1107 = vld [vmem:[#allocation2 + $0xd0] sm:$0xff]
    %v1108 = vld [vmem:[#allocation2 + $0xd8] sm:$0xff]
    %v1109 = vld [vmem:[#allocation2 + $0xe0] sm:$0xff]
    %v1110 = vld [vmem:[#allocation2 + $0xe8] sm:$0xff]
    %v1111 = vld [vmem:[#allocation2 + $0xf0] sm:$0xff]
    %v1112 = vld [vmem:[#allocation2 + $0xf8] sm:$0xff]
    %v1113 = vld [vmem:[#allocation2 + $0x100] sm:$0xff]
    %v1114 = vld [vmem:[#allocation2 + $0x108] sm:$0xff]
    %v1115 = vld [vmem:[#allocation2 + $0x110] sm:$0xff]
    %v1116 = vld [vmem:[#allocation2 + $0x118] sm:$0xff]
    %v1117 = vld [vmem:[#allocation2 + $0x120] sm:$0xff]
    %v1118 = vld [vmem:[#allocation2 + $0x128] sm:$0xff]
    %v1119 = vld [vmem:[#allocation2 + $0x130] sm:$0xff]
    %v1120 = vld [vmem:[#allocation2 + $0x138] sm:$0xff]
    %v1121 = vld [vmem:[#allocation2 + $0x140] sm:$0xff]
    %v1122 = vld [vmem:[#allocation2 + $0x148] sm:$0xff]
    %v1123 = vld [vmem:[#allocation2 + $0x150] sm:$0xff]
    %v1124 = vld [vmem:[#allocation2 + $0x158] sm:$0xff]
    %v1125 = vld [vmem:[#allocation2 + $0x160] sm:$0xff]
    %v1126 = vld [vmem:[#allocation2 + $0x168] sm:$0xff]
    %v1127 = vld [vmem:[#allocation2 + $0x170] sm:$0xff]
    %v1128 = vld [vmem:[#allocation2 + $0x178] sm:$0xff]
    %v1129 = vld [vmem:[#allocation2 + $0x180] sm:$0xff]
    %v1130 = vld [vmem:[#allocation2 + $0x188] sm:$0xff]
    %v1131 = vld [vmem:[#allocation2 + $0x190] sm:$0xff]
    %v1132 = vld [vmem:[#allocation2 + $0x198] sm:$0xff]
    %v1133 = vld [vmem:[#allocation2 + $0x1a0] sm:$0xff]
    %v1134 = vld [vmem:[#allocation2 + $0x1a8] sm:$0xff]
    %v1135 = vld [vmem:[#allocation2 + $0x1b0] sm:$0xff]
    %v1136 = vld [vmem:[#allocation2 + $0x1b8] sm:$0xff]
    %v1137 = vld [vmem:[#allocation2 + $0x1c0] sm:$0xff]
    %v1138 = vld [vmem:[#allocation2 + $0x1c8] sm:$0xff]
    %v1139 = vld [vmem:[#allocation2 + $0x1d0] sm:$0xff]
    %v1140 = vld [vmem:[#allocation2 + $0x1d8] sm:$0xff]
    %v1141 = vld [vmem:[#allocation2 + $0x1e0] sm:$0xff]
    %v1142 = vld [vmem:[#allocation2 + $0x1e8] sm:$0xff]
    %v1143 = vld [vmem:[#allocation2 + $0x1f0] sm:$0xff]
    %v1144 = vld [vmem:[#allocation2 + $0x1f8] sm:$0xff]
    %v1145 = vpack.c.bf16 %v1082, %v1081
    %v1146 = vpack.c.bf16 %v1084, %v1083
    %v1147 = vpack.c.bf16 %v1086, %v1085
    %v1148 = vpack.c.bf16 %v1088, %v1087
    %v1149 = vpack.c.bf16 %v1090, %v1089
    %v1150 = vpack.c.bf16 %v1092, %v1091
    %v1151 = vpack.c.bf16 %v1094, %v1093
    %v1152 = vpack.c.bf16 %v1096, %v1095
    %v1153 = vpack.c.bf16 %v1098, %v1097
    %v1154 = vpack.c.bf16 %v1100, %v1099
    %v1155 = vpack.c.bf16 %v1102, %v1101
    %v1156 = vpack.c.bf16 %v1104, %v1103
    %v1157 = vpack.c.bf16 %v1106, %v1105
    %v1158 = vpack.c.bf16 %v1108, %v1107
    %v1159 = vpack.c.bf16 %v1110, %v1109
    %v1160 = vpack.c.bf16 %v1112, %v1111
    %v1161 = vpack.c.bf16 %v1114, %v1113
    %v1162 = vpack.c.bf16 %v1116, %v1115
    %v1163 = vpack.c.bf16 %v1118, %v1117
    %v1164 = vpack.c.bf16 %v1120, %v1119
    %v1165 = vpack.c.bf16 %v1122, %v1121
    %v1166 = vpack.c.bf16 %v1124, %v1123
    %v1167 = vpack.c.bf16 %v1126, %v1125
    %v1168 = vpack.c.bf16 %v1128, %v1127
    %v1169 = vpack.c.bf16 %v1130, %v1129
    %v1170 = vpack.c.bf16 %v1132, %v1131
    %v1171 = vpack.c.bf16 %v1134, %v1133
    %v1172 = vpack.c.bf16 %v1136, %v1135
    %v1173 = vpack.c.bf16 %v1138, %v1137
    %v1174 = vpack.c.bf16 %v1140, %v1139
    %v1175 = vpack.c.bf16 %v1142, %v1141
    %v1176 = vpack.c.bf16 %v1144, %v1143
    %v1209 = vunpack.c.l.b16 %v1145
    %v1210 = vunpack.c.h.b16 %v1145
    %v1211 = vunpack.c.l.b16 %v1146
    %v1212 = vunpack.c.h.b16 %v1146
    %v1213 = vunpack.c.l.b16 %v1147
    %v1214 = vunpack.c.h.b16 %v1147
    %v1215 = vunpack.c.l.b16 %v1148
    %v1216 = vunpack.c.h.b16 %v1148
    %v1217 = vunpack.c.l.b16 %v1149
    %v1218 = vunpack.c.h.b16 %v1149
    %v1219 = vunpack.c.l.b16 %v1150
    %v1220 = vunpack.c.h.b16 %v1150
    %v1221 = vunpack.c.l.b16 %v1151
    %v1222 = vunpack.c.h.b16 %v1151
    %v1223 = vunpack.c.l.b16 %v1152
    %v1224 = vunpack.c.h.b16 %v1152
    %v1225 = vunpack.c.l.b16 %v1153
    %v1226 = vunpack.c.h.b16 %v1153
    %v1227 = vunpack.c.l.b16 %v1154
    %v1228 = vunpack.c.h.b16 %v1154
    %v1229 = vunpack.c.l.b16 %v1155
    %v1230 = vunpack.c.h.b16 %v1155
    %v1231 = vunpack.c.l.b16 %v1156
    %v1232 = vunpack.c.h.b16 %v1156
    %v1233 = vunpack.c.l.b16 %v1157
    %v1234 = vunpack.c.h.b16 %v1157
    %v1235 = vunpack.c.l.b16 %v1158
    %v1236 = vunpack.c.h.b16 %v1158
    %v1237 = vunpack.c.l.b16 %v1159
    %v1238 = vunpack.c.h.b16 %v1159
    %v1239 = vunpack.c.l.b16 %v1160
    %v1240 = vunpack.c.h.b16 %v1160
    %v1241 = vunpack.c.l.b16 %v1161
    %v1242 = vunpack.c.h.b16 %v1161
    %v1243 = vunpack.c.l.b16 %v1162
    %v1244 = vunpack.c.h.b16 %v1162
    %v1245 = vunpack.c.l.b16 %v1163
    %v1246 = vunpack.c.h.b16 %v1163
    %v1247 = vunpack.c.l.b16 %v1164
    %v1248 = vunpack.c.h.b16 %v1164
    %v1249 = vunpack.c.l.b16 %v1165
    %v1250 = vunpack.c.h.b16 %v1165
    %v1251 = vunpack.c.l.b16 %v1166
    %v1252 = vunpack.c.h.b16 %v1166
    %v1253 = vunpack.c.l.b16 %v1167
    %v1254 = vunpack.c.h.b16 %v1167
    %v1255 = vunpack.c.l.b16 %v1168
    %v1256 = vunpack.c.h.b16 %v1168
    %v1257 = vunpack.c.l.b16 %v1169
    %v1258 = vunpack.c.h.b16 %v1169
    %v1259 = vunpack.c.l.b16 %v1170
    %v1260 = vunpack.c.h.b16 %v1170
    %v1261 = vunpack.c.l.b16 %v1171
    %v1262 = vunpack.c.h.b16 %v1171
    %v1263 = vunpack.c.l.b16 %v1172
    %v1264 = vunpack.c.h.b16 %v1172
    %v1265 = vunpack.c.l.b16 %v1173
    %v1266 = vunpack.c.h.b16 %v1173
    %v1267 = vunpack.c.l.b16 %v1174
    %v1268 = vunpack.c.h.b16 %v1174
    %v1269 = vunpack.c.l.b16 %v1175
    %v1270 = vunpack.c.h.b16 %v1175
    %v1271 = vunpack.c.l.b16 %v1176
    %v1272 = vunpack.c.h.b16 %v1176
    %v1273 = vpack.c.b16 %v1209, %v1209
    %v1274 = vpack.c.b16 %v1210, %v1210
    %v1275 = vpack.c.b16 %v1211, %v1211
    %v1276 = vpack.c.b16 %v1212, %v1212
    %v1277 = vpack.c.b16 %v1213, %v1213
    %v1278 = vpack.c.b16 %v1214, %v1214
    %v1279 = vpack.c.b16 %v1215, %v1215
    %v1280 = vpack.c.b16 %v1216, %v1216
    %v1281 = vpack.c.b16 %v1217, %v1217
    %v1282 = vpack.c.b16 %v1218, %v1218
    %v1283 = vpack.c.b16 %v1219, %v1219
    %v1284 = vpack.c.b16 %v1220, %v1220
    %v1285 = vpack.c.b16 %v1221, %v1221
    %v1286 = vpack.c.b16 %v1222, %v1222
    %v1287 = vpack.c.b16 %v1223, %v1223
    %v1288 = vpack.c.b16 %v1224, %v1224
    %v1289 = vpack.c.b16 %v1225, %v1225
    %v1290 = vpack.c.b16 %v1226, %v1226
    %v1291 = vpack.c.b16 %v1227, %v1227
    %v1292 = vpack.c.b16 %v1228, %v1228
    %v1293 = vpack.c.b16 %v1229, %v1229
    %v1294 = vpack.c.b16 %v1230, %v1230
    %v1295 = vpack.c.b16 %v1231, %v1231
    %v1296 = vpack.c.b16 %v1232, %v1232
    %v1297 = vpack.c.b16 %v1233, %v1233
    %v1298 = vpack.c.b16 %v1234, %v1234
    %v1299 = vpack.c.b16 %v1235, %v1235
    %v1300 = vpack.c.b16 %v1236, %v1236
    %v1301 = vpack.c.b16 %v1237, %v1237
    %v1302 = vpack.c.b16 %v1238, %v1238
    %v1303 = vpack.c.b16 %v1239, %v1239
    %v1304 = vpack.c.b16 %v1240, %v1240
    %v1305 = vpack.c.b16 %v1241, %v1241
    %v1306 = vpack.c.b16 %v1242, %v1242
    %v1307 = vpack.c.b16 %v1243, %v1243
    %v1308 = vpack.c.b16 %v1244, %v1244
    %v1309 = vpack.c.b16 %v1245, %v1245
    %v1310 = vpack.c.b16 %v1246, %v1246
    %v1311 = vpack.c.b16 %v1247, %v1247
    %v1312 = vpack.c.b16 %v1248, %v1248
    %v1313 = vpack.c.b16 %v1249, %v1249
    %v1314 = vpack.c.b16 %v1250, %v1250
    %v1315 = vpack.c.b16 %v1251, %v1251
    %v1316 = vpack.c.b16 %v1252, %v1252
    %v1317 = vpack.c.b16 %v1253, %v1253
    %v1318 = vpack.c.b16 %v1254, %v1254
    %v1319 = vpack.c.b16 %v1255, %v1255
    %v1320 = vpack.c.b16 %v1256, %v1256
    %v1321 = vpack.c.b16 %v1257, %v1257
    %v1322 = vpack.c.b16 %v1258, %v1258
    %v1323 = vpack.c.b16 %v1259, %v1259
    %v1324 = vpack.c.b16 %v1260, %v1260
    %v1325 = vpack.c.b16 %v1261, %v1261
    %v1326 = vpack.c.b16 %v1262, %v1262
    %v1327 = vpack.c.b16 %v1263, %v1263
    %v1328 = vpack.c.b16 %v1264, %v1264
    %v1329 = vpack.c.b16 %v1265, %v1265
    %v1330 = vpack.c.b16 %v1266, %v1266
    %v1331 = vpack.c.b16 %v1267, %v1267
    %v1332 = vpack.c.b16 %v1268, %v1268
    %v1333 = vpack.c.b16 %v1269, %v1269
    %v1334 = vpack.c.b16 %v1270, %v1270
    %v1335 = vpack.c.b16 %v1271, %v1271
    %v1336 = vpack.c.b16 %v1272, %v1272
    %1401 = vst [vmem:[%s3] sm:$0xf] %v1273
    %1402 = vst [vmem:[%s3 + $0x4] sm:$0xf] %v1274
    %1403 = vst [vmem:[%s3 + $0x8] sm:$0xf] %v1275
    %1404 = vst [vmem:[%s3 + $0xc] sm:$0xf] %v1276
    %1405 = vst [vmem:[%s3 + $0x10] sm:$0xf] %v1277
    %1406 = vst [vmem:[%s3 + $0x14] sm:$0xf] %v1278
    %1407 = vst [vmem:[%s3 + $0x18] sm:$0xf] %v1279
    %1408 = vst [vmem:[%s3 + $0x1c] sm:$0xf] %v1280
    %1409 = vst [vmem:[%s3 + $0x20] sm:$0xf] %v1281
    %1410 = vst [vmem:[%s3 + $0x24] sm:$0xf] %v1282
    %1411 = vst [vmem:[%s3 + $0x28] sm:$0xf] %v1283
    %1412 = vst [vmem:[%s3 + $0x2c] sm:$0xf] %v1284
    %1413 = vst [vmem:[%s3 + $0x30] sm:$0xf] %v1285
    %1414 = vst [vmem:[%s3 + $0x34] sm:$0xf] %v1286
    %1415 = vst [vmem:[%s3 + $0x38] sm:$0xf] %v1287
    %1416 = vst [vmem:[%s3 + $0x3c] sm:$0xf] %v1288
    %1417 = vst [vmem:[%s3 + $0x40] sm:$0xf] %v1289
    %1418 = vst [vmem:[%s3 + $0x44] sm:$0xf] %v1290
    %1419 = vst [vmem:[%s3 + $0x48] sm:$0xf] %v1291
    %1420 = vst [vmem:[%s3 + $0x4c] sm:$0xf] %v1292
    %1421 = vst [vmem:[%s3 + $0x50] sm:$0xf] %v1293
    %1422 = vst [vmem:[%s3 + $0x54] sm:$0xf] %v1294
    %1423 = vst [vmem:[%s3 + $0x58] sm:$0xf] %v1295
    %1424 = vst [vmem:[%s3 + $0x5c] sm:$0xf] %v1296
    %1425 = vst [vmem:[%s3 + $0x60] sm:$0xf] %v1297
    %1426 = vst [vmem:[%s3 + $0x64] sm:$0xf] %v1298
    %1427 = vst [vmem:[%s3 + $0x68] sm:$0xf] %v1299
    %1428 = vst [vmem:[%s3 + $0x6c] sm:$0xf] %v1300
    %1429 = vst [vmem:[%s3 + $0x70] sm:$0xf] %v1301
    %1430 = vst [vmem:[%s3 + $0x74] sm:$0xf] %v1302
    %1431 = vst [vmem:[%s3 + $0x78] sm:$0xf] %v1303
    %1432 = vst [vmem:[%s3 + $0x7c] sm:$0xf] %v1304
    %1433 = vst [vmem:[%s3 + $0x80] sm:$0xf] %v1305
    %1434 = vst [vmem:[%s3 + $0x84] sm:$0xf] %v1306
    %1435 = vst [vmem:[%s3 + $0x88] sm:$0xf] %v1307
    %1436 = vst [vmem:[%s3 + $0x8c] sm:$0xf] %v1308
    %1437 = vst [vmem:[%s3 + $0x90] sm:$0xf] %v1309
    %1438 = vst [vmem:[%s3 + $0x94] sm:$0xf] %v1310
    %1439 = vst [vmem:[%s3 + $0x98] sm:$0xf] %v1311
    %1440 = vst [vmem:[%s3 + $0x9c] sm:$0xf] %v1312
    %1441 = vst [vmem:[%s3 + $0xa0] sm:$0xf] %v1313
    %1442 = vst [vmem:[%s3 + $0xa4] sm:$0xf] %v1314
    %1443 = vst [vmem:[%s3 + $0xa8] sm:$0xf] %v1315
    %1444 = vst [vmem:[%s3 + $0xac] sm:$0xf] %v1316
    %1445 = vst [vmem:[%s3 + $0xb0] sm:$0xf] %v1317
    %1446 = vst [vmem:[%s3 + $0xb4] sm:$0xf] %v1318
    %1447 = vst [vmem:[%s3 + $0xb8] sm:$0xf] %v1319
    %1448 = vst [vmem:[%s3 + $0xbc] sm:$0xf] %v1320
    %1449 = vst [vmem:[%s3 + $0xc0] sm:$0xf] %v1321
    %1450 = vst [vmem:[%s3 + $0xc4] sm:$0xf] %v1322
    %1451 = vst [vmem:[%s3 + $0xc8] sm:$0xf] %v1323
    %1452 = vst [vmem:[%s3 + $0xcc] sm:$0xf] %v1324
    %1453 = vst [vmem:[%s3 + $0xd0] sm:$0xf] %v1325
    %1454 = vst [vmem:[%s3 + $0xd4] sm:$0xf] %v1326
    %1455 = vst [vmem:[%s3 + $0xd8] sm:$0xf] %v1327
    %1456 = vst [vmem:[%s3 + $0xdc] sm:$0xf] %v1328
    %1457 = vst [vmem:[%s3 + $0xe0] sm:$0xf] %v1329
    %1458 = vst [vmem:[%s3 + $0xe4] sm:$0xf] %v1330
    %1459 = vst [vmem:[%s3 + $0xe8] sm:$0xf] %v1331
    %1460 = vst [vmem:[%s3 + $0xec] sm:$0xf] %v1332
    %1461 = vst [vmem:[%s3 + $0xf0] sm:$0xf] %v1333
    %1462 = vst [vmem:[%s3 + $0xf4] sm:$0xf] %v1334
    %1463 = vst [vmem:[%s3 + $0xf8] sm:$0xf] %v1335
    %1464 = vst [vmem:[%s3 + $0xfc] sm:$0xf] %v1336
    %v1465 = vadd.f32 %v1081, %v1082
    %v1466 = vadd.f32 %v1465, %v1083
    %v1467 = vadd.f32 %v1466, %v1084
    %v1468 = vadd.f32 %v1467, %v1085
    %v1469 = vadd.f32 %v1468, %v1086
    %v1470 = vadd.f32 %v1469, %v1087
    %v1471 = vadd.f32 %v1470, %v1088
    %v1472 = vadd.f32 %v1471, %v1089
    %v1473 = vadd.f32 %v1472, %v1090
    %v1474 = vadd.f32 %v1473, %v1091
    %v1475 = vadd.f32 %v1474, %v1092
    %v1476 = vadd.f32 %v1475, %v1093
    %v1477 = vadd.f32 %v1476, %v1094
    %v1478 = vadd.f32 %v1477, %v1095
    %v1479 = vadd.f32 %v1478, %v1096
    %v1480 = vadd.f32 %v1479, %v1097
    %v1481 = vadd.f32 %v1480, %v1098
    %v1482 = vadd.f32 %v1481, %v1099
    %v1483 = vadd.f32 %v1482, %v1100
    %v1484 = vadd.f32 %v1483, %v1101
    %v1485 = vadd.f32 %v1484, %v1102
    %v1486 = vadd.f32 %v1485, %v1103
    %v1487 = vadd.f32 %v1486, %v1104
    %v1488 = vadd.f32 %v1487, %v1105
    %v1489 = vadd.f32 %v1488, %v1106
    %v1490 = vadd.f32 %v1489, %v1107
    %v1491 = vadd.f32 %v1490, %v1108
    %v1492 = vadd.f32 %v1491, %v1109
    %v1493 = vadd.f32 %v1492, %v1110
    %v1494 = vadd.f32 %v1493, %v1111
    %v1495 = vadd.f32 %v1494, %v1112
    %v1496 = vadd.f32 %v1495, %v1113
    %v1497 = vadd.f32 %v1496, %v1114
    %v1498 = vadd.f32 %v1497, %v1115
    %v1499 = vadd.f32 %v1498, %v1116
    %v1500 = vadd.f32 %v1499, %v1117
    %v1501 = vadd.f32 %v1500, %v1118
    %v1502 = vadd.f32 %v1501, %v1119
    %v1503 = vadd.f32 %v1502, %v1120
    %v1504 = vadd.f32 %v1503, %v1121
    %v1505 = vadd.f32 %v1504, %v1122
    %v1506 = vadd.f32 %v1505, %v1123
    %v1507 = vadd.f32 %v1506, %v1124
    %v1508 = vadd.f32 %v1507, %v1125
    %v1509 = vadd.f32 %v1508, %v1126
    %v1510 = vadd.f32 %v1509, %v1127
    %v1511 = vadd.f32 %v1510, %v1128
    %v1512 = vadd.f32 %v1511, %v1129
    %v1513 = vadd.f32 %v1512, %v1130
    %v1514 = vadd.f32 %v1513, %v1131
    %v1515 = vadd.f32 %v1514, %v1132
    %v1516 = vadd.f32 %v1515, %v1133
    %v1517 = vadd.f32 %v1516, %v1134
    %v1518 = vadd.f32 %v1517, %v1135
    %v1519 = vadd.f32 %v1518, %v1136
    %v1520 = vadd.f32 %v1519, %v1137
    %v1521 = vadd.f32 %v1520, %v1138
    %v1522 = vadd.f32 %v1521, %v1139
    %v1523 = vadd.f32 %v1522, %v1140
    %v1524 = vadd.f32 %v1523, %v1141
    %v1525 = vadd.f32 %v1524, %v1142
    %v1526 = vadd.f32 %v1525, %v1143
    %v1527 = vadd.f32 %v1526, %v1144
    %v1528 = vrot.slane %v1527, 4
    %v1529 = vadd.f32 %v1527, %v1528
    %v1530 = vrot.slane %v1529, 2
    %v1531 = vadd.f32 %v1529, %v1530
    %v1532 = vrot.slane %v1531, 1
    %v1533 = vadd.f32 %v1531, %v1532
    %v1534 = vmul.f32 %v1081, %v1081
    %v1535 = vmul.f32 %v1082, %v1082
    %v1536 = vmul.f32 %v1083, %v1083
    %v1537 = vmul.f32 %v1084, %v1084
    %v1538 = vmul.f32 %v1085, %v1085
    %v1539 = vmul.f32 %v1086, %v1086
    %v1540 = vmul.f32 %v1087, %v1087
    %v1541 = vmul.f32 %v1088, %v1088
    %v1542 = vmul.f32 %v1089, %v1089
    %v1543 = vmul.f32 %v1090, %v1090
    %v1544 = vmul.f32 %v1091, %v1091
    %v1545 = vmul.f32 %v1092, %v1092
    %v1546 = vmul.f32 %v1093, %v1093
    %v1547 = vmul.f32 %v1094, %v1094
    %v1548 = vmul.f32 %v1095, %v1095
    %v1549 = vmul.f32 %v1096, %v1096
    %v1550 = vmul.f32 %v1097, %v1097
    %v1551 = vmul.f32 %v1098, %v1098
    %v1552 = vmul.f32 %v1099, %v1099
    %v1553 = vmul.f32 %v1100, %v1100
    %v1554 = vmul.f32 %v1101, %v1101
    %v1555 = vmul.f32 %v1102, %v1102
    %v1556 = vmul.f32 %v1103, %v1103
    %v1557 = vmul.f32 %v1104, %v1104
    %v1558 = vmul.f32 %v1105, %v1105
    %v1559 = vmul.f32 %v1106, %v1106
    %v1560 = vmul.f32 %v1107, %v1107
    %v1561 = vmul.f32 %v1108, %v1108
    %v1562 = vmul.f32 %v1109, %v1109
    %v1563 = vmul.f32 %v1110, %v1110
    %v1564 = vmul.f32 %v1111, %v1111
    %v1565 = vmul.f32 %v1112, %v1112
    %v1566 = vmul.f32 %v1113, %v1113
    %v1567 = vmul.f32 %v1114, %v1114
    %v1568 = vmul.f32 %v1115, %v1115
    %v1569 = vmul.f32 %v1116, %v1116
    %v1570 = vmul.f32 %v1117, %v1117
    %v1571 = vmul.f32 %v1118, %v1118
    %v1572 = vmul.f32 %v1119, %v1119
    %v1573 = vmul.f32 %v1120, %v1120
    %v1574 = vmul.f32 %v1121, %v1121
    %v1575 = vmul.f32 %v1122, %v1122
    %v1576 = vmul.f32 %v1123, %v1123
    %v1577 = vmul.f32 %v1124, %v1124
    %v1578 = vmul.f32 %v1125, %v1125
    %v1579 = vmul.f32 %v1126, %v1126
    %v1580 = vmul.f32 %v1127, %v1127
    %v1581 = vmul.f32 %v1128, %v1128
    %v1582 = vmul.f32 %v1129, %v1129
    %v1583 = vmul.f32 %v1130, %v1130
    %v1584 = vmul.f32 %v1131, %v1131
    %v1585 = vmul.f32 %v1132, %v1132
    %v1586 = vmul.f32 %v1133, %v1133
    %v1587 = vmul.f32 %v1134, %v1134
    %v1588 = vmul.f32 %v1135, %v1135
    %v1589 = vmul.f32 %v1136, %v1136
    %v1590 = vmul.f32 %v1137, %v1137
    %v1591 = vmul.f32 %v1138, %v1138
    %v1592 = vmul.f32 %v1139, %v1139
    %v1593 = vmul.f32 %v1140, %v1140
    %v1594 = vmul.f32 %v1141, %v1141
    %v1595 = vmul.f32 %v1142, %v1142
    %v1596 = vmul.f32 %v1143, %v1143
    %v1597 = vmul.f32 %v1144, %v1144
    %v1598 = vadd.f32 %v1534, %v1535
    %v1599 = vadd.f32 %v1598, %v1536
    %v1600 = vadd.f32 %v1599, %v1537
    %v1601 = vadd.f32 %v1600, %v1538
    %v1602 = vadd.f32 %v1601, %v1539
    %v1603 = vadd.f32 %v1602, %v1540
    %v1604 = vadd.f32 %v1603, %v1541
    %v1605 = vadd.f32 %v1604, %v1542
    %v1606 = vadd.f32 %v1605, %v1543
    %v1607 = vadd.f32 %v1606, %v1544
    %v1608 = vadd.f32 %v1607, %v1545
    %v1609 = vadd.f32 %v1608, %v1546
    %v1610 = vadd.f32 %v1609, %v1547
    %v1611 = vadd.f32 %v1610, %v1548
    %v1612 = vadd.f32 %v1611, %v1549
    %v1613 = vadd.f32 %v1612, %v1550
    %v1614 = vadd.f32 %v1613, %v1551
    %v1615 = vadd.f32 %v1614, %v1552
    %v1616 = vadd.f32 %v1615, %v1553
    %v1617 = vadd.f32 %v1616, %v1554
    %v1618 = vadd.f32 %v1617, %v1555
    %v1619 = vadd.f32 %v1618, %v1556
    %v1620 = vadd.f32 %v1619, %v1557
    %v1621 = vadd.f32 %v1620, %v1558
    %v1622 = vadd.f32 %v1621, %v1559
    %v1623 = vadd.f32 %v1622, %v1560
    %v1624 = vadd.f32 %v1623, %v1561
    %v1625 = vadd.f32 %v1624, %v1562
    %v1626 = vadd.f32 %v1625, %v1563
    %v1627 = vadd.f32 %v1626, %v1564
    %v1628 = vadd.f32 %v1627, %v1565
    %v1629 = vadd.f32 %v1628, %v1566
    %v1630 = vadd.f32 %v1629, %v1567
    %v1631 = vadd.f32 %v1630, %v1568
    %v1632 = vadd.f32 %v1631, %v1569
    %v1633 = vadd.f32 %v1632, %v1570
    %v1634 = vadd.f32 %v1633, %v1571
    %v1635 = vadd.f32 %v1634, %v1572
    %v1636 = vadd.f32 %v1635, %v1573
    %v1637 = vadd.f32 %v1636, %v1574
    %v1638 = vadd.f32 %v1637, %v1575
    %v1639 = vadd.f32 %v1638, %v1576
    %v1640 = vadd.f32 %v1639, %v1577
    %v1641 = vadd.f32 %v1640, %v1578
    %v1642 = vadd.f32 %v1641, %v1579
    %v1643 = vadd.f32 %v1642, %v1580
    %v1644 = vadd.f32 %v1643, %v1581
    %v1645 = vadd.f32 %v1644, %v1582
    %v1646 = vadd.f32 %v1645, %v1583
    %v1647 = vadd.f32 %v1646, %v1584
    %v1648 = vadd.f32 %v1647, %v1585
    %v1649 = vadd.f32 %v1648, %v1586
    %v1650 = vadd.f32 %v1649, %v1587
    %v1651 = vadd.f32 %v1650, %v1588
    %v1652 = vadd.f32 %v1651, %v1589
    %v1653 = vadd.f32 %v1652, %v1590
    %v1654 = vadd.f32 %v1653, %v1591
    %v1655 = vadd.f32 %v1654, %v1592
    %v1656 = vadd.f32 %v1655, %v1593
    %v1657 = vadd.f32 %v1656, %v1594
    %v1658 = vadd.f32 %v1657, %v1595
    %v1659 = vadd.f32 %v1658, %v1596
    %v1660 = vadd.f32 %v1659, %v1597
    %v1661 = vrot.slane %v1660, 4
    %v1662 = vadd.f32 %v1660, %v1661
    %v1663 = vrot.slane %v1662, 2
    %v1664 = vadd.f32 %v1662, %v1663
    %v1665 = vrot.slane %v1664, 1
    %v1666 = vadd.f32 %v1664, %v1665
    %v1667 = vlaneseq
    %v1668 = vshrl.u32 %v1667, 7
    %vm1669 = vcmp.eq.s32.totalorder %v1668, 0
    %v1670 = vsel %vm1669, %v1533, 0.0
    %vm1671 = vcmp.eq.s32.totalorder %v1668, 1
    %v1672 = vsel %vm1671, %v1666, 0.0
    %v1673 = vadd.f32 %v1670, %v1672
    %1674 = vst [vmem:[%s4] sm:$0xff] %v1673
  $region21: #{_lambda_.25} parent=0 // pred_fallthru
    _
  // Predicated region
  $region22: #{_lambda_.25} parent=0 // pred_check
    _
  $region23: #{_lambda_.25} parent=0 // pred_check_branch
    %1676 = sbr.rel (0) target = $region25
  $region24: #{_lambda_.25} parent=0 // pred_region
    _
  $region25: #{_lambda_.25} parent=0 // pred_fallthru
    _
  // Predicated region
  $region26: #{_lambda_.25} parent=0 // pred_check
    _
  $region27: #{_lambda_.25} parent=0 // pred_check_branch
    %1678 = sbr.rel (0) target = $region29
  $region28: #{_lambda_.25} parent=0 // pred_region
    _
  $region29: #{_lambda_.25} parent=0 // pred_fallthru
    _
  // Predicated region
  $region30: #{_lambda_.25} parent=0 // pred_check
    _
  $region31: #{_lambda_.25} parent=0 // pred_check_branch
    %1680 = sbr.rel (0) target = $region33
  $region32: #{_lambda_.25} parent=0 // pred_region
    _
  $region33: #{_lambda_.25} parent=0 // pred_fallthru
    _
  // Predicated region
  $region34: #{_lambda_.25} parent=0 // pred_check
    _
  $region35: #{_lambda_.25} parent=0 // pred_check_branch
    %1682 = sbr.rel (0) target = $region37
  $region36: #{_lambda_.25} parent=0 // pred_region
    _
  $region37: #{_lambda_.25} parent=0 // pred_fallthru
    _

// kernel: _lambda_.26
$region0: #{_lambda_.26}
  #allocation0 [shape = 'u32[]', space=smem, size = 0x4, offset = 0x4, fixed_abs, tag = 'smem constant byte address 0x4 - core index']
  #allocation1 [shape = 'u32[144,128]{1,0:T(1,128)}', space=vmem, size = 0x12000, scoped, tag = 'internal scratch']
  %s0 = inlined_call_operand.vmem [shape: bf16[512,128], index: 0, kind: input, shape index: {}]
  %s1 = inlined_call_operand.vmem [shape: f32[1,128], index: 1, kind: input, shape index: {}]
  %s2 = inlined_call_operand.vmem [shape: f32[1,128], index: 2, kind: input, shape index: {}]
  %s3 = inlined_call_operand.vmem [shape: bf16[512,128], index: 3, kind: output, shape index: {}]
  %s4 = sld [smem:[#allocation0]]
  $region22: #{_lambda_.26} parent=0
    _
  %s6 = ssub.s32 1, %s4
  %s7 = scalar_select 0, %s6, %s4
  // Predicated region
  $region2: #{_lambda_.26} parent=0 // pred_check
    _
  $region3: #{_lambda_.26} parent=0 // pred_check_branch
    %9 = sbr.rel (0) target = $region5
  $region4: #{_lambda_.26} parent=0 // pred_region
    _
  $region5: #{_lambda_.26} parent=0 // pred_fallthru
    _
  // Predicated region
  $region6: #{_lambda_.26} parent=0 // pred_check
    _
  $region7: #{_lambda_.26} parent=0 // pred_check_branch
    %11 = sbr.rel (0) target = $region9
  $region8: #{_lambda_.26} parent=0 // pred_region
    _
  $region9: #{_lambda_.26} parent=0 // pred_fallthru
    _
  // Predicated region
  $region10: #{_lambda_.26} parent=0 // pred_check
    _
  $region11: #{_lambda_.26} parent=0 // pred_check_branch
    %13 = sbr.rel (0) target = $region13
  $region12: #{_lambda_.26} parent=0 // pred_region
    _
  $region13: #{_lambda_.26} parent=0 // pred_fallthru
    _
  %v14 = vld [vmem:[%s0] sm:$0xf]
  %v15 = vld [vmem:[%s0 + $0x4] sm:$0xf]
  %v16 = vld [vmem:[%s0 + $0x8] sm:$0xf]
  %v17 = vld [vmem:[%s0 + $0xc] sm:$0xf]
  %v18 = vld [vmem:[%s0 + $0x10] sm:$0xf]
  %v19 = vld [vmem:[%s0 + $0x14] sm:$0xf]
  %v20 = vld [vmem:[%s0 + $0x18] sm:$0xf]
  %v21 = vld [vmem:[%s0 + $0x1c] sm:$0xf]
  %v22 = vld [vmem:[%s0 + $0x20] sm:$0xf]
  %v23 = vld [vmem:[%s0 + $0x24] sm:$0xf]
  %v24 = vld [vmem:[%s0 + $0x28] sm:$0xf]
  %v25 = vld [vmem:[%s0 + $0x2c] sm:$0xf]
  %v26 = vld [vmem:[%s0 + $0x30] sm:$0xf]
  %v27 = vld [vmem:[%s0 + $0x34] sm:$0xf]
  %v28 = vld [vmem:[%s0 + $0x38] sm:$0xf]
  %v29 = vld [vmem:[%s0 + $0x3c] sm:$0xf]
  %v30 = vld [vmem:[%s0 + $0x40] sm:$0xf]
  %v31 = vld [vmem:[%s0 + $0x44] sm:$0xf]
  %v32 = vld [vmem:[%s0 + $0x48] sm:$0xf]
  %v33 = vld [vmem:[%s0 + $0x4c] sm:$0xf]
  %v34 = vld [vmem:[%s0 + $0x50] sm:$0xf]
  %v35 = vld [vmem:[%s0 + $0x54] sm:$0xf]
  %v36 = vld [vmem:[%s0 + $0x58] sm:$0xf]
  %v37 = vld [vmem:[%s0 + $0x5c] sm:$0xf]
  %v38 = vld [vmem:[%s0 + $0x60] sm:$0xf]
  %v39 = vld [vmem:[%s0 + $0x64] sm:$0xf]
  %v40 = vld [vmem:[%s0 + $0x68] sm:$0xf]
  %v41 = vld [vmem:[%s0 + $0x6c] sm:$0xf]
  %v42 = vld [vmem:[%s0 + $0x70] sm:$0xf]
  %v43 = vld [vmem:[%s0 + $0x74] sm:$0xf]
  %v44 = vld [vmem:[%s0 + $0x78] sm:$0xf]
  %v45 = vld [vmem:[%s0 + $0x7c] sm:$0xf]
  %v46 = vld [vmem:[%s0 + $0x80] sm:$0xf]
  %v47 = vld [vmem:[%s0 + $0x84] sm:$0xf]
  %v48 = vld [vmem:[%s0 + $0x88] sm:$0xf]
  %v49 = vld [vmem:[%s0 + $0x8c] sm:$0xf]
  %v50 = vld [vmem:[%s0 + $0x90] sm:$0xf]
  %v51 = vld [vmem:[%s0 + $0x94] sm:$0xf]
  %v52 = vld [vmem:[%s0 + $0x98] sm:$0xf]
  %v53 = vld [vmem:[%s0 + $0x9c] sm:$0xf]
  %v54 = vld [vmem:[%s0 + $0xa0] sm:$0xf]
  %v55 = vld [vmem:[%s0 + $0xa4] sm:$0xf]
  %v56 = vld [vmem:[%s0 + $0xa8] sm:$0xf]
  %v57 = vld [vmem:[%s0 + $0xac] sm:$0xf]
  %v58 = vld [vmem:[%s0 + $0xb0] sm:$0xf]
  %v59 = vld [vmem:[%s0 + $0xb4] sm:$0xf]
  %v60 = vld [vmem:[%s0 + $0xb8] sm:$0xf]
  %v61 = vld [vmem:[%s0 + $0xbc] sm:$0xf]
  %v62 = vld [vmem:[%s0 + $0xc0] sm:$0xf]
  %v63 = vld [vmem:[%s0 + $0xc4] sm:$0xf]
  %v64 = vld [vmem:[%s0 + $0xc8] sm:$0xf]
  %v65 = vld [vmem:[%s0 + $0xcc] sm:$0xf]
  %v66 = vld [vmem:[%s0 + $0xd0] sm:$0xf]
  %v67 = vld [vmem:[%s0 + $0xd4] sm:$0xf]
  %v68 = vld [vmem:[%s0 + $0xd8] sm:$0xf]
  %v69 = vld [vmem:[%s0 + $0xdc] sm:$0xf]
  %v70 = vld [vmem:[%s0 + $0xe0] sm:$0xf]
  %v71 = vld [vmem:[%s0 + $0xe4] sm:$0xf]
  %v72 = vld [vmem:[%s0 + $0xe8] sm:$0xf]
  %v73 = vld [vmem:[%s0 + $0xec] sm:$0xf]
  %v74 = vld [vmem:[%s0 + $0xf0] sm:$0xf]
  %v75 = vld [vmem:[%s0 + $0xf4] sm:$0xf]
  %v76 = vld [vmem:[%s0 + $0xf8] sm:$0xf]
  %v77 = vld [vmem:[%s0 + $0xfc] sm:$0xf]
  %v78 = vunpack.c.l.bf16 %v14
  %v79 = vunpack.c.l.bf16 %v15
  %v80 = vunpack.c.l.bf16 %v16
  %v81 = vunpack.c.l.bf16 %v17
  %v82 = vunpack.c.l.bf16 %v18
  %v83 = vunpack.c.l.bf16 %v19
  %v84 = vunpack.c.l.bf16 %v20
  %v85 = vunpack.c.l.bf16 %v21
  %v86 = vunpack.c.l.bf16 %v22
  %v87 = vunpack.c.l.bf16 %v23
  %v88 = vunpack.c.l.bf16 %v24
  %v89 = vunpack.c.l.bf16 %v25
  %v90 = vunpack.c.l.bf16 %v26
  %v91 = vunpack.c.l.bf16 %v27
  %v92 = vunpack.c.l.bf16 %v28
  %v93 = vunpack.c.l.bf16 %v29
  %v94 = vunpack.c.l.bf16 %v30
  %v95 = vunpack.c.l.bf16 %v31
  %v96 = vunpack.c.l.bf16 %v32
  %v97 = vunpack.c.l.bf16 %v33
  %v98 = vunpack.c.l.bf16 %v34
  %v99 = vunpack.c.l.bf16 %v35
  %v100 = vunpack.c.l.bf16 %v36
  %v101 = vunpack.c.l.bf16 %v37
  %v102 = vunpack.c.l.bf16 %v38
  %v103 = vunpack.c.l.bf16 %v39
  %v104 = vunpack.c.l.bf16 %v40
  %v105 = vunpack.c.l.bf16 %v41
  %v106 = vunpack.c.l.bf16 %v42
  %v107 = vunpack.c.l.bf16 %v43
  %v108 = vunpack.c.l.bf16 %v44
  %v109 = vunpack.c.l.bf16 %v45
  %v110 = vunpack.c.l.bf16 %v46
  %v111 = vunpack.c.l.bf16 %v47
  %v112 = vunpack.c.l.bf16 %v48
  %v113 = vunpack.c.l.bf16 %v49
  %v114 = vunpack.c.l.bf16 %v50
  %v115 = vunpack.c.l.bf16 %v51
  %v116 = vunpack.c.l.bf16 %v52
  %v117 = vunpack.c.l.bf16 %v53
  %v118 = vunpack.c.l.bf16 %v54
  %v119 = vunpack.c.l.bf16 %v55
  %v120 = vunpack.c.l.bf16 %v56
  %v121 = vunpack.c.l.bf16 %v57
  %v122 = vunpack.c.l.bf16 %v58
  %v123 = vunpack.c.l.bf16 %v59
  %v124 = vunpack.c.l.bf16 %v60
  %v125 = vunpack.c.l.bf16 %v61
  %v126 = vunpack.c.l.bf16 %v62
  %v127 = vunpack.c.l.bf16 %v63
  %v128 = vunpack.c.l.bf16 %v64
  %v129 = vunpack.c.l.bf16 %v65
  %v130 = vunpack.c.l.bf16 %v66
  %v131 = vunpack.c.l.bf16 %v67
  %v132 = vunpack.c.l.bf16 %v68
  %v133 = vunpack.c.l.bf16 %v69
  %v134 = vunpack.c.l.bf16 %v70
  %v135 = vunpack.c.l.bf16 %v71
  %v136 = vunpack.c.l.bf16 %v72
  %v137 = vunpack.c.l.bf16 %v73
  %v138 = vunpack.c.l.bf16 %v74
  %v139 = vunpack.c.l.bf16 %v75
  %v140 = vunpack.c.l.bf16 %v76
  %v141 = vunpack.c.l.bf16 %v77
  %v142 = vld [vmem:[%s1] sm:$0x1]
  %v144 = vlaneseq
  %v145 = vshrl.u32 %v144, 7
  %v146 = vsub.s32 0, %v145
  %v147 = vrot.slane %v142, %v146
  %v149 = vmul.f32 %v78, %v147
  %v150 = vmul.f32 %v79, %v147
  %v151 = vmul.f32 %v80, %v147
  %v152 = vmul.f32 %v81, %v147
  %v153 = vmul.f32 %v82, %v147
  %v154 = vmul.f32 %v83, %v147
  %v155 = vmul.f32 %v84, %v147
  %v156 = vmul.f32 %v85, %v147
  %v157 = vmul.f32 %v86, %v147
  %v158 = vmul.f32 %v87, %v147
  %v159 = vmul.f32 %v88, %v147
  %v160 = vmul.f32 %v89, %v147
  %v161 = vmul.f32 %v90, %v147
  %v162 = vmul.f32 %v91, %v147
  %v163 = vmul.f32 %v92, %v147
  %v164 = vmul.f32 %v93, %v147
  %v165 = vmul.f32 %v94, %v147
  %v166 = vmul.f32 %v95, %v147
  %v167 = vmul.f32 %v96, %v147
  %v168 = vmul.f32 %v97, %v147
  %v169 = vmul.f32 %v98, %v147
  %v170 = vmul.f32 %v99, %v147
  %v171 = vmul.f32 %v100, %v147
  %v172 = vmul.f32 %v101, %v147
  %v173 = vmul.f32 %v102, %v147
  %v174 = vmul.f32 %v103, %v147
  %v175 = vmul.f32 %v104, %v147
  %v176 = vmul.f32 %v105, %v147
  %v177 = vmul.f32 %v106, %v147
  %v178 = vmul.f32 %v107, %v147
  %v179 = vmul.f32 %v108, %v147
  %v180 = vmul.f32 %v109, %v147
  %v181 = vmul.f32 %v110, %v147
  %v182 = vmul.f32 %v111, %v147
  %v183 = vmul.f32 %v112, %v147
  %v184 = vmul.f32 %v113, %v147
  %v185 = vmul.f32 %v114, %v147
  %v186 = vmul.f32 %v115, %v147
  %v187 = vmul.f32 %v116, %v147
  %v188 = vmul.f32 %v117, %v147
  %v189 = vmul.f32 %v118, %v147
  %v190 = vmul.f32 %v119, %v147
  %v191 = vmul.f32 %v120, %v147
  %v192 = vmul.f32 %v121, %v147
  %v193 = vmul.f32 %v122, %v147
  %v194 = vmul.f32 %v123, %v147
  %v195 = vmul.f32 %v124, %v147
  %v196 = vmul.f32 %v125, %v147
  %v197 = vmul.f32 %v126, %v147
  %v198 = vmul.f32 %v127, %v147
  %v199 = vmul.f32 %v128, %v147
  %v200 = vmul.f32 %v129, %v147
  %v201 = vmul.f32 %v130, %v147
  %v202 = vmul.f32 %v131, %v147
  %v203 = vmul.f32 %v132, %v147
  %v204 = vmul.f32 %v133, %v147
  %v205 = vmul.f32 %v134, %v147
  %v206 = vmul.f32 %v135, %v147
  %v207 = vmul.f32 %v136, %v147
  %v208 = vmul.f32 %v137, %v147
  %v209 = vmul.f32 %v138, %v147
  %v210 = vmul.f32 %v139, %v147
  %v211 = vmul.f32 %v140, %v147
  %v212 = vmul.f32 %v141, %v147
  %v213 = vld [vmem:[%s2] sm:$0x1]
  %v215 = vlaneseq
  %v216 = vshrl.u32 %v215, 7
  %v217 = vsub.s32 0, %v216
  %v218 = vrot.slane %v213, %v217
  %v220 = vadd.f32 %v149, %v218
  %v221 = vadd.f32 %v150, %v218
  %v222 = vadd.f32 %v151, %v218
  %v223 = vadd.f32 %v152, %v218
  %v224 = vadd.f32 %v153, %v218
  %v225 = vadd.f32 %v154, %v218
  %v226 = vadd.f32 %v155, %v218
  %v227 = vadd.f32 %v156, %v218
  %v228 = vadd.f32 %v157, %v218
  %v229 = vadd.f32 %v158, %v218
  %v230 = vadd.f32 %v159, %v218
  %v231 = vadd.f32 %v160, %v218
  %v232 = vadd.f32 %v161, %v218
  %v233 = vadd.f32 %v162, %v218
  %v234 = vadd.f32 %v163, %v218
  %v235 = vadd.f32 %v164, %v218
  %v236 = vadd.f32 %v165, %v218
  %v237 = vadd.f32 %v166, %v218
  %v238 = vadd.f32 %v167, %v218
  %v239 = vadd.f32 %v168, %v218
  %v240 = vadd.f32 %v169, %v218
  %v241 = vadd.f32 %v170, %v218
  %v242 = vadd.f32 %v171, %v218
  %v243 = vadd.f32 %v172, %v218
  %v244 = vadd.f32 %v173, %v218
  %v245 = vadd.f32 %v174, %v218
  %v246 = vadd.f32 %v175, %v218
  %v247 = vadd.f32 %v176, %v218
  %v248 = vadd.f32 %v177, %v218
  %v249 = vadd.f32 %v178, %v218
  %v250 = vadd.f32 %v179, %v218
  %v251 = vadd.f32 %v180, %v218
  %v252 = vadd.f32 %v181, %v218
  %v253 = vadd.f32 %v182, %v218
  %v254 = vadd.f32 %v183, %v218
  %v255 = vadd.f32 %v184, %v218
  %v256 = vadd.f32 %v185, %v218
  %v257 = vadd.f32 %v186, %v218
  %v258 = vadd.f32 %v187, %v218
  %v259 = vadd.f32 %v188, %v218
  %v260 = vadd.f32 %v189, %v218
  %v261 = vadd.f32 %v190, %v218
  %v262 = vadd.f32 %v191, %v218
  %v263 = vadd.f32 %v192, %v218
  %v264 = vadd.f32 %v193, %v218
  %v265 = vadd.f32 %v194, %v218
  %v266 = vadd.f32 %v195, %v218
  %v267 = vadd.f32 %v196, %v218
  %v268 = vadd.f32 %v197, %v218
  %v269 = vadd.f32 %v198, %v218
  %v270 = vadd.f32 %v199, %v218
  %v271 = vadd.f32 %v200, %v218
  %v272 = vadd.f32 %v201, %v218
  %v273 = vadd.f32 %v202, %v218
  %v274 = vadd.f32 %v203, %v218
  %v275 = vadd.f32 %v204, %v218
  %v276 = vadd.f32 %v205, %v218
  %v277 = vadd.f32 %v206, %v218
  %v278 = vadd.f32 %v207, %v218
  %v279 = vadd.f32 %v208, %v218
  %v280 = vadd.f32 %v209, %v218
  %v281 = vadd.f32 %v210, %v218
  %v282 = vadd.f32 %v211, %v218
  %v283 = vadd.f32 %v212, %v218
  %vm284 = vcmp.ge.f32.partialorder %v220, 0.0
  %vm285 = vcmp.ge.f32.partialorder %v221, 0.0
  %vm286 = vcmp.ge.f32.partialorder %v222, 0.0
  %vm287 = vcmp.ge.f32.partialorder %v223, 0.0
  %vm288 = vcmp.ge.f32.partialorder %v224, 0.0
  %vm289 = vcmp.ge.f32.partialorder %v225, 0.0
  %vm290 = vcmp.ge.f32.partialorder %v226, 0.0
  %vm291 = vcmp.ge.f32.partialorder %v227, 0.0
  %vm292 = vcmp.ge.f32.partialorder %v228, 0.0
  %vm293 = vcmp.ge.f32.partialorder %v229, 0.0
  %vm294 = vcmp.ge.f32.partialorder %v230, 0.0
  %vm295 = vcmp.ge.f32.partialorder %v231, 0.0
  %vm296 = vcmp.ge.f32.partialorder %v232, 0.0
  %vm297 = vcmp.ge.f32.partialorder %v233, 0.0
  %vm298 = vcmp.ge.f32.partialorder %v234, 0.0
  %vm299 = vcmp.ge.f32.partialorder %v235, 0.0
  %vm300 = vcmp.ge.f32.partialorder %v236, 0.0
  %vm301 = vcmp.ge.f32.partialorder %v237, 0.0
  %vm302 = vcmp.ge.f32.partialorder %v238, 0.0
  %vm303 = vcmp.ge.f32.partialorder %v239, 0.0
  %vm304 = vcmp.ge.f32.partialorder %v240, 0.0
  %vm305 = vcmp.ge.f32.partialorder %v241, 0.0
  %vm306 = vcmp.ge.f32.partialorder %v242, 0.0
  %vm307 = vcmp.ge.f32.partialorder %v243, 0.0
  %vm308 = vcmp.ge.f32.partialorder %v244, 0.0
  %vm309 = vcmp.ge.f32.partialorder %v245, 0.0
  %vm310 = vcmp.ge.f32.partialorder %v246, 0.0
  %vm311 = vcmp.ge.f32.partialorder %v247, 0.0
  %vm312 = vcmp.ge.f32.partialorder %v248, 0.0
  %vm313 = vcmp.ge.f32.partialorder %v249, 0.0
  %vm314 = vcmp.ge.f32.partialorder %v250, 0.0
  %vm315 = vcmp.ge.f32.partialorder %v251, 0.0
  %vm316 = vcmp.ge.f32.partialorder %v252, 0.0
  %vm317 = vcmp.ge.f32.partialorder %v253, 0.0
  %vm318 = vcmp.ge.f32.partialorder %v254, 0.0
  %vm319 = vcmp.ge.f32.partialorder %v255, 0.0
  %vm320 = vcmp.ge.f32.partialorder %v256, 0.0
  %vm321 = vcmp.ge.f32.partialorder %v257, 0.0
  %vm322 = vcmp.ge.f32.partialorder %v258, 0.0
  %vm323 = vcmp.ge.f32.partialorder %v259, 0.0
  %vm324 = vcmp.ge.f32.partialorder %v260, 0.0
  %vm325 = vcmp.ge.f32.partialorder %v261, 0.0
  %vm326 = vcmp.ge.f32.partialorder %v262, 0.0
  %vm327 = vcmp.ge.f32.partialorder %v263, 0.0
  %vm328 = vcmp.ge.f32.partialorder %v264, 0.0
  %vm329 = vcmp.ge.f32.partialorder %v265, 0.0
  %vm330 = vcmp.ge.f32.partialorder %v266, 0.0
  %vm331 = vcmp.ge.f32.partialorder %v267, 0.0
  %vm332 = vcmp.ge.f32.partialorder %v268, 0.0
  %vm333 = vcmp.ge.f32.partialorder %v269, 0.0
  %vm334 = vcmp.ge.f32.partialorder %v270, 0.0
  %vm335 = vcmp.ge.f32.partialorder %v271, 0.0
  %vm336 = vcmp.ge.f32.partialorder %v272, 0.0
  %vm337 = vcmp.ge.f32.partialorder %v273, 0.0
  %vm338 = vcmp.ge.f32.partialorder %v274, 0.0
  %vm339 = vcmp.ge.f32.partialorder %v275, 0.0
  %vm340 = vcmp.ge.f32.partialorder %v276, 0.0
  %vm341 = vcmp.ge.f32.partialorder %v277, 0.0
  %vm342 = vcmp.ge.f32.partialorder %v278, 0.0
  %vm343 = vcmp.ge.f32.partialorder %v279, 0.0
  %vm344 = vcmp.ge.f32.partialorder %v280, 0.0
  %vm345 = vcmp.ge.f32.partialorder %v281, 0.0
  %vm346 = vcmp.ge.f32.partialorder %v282, 0.0
  %vm347 = vcmp.ge.f32.partialorder %v283, 0.0
  %v348 = vmul.f32 %v220, 0.2
  %v349 = vmul.f32 %v221, 0.2
  %v350 = vmul.f32 %v222, 0.2
  %v351 = vmul.f32 %v223, 0.2
  %v352 = vmul.f32 %v224, 0.2
  %v353 = vmul.f32 %v225, 0.2
  %v354 = vmul.f32 %v226, 0.2
  %v355 = vmul.f32 %v227, 0.2
  %v356 = vmul.f32 %v228, 0.2
  %v357 = vmul.f32 %v229, 0.2
  %v358 = vmul.f32 %v230, 0.2
  %v359 = vmul.f32 %v231, 0.2
  %v360 = vmul.f32 %v232, 0.2
  %v361 = vmul.f32 %v233, 0.2
  %v362 = vmul.f32 %v234, 0.2
  %v363 = vmul.f32 %v235, 0.2
  %v364 = vmul.f32 %v236, 0.2
  %v365 = vmul.f32 %v237, 0.2
  %v366 = vmul.f32 %v238, 0.2
  %v367 = vmul.f32 %v239, 0.2
  %v368 = vmul.f32 %v240, 0.2
  %v369 = vmul.f32 %v241, 0.2
  %v370 = vmul.f32 %v242, 0.2
  %v371 = vmul.f32 %v243, 0.2
  %v372 = vmul.f32 %v244, 0.2
  %v373 = vmul.f32 %v245, 0.2
  %v374 = vmul.f32 %v246, 0.2
  %v375 = vmul.f32 %v247, 0.2
  %v376 = vmul.f32 %v248, 0.2
  %v377 = vmul.f32 %v249, 0.2
  %v378 = vmul.f32 %v250, 0.2
  %v379 = vmul.f32 %v251, 0.2
  %v380 = vmul.f32 %v252, 0.2
  %v381 = vmul.f32 %v253, 0.2
  %v382 = vmul.f32 %v254, 0.2
  %v383 = vmul.f32 %v255, 0.2
  %v384 = vmul.f32 %v256, 0.2
  %v385 = vmul.f32 %v257, 0.2
  %v386 = vmul.f32 %v258, 0.2
  %v387 = vmul.f32 %v259, 0.2
  %v388 = vmul.f32 %v260, 0.2
  %v389 = vmul.f32 %v261, 0.2
  %v390 = vmul.f32 %v262, 0.2
  %v391 = vmul.f32 %v263, 0.2
  %v392 = vmul.f32 %v264, 0.2
  %v393 = vmul.f32 %v265, 0.2
  %v394 = vmul.f32 %v266, 0.2
  %v395 = vmul.f32 %v267, 0.2
  %v396 = vmul.f32 %v268, 0.2
  %v397 = vmul.f32 %v269, 0.2
  %v398 = vmul.f32 %v270, 0.2
  %v399 = vmul.f32 %v271, 0.2
  %v400 = vmul.f32 %v272, 0.2
  %v401 = vmul.f32 %v273, 0.2
  %v402 = vmul.f32 %v274, 0.2
  %v403 = vmul.f32 %v275, 0.2
  %v404 = vmul.f32 %v276, 0.2
  %v405 = vmul.f32 %v277, 0.2
  %v406 = vmul.f32 %v278, 0.2
  %v407 = vmul.f32 %v279, 0.2
  %v408 = vmul.f32 %v280, 0.2
  %v409 = vmul.f32 %v281, 0.2
  %v410 = vmul.f32 %v282, 0.2
  %v411 = vmul.f32 %v283, 0.2
  %v412 = vsel %vm284, %v220, %v348
  %v413 = vsel %vm285, %v221, %v349
  %v414 = vsel %vm286, %v222, %v350
  %v415 = vsel %vm287, %v223, %v351
  %v416 = vsel %vm288, %v224, %v352
  %v417 = vsel %vm289, %v225, %v353
  %v418 = vsel %vm290, %v226, %v354
  %v419 = vsel %vm291, %v227, %v355
  %v420 = vsel %vm292, %v228, %v356
  %v421 = vsel %vm293, %v229, %v357
  %v422 = vsel %vm294, %v230, %v358
  %v423 = vsel %vm295, %v231, %v359
  %v424 = vsel %vm296, %v232, %v360
  %v425 = vsel %vm297, %v233, %v361
  %v426 = vsel %vm298, %v234, %v362
  %v427 = vsel %vm299, %v235, %v363
  %v428 = vsel %vm300, %v236, %v364
  %v429 = vsel %vm301, %v237, %v365
  %v430 = vsel %vm302, %v238, %v366
  %v431 = vsel %vm303, %v239, %v367
  %v432 = vsel %vm304, %v240, %v368
  %v433 = vsel %vm305, %v241, %v369
  %v434 = vsel %vm306, %v242, %v370
  %v435 = vsel %vm307, %v243, %v371
  %v436 = vsel %vm308, %v244, %v372
  %v437 = vsel %vm309, %v245, %v373
  %v438 = vsel %vm310, %v246, %v374
  %v439 = vsel %vm311, %v247, %v375
  %v440 = vsel %vm312, %v248, %v376
  %v441 = vsel %vm313, %v249, %v377
  %v442 = vsel %vm314, %v250, %v378
  %v443 = vsel %vm315, %v251, %v379
  %v444 = vsel %vm316, %v252, %v380
  %v445 = vsel %vm317, %v253, %v381
  %v446 = vsel %vm318, %v254, %v382
  %v447 = vsel %vm319, %v255, %v383
  %v448 = vsel %vm320, %v256, %v384
  %v449 = vsel %vm321, %v257, %v385
  %v450 = vsel %vm322, %v258, %v386
  %v451 = vsel %vm323, %v259, %v387
  %v452 = vsel %vm324, %v260, %v388
  %v453 = vsel %vm325, %v261, %v389
  %v454 = vsel %vm326, %v262, %v390
  %v455 = vsel %vm327, %v263, %v391
  %v456 = vsel %vm328, %v264, %v392
  %v457 = vsel %vm329, %v265, %v393
  %v458 = vsel %vm330, %v266, %v394
  %v459 = vsel %vm331, %v267, %v395
  %v460 = vsel %vm332, %v268, %v396
  %v461 = vsel %vm333, %v269, %v397
  %v462 = vsel %vm334, %v270, %v398
  %v463 = vsel %vm335, %v271, %v399
  %v464 = vsel %vm336, %v272, %v400
  %v465 = vsel %vm337, %v273, %v401
  %v466 = vsel %vm338, %v274, %v402
  %v467 = vsel %vm339, %v275, %v403
  %v468 = vsel %vm340, %v276, %v404
  %v469 = vsel %vm341, %v277, %v405
  %v470 = vsel %vm342, %v278, %v406
  %v471 = vsel %vm343, %v279, %v407
  %v472 = vsel %vm344, %v280, %v408
  %v473 = vsel %vm345, %v281, %v409
  %v474 = vsel %vm346, %v282, %v410
  %v475 = vsel %vm347, %v283, %v411
  %v476 = vpack.c.bf16 %v413, %v412
  %v477 = vpack.c.bf16 %v415, %v414
  %v478 = vpack.c.bf16 %v417, %v416
  %v479 = vpack.c.bf16 %v419, %v418
  %v480 = vpack.c.bf16 %v421, %v420
  %v481 = vpack.c.bf16 %v423, %v422
  %v482 = vpack.c.bf16 %v425, %v424
  %v483 = vpack.c.bf16 %v427, %v426
  %v484 = vpack.c.bf16 %v429, %v428
  %v485 = vpack.c.bf16 %v431, %v430
  %v486 = vpack.c.bf16 %v433, %v432
  %v487 = vpack.c.bf16 %v435, %v434
  %v488 = vpack.c.bf16 %v437, %v436
  %v489 = vpack.c.bf16 %v439, %v438
  %v490 = vpack.c.bf16 %v441, %v440
  %v491 = vpack.c.bf16 %v443, %v442
  %v492 = vpack.c.bf16 %v445, %v444
  %v493 = vpack.c.bf16 %v447, %v446
  %v494 = vpack.c.bf16 %v449, %v448
  %v495 = vpack.c.bf16 %v451, %v450
  %v496 = vpack.c.bf16 %v453, %v452
  %v497 = vpack.c.bf16 %v455, %v454
  %v498 = vpack.c.bf16 %v457, %v456
  %v499 = vpack.c.bf16 %v459, %v458
  %v500 = vpack.c.bf16 %v461, %v460
  %v501 = vpack.c.bf16 %v463, %v462
  %v502 = vpack.c.bf16 %v465, %v464
  %v503 = vpack.c.bf16 %v467, %v466
  %v504 = vpack.c.bf16 %v469, %v468
  %v505 = vpack.c.bf16 %v471, %v470
  %v506 = vpack.c.bf16 %v473, %v472
  %v507 = vpack.c.bf16 %v475, %v474
  %v540 = vunpack.c.l.b16 %v476
  %v541 = vunpack.c.h.b16 %v476
  %v542 = vunpack.c.l.b16 %v477
  %v543 = vunpack.c.h.b16 %v477
  %v544 = vunpack.c.l.b16 %v478
  %v545 = vunpack.c.h.b16 %v478
  %v546 = vunpack.c.l.b16 %v479
  %v547 = vunpack.c.h.b16 %v479
  %v548 = vunpack.c.l.b16 %v480
  %v549 = vunpack.c.h.b16 %v480
  %v550 = vunpack.c.l.b16 %v481
  %v551 = vunpack.c.h.b16 %v481
  %v552 = vunpack.c.l.b16 %v482
  %v553 = vunpack.c.h.b16 %v482
  %v554 = vunpack.c.l.b16 %v483
  %v555 = vunpack.c.h.b16 %v483
  %v556 = vunpack.c.l.b16 %v484
  %v557 = vunpack.c.h.b16 %v484
  %v558 = vunpack.c.l.b16 %v485
  %v559 = vunpack.c.h.b16 %v485
  %v560 = vunpack.c.l.b16 %v486
  %v561 = vunpack.c.h.b16 %v486
  %v562 = vunpack.c.l.b16 %v487
  %v563 = vunpack.c.h.b16 %v487
  %v564 = vunpack.c.l.b16 %v488
  %v565 = vunpack.c.h.b16 %v488
  %v566 = vunpack.c.l.b16 %v489
  %v567 = vunpack.c.h.b16 %v489
  %v568 = vunpack.c.l.b16 %v490
  %v569 = vunpack.c.h.b16 %v490
  %v570 = vunpack.c.l.b16 %v491
  %v571 = vunpack.c.h.b16 %v491
  %v572 = vunpack.c.l.b16 %v492
  %v573 = vunpack.c.h.b16 %v492
  %v574 = vunpack.c.l.b16 %v493
  %v575 = vunpack.c.h.b16 %v493
  %v576 = vunpack.c.l.b16 %v494
  %v577 = vunpack.c.h.b16 %v494
  %v578 = vunpack.c.l.b16 %v495
  %v579 = vunpack.c.h.b16 %v495
  %v580 = vunpack.c.l.b16 %v496
  %v581 = vunpack.c.h.b16 %v496
  %v582 = vunpack.c.l.b16 %v497
  %v583 = vunpack.c.h.b16 %v497
  %v584 = vunpack.c.l.b16 %v498
  %v585 = vunpack.c.h.b16 %v498
  %v586 = vunpack.c.l.b16 %v499
  %v587 = vunpack.c.h.b16 %v499
  %v588 = vunpack.c.l.b16 %v500
  %v589 = vunpack.c.h.b16 %v500
  %v590 = vunpack.c.l.b16 %v501
  %v591 = vunpack.c.h.b16 %v501
  %v592 = vunpack.c.l.b16 %v502
  %v593 = vunpack.c.h.b16 %v502
  %v594 = vunpack.c.l.b16 %v503
  %v595 = vunpack.c.h.b16 %v503
  %v596 = vunpack.c.l.b16 %v504
  %v597 = vunpack.c.h.b16 %v504
  %v598 = vunpack.c.l.b16 %v505
  %v599 = vunpack.c.h.b16 %v505
  %v600 = vunpack.c.l.b16 %v506
  %v601 = vunpack.c.h.b16 %v506
  %v602 = vunpack.c.l.b16 %v507
  %v603 = vunpack.c.h.b16 %v507
  %v604 = vpack.c.b16 %v540, %v540
  %v605 = vpack.c.b16 %v541, %v541
  %v606 = vpack.c.b16 %v542, %v542
  %v607 = vpack.c.b16 %v543, %v543
  %v608 = vpack.c.b16 %v544, %v544
  %v609 = vpack.c.b16 %v545, %v545
  %v610 = vpack.c.b16 %v546, %v546
  %v611 = vpack.c.b16 %v547, %v547
  %v612 = vpack.c.b16 %v548, %v548
  %v613 = vpack.c.b16 %v549, %v549
  %v614 = vpack.c.b16 %v550, %v550
  %v615 = vpack.c.b16 %v551, %v551
  %v616 = vpack.c.b16 %v552, %v552
  %v617 = vpack.c.b16 %v553, %v553
  %v618 = vpack.c.b16 %v554, %v554
  %v619 = vpack.c.b16 %v555, %v555
  %v620 = vpack.c.b16 %v556, %v556
  %v621 = vpack.c.b16 %v557, %v557
  %v622 = vpack.c.b16 %v558, %v558
  %v623 = vpack.c.b16 %v559, %v559
  %v624 = vpack.c.b16 %v560, %v560
  %v625 = vpack.c.b16 %v561, %v561
  %v626 = vpack.c.b16 %v562, %v562
  %v627 = vpack.c.b16 %v563, %v563
  %v628 = vpack.c.b16 %v564, %v564
  %v629 = vpack.c.b16 %v565, %v565
  %v630 = vpack.c.b16 %v566, %v566
  %v631 = vpack.c.b16 %v567, %v567
  %v632 = vpack.c.b16 %v568, %v568
  %v633 = vpack.c.b16 %v569, %v569
  %v634 = vpack.c.b16 %v570, %v570
  %v635 = vpack.c.b16 %v571, %v571
  %v636 = vpack.c.b16 %v572, %v572
  %v637 = vpack.c.b16 %v573, %v573
  %v638 = vpack.c.b16 %v574, %v574
  %v639 = vpack.c.b16 %v575, %v575
  %v640 = vpack.c.b16 %v576, %v576
  %v641 = vpack.c.b16 %v577, %v577
  %v642 = vpack.c.b16 %v578, %v578
  %v643 = vpack.c.b16 %v579, %v579
  %v644 = vpack.c.b16 %v580, %v580
  %v645 = vpack.c.b16 %v581, %v581
  %v646 = vpack.c.b16 %v582, %v582
  %v647 = vpack.c.b16 %v583, %v583
  %v648 = vpack.c.b16 %v584, %v584
  %v649 = vpack.c.b16 %v585, %v585
  %v650 = vpack.c.b16 %v586, %v586
  %v651 = vpack.c.b16 %v587, %v587
  %v652 = vpack.c.b16 %v588, %v588
  %v653 = vpack.c.b16 %v589, %v589
  %v654 = vpack.c.b16 %v590, %v590
  %v655 = vpack.c.b16 %v591, %v591
  %v656 = vpack.c.b16 %v592, %v592
  %v657 = vpack.c.b16 %v593, %v593
  %v658 = vpack.c.b16 %v594, %v594
  %v659 = vpack.c.b16 %v595, %v595
  %v660 = vpack.c.b16 %v596, %v596
  %v661 = vpack.c.b16 %v597, %v597
  %v662 = vpack.c.b16 %v598, %v598
  %v663 = vpack.c.b16 %v599, %v599
  %v664 = vpack.c.b16 %v600, %v600
  %v665 = vpack.c.b16 %v601, %v601
  %v666 = vpack.c.b16 %v602, %v602
  %v667 = vpack.c.b16 %v603, %v603
  %732 = vst [vmem:[%s3] sm:$0xf] %v604
  %733 = vst [vmem:[%s3 + $0x4] sm:$0xf] %v605
  %734 = vst [vmem:[%s3 + $0x8] sm:$0xf] %v606
  %735 = vst [vmem:[%s3 + $0xc] sm:$0xf] %v607
  %736 = vst [vmem:[%s3 + $0x10] sm:$0xf] %v608
  %737 = vst [vmem:[%s3 + $0x14] sm:$0xf] %v609
  %738 = vst [vmem:[%s3 + $0x18] sm:$0xf] %v610
  %739 = vst [vmem:[%s3 + $0x1c] sm:$0xf] %v611
  %740 = vst [vmem:[%s3 + $0x20] sm:$0xf] %v612
  %741 = vst [vmem:[%s3 + $0x24] sm:$0xf] %v613
  %742 = vst [vmem:[%s3 + $0x28] sm:$0xf] %v614
  %743 = vst [vmem:[%s3 + $0x2c] sm:$0xf] %v615
  %744 = vst [vmem:[%s3 + $0x30] sm:$0xf] %v616
  %745 = vst [vmem:[%s3 + $0x34] sm:$0xf] %v617
  %746 = vst [vmem:[%s3 + $0x38] sm:$0xf] %v618
  %747 = vst [vmem:[%s3 + $0x3c] sm:$0xf] %v619
  %748 = vst [vmem:[%s3 + $0x40] sm:$0xf] %v620
  %749 = vst [vmem:[%s3 + $0x44] sm:$0xf] %v621
  %750 = vst [vmem:[%s3 + $0x48] sm:$0xf] %v622
  %751 = vst [vmem:[%s3 + $0x4c] sm:$0xf] %v623
  %752 = vst [vmem:[%s3 + $0x50] sm:$0xf] %v624
  %753 = vst [vmem:[%s3 + $0x54] sm:$0xf] %v625
  %754 = vst [vmem:[%s3 + $0x58] sm:$0xf] %v626
  %755 = vst [vmem:[%s3 + $0x5c] sm:$0xf] %v627
  %756 = vst [vmem:[%s3 + $0x60] sm:$0xf] %v628
  %757 = vst [vmem:[%s3 + $0x64] sm:$0xf] %v629
  %758 = vst [vmem:[%s3 + $0x68] sm:$0xf] %v630
  %759 = vst [vmem:[%s3 + $0x6c] sm:$0xf] %v631
  %760 = vst [vmem:[%s3 + $0x70] sm:$0xf] %v632
  %761 = vst [vmem:[%s3 + $0x74] sm:$0xf] %v633
  %762 = vst [vmem:[%s3 + $0x78] sm:$0xf] %v634
  %763 = vst [vmem:[%s3 + $0x7c] sm:$0xf] %v635
  %764 = vst [vmem:[%s3 + $0x80] sm:$0xf] %v636
  %765 = vst [vmem:[%s3 + $0x84] sm:$0xf] %v637
  %766 = vst [vmem:[%s3 + $0x88] sm:$0xf] %v638
  %767 = vst [vmem:[%s3 + $0x8c] sm:$0xf] %v639
  %768 = vst [vmem:[%s3 + $0x90] sm:$0xf] %v640
  %769 = vst [vmem:[%s3 + $0x94] sm:$0xf] %v641
  %770 = vst [vmem:[%s3 + $0x98] sm:$0xf] %v642
  %771 = vst [vmem:[%s3 + $0x9c] sm:$0xf] %v643
  %772 = vst [vmem:[%s3 + $0xa0] sm:$0xf] %v644
  %773 = vst [vmem:[%s3 + $0xa4] sm:$0xf] %v645
  %774 = vst [vmem:[%s3 + $0xa8] sm:$0xf] %v646
  %775 = vst [vmem:[%s3 + $0xac] sm:$0xf] %v647
  %776 = vst [vmem:[%s3 + $0xb0] sm:$0xf] %v648
  %777 = vst [vmem:[%s3 + $0xb4] sm:$0xf] %v649
  %778 = vst [vmem:[%s3 + $0xb8] sm:$0xf] %v650
  %779 = vst [vmem:[%s3 + $0xbc] sm:$0xf] %v651
  %780 = vst [vmem:[%s3 + $0xc0] sm:$0xf] %v652
  %781 = vst [vmem:[%s3 + $0xc4] sm:$0xf] %v653
  %782 = vst [vmem:[%s3 + $0xc8] sm:$0xf] %v654
  %783 = vst [vmem:[%s3 + $0xcc] sm:$0xf] %v655
  %784 = vst [vmem:[%s3 + $0xd0] sm:$0xf] %v656
  %785 = vst [vmem:[%s3 + $0xd4] sm:$0xf] %v657
  %786 = vst [vmem:[%s3 + $0xd8] sm:$0xf] %v658
  %787 = vst [vmem:[%s3 + $0xdc] sm:$0xf] %v659
  %788 = vst [vmem:[%s3 + $0xe0] sm:$0xf] %v660
  %789 = vst [vmem:[%s3 + $0xe4] sm:$0xf] %v661
  %790 = vst [vmem:[%s3 + $0xe8] sm:$0xf] %v662
  %791 = vst [vmem:[%s3 + $0xec] sm:$0xf] %v663
  %792 = vst [vmem:[%s3 + $0xf0] sm:$0xf] %v664
  %793 = vst [vmem:[%s3 + $0xf4] sm:$0xf] %v665
  %794 = vst [vmem:[%s3 + $0xf8] sm:$0xf] %v666
  %795 = vst [vmem:[%s3 + $0xfc] sm:$0xf] %v667
  // Predicated region
  $region14: #{_lambda_.26} parent=0 // pred_check
    _
  $region15: #{_lambda_.26} parent=0 // pred_check_branch
    %797 = sbr.rel (0) target = $region17
  $region16: #{_lambda_.26} parent=0 // pred_region
    _
  $region17: #{_lambda_.26} parent=0 // pred_fallthru
    _
  // Predicated region
  $region18: #{_lambda_.26} parent=0 // pred_check
    _
  $region19: #{_lambda_.26} parent=0 // pred_check_branch
    %799 = sbr.rel (0) target = $region21
  $region20: #{_lambda_.26} parent=0 // pred_region
    _
  $region21: #{_lambda_.26} parent=0 // pred_fallthru
    _

// kernel: _lambda_.27
$region0: #{_lambda_.27}
  #allocation0 [shape = 'u32[]', space=smem, size = 0x4, offset = 0x4, fixed_abs, tag = 'smem constant byte address 0x4 - core index']
  #allocation1 [shape = 'u32[144,128]{1,0:T(1,128)}', space=vmem, size = 0x12000, scoped, tag = 'internal scratch']
  #allocation2 [shape = 'f32[128,128]{1,0:T(8,128)}', space=vmem, size = 0x10000, scoped, tag = 'scratch operand']
  %s0 = inlined_call_operand.vmem [shape: bf16[128,512], index: 0, kind: input, shape index: {}]
  %s1 = inlined_call_operand.vmem [shape: bf16[512,128], index: 1, kind: input, shape index: {}]
  %s2 = inlined_call_operand.vmem [shape: f32[1,128], index: 2, kind: input, shape index: {}]
  %s3 = inlined_call_operand.vmem [shape: bf16[128,128], index: 3, kind: output, shape index: {0}]
  %s4 = inlined_call_operand.vmem [shape: f32[1,8,128], index: 4, kind: output, shape index: {1}]
  %5 = xla_tuple %s3, %s4
  %s6 = sld [smem:[#allocation0]]
  $region38: #{_lambda_.27} parent=0
    _
  %s8 = ssub.s32 1, %s6
  %s9 = scalar_select 0, %s8, %s6
  // Predicated region
  $region2: #{_lambda_.27} parent=0 // pred_check
    _
  $region3: #{_lambda_.27} parent=0 // pred_check_branch
    %11 = sbr.rel (0) target = $region5
  $region4: #{_lambda_.27} parent=0 // pred_region
    _
  $region5: #{_lambda_.27} parent=0 // pred_fallthru
    _
  // Predicated region
  $region6: #{_lambda_.27} parent=0 // pred_check
    _
  $region7: #{_lambda_.27} parent=0 // pred_check_branch
    %13 = sbr.rel (0) target = $region9
  $region8: #{_lambda_.27} parent=0 // pred_region
    _
  $region9: #{_lambda_.27} parent=0 // pred_fallthru
    _
  // Predicated region
  $region10: #{_lambda_.27} parent=0 // pred_check
    _
  $region11: #{_lambda_.27} parent=0 // pred_check_branch
    %15 = sbr.rel (0) target = $region13
  $region12: #{_lambda_.27} parent=0 // pred_region
    _
  $region13: #{_lambda_.27} parent=0 // pred_fallthru
    _
  %p17 = scmp.eq.s32.totalorder 0, 0
  // Predicated region
  $region14: #{_lambda_.27} parent=0 // pred_check
    %p18 = pneg %p17
  $region15: #{_lambda_.27} parent=0 // pred_check_branch
    %20 = sbr.rel (%p18) target = $region17
  $region16: #{_lambda_.27} parent=0 // pred_region
    %21 = vst [vmem:[#allocation2] sm:$0xff] 0.0
    %22 = vst [vmem:[#allocation2 + $0x8] sm:$0xff] 0.0
    %23 = vst [vmem:[#allocation2 + $0x10] sm:$0xff] 0.0
    %24 = vst [vmem:[#allocation2 + $0x18] sm:$0xff] 0.0
    %25 = vst [vmem:[#allocation2 + $0x20] sm:$0xff] 0.0
    %26 = vst [vmem:[#allocation2 + $0x28] sm:$0xff] 0.0
    %27 = vst [vmem:[#allocation2 + $0x30] sm:$0xff] 0.0
    %28 = vst [vmem:[#allocation2 + $0x38] sm:$0xff] 0.0
    %29 = vst [vmem:[#allocation2 + $0x40] sm:$0xff] 0.0
    %30 = vst [vmem:[#allocation2 + $0x48] sm:$0xff] 0.0
    %31 = vst [vmem:[#allocation2 + $0x50] sm:$0xff] 0.0
    %32 = vst [vmem:[#allocation2 + $0x58] sm:$0xff] 0.0
    %33 = vst [vmem:[#allocation2 + $0x60] sm:$0xff] 0.0
    %34 = vst [vmem:[#allocation2 + $0x68] sm:$0xff] 0.0
    %35 = vst [vmem:[#allocation2 + $0x70] sm:$0xff] 0.0
    %36 = vst [vmem:[#allocation2 + $0x78] sm:$0xff] 0.0
  $region17: #{_lambda_.27} parent=0 // pred_fallthru
    _
  %v37 = vld [vmem:[#allocation2] sm:$0xff]
  %v38 = vld [vmem:[#allocation2 + $0x8] sm:$0xff]
  %v39 = vld [vmem:[#allocation2 + $0x10] sm:$0xff]
  %v40 = vld [vmem:[#allocation2 + $0x18] sm:$0xff]
  %v41 = vld [vmem:[#allocation2 + $0x20] sm:$0xff]
  %v42 = vld [vmem:[#allocation2 + $0x28] sm:$0xff]
  %v43 = vld [vmem:[#allocation2 + $0x30] sm:$0xff]
  %v44 = vld [vmem:[#allocation2 + $0x38] sm:$0xff]
  %v45 = vld [vmem:[#allocation2 + $0x40] sm:$0xff]
  %v46 = vld [vmem:[#allocation2 + $0x48] sm:$0xff]
  %v47 = vld [vmem:[#allocation2 + $0x50] sm:$0xff]
  %v48 = vld [vmem:[#allocation2 + $0x58] sm:$0xff]
  %v49 = vld [vmem:[#allocation2 + $0x60] sm:$0xff]
  %v50 = vld [vmem:[#allocation2 + $0x68] sm:$0xff]
  %v51 = vld [vmem:[#allocation2 + $0x70] sm:$0xff]
  %v52 = vld [vmem:[#allocation2 + $0x78] sm:$0xff]
  %v53 = vld [vmem:[%s0] sm:$0xff]
  %v54 = vld [vmem:[%s0 + $0x8] sm:$0xff]
  %v55 = vld [vmem:[%s0 + $0x10] sm:$0xff]
  %v56 = vld [vmem:[%s0 + $0x18] sm:$0xff]
  %v57 = vld [vmem:[%s0 + $0x20] sm:$0xff]
  %v58 = vld [vmem:[%s0 + $0x28] sm:$0xff]
  %v59 = vld [vmem:[%s0 + $0x30] sm:$0xff]
  %v60 = vld [vmem:[%s0 + $0x38] sm:$0xff]
  %v61 = vld [vmem:[%s0 + $0x40] sm:$0xff]
  %v62 = vld [vmem:[%s0 + $0x48] sm:$0xff]
  %v63 = vld [vmem:[%s0 + $0x50] sm:$0xff]
  %v64 = vld [vmem:[%s0 + $0x58] sm:$0xff]
  %v65 = vld [vmem:[%s0 + $0x60] sm:$0xff]
  %v66 = vld [vmem:[%s0 + $0x68] sm:$0xff]
  %v67 = vld [vmem:[%s0 + $0x70] sm:$0xff]
  %v68 = vld [vmem:[%s0 + $0x78] sm:$0xff]
  %v69 = vld [vmem:[%s0 + $0x80] sm:$0xff]
  %v70 = vld [vmem:[%s0 + $0x88] sm:$0xff]
  %v71 = vld [vmem:[%s0 + $0x90] sm:$0xff]
  %v72 = vld [vmem:[%s0 + $0x98] sm:$0xff]
  %v73 = vld [vmem:[%s0 + $0xa0] sm:$0xff]
  %v74 = vld [vmem:[%s0 + $0xa8] sm:$0xff]
  %v75 = vld [vmem:[%s0 + $0xb0] sm:$0xff]
  %v76 = vld [vmem:[%s0 + $0xb8] sm:$0xff]
  %v77 = vld [vmem:[%s0 + $0xc0] sm:$0xff]
  %v78 = vld [vmem:[%s0 + $0xc8] sm:$0xff]
  %v79 = vld [vmem:[%s0 + $0xd0] sm:$0xff]
  %v80 = vld [vmem:[%s0 + $0xd8] sm:$0xff]
  %v81 = vld [vmem:[%s0 + $0xe0] sm:$0xff]
  %v82 = vld [vmem:[%s0 + $0xe8] sm:$0xff]
  %v83 = vld [vmem:[%s0 + $0xf0] sm:$0xff]
  %v84 = vld [vmem:[%s0 + $0xf8] sm:$0xff]
  %v85 = vld [vmem:[%s1] sm:$0xf]
  %v86 = vld [vmem:[%s1 + $0x4] sm:$0xf]
  %v87 = vld [vmem:[%s1 + $0x8] sm:$0xf]
  %v88 = vld [vmem:[%s1 + $0xc] sm:$0xf]
  %v89 = vld [vmem:[%s1 + $0x10] sm:$0xf]
  %v90 = vld [vmem:[%s1 + $0x14] sm:$0xf]
  %v91 = vld [vmem:[%s1 + $0x18] sm:$0xf]
  %v92 = vld [vmem:[%s1 + $0x1c] sm:$0xf]
  %v93 = vld [vmem:[%s1 + $0x20] sm:$0xf]
  %v94 = vld [vmem:[%s1 + $0x24] sm:$0xf]
  %v95 = vld [vmem:[%s1 + $0x28] sm:$0xf]
  %v96 = vld [vmem:[%s1 + $0x2c] sm:$0xf]
  %v97 = vld [vmem:[%s1 + $0x30] sm:$0xf]
  %v98 = vld [vmem:[%s1 + $0x34] sm:$0xf]
  %v99 = vld [vmem:[%s1 + $0x38] sm:$0xf]
  %v100 = vld [vmem:[%s1 + $0x3c] sm:$0xf]
  %v101 = vld [vmem:[%s1 + $0x40] sm:$0xf]
  %v102 = vld [vmem:[%s1 + $0x44] sm:$0xf]
  %v103 = vld [vmem:[%s1 + $0x48] sm:$0xf]
  %v104 = vld [vmem:[%s1 + $0x4c] sm:$0xf]
  %v105 = vld [vmem:[%s1 + $0x50] sm:$0xf]
  %v106 = vld [vmem:[%s1 + $0x54] sm:$0xf]
  %v107 = vld [vmem:[%s1 + $0x58] sm:$0xf]
  %v108 = vld [vmem:[%s1 + $0x5c] sm:$0xf]
  %v109 = vld [vmem:[%s1 + $0x60] sm:$0xf]
  %v110 = vld [vmem:[%s1 + $0x64] sm:$0xf]
  %v111 = vld [vmem:[%s1 + $0x68] sm:$0xf]
  %v112 = vld [vmem:[%s1 + $0x6c] sm:$0xf]
  %v113 = vld [vmem:[%s1 + $0x70] sm:$0xf]
  %v114 = vld [vmem:[%s1 + $0x74] sm:$0xf]
  %v115 = vld [vmem:[%s1 + $0x78] sm:$0xf]
  %v116 = vld [vmem:[%s1 + $0x7c] sm:$0xf]
  %v117 = vld [vmem:[%s1 + $0x80] sm:$0xf]
  %v118 = vld [vmem:[%s1 + $0x84] sm:$0xf]
  %v119 = vld [vmem:[%s1 + $0x88] sm:$0xf]
  %v120 = vld [vmem:[%s1 + $0x8c] sm:$0xf]
  %v121 = vld [vmem:[%s1 + $0x90] sm:$0xf]
  %v122 = vld [vmem:[%s1 + $0x94] sm:$0xf]
  %v123 = vld [vmem:[%s1 + $0x98] sm:$0xf]
  %v124 = vld [vmem:[%s1 + $0x9c] sm:$0xf]
  %v125 = vld [vmem:[%s1 + $0xa0] sm:$0xf]
  %v126 = vld [vmem:[%s1 + $0xa4] sm:$0xf]
  %v127 = vld [vmem:[%s1 + $0xa8] sm:$0xf]
  %v128 = vld [vmem:[%s1 + $0xac] sm:$0xf]
  %v129 = vld [vmem:[%s1 + $0xb0] sm:$0xf]
  %v130 = vld [vmem:[%s1 + $0xb4] sm:$0xf]
  %v131 = vld [vmem:[%s1 + $0xb8] sm:$0xf]
  %v132 = vld [vmem:[%s1 + $0xbc] sm:$0xf]
  %v133 = vld [vmem:[%s1 + $0xc0] sm:$0xf]
  %v134 = vld [vmem:[%s1 + $0xc4] sm:$0xf]
  %v135 = vld [vmem:[%s1 + $0xc8] sm:$0xf]
  %v136 = vld [vmem:[%s1 + $0xcc] sm:$0xf]
  %v137 = vld [vmem:[%s1 + $0xd0] sm:$0xf]
  %v138 = vld [vmem:[%s1 + $0xd4] sm:$0xf]
  %v139 = vld [vmem:[%s1 + $0xd8] sm:$0xf]
  %v140 = vld [vmem:[%s1 + $0xdc] sm:$0xf]
  %v141 = vld [vmem:[%s1 + $0xe0] sm:$0xf]
  %v142 = vld [vmem:[%s1 + $0xe4] sm:$0xf]
  %v143 = vld [vmem:[%s1 + $0xe8] sm:$0xf]
  %v144 = vld [vmem:[%s1 + $0xec] sm:$0xf]
  %v145 = vld [vmem:[%s1 + $0xf0] sm:$0xf]
  %v146 = vld [vmem:[%s1 + $0xf4] sm:$0xf]
  %v147 = vld [vmem:[%s1 + $0xf8] sm:$0xf]
  %v148 = vld [vmem:[%s1 + $0xfc] sm:$0xf]
  %v181 = vunpack.c.l.b16 %v53
  %v182 = vunpack.c.h.b16 %v53
  %v183 = vunpack.c.l.b16 %v54
  %v184 = vunpack.c.h.b16 %v54
  %v185 = vunpack.c.l.b16 %v55
  %v186 = vunpack.c.h.b16 %v55
  %v187 = vunpack.c.l.b16 %v56
  %v188 = vunpack.c.h.b16 %v56
  %v189 = vunpack.c.l.b16 %v57
  %v190 = vunpack.c.h.b16 %v57
  %v191 = vunpack.c.l.b16 %v58
  %v192 = vunpack.c.h.b16 %v58
  %v193 = vunpack.c.l.b16 %v59
  %v194 = vunpack.c.h.b16 %v59
  %v195 = vunpack.c.l.b16 %v60
  %v196 = vunpack.c.h.b16 %v60
  %v197 = vunpack.c.l.b16 %v61
  %v198 = vunpack.c.h.b16 %v61
  %v199 = vunpack.c.l.b16 %v62
  %v200 = vunpack.c.h.b16 %v62
  %v201 = vunpack.c.l.b16 %v63
  %v202 = vunpack.c.h.b16 %v63
  %v203 = vunpack.c.l.b16 %v64
  %v204 = vunpack.c.h.b16 %v64
  %v205 = vunpack.c.l.b16 %v65
  %v206 = vunpack.c.h.b16 %v65
  %v207 = vunpack.c.l.b16 %v66
  %v208 = vunpack.c.h.b16 %v66
  %v209 = vunpack.c.l.b16 %v67
  %v210 = vunpack.c.h.b16 %v67
  %v211 = vunpack.c.l.b16 %v68
  %v212 = vunpack.c.h.b16 %v68
  %v213 = vunpack.c.l.b16 %v69
  %v214 = vunpack.c.h.b16 %v69
  %v215 = vunpack.c.l.b16 %v70
  %v216 = vunpack.c.h.b16 %v70
  %v217 = vunpack.c.l.b16 %v71
  %v218 = vunpack.c.h.b16 %v71
  %v219 = vunpack.c.l.b16 %v72
  %v220 = vunpack.c.h.b16 %v72
  %v221 = vunpack.c.l.b16 %v73
  %v222 = vunpack.c.h.b16 %v73
  %v223 = vunpack.c.l.b16 %v74
  %v224 = vunpack.c.h.b16 %v74
  %v225 = vunpack.c.l.b16 %v75
  %v226 = vunpack.c.h.b16 %v75
  %v227 = vunpack.c.l.b16 %v76
  %v228 = vunpack.c.h.b16 %v76
  %v229 = vunpack.c.l.b16 %v77
  %v230 = vunpack.c.h.b16 %v77
  %v231 = vunpack.c.l.b16 %v78
  %v232 = vunpack.c.h.b16 %v78
  %v233 = vunpack.c.l.b16 %v79
  %v234 = vunpack.c.h.b16 %v79
  %v235 = vunpack.c.l.b16 %v80
  %v236 = vunpack.c.h.b16 %v80
  %v237 = vunpack.c.l.b16 %v81
  %v238 = vunpack.c.h.b16 %v81
  %v239 = vunpack.c.l.b16 %v82
  %v240 = vunpack.c.h.b16 %v82
  %v241 = vunpack.c.l.b16 %v83
  %v242 = vunpack.c.h.b16 %v83
  %v243 = vunpack.c.l.b16 %v84
  %v244 = vunpack.c.h.b16 %v84
  %v245 = vpack.c.b16 %v185, %v181
  %v246 = vpack.c.b16 %v186, %v182
  %v247 = vpack.c.b16 %v187, %v183
  %v248 = vpack.c.b16 %v188, %v184
  %v249 = vpack.c.b16 %v193, %v189
  %v250 = vpack.c.b16 %v194, %v190
  %v251 = vpack.c.b16 %v195, %v191
  %v252 = vpack.c.b16 %v196, %v192
  %v253 = vpack.c.b16 %v201, %v197
  %v254 = vpack.c.b16 %v202, %v198
  %v255 = vpack.c.b16 %v203, %v199
  %v256 = vpack.c.b16 %v204, %v200
  %v257 = vpack.c.b16 %v209, %v205
  %v258 = vpack.c.b16 %v210, %v206
  %v259 = vpack.c.b16 %v211, %v207
  %v260 = vpack.c.b16 %v212, %v208
  %v261 = vpack.c.b16 %v217, %v213
  %v262 = vpack.c.b16 %v218, %v214
  %v263 = vpack.c.b16 %v219, %v215
  %v264 = vpack.c.b16 %v220, %v216
  %v265 = vpack.c.b16 %v225, %v221
  %v266 = vpack.c.b16 %v226, %v222
  %v267 = vpack.c.b16 %v227, %v223
  %v268 = vpack.c.b16 %v228, %v224
  %v269 = vpack.c.b16 %v233, %v229
  %v270 = vpack.c.b16 %v234, %v230
  %v271 = vpack.c.b16 %v235, %v231
  %v272 = vpack.c.b16 %v236, %v232
  %v273 = vpack.c.b16 %v241, %v237
  %v274 = vpack.c.b16 %v242, %v238
  %v275 = vpack.c.b16 %v243, %v239
  %v276 = vpack.c.b16 %v244, %v240
  %v373 = vunpack.c.l.b16 %v85
  %v374 = vunpack.c.l.b16 %v86
  %v375 = vunpack.c.l.b16 %v87
  %v376 = vunpack.c.l.b16 %v88
  %v377 = vunpack.c.l.b16 %v89
  %v378 = vunpack.c.l.b16 %v90
  %v379 = vunpack.c.l.b16 %v91
  %v380 = vunpack.c.l.b16 %v92
  %v381 = vunpack.c.l.b16 %v93
  %v382 = vunpack.c.l.b16 %v94
  %v383 = vunpack.c.l.b16 %v95
  %v384 = vunpack.c.l.b16 %v96
  %v385 = vunpack.c.l.b16 %v97
  %v386 = vunpack.c.l.b16 %v98
  %v387 = vunpack.c.l.b16 %v99
  %v388 = vunpack.c.l.b16 %v100
  %v389 = vunpack.c.l.b16 %v101
  %v390 = vunpack.c.l.b16 %v102
  %v391 = vunpack.c.l.b16 %v103
  %v392 = vunpack.c.l.b16 %v104
  %v393 = vunpack.c.l.b16 %v105
  %v394 = vunpack.c.l.b16 %v106
  %v395 = vunpack.c.l.b16 %v107
  %v396 = vunpack.c.l.b16 %v108
  %v397 = vunpack.c.l.b16 %v109
  %v398 = vunpack.c.l.b16 %v110
  %v399 = vunpack.c.l.b16 %v111
  %v400 = vunpack.c.l.b16 %v112
  %v401 = vunpack.c.l.b16 %v113
  %v402 = vunpack.c.l.b16 %v114
  %v403 = vunpack.c.l.b16 %v115
  %v404 = vunpack.c.l.b16 %v116
  %v405 = vunpack.c.l.b16 %v117
  %v406 = vunpack.c.l.b16 %v118
  %v407 = vunpack.c.l.b16 %v119
  %v408 = vunpack.c.l.b16 %v120
  %v409 = vunpack.c.l.b16 %v121
  %v410 = vunpack.c.l.b16 %v122
  %v411 = vunpack.c.l.b16 %v123
  %v412 = vunpack.c.l.b16 %v124
  %v413 = vunpack.c.l.b16 %v125
  %v414 = vunpack.c.l.b16 %v126
  %v415 = vunpack.c.l.b16 %v127
  %v416 = vunpack.c.l.b16 %v128
  %v417 = vunpack.c.l.b16 %v129
  %v418 = vunpack.c.l.b16 %v130
  %v419 = vunpack.c.l.b16 %v131
  %v420 = vunpack.c.l.b16 %v132
  %v421 = vunpack.c.l.b16 %v133
  %v422 = vunpack.c.l.b16 %v134
  %v423 = vunpack.c.l.b16 %v135
  %v424 = vunpack.c.l.b16 %v136
  %v425 = vunpack.c.l.b16 %v137
  %v426 = vunpack.c.l.b16 %v138
  %v427 = vunpack.c.l.b16 %v139
  %v428 = vunpack.c.l.b16 %v140
  %v429 = vunpack.c.l.b16 %v141
  %v430 = vunpack.c.l.b16 %v142
  %v431 = vunpack.c.l.b16 %v143
  %v432 = vunpack.c.l.b16 %v144
  %v433 = vunpack.c.l.b16 %v145
  %v434 = vunpack.c.l.b16 %v146
  %v435 = vunpack.c.l.b16 %v147
  %v436 = vunpack.c.l.b16 %v148
  %v437 = vpack.c.b16 %v374, %v373
  %v438 = vpack.c.b16 %v376, %v375
  %v439 = vpack.c.b16 %v378, %v377
  %v440 = vpack.c.b16 %v380, %v379
  %v441 = vpack.c.b16 %v382, %v381
  %v442 = vpack.c.b16 %v384, %v383
  %v443 = vpack.c.b16 %v386, %v385
  %v444 = vpack.c.b16 %v388, %v387
  %v445 = vpack.c.b16 %v390, %v389
  %v446 = vpack.c.b16 %v392, %v391
  %v447 = vpack.c.b16 %v394, %v393
  %v448 = vpack.c.b16 %v396, %v395
  %v449 = vpack.c.b16 %v398, %v397
  %v450 = vpack.c.b16 %v400, %v399
  %v451 = vpack.c.b16 %v402, %v401
  %v452 = vpack.c.b16 %v404, %v403
  %v453 = vpack.c.b16 %v406, %v405
  %v454 = vpack.c.b16 %v408, %v407
  %v455 = vpack.c.b16 %v410, %v409
  %v456 = vpack.c.b16 %v412, %v411
  %v457 = vpack.c.b16 %v414, %v413
  %v458 = vpack.c.b16 %v416, %v415
  %v459 = vpack.c.b16 %v418, %v417
  %v460 = vpack.c.b16 %v420, %v419
  %v461 = vpack.c.b16 %v422, %v421
  %v462 = vpack.c.b16 %v424, %v423
  %v463 = vpack.c.b16 %v426, %v425
  %v464 = vpack.c.b16 %v428, %v427
  %v465 = vpack.c.b16 %v430, %v429
  %v466 = vpack.c.b16 %v432, %v431
  %v467 = vpack.c.b16 %v434, %v433
  %v468 = vpack.c.b16 %v436, %v435
  %501 = vmatprep.subr.bf16.mxu0 0
  %502 = vmatpush1.bf16.msra.mxu0 %v444
  %503 = vmatprep.subr.bf16.mxu0 0
  %504 = vmatpush1.bf16.msra.mxu0 %v443
  %505 = vmatprep.subr.bf16.mxu0 0
  %506 = vmatpush1.bf16.msra.mxu0 %v442
  %507 = vmatprep.subr.bf16.mxu0 0
  %508 = vmatpush1.bf16.msra.mxu0 %v441
  %509 = vmatprep.subr.bf16.mxu0 0
  %510 = vmatpush1.bf16.msra.mxu0 %v440
  %511 = vmatprep.subr.bf16.mxu0 0
  %512 = vmatpush1.bf16.msra.mxu0 %v439
  %513 = vmatprep.subr.bf16.mxu0 0
  %514 = vmatpush1.bf16.msra.mxu0 %v438
  %515 = vmatprep.subr.bf16.mxu0 0
  %516 = vmatpush1.bf16.msra.mxu0 %v437
  %517 = vmatprep.subr.bf16.mxu0 0
  %518 = vmatpush2.bf16.msra.mxu0 %v452
  %519 = vmatprep.subr.bf16.mxu0 0
  %520 = vmatpush2.bf16.msra.mxu0 %v451
  %521 = vmatprep.subr.bf16.mxu0 0
  %522 = vmatpush2.bf16.msra.mxu0 %v450
  %523 = vmatprep.subr.bf16.mxu0 0
  %524 = vmatpush2.bf16.msra.mxu0 %v449
  %525 = vmatprep.subr.bf16.mxu0 0
  %526 = vmatpush2.bf16.msra.mxu0 %v448
  %527 = vmatprep.subr.bf16.mxu0 0
  %528 = vmatpush2.bf16.msra.mxu0 %v447
  %529 = vmatprep.subr.bf16.mxu0 0
  %530 = vmatpush2.bf16.msra.mxu0 %v446
  %531 = vmatprep.subr.bf16.mxu0 0
  %532 = vmatpush2.bf16.msra.mxu0 %v445
  %533 = vmatprep.mubr.bf16.mxu0 %v246
  %534 = vmatmul.mubr.bf16.gmra.mxu0 %v245
  %v535 = vpop.f32.mrf.mxu0
  %v536 = vadd.f32 0.0, %v535
  %v537 = vpop.f32.mrf.mxu0
  %v538 = vpop.f32.mrf.mxu0
  %v539 = vadd.f32 0.0, %v538
  %v540 = vpop.f32.mrf.mxu0
  %541 = vmatprep.mubr.bf16.mxu0 %v250
  %542 = vmatmul.mubr.bf16.gmra.mxu0 %v249
  %v543 = vpop.f32.mrf.mxu0
  %v544 = vadd.f32 0.0, %v543
  %v545 = vpop.f32.mrf.mxu0
  %v546 = vpop.f32.mrf.mxu0
  %v547 = vadd.f32 0.0, %v546
  %v548 = vpop.f32.mrf.mxu0
  %549 = vmatprep.mubr.bf16.mxu0 %v254
  %550 = vmatmul.mubr.bf16.gmra.mxu0 %v253
  %v551 = vpop.f32.mrf.mxu0
  %v552 = vadd.f32 0.0, %v551
  %v553 = vpop.f32.mrf.mxu0
  %v554 = vpop.f32.mrf.mxu0
  %v555 = vadd.f32 0.0, %v554
  %v556 = vpop.f32.mrf.mxu0
  %557 = vmatprep.mubr.bf16.mxu0 %v258
  %558 = vmatmul.mubr.bf16.gmra.mxu0 %v257
  %v559 = vpop.f32.mrf.mxu0
  %v560 = vadd.f32 0.0, %v559
  %v561 = vpop.f32.mrf.mxu0
  %v562 = vpop.f32.mrf.mxu0
  %v563 = vadd.f32 0.0, %v562
  %v564 = vpop.f32.mrf.mxu0
  %565 = vmatprep.mubr.bf16.mxu0 %v262
  %566 = vmatmul.mubr.bf16.gmra.mxu0 %v261
  %v567 = vpop.f32.mrf.mxu0
  %v568 = vadd.f32 0.0, %v567
  %v569 = vpop.f32.mrf.mxu0
  %v570 = vpop.f32.mrf.mxu0
  %v571 = vadd.f32 0.0, %v570
  %v572 = vpop.f32.mrf.mxu0
  %573 = vmatprep.mubr.bf16.mxu0 %v266
  %574 = vmatmul.mubr.bf16.gmra.mxu0 %v265
  %v575 = vpop.f32.mrf.mxu0
  %v576 = vadd.f32 0.0, %v575
  %v577 = vpop.f32.mrf.mxu0
  %v578 = vpop.f32.mrf.mxu0
  %v579 = vadd.f32 0.0, %v578
  %v580 = vpop.f32.mrf.mxu0
  %581 = vmatprep.mubr.bf16.mxu0 %v270
  %582 = vmatmul.mubr.bf16.gmra.mxu0 %v269
  %v583 = vpop.f32.mrf.mxu0
  %v584 = vadd.f32 0.0, %v583
  %v585 = vpop.f32.mrf.mxu0
  %v586 = vpop.f32.mrf.mxu0
  %v587 = vadd.f32 0.0, %v586
  %v588 = vpop.f32.mrf.mxu0
  %589 = vmatprep.mubr.bf16.mxu0 %v274
  %590 = vmatmul.mubr.bf16.gmra.mxu0 %v273
  %v591 = vpop.f32.mrf.mxu0
  %v592 = vadd.f32 0.0, %v591
  %v593 = vpop.f32.mrf.mxu0
  %v594 = vpop.f32.mrf.mxu0
  %v595 = vadd.f32 0.0, %v594
  %v596 = vpop.f32.mrf.mxu0
  %597 = vdwg.mxu0
  %598 = vmatprep.subr.bf16.mxu0 0
  %599 = vmatpush1.bf16.msra.mxu0 %v460
  %600 = vmatprep.subr.bf16.mxu0 0
  %601 = vmatpush1.bf16.msra.mxu0 %v459
  %602 = vmatprep.subr.bf16.mxu0 0
  %603 = vmatpush1.bf16.msra.mxu0 %v458
  %604 = vmatprep.subr.bf16.mxu0 0
  %605 = vmatpush1.bf16.msra.mxu0 %v457
  %606 = vmatprep.subr.bf16.mxu0 0
  %607 = vmatpush1.bf16.msra.mxu0 %v456
  %608 = vmatprep.subr.bf16.mxu0 0
  %609 = vmatpush1.bf16.msra.mxu0 %v455
  %610 = vmatprep.subr.bf16.mxu0 0
  %611 = vmatpush1.bf16.msra.mxu0 %v454
  %612 = vmatprep.subr.bf16.mxu0 0
  %613 = vmatpush1.bf16.msra.mxu0 %v453
  %614 = vmatprep.subr.bf16.mxu0 0
  %615 = vmatpush2.bf16.msra.mxu0 %v468
  %616 = vmatprep.subr.bf16.mxu0 0
  %617 = vmatpush2.bf16.msra.mxu0 %v467
  %618 = vmatprep.subr.bf16.mxu0 0
  %619 = vmatpush2.bf16.msra.mxu0 %v466
  %620 = vmatprep.subr.bf16.mxu0 0
  %621 = vmatpush2.bf16.msra.mxu0 %v465
  %622 = vmatprep.subr.bf16.mxu0 0
  %623 = vmatpush2.bf16.msra.mxu0 %v464
  %624 = vmatprep.subr.bf16.mxu0 0
  %625 = vmatpush2.bf16.msra.mxu0 %v463
  %626 = vmatprep.subr.bf16.mxu0 0
  %627 = vmatpush2.bf16.msra.mxu0 %v462
  %628 = vmatprep.subr.bf16.mxu0 0
  %629 = vmatpush2.bf16.msra.mxu0 %v461
  %630 = vmatprep.mubr.bf16.mxu0 %v248
  %631 = vmatmul.mubr.bf16.gmra.mxu0 %v247
  %v632 = vpop.f32.mrf.mxu0
  %v633 = vadd.f32 %v536, %v632
  %v634 = vpop.f32.mrf.mxu0
  %v635 = vpop.f32.mrf.mxu0
  %v636 = vadd.f32 %v539, %v635
  %v637 = vpop.f32.mrf.mxu0
  %638 = vmatprep.mubr.bf16.mxu0 %v252
  %639 = vmatmul.mubr.bf16.gmra.mxu0 %v251
  %v640 = vpop.f32.mrf.mxu0
  %v641 = vadd.f32 %v544, %v640
  %v642 = vpop.f32.mrf.mxu0
  %v643 = vpop.f32.mrf.mxu0
  %v644 = vadd.f32 %v547, %v643
  %v645 = vpop.f32.mrf.mxu0
  %646 = vmatprep.mubr.bf16.mxu0 %v256
  %647 = vmatmul.mubr.bf16.gmra.mxu0 %v255
  %v648 = vpop.f32.mrf.mxu0
  %v649 = vadd.f32 %v552, %v648
  %v650 = vpop.f32.mrf.mxu0
  %v651 = vpop.f32.mrf.mxu0
  %v652 = vadd.f32 %v555, %v651
  %v653 = vpop.f32.mrf.mxu0
  %654 = vmatprep.mubr.bf16.mxu0 %v260
  %655 = vmatmul.mubr.bf16.gmra.mxu0 %v259
  %v656 = vpop.f32.mrf.mxu0
  %v657 = vadd.f32 %v560, %v656
  %v658 = vpop.f32.mrf.mxu0
  %v659 = vpop.f32.mrf.mxu0
  %v660 = vadd.f32 %v563, %v659
  %v661 = vpop.f32.mrf.mxu0
  %662 = vmatprep.mubr.bf16.mxu0 %v264
  %663 = vmatmul.mubr.bf16.gmra.mxu0 %v263
  %v664 = vpop.f32.mrf.mxu0
  %v665 = vadd.f32 %v568, %v664
  %v666 = vpop.f32.mrf.mxu0
  %v667 = vpop.f32.mrf.mxu0
  %v668 = vadd.f32 %v571, %v667
  %v669 = vpop.f32.mrf.mxu0
  %670 = vmatprep.mubr.bf16.mxu0 %v268
  %671 = vmatmul.mubr.bf16.gmra.mxu0 %v267
  %v672 = vpop.f32.mrf.mxu0
  %v673 = vadd.f32 %v576, %v672
  %v674 = vpop.f32.mrf.mxu0
  %v675 = vpop.f32.mrf.mxu0
  %v676 = vadd.f32 %v579, %v675
  %v677 = vpop.f32.mrf.mxu0
  %678 = vmatprep.mubr.bf16.mxu0 %v272
  %679 = vmatmul.mubr.bf16.gmra.mxu0 %v271
  %v680 = vpop.f32.mrf.mxu0
  %v681 = vadd.f32 %v584, %v680
  %v682 = vpop.f32.mrf.mxu0
  %v683 = vpop.f32.mrf.mxu0
  %v684 = vadd.f32 %v587, %v683
  %v685 = vpop.f32.mrf.mxu0
  %686 = vmatprep.mubr.bf16.mxu0 %v276
  %687 = vmatmul.mubr.bf16.gmra.mxu0 %v275
  %v688 = vpop.f32.mrf.mxu0
  %v689 = vadd.f32 %v592, %v688
  %v690 = vpop.f32.mrf.mxu0
  %v691 = vpop.f32.mrf.mxu0
  %v692 = vadd.f32 %v595, %v691
  %v693 = vpop.f32.mrf.mxu0
  %694 = vdwg.mxu0
  %v695 = vadd.f32 %v37, %v633
  %v696 = vadd.f32 %v38, %v636
  %v697 = vadd.f32 %v39, %v641
  %v698 = vadd.f32 %v40, %v644
  %v699 = vadd.f32 %v41, %v649
  %v700 = vadd.f32 %v42, %v652
  %v701 = vadd.f32 %v43, %v657
  %v702 = vadd.f32 %v44, %v660
  %v703 = vadd.f32 %v45, %v665
  %v704 = vadd.f32 %v46, %v668
  %v705 = vadd.f32 %v47, %v673
  %v706 = vadd.f32 %v48, %v676
  %v707 = vadd.f32 %v49, %v681
  %v708 = vadd.f32 %v50, %v684
  %v709 = vadd.f32 %v51, %v689
  %v710 = vadd.f32 %v52, %v692
  %711 = vst [vmem:[#allocation2] sm:$0xff] %v695
  %712 = vst [vmem:[#allocation2 + $0x8] sm:$0xff] %v696
  %713 = vst [vmem:[#allocation2 + $0x10] sm:$0xff] %v697
  %714 = vst [vmem:[#allocation2 + $0x18] sm:$0xff] %v698
  %715 = vst [vmem:[#allocation2 + $0x20] sm:$0xff] %v699
  %716 = vst [vmem:[#allocation2 + $0x28] sm:$0xff] %v700
  %717 = vst [vmem:[#allocation2 + $0x30] sm:$0xff] %v701
  %718 = vst [vmem:[#allocation2 + $0x38] sm:$0xff] %v702
  %719 = vst [vmem:[#allocation2 + $0x40] sm:$0xff] %v703
  %720 = vst [vmem:[#allocation2 + $0x48] sm:$0xff] %v704
  %721 = vst [vmem:[#allocation2 + $0x50] sm:$0xff] %v705
  %722 = vst [vmem:[#allocation2 + $0x58] sm:$0xff] %v706
  %723 = vst [vmem:[#allocation2 + $0x60] sm:$0xff] %v707
  %724 = vst [vmem:[#allocation2 + $0x68] sm:$0xff] %v708
  %725 = vst [vmem:[#allocation2 + $0x70] sm:$0xff] %v709
  %726 = vst [vmem:[#allocation2 + $0x78] sm:$0xff] %v710
  // Predicated region
  $region18: #{_lambda_.27} parent=0 // pred_check
    %p727 = pneg %p17
  $region19: #{_lambda_.27} parent=0 // pred_check_branch
    %729 = sbr.rel (%p727) target = $region21
  $region20: #{_lambda_.27} parent=0 // pred_region
    %v730 = vld [vmem:[#allocation2] sm:$0xff]
    %v731 = vld [vmem:[#allocation2 + $0x8] sm:$0xff]
    %v732 = vld [vmem:[#allocation2 + $0x10] sm:$0xff]
    %v733 = vld [vmem:[#allocation2 + $0x18] sm:$0xff]
    %v734 = vld [vmem:[#allocation2 + $0x20] sm:$0xff]
    %v735 = vld [vmem:[#allocation2 + $0x28] sm:$0xff]
    %v736 = vld [vmem:[#allocation2 + $0x30] sm:$0xff]
    %v737 = vld [vmem:[#allocation2 + $0x38] sm:$0xff]
    %v738 = vld [vmem:[#allocation2 + $0x40] sm:$0xff]
    %v739 = vld [vmem:[#allocation2 + $0x48] sm:$0xff]
    %v740 = vld [vmem:[#allocation2 + $0x50] sm:$0xff]
    %v741 = vld [vmem:[#allocation2 + $0x58] sm:$0xff]
    %v742 = vld [vmem:[#allocation2 + $0x60] sm:$0xff]
    %v743 = vld [vmem:[#allocation2 + $0x68] sm:$0xff]
    %v744 = vld [vmem:[#allocation2 + $0x70] sm:$0xff]
    %v745 = vld [vmem:[#allocation2 + $0x78] sm:$0xff]
    %v746 = vpack.c.bf16 %v731, %v730
    %v747 = vpack.c.bf16 %v733, %v732
    %v748 = vpack.c.bf16 %v735, %v734
    %v749 = vpack.c.bf16 %v737, %v736
    %v750 = vpack.c.bf16 %v739, %v738
    %v751 = vpack.c.bf16 %v741, %v740
    %v752 = vpack.c.bf16 %v743, %v742
    %v753 = vpack.c.bf16 %v745, %v744
    %v762 = vunpack.c.l.b16 %v746
    %v763 = vunpack.c.h.b16 %v746
    %v764 = vunpack.c.l.b16 %v747
    %v765 = vunpack.c.h.b16 %v747
    %v766 = vunpack.c.l.b16 %v748
    %v767 = vunpack.c.h.b16 %v748
    %v768 = vunpack.c.l.b16 %v749
    %v769 = vunpack.c.h.b16 %v749
    %v770 = vunpack.c.l.b16 %v750
    %v771 = vunpack.c.h.b16 %v750
    %v772 = vunpack.c.l.b16 %v751
    %v773 = vunpack.c.h.b16 %v751
    %v774 = vunpack.c.l.b16 %v752
    %v775 = vunpack.c.h.b16 %v752
    %v776 = vunpack.c.l.b16 %v753
    %v777 = vunpack.c.h.b16 %v753
    %v778 = vpack.c.b16 %v762, %v762
    %v779 = vpack.c.b16 %v763, %v763
    %v780 = vpack.c.b16 %v764, %v764
    %v781 = vpack.c.b16 %v765, %v765
    %v782 = vpack.c.b16 %v766, %v766
    %v783 = vpack.c.b16 %v767, %v767
    %v784 = vpack.c.b16 %v768, %v768
    %v785 = vpack.c.b16 %v769, %v769
    %v786 = vpack.c.b16 %v770, %v770
    %v787 = vpack.c.b16 %v771, %v771
    %v788 = vpack.c.b16 %v772, %v772
    %v789 = vpack.c.b16 %v773, %v773
    %v790 = vpack.c.b16 %v774, %v774
    %v791 = vpack.c.b16 %v775, %v775
    %v792 = vpack.c.b16 %v776, %v776
    %v793 = vpack.c.b16 %v777, %v777
    %810 = vst [vmem:[%s3] sm:$0xf] %v778
    %811 = vst [vmem:[%s3 + $0x4] sm:$0xf] %v779
    %812 = vst [vmem:[%s3 + $0x8] sm:$0xf] %v780
    %813 = vst [vmem:[%s3 + $0xc] sm:$0xf] %v781
    %814 = vst [vmem:[%s3 + $0x10] sm:$0xf] %v782
    %815 = vst [vmem:[%s3 + $0x14] sm:$0xf] %v783
    %816 = vst [vmem:[%s3 + $0x18] sm:$0xf] %v784
    %817 = vst [vmem:[%s3 + $0x1c] sm:$0xf] %v785
    %818 = vst [vmem:[%s3 + $0x20] sm:$0xf] %v786
    %819 = vst [vmem:[%s3 + $0x24] sm:$0xf] %v787
    %820 = vst [vmem:[%s3 + $0x28] sm:$0xf] %v788
    %821 = vst [vmem:[%s3 + $0x2c] sm:$0xf] %v789
    %822 = vst [vmem:[%s3 + $0x30] sm:$0xf] %v790
    %823 = vst [vmem:[%s3 + $0x34] sm:$0xf] %v791
    %824 = vst [vmem:[%s3 + $0x38] sm:$0xf] %v792
    %825 = vst [vmem:[%s3 + $0x3c] sm:$0xf] %v793
    %v826 = vadd.f32 %v730, %v731
    %v827 = vadd.f32 %v826, %v732
    %v828 = vadd.f32 %v827, %v733
    %v829 = vadd.f32 %v828, %v734
    %v830 = vadd.f32 %v829, %v735
    %v831 = vadd.f32 %v830, %v736
    %v832 = vadd.f32 %v831, %v737
    %v833 = vadd.f32 %v832, %v738
    %v834 = vadd.f32 %v833, %v739
    %v835 = vadd.f32 %v834, %v740
    %v836 = vadd.f32 %v835, %v741
    %v837 = vadd.f32 %v836, %v742
    %v838 = vadd.f32 %v837, %v743
    %v839 = vadd.f32 %v838, %v744
    %v840 = vadd.f32 %v839, %v745
    %v841 = vrot.slane %v840, 4
    %v842 = vadd.f32 %v840, %v841
    %v843 = vrot.slane %v842, 2
    %v844 = vadd.f32 %v842, %v843
    %v845 = vrot.slane %v844, 1
    %v846 = vadd.f32 %v844, %v845
    %v847 = vmul.f32 %v730, %v730
    %v848 = vmul.f32 %v731, %v731
    %v849 = vmul.f32 %v732, %v732
    %v850 = vmul.f32 %v733, %v733
    %v851 = vmul.f32 %v734, %v734
    %v852 = vmul.f32 %v735, %v735
    %v853 = vmul.f32 %v736, %v736
    %v854 = vmul.f32 %v737, %v737
    %v855 = vmul.f32 %v738, %v738
    %v856 = vmul.f32 %v739, %v739
    %v857 = vmul.f32 %v740, %v740
    %v858 = vmul.f32 %v741, %v741
    %v859 = vmul.f32 %v742, %v742
    %v860 = vmul.f32 %v743, %v743
    %v861 = vmul.f32 %v744, %v744
    %v862 = vmul.f32 %v745, %v745
    %v863 = vadd.f32 %v847, %v848
    %v864 = vadd.f32 %v863, %v849
    %v865 = vadd.f32 %v864, %v850
    %v866 = vadd.f32 %v865, %v851
    %v867 = vadd.f32 %v866, %v852
    %v868 = vadd.f32 %v867, %v853
    %v869 = vadd.f32 %v868, %v854
    %v870 = vadd.f32 %v869, %v855
    %v871 = vadd.f32 %v870, %v856
    %v872 = vadd.f32 %v871, %v857
    %v873 = vadd.f32 %v872, %v858
    %v874 = vadd.f32 %v873, %v859
    %v875 = vadd.f32 %v874, %v860
    %v876 = vadd.f32 %v875, %v861
    %v877 = vadd.f32 %v876, %v862
    %v878 = vrot.slane %v877, 4
    %v879 = vadd.f32 %v877, %v878
    %v880 = vrot.slane %v879, 2
    %v881 = vadd.f32 %v879, %v880
    %v882 = vrot.slane %v881, 1
    %v883 = vadd.f32 %v881, %v882
    %v884 = vlaneseq
    %v885 = vshrl.u32 %v884, 7
    %vm886 = vcmp.eq.s32.totalorder %v885, 0
    %v887 = vsel %vm886, %v846, 0.0
    %vm888 = vcmp.eq.s32.totalorder %v885, 1
    %v889 = vsel %vm888, %v883, 0.0
    %v890 = vadd.f32 %v887, %v889
    %891 = vst [vmem:[%s4] sm:$0xff] %v890
  $region21: #{_lambda_.27} parent=0 // pred_fallthru
    _
  // Predicated region
  $region22: #{_lambda_.27} parent=0 // pred_check
    _
  $region23: #{_lambda_.27} parent=0 // pred_check_branch
    %893 = sbr.rel (0) target = $region25
  $region24: #{_lambda_.27} parent=0 // pred_region
    _
  $region25: #{_lambda_.27} parent=0 // pred_fallthru
    _
  // Predicated region
  $region26: #{_lambda_.27} parent=0 // pred_check
    _
  $region27: #{_lambda_.27} parent=0 // pred_check_branch
    %895 = sbr.rel (0) target = $region29
  $region28: #{_lambda_.27} parent=0 // pred_region
    _
  $region29: #{_lambda_.27} parent=0 // pred_fallthru
    _
  // Predicated region
  $region30: #{_lambda_.27} parent=0 // pred_check
    _
  $region31: #{_lambda_.27} parent=0 // pred_check_branch
    %897 = sbr.rel (0) target = $region33
  $region32: #{_lambda_.27} parent=0 // pred_region
    _
  $region33: #{_lambda_.27} parent=0 // pred_fallthru
    _
  // Predicated region
  $region34: #{_lambda_.27} parent=0 // pred_check
    _
  $region35: #{_lambda_.27} parent=0 // pred_check_branch
    %899 = sbr.rel (0) target = $region37
  $region36: #{_lambda_.27} parent=0 // pred_region
    _
  $region37: #{_lambda_.27} parent=0 // pred_fallthru
    _

// kernel: _lambda_.28
$region0: #{_lambda_.28}
  #allocation0 [shape = 'u32[]', space=smem, size = 0x4, offset = 0x4, fixed_abs, tag = 'smem constant byte address 0x4 - core index']
  #allocation1 [shape = 'u32[144,128]{1,0:T(1,128)}', space=vmem, size = 0x12000, scoped, tag = 'internal scratch']
  %s0 = inlined_call_operand.vmem [shape: bf16[128,128], index: 0, kind: input, shape index: {}]
  %s1 = inlined_call_operand.vmem [shape: f32[1,128], index: 1, kind: input, shape index: {}]
  %s2 = inlined_call_operand.vmem [shape: f32[1,128], index: 2, kind: input, shape index: {}]
  %s3 = inlined_call_operand.vmem [shape: bf16[128,128], index: 3, kind: output, shape index: {}]
  %s4 = sld [smem:[#allocation0]]
  $region22: #{_lambda_.28} parent=0
    _
  %s6 = ssub.s32 1, %s4
  %s7 = scalar_select 0, %s6, %s4
  // Predicated region
  $region2: #{_lambda_.28} parent=0 // pred_check
    _
  $region3: #{_lambda_.28} parent=0 // pred_check_branch
    %9 = sbr.rel (0) target = $region5
  $region4: #{_lambda_.28} parent=0 // pred_region
    _
  $region5: #{_lambda_.28} parent=0 // pred_fallthru
    _
  // Predicated region
  $region6: #{_lambda_.28} parent=0 // pred_check
    _
  $region7: #{_lambda_.28} parent=0 // pred_check_branch
    %11 = sbr.rel (0) target = $region9
  $region8: #{_lambda_.28} parent=0 // pred_region
    _
  $region9: #{_lambda_.28} parent=0 // pred_fallthru
    _
  // Predicated region
  $region10: #{_lambda_.28} parent=0 // pred_check
    _
  $region11: #{_lambda_.28} parent=0 // pred_check_branch
    %13 = sbr.rel (0) target = $region13
  $region12: #{_lambda_.28} parent=0 // pred_region
    _
  $region13: #{_lambda_.28} parent=0 // pred_fallthru
    _
  %v14 = vld [vmem:[%s0] sm:$0xf]
  %v15 = vld [vmem:[%s0 + $0x4] sm:$0xf]
  %v16 = vld [vmem:[%s0 + $0x8] sm:$0xf]
  %v17 = vld [vmem:[%s0 + $0xc] sm:$0xf]
  %v18 = vld [vmem:[%s0 + $0x10] sm:$0xf]
  %v19 = vld [vmem:[%s0 + $0x14] sm:$0xf]
  %v20 = vld [vmem:[%s0 + $0x18] sm:$0xf]
  %v21 = vld [vmem:[%s0 + $0x1c] sm:$0xf]
  %v22 = vld [vmem:[%s0 + $0x20] sm:$0xf]
  %v23 = vld [vmem:[%s0 + $0x24] sm:$0xf]
  %v24 = vld [vmem:[%s0 + $0x28] sm:$0xf]
  %v25 = vld [vmem:[%s0 + $0x2c] sm:$0xf]
  %v26 = vld [vmem:[%s0 + $0x30] sm:$0xf]
  %v27 = vld [vmem:[%s0 + $0x34] sm:$0xf]
  %v28 = vld [vmem:[%s0 + $0x38] sm:$0xf]
  %v29 = vld [vmem:[%s0 + $0x3c] sm:$0xf]
  %v30 = vunpack.c.l.bf16 %v14
  %v31 = vunpack.c.l.bf16 %v15
  %v32 = vunpack.c.l.bf16 %v16
  %v33 = vunpack.c.l.bf16 %v17
  %v34 = vunpack.c.l.bf16 %v18
  %v35 = vunpack.c.l.bf16 %v19
  %v36 = vunpack.c.l.bf16 %v20
  %v37 = vunpack.c.l.bf16 %v21
  %v38 = vunpack.c.l.bf16 %v22
  %v39 = vunpack.c.l.bf16 %v23
  %v40 = vunpack.c.l.bf16 %v24
  %v41 = vunpack.c.l.bf16 %v25
  %v42 = vunpack.c.l.bf16 %v26
  %v43 = vunpack.c.l.bf16 %v27
  %v44 = vunpack.c.l.bf16 %v28
  %v45 = vunpack.c.l.bf16 %v29
  %v46 = vld [vmem:[%s1] sm:$0x1]
  %v48 = vlaneseq
  %v49 = vshrl.u32 %v48, 7
  %v50 = vsub.s32 0, %v49
  %v51 = vrot.slane %v46, %v50
  %v53 = vmul.f32 %v30, %v51
  %v54 = vmul.f32 %v31, %v51
  %v55 = vmul.f32 %v32, %v51
  %v56 = vmul.f32 %v33, %v51
  %v57 = vmul.f32 %v34, %v51
  %v58 = vmul.f32 %v35, %v51
  %v59 = vmul.f32 %v36, %v51
  %v60 = vmul.f32 %v37, %v51
  %v61 = vmul.f32 %v38, %v51
  %v62 = vmul.f32 %v39, %v51
  %v63 = vmul.f32 %v40, %v51
  %v64 = vmul.f32 %v41, %v51
  %v65 = vmul.f32 %v42, %v51
  %v66 = vmul.f32 %v43, %v51
  %v67 = vmul.f32 %v44, %v51
  %v68 = vmul.f32 %v45, %v51
  %v69 = vld [vmem:[%s2] sm:$0x1]
  %v71 = vlaneseq
  %v72 = vshrl.u32 %v71, 7
  %v73 = vsub.s32 0, %v72
  %v74 = vrot.slane %v69, %v73
  %v76 = vadd.f32 %v53, %v74
  %v77 = vadd.f32 %v54, %v74
  %v78 = vadd.f32 %v55, %v74
  %v79 = vadd.f32 %v56, %v74
  %v80 = vadd.f32 %v57, %v74
  %v81 = vadd.f32 %v58, %v74
  %v82 = vadd.f32 %v59, %v74
  %v83 = vadd.f32 %v60, %v74
  %v84 = vadd.f32 %v61, %v74
  %v85 = vadd.f32 %v62, %v74
  %v86 = vadd.f32 %v63, %v74
  %v87 = vadd.f32 %v64, %v74
  %v88 = vadd.f32 %v65, %v74
  %v89 = vadd.f32 %v66, %v74
  %v90 = vadd.f32 %v67, %v74
  %v91 = vadd.f32 %v68, %v74
  %vm92 = vcmp.ge.f32.partialorder %v76, 0.0
  %vm93 = vcmp.ge.f32.partialorder %v77, 0.0
  %vm94 = vcmp.ge.f32.partialorder %v78, 0.0
  %vm95 = vcmp.ge.f32.partialorder %v79, 0.0
  %vm96 = vcmp.ge.f32.partialorder %v80, 0.0
  %vm97 = vcmp.ge.f32.partialorder %v81, 0.0
  %vm98 = vcmp.ge.f32.partialorder %v82, 0.0
  %vm99 = vcmp.ge.f32.partialorder %v83, 0.0
  %vm100 = vcmp.ge.f32.partialorder %v84, 0.0
  %vm101 = vcmp.ge.f32.partialorder %v85, 0.0
  %vm102 = vcmp.ge.f32.partialorder %v86, 0.0
  %vm103 = vcmp.ge.f32.partialorder %v87, 0.0
  %vm104 = vcmp.ge.f32.partialorder %v88, 0.0
  %vm105 = vcmp.ge.f32.partialorder %v89, 0.0
  %vm106 = vcmp.ge.f32.partialorder %v90, 0.0
  %vm107 = vcmp.ge.f32.partialorder %v91, 0.0
  %v108 = vmul.f32 %v76, 0.2
  %v109 = vmul.f32 %v77, 0.2
  %v110 = vmul.f32 %v78, 0.2
  %v111 = vmul.f32 %v79, 0.2
  %v112 = vmul.f32 %v80, 0.2
  %v113 = vmul.f32 %v81, 0.2
  %v114 = vmul.f32 %v82, 0.2
  %v115 = vmul.f32 %v83, 0.2
  %v116 = vmul.f32 %v84, 0.2
  %v117 = vmul.f32 %v85, 0.2
  %v118 = vmul.f32 %v86, 0.2
  %v119 = vmul.f32 %v87, 0.2
  %v120 = vmul.f32 %v88, 0.2
  %v121 = vmul.f32 %v89, 0.2
  %v122 = vmul.f32 %v90, 0.2
  %v123 = vmul.f32 %v91, 0.2
  %v124 = vsel %vm92, %v76, %v108
  %v125 = vsel %vm93, %v77, %v109
  %v126 = vsel %vm94, %v78, %v110
  %v127 = vsel %vm95, %v79, %v111
  %v128 = vsel %vm96, %v80, %v112
  %v129 = vsel %vm97, %v81, %v113
  %v130 = vsel %vm98, %v82, %v114
  %v131 = vsel %vm99, %v83, %v115
  %v132 = vsel %vm100, %v84, %v116
  %v133 = vsel %vm101, %v85, %v117
  %v134 = vsel %vm102, %v86, %v118
  %v135 = vsel %vm103, %v87, %v119
  %v136 = vsel %vm104, %v88, %v120
  %v137 = vsel %vm105, %v89, %v121
  %v138 = vsel %vm106, %v90, %v122
  %v139 = vsel %vm107, %v91, %v123
  %v140 = vpack.c.bf16 %v125, %v124
  %v141 = vpack.c.bf16 %v127, %v126
  %v142 = vpack.c.bf16 %v129, %v128
  %v143 = vpack.c.bf16 %v131, %v130
  %v144 = vpack.c.bf16 %v133, %v132
  %v145 = vpack.c.bf16 %v135, %v134
  %v146 = vpack.c.bf16 %v137, %v136
  %v147 = vpack.c.bf16 %v139, %v138
  %v156 = vunpack.c.l.b16 %v140
  %v157 = vunpack.c.h.b16 %v140
  %v158 = vunpack.c.l.b16 %v141
  %v159 = vunpack.c.h.b16 %v141
  %v160 = vunpack.c.l.b16 %v142
  %v161 = vunpack.c.h.b16 %v142
  %v162 = vunpack.c.l.b16 %v143
  %v163 = vunpack.c.h.b16 %v143
  %v164 = vunpack.c.l.b16 %v144
  %v165 = vunpack.c.h.b16 %v144
  %v166 = vunpack.c.l.b16 %v145
  %v167 = vunpack.c.h.b16 %v145
  %v168 = vunpack.c.l.b16 %v146
  %v169 = vunpack.c.h.b16 %v146
  %v170 = vunpack.c.l.b16 %v147
  %v171 = vunpack.c.h.b16 %v147
  %v172 = vpack.c.b16 %v156, %v156
  %v173 = vpack.c.b16 %v157, %v157
  %v174 = vpack.c.b16 %v158, %v158
  %v175 = vpack.c.b16 %v159, %v159
  %v176 = vpack.c.b16 %v160, %v160
  %v177 = vpack.c.b16 %v161, %v161
  %v178 = vpack.c.b16 %v162, %v162
  %v179 = vpack.c.b16 %v163, %v163
  %v180 = vpack.c.b16 %v164, %v164
  %v181 = vpack.c.b16 %v165, %v165
  %v182 = vpack.c.b16 %v166, %v166
  %v183 = vpack.c.b16 %v167, %v167
  %v184 = vpack.c.b16 %v168, %v168
  %v185 = vpack.c.b16 %v169, %v169
  %v186 = vpack.c.b16 %v170, %v170
  %v187 = vpack.c.b16 %v171, %v171
  %204 = vst [vmem:[%s3] sm:$0xf] %v172
  %205 = vst [vmem:[%s3 + $0x4] sm:$0xf] %v173
  %206 = vst [vmem:[%s3 + $0x8] sm:$0xf] %v174
  %207 = vst [vmem:[%s3 + $0xc] sm:$0xf] %v175
  %208 = vst [vmem:[%s3 + $0x10] sm:$0xf] %v176
  %209 = vst [vmem:[%s3 + $0x14] sm:$0xf] %v177
  %210 = vst [vmem:[%s3 + $0x18] sm:$0xf] %v178
  %211 = vst [vmem:[%s3 + $0x1c] sm:$0xf] %v179
  %212 = vst [vmem:[%s3 + $0x20] sm:$0xf] %v180
  %213 = vst [vmem:[%s3 + $0x24] sm:$0xf] %v181
  %214 = vst [vmem:[%s3 + $0x28] sm:$0xf] %v182
  %215 = vst [vmem:[%s3 + $0x2c] sm:$0xf] %v183
  %216 = vst [vmem:[%s3 + $0x30] sm:$0xf] %v184
  %217 = vst [vmem:[%s3 + $0x34] sm:$0xf] %v185
  %218 = vst [vmem:[%s3 + $0x38] sm:$0xf] %v186
  %219 = vst [vmem:[%s3 + $0x3c] sm:$0xf] %v187
  // Predicated region
  $region14: #{_lambda_.28} parent=0 // pred_check
    _
  $region15: #{_lambda_.28} parent=0 // pred_check_branch
    %221 = sbr.rel (0) target = $region17
  $region16: #{_lambda_.28} parent=0 // pred_region
    _
  $region17: #{_lambda_.28} parent=0 // pred_fallthru
    _
  // Predicated region
  $region18: #{_lambda_.28} parent=0 // pred_check
    _
  $region19: #{_lambda_.28} parent=0 // pred_check_branch
    %223 = sbr.rel (0) target = $region21
  $region20: #{_lambda_.28} parent=0 // pred_region
    _
  $region21: #{_lambda_.28} parent=0 // pred_fallthru
    _

// kernel: _lambda_.29
$region0: #{_lambda_.29}
  #allocation0 [shape = 'u32[]', space=smem, size = 0x4, offset = 0x4, fixed_abs, tag = 'smem constant byte address 0x4 - core index']
  #allocation1 [shape = 'u32[144,128]{1,0:T(1,128)}', space=vmem, size = 0x12000, scoped, tag = 'internal scratch']
  #allocation2 [shape = 'f32[128,128]{1,0:T(8,128)}', space=vmem, size = 0x10000, scoped, tag = 'scratch operand']
  %s0 = inlined_call_operand.vmem [shape: bf16[128,1024], index: 0, kind: input, shape index: {}]
  %s1 = inlined_call_operand.vmem [shape: bf16[1024,128], index: 1, kind: input, shape index: {}]
  %s2 = inlined_call_operand.vmem [shape: f32[1,128], index: 2, kind: input, shape index: {}]
  %s3 = inlined_call_operand.vmem [shape: bf16[128,128], index: 3, kind: output, shape index: {0}]
  %s4 = inlined_call_operand.vmem [shape: f32[1,8,128], index: 4, kind: output, shape index: {1}]
  %5 = xla_tuple %s3, %s4
  %s6 = sld [smem:[#allocation0]]
  $region84: #{_lambda_.29} parent=0
    _
  %s8 = ssub.s32 1, %s6
  %s9 = scalar_select 0, %s8, %s6
  $region1: #{_lambda_.29} parent=0
    #allocation3 [shape = 'u8[262144]{0}', space=vmem, size = 0x40000, scoped, tag = 'input window, operand 0']
    loop: start=0, step=1, limit=4
    $region2: #{_lambda_.29} parent=1 // loop_pre_header
      _
    $region3: #{_lambda_.29} parent=1 // loop_header
      %s11 = sphi 0, %s15
      %p12 = scmp.ge.s32.totalorder %s11, 4
      %s18 = sphi 0, %s37
      %s19 = sphi 0, %s33
      %s20 = sphi 0, %s29
      %s21 = sphi 0, %s18
      %s22 = sphi 0, %s19
      %s23 = sphi 0, %s20
      %s24 = sphi 0, %s21
      %s25 = sphi 0, %s22
      %s26 = sphi 0, %s23
      %s42 = sphi 0, %s44
      %s45 = sphi 0, %s42
      %s46 = sphi 0, %s45
      %s62 = sphi 0, %s46
      %s70 = sphi 0, %s72
      %s73 = sphi 0, %s70
      %s74 = sphi 0, %s73
      %s90 = sphi 0, %s74
      %s96 = sphi 0, %s98
      %s99 = sphi 0, %s96
      %s100 = sphi 0, %s99
      %s116 = sphi 0, %s100
      %s124 = sphi 0, %s126
      %s127 = sphi 0, %s124
      %s128 = sphi 0, %s127
      %s144 = sphi 0, %s128
      %s152 = sphi 0, %s154
      %s155 = sphi 0, %s152
      %s156 = sphi 0, %s155
      %s172 = sphi 0, %s156
    $region4: #{_lambda_.29} parent=1 // loop_header_branch
      %14 = sbr.rel (%p12) target = $region8
    $region5: #{_lambda_.29} parent=1 // loop_body
      %s16 = ssub.s32 %s11, 1
      %s17 = ssub.s32 %s11, 2
      %s27 = sadd.s32 1, %s20
      %p28 = scmp.ge.s32.totalorder %s27, 2
      %s29 = scalar_select %p28, 0, %s27
      %s30 = sadd.s32 1, %s19
      %s31 = scalar_select %p28, %s30, %s19
      %p32 = scmp.ge.s32.totalorder %s31, 1
      %s33 = scalar_select %p32, 0, %s31
      %s34 = sadd.s32 1, %s18
      %s35 = scalar_select %p32, %s34, %s18
      %p36 = scmp.ge.s32.totalorder %s35, 1
      %s37 = scalar_select %p36, 0, %s35
      %s38 = ssub.s32 %s18, %s37
      %s39 = ssub.s32 %s20, %s29
      %s40 = sor.u32 %s38, %s39
      %p41 = scmp.eq.s32.totalorder %s40, 0
      %s43 = sadd.s32 %s42, 1
      %s44 = scalar_select %p41, %s42, %s43
      %p47 = pneg %p41
      %p48 = scmp.eq.s32.totalorder %s11, 1
      %p49 = por %p47, %p48
      %p50 = scmp.ne.s32.totalorder %s42, %s45
      %p51 = scmp.eq.s32.totalorder %s11, 0
      %p52 = por %p50, %p51
      %p53 = scmp.ne.s32.totalorder %s42, %s45
      %p54 = scmp.eq.s32.totalorder %s16, 1
      %p55 = por %p53, %p54
      %p56 = scmp.ne.s32.totalorder %s45, %s46
      %p57 = scmp.eq.s32.totalorder %s16, 0
      %p58 = por %p56, %p57
      %p59 = scmp.ne.s32.totalorder %s45, %s46
      %p60 = scmp.eq.s32.totalorder %s17, 1
      %p61 = por %p59, %p60
      %p63 = scmp.ne.s32.totalorder %s46, %s62
      %p64 = scmp.eq.s32.totalorder %s17, 0
      %p65 = por %p63, %p64
      %s66 = ssub.s32 %s20, %s29
      %s67 = ssub.s32 %s19, %s33
      %s68 = sor.u32 %s66, %s67
      %p69 = scmp.eq.s32.totalorder %s68, 0
      %s71 = sadd.s32 %s70, 1
      %s72 = scalar_select %p69, %s70, %s71
      %p75 = pneg %p69
      %p76 = scmp.eq.s32.totalorder %s11, 1
      %p77 = por %p75, %p76
      %p78 = scmp.ne.s32.totalorder %s70, %s73
      %p79 = scmp.eq.s32.totalorder %s11, 0
      %p80 = por %p78, %p79
      %p81 = scmp.ne.s32.totalorder %s70, %s73
      %p82 = scmp.eq.s32.totalorder %s16, 1
      %p83 = por %p81, %p82
      %p84 = scmp.ne.s32.totalorder %s73, %s74
      %p85 = scmp.eq.s32.totalorder %s16, 0
      %p86 = por %p84, %p85
      %p87 = scmp.ne.s32.totalorder %s73, %s74
      %p88 = scmp.eq.s32.totalorder %s17, 1
      %p89 = por %p87, %p88
      %p91 = scmp.ne.s32.totalorder %s74, %s90
      %p92 = scmp.eq.s32.totalorder %s17, 0
      %p93 = por %p91, %p92
      %s94 = ssub.s32 %s19, %s33
      %p95 = scmp.eq.s32.totalorder %s94, 0
      %s97 = sadd.s32 %s96, 1
      %s98 = scalar_select %p95, %s96, %s97
      %p101 = pneg %p95
      %p102 = scmp.eq.s32.totalorder %s11, 1
      %p103 = por %p101, %p102
      %p104 = scmp.ne.s32.totalorder %s96, %s99
      %p105 = scmp.eq.s32.totalorder %s11, 0
      %p106 = por %p104, %p105
      %p107 = scmp.ne.s32.totalorder %s96, %s99
      %p108 = scmp.eq.s32.totalorder %s16, 1
      %p109 = por %p107, %p108
      %p110 = scmp.ne.s32.totalorder %s99, %s100
      %p111 = scmp.eq.s32.totalorder %s16, 0
      %p112 = por %p110, %p111
      %p113 = scmp.ne.s32.totalorder %s99, %s100
      %p114 = scmp.eq.s32.totalorder %s17, 1
      %p115 = por %p113, %p114
      %p117 = scmp.ne.s32.totalorder %s100, %s116
      %p118 = scmp.eq.s32.totalorder %s17, 0
      %p119 = por %p117, %p118
      %s120 = ssub.s32 %s18, %s37
      %s121 = ssub.s32 %s19, %s33
      %s122 = sor.u32 %s120, %s121
      %p123 = scmp.eq.s32.totalorder %s122, 0
      %s125 = sadd.s32 %s124, 1
      %s126 = scalar_select %p123, %s124, %s125
      %p129 = pneg %p123
      %p130 = scmp.eq.s32.totalorder %s11, 1
      %p131 = por %p129, %p130
      %p132 = scmp.ne.s32.totalorder %s124, %s127
      %p133 = scmp.eq.s32.totalorder %s11, 0
      %p134 = por %p132, %p133
      %p135 = scmp.ne.s32.totalorder %s124, %s127
      %p136 = scmp.eq.s32.totalorder %s16, 1
      %p137 = por %p135, %p136
      %p138 = scmp.ne.s32.totalorder %s127, %s128
      %p139 = scmp.eq.s32.totalorder %s16, 0
      %p140 = por %p138, %p139
      %p141 = scmp.ne.s32.totalorder %s127, %s128
      %p142 = scmp.eq.s32.totalorder %s17, 1
      %p143 = por %p141, %p142
      %p145 = scmp.ne.s32.totalorder %s128, %s144
      %p146 = scmp.eq.s32.totalorder %s17, 0
      %p147 = por %p145, %p146
      %s148 = ssub.s32 %s18, %s37
      %s149 = ssub.s32 %s19, %s33
      %s150 = sor.u32 %s148, %s149
      %p151 = scmp.eq.s32.totalorder %s150, 0
      %s153 = sadd.s32 %s152, 1
      %s154 = scalar_select %p151, %s152, %s153
      %p157 = pneg %p151
      %p158 = scmp.eq.s32.totalorder %s11, 1
      %p159 = por %p157, %p158
      %p160 = scmp.ne.s32.totalorder %s152, %s155
      %p161 = scmp.eq.s32.totalorder %s11, 0
      %p162 = por %p160, %p161
      %p163 = scmp.ne.s32.totalorder %s152, %s155
      %p164 = scmp.eq.s32.totalorder %s16, 1
      %p165 = por %p163, %p164
      %p166 = scmp.ne.s32.totalorder %s155, %s156
      %p167 = scmp.eq.s32.totalorder %s16, 0
      %p168 = por %p166, %p167
      %p169 = scmp.ne.s32.totalorder %s155, %s156
      %p170 = scmp.eq.s32.totalorder %s17, 1
      %p171 = por %p169, %p170
      %p173 = scmp.ne.s32.totalorder %s156, %s172
      %p174 = scmp.eq.s32.totalorder %s17, 0
      %p175 = por %p173, %p174
      %p176 = scmp.le.s32.totalorder 1, %s11
      %p177 = scmp.lt.s32.totalorder %s11, 3
      %p178 = pnand %p176, %p177
      %p179 = pneg %p178
      // Predicated region
      $region9: #{_lambda_.29} parent=5 // pred_check
        _
      $region10: #{_lambda_.29} parent=5 // pred_check_branch
        %181 = sbr.rel (%p178) target = $region12
      $region11: #{_lambda_.29} parent=5 // pred_region
        %s182 = ssub.s32 %s11, 1
        // Predicated region
        $region13: #{_lambda_.29} parent=11 // pred_check
          %p183 = pneg %p112
        $region14: #{_lambda_.29} parent=11 // pred_check_branch
          %185 = sbr.rel (%p183) target = $region16
        $region15: #{_lambda_.29} parent=11 // pred_region
          %p186 = scmp.lt.s32.totalorder %s22, 0
          %s187 = scalar_select %p186, %s22, 0
          %s188 = scalar_lea.vmem %s2, %s187
        $region16: #{_lambda_.29} parent=11 // pred_fallthru
          _
      $region12: #{_lambda_.29} parent=5 // pred_fallthru
        _
      %p189 = scmp.lt.s32.totalorder %s11, 2
      // Predicated region
      $region17: #{_lambda_.29} parent=5 // pred_check
        %p190 = pneg %p189
      $region18: #{_lambda_.29} parent=5 // pred_check_branch
        %192 = sbr.rel (%p190) target = $region20
      $region19: #{_lambda_.29} parent=5 // pred_region
        // Predicated region
        $region21: #{_lambda_.29} parent=19 // pred_check
          %p193 = pneg %p52
        $region22: #{_lambda_.29} parent=19 // pred_check_branch
          %195 = sbr.rel (%p193) target = $region24
        $region23: #{_lambda_.29} parent=19 // pred_region
          %s196 = sand.u32 %s42, 1
          %s197 = sand.u32 %s42, 1
          %s198 = smul.addr %s197, 256
          %s199 = scalar_lea.vmem [#allocation3], %s198
          %s200 = smul.u32 16, %s18
          %s201 = smul.u32 4, %s20
          %s202 = smul.addr %s200, 8
          %s203 = sadd.s32 %s201, %s202
          %s204 = smul.addr %s203, 4
          %s205 = scalar_lea.vmem %s0, %s204
          // Predicated region
          $region25: #{_lambda_.29} parent=23 // pred_check
            _
          $region26: #{_lambda_.29} parent=23 // pred_check_branch
            %207 = sbr.rel (0) target = $region28
          $region27: #{_lambda_.29} parent=23 // pred_region
            // Predicated region
            $region29: #{_lambda_.29} parent=27 // pred_check
              _
            $region30: #{_lambda_.29} parent=27 // pred_check_branch
              %209 = sbr.rel (0) target = $region32
            $region31: #{_lambda_.29} parent=27 // pred_region
              loop: start=0, step=1, limit=1
              $region33: #{_lambda_.29} parent=31 // loop_pre_header
                _
              $region34: #{_lambda_.29} parent=31 // loop_header
                %s211 = sphi 0, %s215
                %p212 = scmp.ge.s32.totalorder %s211, 1
                %s216 = sphi %s205, %s205
                %s217 = sphi %s199, %s199
              $region35: #{_lambda_.29} parent=31 // loop_header_branch
                %214 = sbr.rel (%p212) target = $region39
              $region36: #{_lambda_.29} parent=31 // loop_body
                %v218 = vld [vmem:[%s216] sm:$0xff]
                %219 = vst [vmem:[%s217] sm:$0xff] %v218
                %v220 = vld [vmem:[%s216 + $0x8] sm:$0xff]
                %221 = vst [vmem:[%s217 + $0x8] sm:$0xff] %v220
                %v222 = vld [vmem:[%s216 + $0x20] sm:$0xff]
                %223 = vst [vmem:[%s217 + $0x10] sm:$0xff] %v222
                %v224 = vld [vmem:[%s216 + $0x28] sm:$0xff]
                %225 = vst [vmem:[%s217 + $0x18] sm:$0xff] %v224
                %v226 = vld [vmem:[%s216 + $0x40] sm:$0xff]
                %227 = vst [vmem:[%s217 + $0x20] sm:$0xff] %v226
                %v228 = vld [vmem:[%s216 + $0x48] sm:$0xff]
                %229 = vst [vmem:[%s217 + $0x28] sm:$0xff] %v228
                %v230 = vld [vmem:[%s216 + $0x60] sm:$0xff]
                %231 = vst [vmem:[%s217 + $0x30] sm:$0xff] %v230
                %v232 = vld [vmem:[%s216 + $0x68] sm:$0xff]
                %233 = vst [vmem:[%s217 + $0x38] sm:$0xff] %v232
                %v234 = vld [vmem:[%s216 + $0x80] sm:$0xff]
                %235 = vst [vmem:[%s217 + $0x40] sm:$0xff] %v234
                %v236 = vld [vmem:[%s216 + $0x88] sm:$0xff]
                %237 = vst [vmem:[%s217 + $0x48] sm:$0xff] %v236
                %v238 = vld [vmem:[%s216 + $0xa0] sm:$0xff]
                %239 = vst [vmem:[%s217 + $0x50] sm:$0xff] %v238
                %v240 = vld [vmem:[%s216 + $0xa8] sm:$0xff]
                %241 = vst [vmem:[%s217 + $0x58] sm:$0xff] %v240
                %v242 = vld [vmem:[%s216 + $0xc0] sm:$0xff]
                %243 = vst [vmem:[%s217 + $0x60] sm:$0xff] %v242
                %v244 = vld [vmem:[%s216 + $0xc8] sm:$0xff]
                %245 = vst [vmem:[%s217 + $0x68] sm:$0xff] %v244
                %v246 = vld [vmem:[%s216 + $0xe0] sm:$0xff]
                %247 = vst [vmem:[%s217 + $0x70] sm:$0xff] %v246
                %v248 = vld [vmem:[%s216 + $0xe8] sm:$0xff]
                %249 = vst [vmem:[%s217 + $0x78] sm:$0xff] %v248
                %v250 = vld [vmem:[%s216 + $0x100] sm:$0xff]
                %251 = vst [vmem:[%s217 + $0x80] sm:$0xff] %v250
                %v252 = vld [vmem:[%s216 + $0x108] sm:$0xff]
                %253 = vst [vmem:[%s217 + $0x88] sm:$0xff] %v252
                %v254 = vld [vmem:[%s216 + $0x120] sm:$0xff]
                %255 = vst [vmem:[%s217 + $0x90] sm:$0xff] %v254
                %v256 = vld [vmem:[%s216 + $0x128] sm:$0xff]
                %257 = vst [vmem:[%s217 + $0x98] sm:$0xff] %v256
                %v258 = vld [vmem:[%s216 + $0x140] sm:$0xff]
                %259 = vst [vmem:[%s217 + $0xa0] sm:$0xff] %v258
                %v260 = vld [vmem:[%s216 + $0x148] sm:$0xff]
                %261 = vst [vmem:[%s217 + $0xa8] sm:$0xff] %v260
                %v262 = vld [vmem:[%s216 + $0x160] sm:$0xff]
                %263 = vst [vmem:[%s217 + $0xb0] sm:$0xff] %v262
                %v264 = vld [vmem:[%s216 + $0x168] sm:$0xff]
                %265 = vst [vmem:[%s217 + $0xb8] sm:$0xff] %v264
                %v266 = vld [vmem:[%s216 + $0x180] sm:$0xff]
                %267 = vst [vmem:[%s217 + $0xc0] sm:$0xff] %v266
                %v268 = vld [vmem:[%s216 + $0x188] sm:$0xff]
                %269 = vst [vmem:[%s217 + $0xc8] sm:$0xff] %v268
                %v270 = vld [vmem:[%s216 + $0x1a0] sm:$0xff]
                %271 = vst [vmem:[%s217 + $0xd0] sm:$0xff] %v270
                %v272 = vld [vmem:[%s216 + $0x1a8] sm:$0xff]
                %273 = vst [vmem:[%s217 + $0xd8] sm:$0xff] %v272
                %v274 = vld [vmem:[%s216 + $0x1c0] sm:$0xff]
                %275 = vst [vmem:[%s217 + $0xe0] sm:$0xff] %v274
                %v276 = vld [vmem:[%s216 + $0x1c8] sm:$0xff]
                %277 = vst [vmem:[%s217 + $0xe8] sm:$0xff] %v276
                %v278 = vld [vmem:[%s216 + $0x1e0] sm:$0xff]
                %279 = vst [vmem:[%s217 + $0xf0] sm:$0xff] %v278
                %v280 = vld [vmem:[%s216 + $0x1e8] sm:$0xff]
                %281 = vst [vmem:[%s217 + $0xf8] sm:$0xff] %v280
              $region37: #{_lambda_.29} parent=31 // loop_footer
                %s215 = sadd.s32 1, %s211
              $region38: #{_lambda_.29} parent=31 // loop_footer_branch
                %210 = sbr.rel target = $region34
              $region39: #{_lambda_.29} parent=31 // loop_exit
                _
            $region32: #{_lambda_.29} parent=27 // pred_fallthru
              _
            // Predicated region
            $region40: #{_lambda_.29} parent=27 // pred_check
              _
            $region41: #{_lambda_.29} parent=27 // pred_check_branch
              %283 = sbr.rel target = $region43
            $region42: #{_lambda_.29} parent=27 // pred_region
              _
            $region43: #{_lambda_.29} parent=27 // pred_fallthru
              _
          $region28: #{_lambda_.29} parent=23 // pred_fallthru
            _
          %284 = vnop
        $region24: #{_lambda_.29} parent=19 // pred_fallthru
          _
        // Predicated region
        $region44: #{_lambda_.29} parent=19 // pred_check
          %p285 = pneg %p80
        $region45: #{_lambda_.29} parent=19 // pred_check_branch
          %287 = sbr.rel (%p285) target = $region47
        $region46: #{_lambda_.29} parent=19 // pred_region
          %s288 = smul.u32 64, %s20
          %p289 = scmp.lt.s32.totalorder %s288, 127
          %s290 = scalar_select %p289, %s288, 127
          %p291 = scmp.lt.s32.totalorder %s19, 0
          %s292 = scalar_select %p291, %s19, 0
          %s293 = sadd.s32 %s292, %s290
          %s294 = smul.addr %s293, 4
          %s295 = scalar_lea.vmem %s1, %s294
          %s296 = smul.u32 64, %s20
        $region47: #{_lambda_.29} parent=19 // pred_fallthru
          _
      $region20: #{_lambda_.29} parent=5 // pred_fallthru
        _
      %p297 = scmp.le.s32.totalorder 1, %s11
      %p298 = scmp.lt.s32.totalorder %s11, 3
      %p299 = pnand %p297, %p298
      %p300 = pneg %p299
      // Predicated region
      $region48: #{_lambda_.29} parent=5 // pred_check
        _
      $region49: #{_lambda_.29} parent=5 // pred_check_branch
        %302 = sbr.rel (%p299) target = $region51
      $region50: #{_lambda_.29} parent=5 // pred_region
        %s303 = ssub.s32 %s11, 1
        %s304 = sand.u32 %s45, 1
        %s305 = sand.u32 %s45, 1
        %s306 = smul.addr %s305, 256
        %s307 = scalar_lea.vmem [#allocation3], %s306
        // Predicated region
        $region52: #{_lambda_.29} parent=50 // pred_check
          %p308 = pneg %p58
        $region53: #{_lambda_.29} parent=50 // pred_check_branch
          %310 = sbr.rel (%p308) target = $region55
        $region54: #{_lambda_.29} parent=50 // pred_region
          _
        $region55: #{_lambda_.29} parent=50 // pred_fallthru
          _
        %s311 = sand.u32 %s45, 1
        %s312 = sand.u32 %s45, 1
        %s313 = smul.addr %s312, 256
        %s314 = scalar_lea.vmem [#allocation3], %s313
        %p315 = pneg %p58
        %p316 = pneg %p55
        %s317 = smul.u32 64, %s23
        %p318 = scmp.lt.s32.totalorder %s317, 127
        %s319 = scalar_select %p318, %s317, 127
        %p320 = scmp.lt.s32.totalorder %s22, 0
        %s321 = scalar_select %p320, %s22, 0
        %s322 = sadd.s32 %s321, %s319
        %s323 = smul.addr %s322, 4
        %s324 = scalar_lea.vmem %s1, %s323
        %p325 = pneg %p86
        %p326 = pneg %p83
        %p327 = scmp.lt.s32.totalorder %s22, 0
        %s328 = scalar_select %p327, %s22, 0
        %s329 = scalar_lea.vmem %s2, %s328
        %p330 = pneg %p112
        %p331 = pneg %p109
        %p332 = pneg %p140
        %p333 = pneg %p137
        %s334 = smul.u32 16, %s21
        %p335 = scmp.lt.s32.totalorder %s334, 15
        %s336 = scalar_select %p335, %s334, 15
        %p337 = scmp.lt.s32.totalorder %s22, 0
        %s338 = scalar_select %p337, %s22, 0
        %s339 = sadd.s32 %s338, %s336
        %s340 = smul.addr %s339, 4
        %s341 = scalar_lea.vmem %s3, %s340
        %p342 = pneg %p168
        %p343 = pneg %p165
        %p344 = scmp.lt.s32.totalorder %s21, 0
        %s345 = scalar_select %p344, %s21, 0
        %p346 = scmp.lt.s32.totalorder %s22, 0
        %s347 = scalar_select %p346, %s22, 0
        %s348 = sadd.s32 %s347, %s345
        %s349 = smul.addr %s348, 8
        %s350 = scalar_lea.vmem %s4, %s349
        %s351 = smul.u32 16, %s21
        %s352 = smul.u32 4, %s23
        %s353 = smul.u32 64, %s23
        %p354 = scmp.lt.s32.totalorder %s353, 127
        %s355 = scalar_select %p354, %s353, 127
        %p356 = scmp.lt.s32.totalorder %s22, 0
        %s357 = scalar_select %p356, %s22, 0
        %s358 = sadd.s32 %s357, %s355
        %s359 = smul.addr %s358, 4
        %s360 = scalar_lea.vmem %s1, %s359
        %s361 = smul.u32 64, %s23
        %p362 = scmp.lt.s32.totalorder %s22, 0
        %s363 = scalar_select %p362, %s22, 0
        %s364 = scalar_lea.vmem %s2, %s363
        %s365 = smul.u32 16, %s21
        %p366 = scmp.lt.s32.totalorder %s365, 15
        %s367 = scalar_select %p366, %s365, 15
        %p368 = scmp.lt.s32.totalorder %s22, 0
        %s369 = scalar_select %p368, %s22, 0
        %s370 = sadd.s32 %s369, %s367
        %s371 = smul.addr %s370, 4
        %s372 = scalar_lea.vmem %s3, %s371
        %s373 = smul.u32 16, %s21
        %p374 = scmp.lt.s32.totalorder %s21, 0
        %s375 = scalar_select %p374, %s21, 0
        %p376 = scmp.lt.s32.totalorder %s22, 0
        %s377 = scalar_select %p376, %s22, 0
        %s378 = sadd.s32 %s377, %s375
        %s379 = smul.addr %s378, 8
        %s380 = scalar_lea.vmem %s4, %s379
        %p382 = scmp.eq.s32.totalorder %s23, 0
        // Predicated region
        $region56: #{_lambda_.29} parent=50 // pred_check
          %p383 = pneg %p382
        $region57: #{_lambda_.29} parent=50 // pred_check_branch
          %385 = sbr.rel (%p383) target = $region59
        $region58: #{_lambda_.29} parent=50 // pred_region
          %386 = vst [vmem:[#allocation2] sm:$0xff] 0.0
          %387 = vst [vmem:[#allocation2 + $0x8] sm:$0xff] 0.0
          %388 = vst [vmem:[#allocation2 + $0x10] sm:$0xff] 0.0
          %389 = vst [vmem:[#allocation2 + $0x18] sm:$0xff] 0.0
          %390 = vst [vmem:[#allocation2 + $0x20] sm:$0xff] 0.0
          %391 = vst [vmem:[#allocation2 + $0x28] sm:$0xff] 0.0
          %392 = vst [vmem:[#allocation2 + $0x30] sm:$0xff] 0.0
          %393 = vst [vmem:[#allocation2 + $0x38] sm:$0xff] 0.0
          %394 = vst [vmem:[#allocation2 + $0x40] sm:$0xff] 0.0
          %395 = vst [vmem:[#allocation2 + $0x48] sm:$0xff] 0.0
          %396 = vst [vmem:[#allocation2 + $0x50] sm:$0xff] 0.0
          %397 = vst [vmem:[#allocation2 + $0x58] sm:$0xff] 0.0
          %398 = vst [vmem:[#allocation2 + $0x60] sm:$0xff] 0.0
          %399 = vst [vmem:[#allocation2 + $0x68] sm:$0xff] 0.0
          %400 = vst [vmem:[#allocation2 + $0x70] sm:$0xff] 0.0
          %401 = vst [vmem:[#allocation2 + $0x78] sm:$0xff] 0.0
        $region59: #{_lambda_.29} parent=50 // pred_fallthru
          _
        %v402 = vld [vmem:[#allocation2] sm:$0xff]
        %v403 = vld [vmem:[#allocation2 + $0x8] sm:$0xff]
        %v404 = vld [vmem:[#allocation2 + $0x10] sm:$0xff]
        %v405 = vld [vmem:[#allocation2 + $0x18] sm:$0xff]
        %v406 = vld [vmem:[#allocation2 + $0x20] sm:$0xff]
        %v407 = vld [vmem:[#allocation2 + $0x28] sm:$0xff]
        %v408 = vld [vmem:[#allocation2 + $0x30] sm:$0xff]
        %v409 = vld [vmem:[#allocation2 + $0x38] sm:$0xff]
        %v410 = vld [vmem:[#allocation2 + $0x40] sm:$0xff]
        %v411 = vld [vmem:[#allocation2 + $0x48] sm:$0xff]
        %v412 = vld [vmem:[#allocation2 + $0x50] sm:$0xff]
        %v413 = vld [vmem:[#allocation2 + $0x58] sm:$0xff]
        %v414 = vld [vmem:[#allocation2 + $0x60] sm:$0xff]
        %v415 = vld [vmem:[#allocation2 + $0x68] sm:$0xff]
        %v416 = vld [vmem:[#allocation2 + $0x70] sm:$0xff]
        %v417 = vld [vmem:[#allocation2 + $0x78] sm:$0xff]
        %v418 = vld [vmem:[%s307] sm:$0xff]
        %v419 = vld [vmem:[%s307 + $0x8] sm:$0xff]
        %v420 = vld [vmem:[%s307 + $0x10] sm:$0xff]
        %v421 = vld [vmem:[%s307 + $0x18] sm:$0xff]
        %v422 = vld [vmem:[%s307 + $0x20] sm:$0xff]
        %v423 = vld [vmem:[%s307 + $0x28] sm:$0xff]
        %v424 = vld [vmem:[%s307 + $0x30] sm:$0xff]
        %v425 = vld [vmem:[%s307 + $0x38] sm:$0xff]
        %v426 = vld [vmem:[%s307 + $0x40] sm:$0xff]
        %v427 = vld [vmem:[%s307 + $0x48] sm:$0xff]
        %v428 = vld [vmem:[%s307 + $0x50] sm:$0xff]
        %v429 = vld [vmem:[%s307 + $0x58] sm:$0xff]
        %v430 = vld [vmem:[%s307 + $0x60] sm:$0xff]
        %v431 = vld [vmem:[%s307 + $0x68] sm:$0xff]
        %v432 = vld [vmem:[%s307 + $0x70] sm:$0xff]
        %v433 = vld [vmem:[%s307 + $0x78] sm:$0xff]
        %v434 = vld [vmem:[%s307 + $0x80] sm:$0xff]
        %v435 = vld [vmem:[%s307 + $0x88] sm:$0xff]
        %v436 = vld [vmem:[%s307 + $0x90] sm:$0xff]
        %v437 = vld [vmem:[%s307 + $0x98] sm:$0xff]
        %v438 = vld [vmem:[%s307 + $0xa0] sm:$0xff]
        %v439 = vld [vmem:[%s307 + $0xa8] sm:$0xff]
        %v440 = vld [vmem:[%s307 + $0xb0] sm:$0xff]
        %v441 = vld [vmem:[%s307 + $0xb8] sm:$0xff]
        %v442 = vld [vmem:[%s307 + $0xc0] sm:$0xff]
        %v443 = vld [vmem:[%s307 + $0xc8] sm:$0xff]
        %v444 = vld [vmem:[%s307 + $0xd0] sm:$0xff]
        %v445 = vld [vmem:[%s307 + $0xd8] sm:$0xff]
        %v446 = vld [vmem:[%s307 + $0xe0] sm:$0xff]
        %v447 = vld [vmem:[%s307 + $0xe8] sm:$0xff]
        %v448 = vld [vmem:[%s307 + $0xf0] sm:$0xff]
        %v449 = vld [vmem:[%s307 + $0xf8] sm:$0xff]
        %v450 = vld [vmem:[%s360] sm:$0xf]
        %v451 = vld [vmem:[%s360 + $0x4] sm:$0xf]
        %v452 = vld [vmem:[%s360 + $0x8] sm:$0xf]
        %v453 = vld [vmem:[%s360 + $0xc] sm:$0xf]
        %v454 = vld [vmem:[%s360 + $0x10] sm:$0xf]
        %v455 = vld [vmem:[%s360 + $0x14] sm:$0xf]
        %v456 = vld [vmem:[%s360 + $0x18] sm:$0xf]
        %v457 = vld [vmem:[%s360 + $0x1c] sm:$0xf]
        %v458 = vld [vmem:[%s360 + $0x20] sm:$0xf]
        %v459 = vld [vmem:[%s360 + $0x24] sm:$0xf]
        %v460 = vld [vmem:[%s360 + $0x28] sm:$0xf]
        %v461 = vld [vmem:[%s360 + $0x2c] sm:$0xf]
        %v462 = vld [vmem:[%s360 + $0x30] sm:$0xf]
        %v463 = vld [vmem:[%s360 + $0x34] sm:$0xf]
        %v464 = vld [vmem:[%s360 + $0x38] sm:$0xf]
        %v465 = vld [vmem:[%s360 + $0x3c] sm:$0xf]
        %v466 = vld [vmem:[%s360 + $0x40] sm:$0xf]
        %v467 = vld [vmem:[%s360 + $0x44] sm:$0xf]
        %v468 = vld [vmem:[%s360 + $0x48] sm:$0xf]
        %v469 = vld [vmem:[%s360 + $0x4c] sm:$0xf]
        %v470 = vld [vmem:[%s360 + $0x50] sm:$0xf]
        %v471 = vld [vmem:[%s360 + $0x54] sm:$0xf]
        %v472 = vld [vmem:[%s360 + $0x58] sm:$0xf]
        %v473 = vld [vmem:[%s360 + $0x5c] sm:$0xf]
        %v474 = vld [vmem:[%s360 + $0x60] sm:$0xf]
        %v475 = vld [vmem:[%s360 + $0x64] sm:$0xf]
        %v476 = vld [vmem:[%s360 + $0x68] sm:$0xf]
        %v477 = vld [vmem:[%s360 + $0x6c] sm:$0xf]
        %v478 = vld [vmem:[%s360 + $0x70] sm:$0xf]
        %v479 = vld [vmem:[%s360 + $0x74] sm:$0xf]
        %v480 = vld [vmem:[%s360 + $0x78] sm:$0xf]
        %v481 = vld [vmem:[%s360 + $0x7c] sm:$0xf]
        %v482 = vld [vmem:[%s360 + $0x80] sm:$0xf]
        %v483 = vld [vmem:[%s360 + $0x84] sm:$0xf]
        %v484 = vld [vmem:[%s360 + $0x88] sm:$0xf]
        %v485 = vld [vmem:[%s360 + $0x8c] sm:$0xf]
        %v486 = vld [vmem:[%s360 + $0x90] sm:$0xf]
        %v487 = vld [vmem:[%s360 + $0x94] sm:$0xf]
        %v488 = vld [vmem:[%s360 + $0x98] sm:$0xf]
        %v489 = vld [vmem:[%s360 + $0x9c] sm:$0xf]
        %v490 = vld [vmem:[%s360 + $0xa0] sm:$0xf]
        %v491 = vld [vmem:[%s360 + $0xa4] sm:$0xf]
        %v492 = vld [vmem:[%s360 + $0xa8] sm:$0xf]
        %v493 = vld [vmem:[%s360 + $0xac] sm:$0xf]
        %v494 = vld [vmem:[%s360 + $0xb0] sm:$0xf]
        %v495 = vld [vmem:[%s360 + $0xb4] sm:$0xf]
        %v496 = vld [vmem:[%s360 + $0xb8] sm:$0xf]
        %v497 = vld [vmem:[%s360 + $0xbc] sm:$0xf]
        %v498 = vld [vmem:[%s360 + $0xc0] sm:$0xf]
        %v499 = vld [vmem:[%s360 + $0xc4] sm:$0xf]
        %v500 = vld [vmem:[%s360 + $0xc8] sm:$0xf]
        %v501 = vld [vmem:[%s360 + $0xcc] sm:$0xf]
        %v502 = vld [vmem:[%s360 + $0xd0] sm:$0xf]
        %v503 = vld [vmem:[%s360 + $0xd4] sm:$0xf]
        %v504 = vld [vmem:[%s360 + $0xd8] sm:$0xf]
        %v505 = vld [vmem:[%s360 + $0xdc] sm:$0xf]
        %v506 = vld [vmem:[%s360 + $0xe0] sm:$0xf]
        %v507 = vld [vmem:[%s360 + $0xe4] sm:$0xf]
        %v508 = vld [vmem:[%s360 + $0xe8] sm:$0xf]
        %v509 = vld [vmem:[%s360 + $0xec] sm:$0xf]
        %v510 = vld [vmem:[%s360 + $0xf0] sm:$0xf]
        %v511 = vld [vmem:[%s360 + $0xf4] sm:$0xf]
        %v512 = vld [vmem:[%s360 + $0xf8] sm:$0xf]
        %v513 = vld [vmem:[%s360 + $0xfc] sm:$0xf]
        %v546 = vunpack.c.l.b16 %v418
        %v547 = vunpack.c.h.b16 %v418
        %v548 = vunpack.c.l.b16 %v419
        %v549 = vunpack.c.h.b16 %v419
        %v550 = vunpack.c.l.b16 %v420
        %v551 = vunpack.c.h.b16 %v420
        %v552 = vunpack.c.l.b16 %v421
        %v553 = vunpack.c.h.b16 %v421
        %v554 = vunpack.c.l.b16 %v422
        %v555 = vunpack.c.h.b16 %v422
        %v556 = vunpack.c.l.b16 %v423
        %v557 = vunpack.c.h.b16 %v423
        %v558 = vunpack.c.l.b16 %v424
        %v559 = vunpack.c.h.b16 %v424
        %v560 = vunpack.c.l.b16 %v425
        %v561 = vunpack.c.h.b16 %v425
        %v562 = vunpack.c.l.b16 %v426
        %v563 = vunpack.c.h.b16 %v426
        %v564 = vunpack.c.l.b16 %v427
        %v565 = vunpack.c.h.b16 %v427
        %v566 = vunpack.c.l.b16 %v428
        %v567 = vunpack.c.h.b16 %v428
        %v568 = vunpack.c.l.b16 %v429
        %v569 = vunpack.c.h.b16 %v429
        %v570 = vunpack.c.l.b16 %v430
        %v571 = vunpack.c.h.b16 %v430
        %v572 = vunpack.c.l.b16 %v431
        %v573 = vunpack.c.h.b16 %v431
        %v574 = vunpack.c.l.b16 %v432
        %v575 = vunpack.c.h.b16 %v432
        %v576 = vunpack.c.l.b16 %v433
        %v577 = vunpack.c.h.b16 %v433
        %v578 = vunpack.c.l.b16 %v434
        %v579 = vunpack.c.h.b16 %v434
        %v580 = vunpack.c.l.b16 %v435
        %v581 = vunpack.c.h.b16 %v435
        %v582 = vunpack.c.l.b16 %v436
        %v583 = vunpack.c.h.b16 %v436
        %v584 = vunpack.c.l.b16 %v437
        %v585 = vunpack.c.h.b16 %v437
        %v586 = vunpack.c.l.b16 %v438
        %v587 = vunpack.c.h.b16 %v438
        %v588 = vunpack.c.l.b16 %v439
        %v589 = vunpack.c.h.b16 %v439
        %v590 = vunpack.c.l.b16 %v440
        %v591 = vunpack.c.h.b16 %v440
        %v592 = vunpack.c.l.b16 %v441
        %v593 = vunpack.c.h.b16 %v441
        %v594 = vunpack.c.l.b16 %v442
        %v595 = vunpack.c.h.b16 %v442
        %v596 = vunpack.c.l.b16 %v443
        %v597 = vunpack.c.h.b16 %v443
        %v598 = vunpack.c.l.b16 %v444
        %v599 = vunpack.c.h.b16 %v444
        %v600 = vunpack.c.l.b16 %v445
        %v601 = vunpack.c.h.b16 %v445
        %v602 = vunpack.c.l.b16 %v446
        %v603 = vunpack.c.h.b16 %v446
        %v604 = vunpack.c.l.b16 %v447
        %v605 = vunpack.c.h.b16 %v447
        %v606 = vunpack.c.l.b16 %v448
        %v607 = vunpack.c.h.b16 %v448
        %v608 = vunpack.c.l.b16 %v449
        %v609 = vunpack.c.h.b16 %v449
        %v610 = vpack.c.b16 %v550, %v546
        %v611 = vpack.c.b16 %v551, %v547
        %v612 = vpack.c.b16 %v552, %v548
        %v613 = vpack.c.b16 %v553, %v549
        %v614 = vpack.c.b16 %v558, %v554
        %v615 = vpack.c.b16 %v559, %v555
        %v616 = vpack.c.b16 %v560, %v556
        %v617 = vpack.c.b16 %v561, %v557
        %v618 = vpack.c.b16 %v566, %v562
        %v619 = vpack.c.b16 %v567, %v563
        %v620 = vpack.c.b16 %v568, %v564
        %v621 = vpack.c.b16 %v569, %v565
        %v622 = vpack.c.b16 %v574, %v570
        %v623 = vpack.c.b16 %v575, %v571
        %v624 = vpack.c.b16 %v576, %v572
        %v625 = vpack.c.b16 %v577, %v573
        %v626 = vpack.c.b16 %v582, %v578
        %v627 = vpack.c.b16 %v583, %v579
        %v628 = vpack.c.b16 %v584, %v580
        %v629 = vpack.c.b16 %v585, %v581
        %v630 = vpack.c.b16 %v590, %v586
        %v631 = vpack.c.b16 %v591, %v587
        %v632 = vpack.c.b16 %v592, %v588
        %v633 = vpack.c.b16 %v593, %v589
        %v634 = vpack.c.b16 %v598, %v594
        %v635 = vpack.c.b16 %v599, %v595
        %v636 = vpack.c.b16 %v600, %v596
        %v637 = vpack.c.b16 %v601, %v597
        %v638 = vpack.c.b16 %v606, %v602
        %v639 = vpack.c.b16 %v607, %v603
        %v640 = vpack.c.b16 %v608, %v604
        %v641 = vpack.c.b16 %v609, %v605
        %v738 = vunpack.c.l.b16 %v450
        %v739 = vunpack.c.l.b16 %v451
        %v740 = vunpack.c.l.b16 %v452
        %v741 = vunpack.c.l.b16 %v453
        %v742 = vunpack.c.l.b16 %v454
        %v743 = vunpack.c.l.b16 %v455
        %v744 = vunpack.c.l.b16 %v456
        %v745 = vunpack.c.l.b16 %v457
        %v746 = vunpack.c.l.b16 %v458
        %v747 = vunpack.c.l.b16 %v459
        %v748 = vunpack.c.l.b16 %v460
        %v749 = vunpack.c.l.b16 %v461
        %v750 = vunpack.c.l.b16 %v462
        %v751 = vunpack.c.l.b16 %v463
        %v752 = vunpack.c.l.b16 %v464
        %v753 = vunpack.c.l.b16 %v465
        %v754 = vunpack.c.l.b16 %v466
        %v755 = vunpack.c.l.b16 %v467
        %v756 = vunpack.c.l.b16 %v468
        %v757 = vunpack.c.l.b16 %v469
        %v758 = vunpack.c.l.b16 %v470
        %v759 = vunpack.c.l.b16 %v471
        %v760 = vunpack.c.l.b16 %v472
        %v761 = vunpack.c.l.b16 %v473
        %v762 = vunpack.c.l.b16 %v474
        %v763 = vunpack.c.l.b16 %v475
        %v764 = vunpack.c.l.b16 %v476
        %v765 = vunpack.c.l.b16 %v477
        %v766 = vunpack.c.l.b16 %v478
        %v767 = vunpack.c.l.b16 %v479
        %v768 = vunpack.c.l.b16 %v480
        %v769 = vunpack.c.l.b16 %v481
        %v770 = vunpack.c.l.b16 %v482
        %v771 = vunpack.c.l.b16 %v483
        %v772 = vunpack.c.l.b16 %v484
        %v773 = vunpack.c.l.b16 %v485
        %v774 = vunpack.c.l.b16 %v486
        %v775 = vunpack.c.l.b16 %v487
        %v776 = vunpack.c.l.b16 %v488
        %v777 = vunpack.c.l.b16 %v489
        %v778 = vunpack.c.l.b16 %v490
        %v779 = vunpack.c.l.b16 %v491
        %v780 = vunpack.c.l.b16 %v492
        %v781 = vunpack.c.l.b16 %v493
        %v782 = vunpack.c.l.b16 %v494
        %v783 = vunpack.c.l.b16 %v495
        %v784 = vunpack.c.l.b16 %v496
        %v785 = vunpack.c.l.b16 %v497
        %v786 = vunpack.c.l.b16 %v498
        %v787 = vunpack.c.l.b16 %v499
        %v788 = vunpack.c.l.b16 %v500
        %v789 = vunpack.c.l.b16 %v501
        %v790 = vunpack.c.l.b16 %v502
        %v791 = vunpack.c.l.b16 %v503
        %v792 = vunpack.c.l.b16 %v504
        %v793 = vunpack.c.l.b16 %v505
        %v794 = vunpack.c.l.b16 %v506
        %v795 = vunpack.c.l.b16 %v507
        %v796 = vunpack.c.l.b16 %v508
        %v797 = vunpack.c.l.b16 %v509
        %v798 = vunpack.c.l.b16 %v510
        %v799 = vunpack.c.l.b16 %v511
        %v800 = vunpack.c.l.b16 %v512
        %v801 = vunpack.c.l.b16 %v513
        %v802 = vpack.c.b16 %v739, %v738
        %v803 = vpack.c.b16 %v741, %v740
        %v804 = vpack.c.b16 %v743, %v742
        %v805 = vpack.c.b16 %v745, %v744
        %v806 = vpack.c.b16 %v747, %v746
        %v807 = vpack.c.b16 %v749, %v748
        %v808 = vpack.c.b16 %v751, %v750
        %v809 = vpack.c.b16 %v753, %v752
        %v810 = vpack.c.b16 %v755, %v754
        %v811 = vpack.c.b16 %v757, %v756
        %v812 = vpack.c.b16 %v759, %v758
        %v813 = vpack.c.b16 %v761, %v760
        %v814 = vpack.c.b16 %v763, %v762
        %v815 = vpack.c.b16 %v765, %v764
        %v816 = vpack.c.b16 %v767, %v766
        %v817 = vpack.c.b16 %v769, %v768
        %v818 = vpack.c.b16 %v771, %v770
        %v819 = vpack.c.b16 %v773, %v772
        %v820 = vpack.c.b16 %v775, %v774
        %v821 = vpack.c.b16 %v777, %v776
        %v822 = vpack.c.b16 %v779, %v778
        %v823 = vpack.c.b16 %v781, %v780
        %v824 = vpack.c.b16 %v783, %v782
        %v825 = vpack.c.b16 %v785, %v784
        %v826 = vpack.c.b16 %v787, %v786
        %v827 = vpack.c.b16 %v789, %v788
        %v828 = vpack.c.b16 %v791, %v790
        %v829 = vpack.c.b16 %v793, %v792
        %v830 = vpack.c.b16 %v795, %v794
        %v831 = vpack.c.b16 %v797, %v796
        %v832 = vpack.c.b16 %v799, %v798
        %v833 = vpack.c.b16 %v801, %v800
        %866 = vmatprep.subr.bf16.mxu0 0
        %867 = vmatpush1.bf16.msra.mxu0 %v809
        %868 = vmatprep.subr.bf16.mxu0 0
        %869 = vmatpush1.bf16.msra.mxu0 %v808
        %870 = vmatprep.subr.bf16.mxu0 0
        %871 = vmatpush1.bf16.msra.mxu0 %v807
        %872 = vmatprep.subr.bf16.mxu0 0
        %873 = vmatpush1.bf16.msra.mxu0 %v806
        %874 = vmatprep.subr.bf16.mxu0 0
        %875 = vmatpush1.bf16.msra.mxu0 %v805
        %876 = vmatprep.subr.bf16.mxu0 0
        %877 = vmatpush1.bf16.msra.mxu0 %v804
        %878 = vmatprep.subr.bf16.mxu0 0
        %879 = vmatpush1.bf16.msra.mxu0 %v803
        %880 = vmatprep.subr.bf16.mxu0 0
        %881 = vmatpush1.bf16.msra.mxu0 %v802
        %882 = vmatprep.subr.bf16.mxu0 0
        %883 = vmatpush2.bf16.msra.mxu0 %v817
        %884 = vmatprep.subr.bf16.mxu0 0
        %885 = vmatpush2.bf16.msra.mxu0 %v816
        %886 = vmatprep.subr.bf16.mxu0 0
        %887 = vmatpush2.bf16.msra.mxu0 %v815
        %888 = vmatprep.subr.bf16.mxu0 0
        %889 = vmatpush2.bf16.msra.mxu0 %v814
        %890 = vmatprep.subr.bf16.mxu0 0
        %891 = vmatpush2.bf16.msra.mxu0 %v813
        %892 = vmatprep.subr.bf16.mxu0 0
        %893 = vmatpush2.bf16.msra.mxu0 %v812
        %894 = vmatprep.subr.bf16.mxu0 0
        %895 = vmatpush2.bf16.msra.mxu0 %v811
        %896 = vmatprep.subr.bf16.mxu0 0
        %897 = vmatpush2.bf16.msra.mxu0 %v810
        %898 = vmatprep.mubr.bf16.mxu0 %v611
        %899 = vmatmul.mubr.bf16.gmra.mxu0 %v610
        %v900 = vpop.f32.mrf.mxu0
        %v901 = vadd.f32 0.0, %v900
        %v902 = vpop.f32.mrf.mxu0
        %v903 = vpop.f32.mrf.mxu0
        %v904 = vadd.f32 0.0, %v903
        %v905 = vpop.f32.mrf.mxu0
        %906 = vmatprep.mubr.bf16.mxu0 %v615
        %907 = vmatmul.mubr.bf16.gmra.mxu0 %v614
        %v908 = vpop.f32.mrf.mxu0
        %v909 = vadd.f32 0.0, %v908
        %v910 = vpop.f32.mrf.mxu0
        %v911 = vpop.f32.mrf.mxu0
        %v912 = vadd.f32 0.0, %v911
        %v913 = vpop.f32.mrf.mxu0
        %914 = vmatprep.mubr.bf16.mxu0 %v619
        %915 = vmatmul.mubr.bf16.gmra.mxu0 %v618
        %v916 = vpop.f32.mrf.mxu0
        %v917 = vadd.f32 0.0, %v916
        %v918 = vpop.f32.mrf.mxu0
        %v919 = vpop.f32.mrf.mxu0
        %v920 = vadd.f32 0.0, %v919
        %v921 = vpop.f32.mrf.mxu0
        %922 = vmatprep.mubr.bf16.mxu0 %v623
        %923 = vmatmul.mubr.bf16.gmra.mxu0 %v622
        %v924 = vpop.f32.mrf.mxu0
        %v925 = vadd.f32 0.0, %v924
        %v926 = vpop.f32.mrf.mxu0
        %v927 = vpop.f32.mrf.mxu0
        %v928 = vadd.f32 0.0, %v927
        %v929 = vpop.f32.mrf.mxu0
        %930 = vmatprep.mubr.bf16.mxu0 %v627
        %931 = vmatmul.mubr.bf16.gmra.mxu0 %v626
        %v932 = vpop.f32.mrf.mxu0
        %v933 = vadd.f32 0.0, %v932
        %v934 = vpop.f32.mrf.mxu0
        %v935 = vpop.f32.mrf.mxu0
        %v936 = vadd.f32 0.0, %v935
        %v937 = vpop.f32.mrf.mxu0
        %938 = vmatprep.mubr.bf16.mxu0 %v631
        %939 = vmatmul.mubr.bf16.gmra.mxu0 %v630
        %v940 = vpop.f32.mrf.mxu0
        %v941 = vadd.f32 0.0, %v940
        %v942 = vpop.f32.mrf.mxu0
        %v943 = vpop.f32.mrf.mxu0
        %v944 = vadd.f32 0.0, %v943
        %v945 = vpop.f32.mrf.mxu0
        %946 = vmatprep.mubr.bf16.mxu0 %v635
        %947 = vmatmul.mubr.bf16.gmra.mxu0 %v634
        %v948 = vpop.f32.mrf.mxu0
        %v949 = vadd.f32 0.0, %v948
        %v950 = vpop.f32.mrf.mxu0
        %v951 = vpop.f32.mrf.mxu0
        %v952 = vadd.f32 0.0, %v951
        %v953 = vpop.f32.mrf.mxu0
        %954 = vmatprep.mubr.bf16.mxu0 %v639
        %955 = vmatmul.mubr.bf16.gmra.mxu0 %v638
        %v956 = vpop.f32.mrf.mxu0
        %v957 = vadd.f32 0.0, %v956
        %v958 = vpop.f32.mrf.mxu0
        %v959 = vpop.f32.mrf.mxu0
        %v960 = vadd.f32 0.0, %v959
        %v961 = vpop.f32.mrf.mxu0
        %962 = vdwg.mxu0
        %963 = vmatprep.subr.bf16.mxu0 0
        %964 = vmatpush1.bf16.msra.mxu0 %v825
        %965 = vmatprep.subr.bf16.mxu0 0
        %966 = vmatpush1.bf16.msra.mxu0 %v824
        %967 = vmatprep.subr.bf16.mxu0 0
        %968 = vmatpush1.bf16.msra.mxu0 %v823
        %969 = vmatprep.subr.bf16.mxu0 0
        %970 = vmatpush1.bf16.msra.mxu0 %v822
        %971 = vmatprep.subr.bf16.mxu0 0
        %972 = vmatpush1.bf16.msra.mxu0 %v821
        %973 = vmatprep.subr.bf16.mxu0 0
        %974 = vmatpush1.bf16.msra.mxu0 %v820
        %975 = vmatprep.subr.bf16.mxu0 0
        %976 = vmatpush1.bf16.msra.mxu0 %v819
        %977 = vmatprep.subr.bf16.mxu0 0
        %978 = vmatpush1.bf16.msra.mxu0 %v818
        %979 = vmatprep.subr.bf16.mxu0 0
        %980 = vmatpush2.bf16.msra.mxu0 %v833
        %981 = vmatprep.subr.bf16.mxu0 0
        %982 = vmatpush2.bf16.msra.mxu0 %v832
        %983 = vmatprep.subr.bf16.mxu0 0
        %984 = vmatpush2.bf16.msra.mxu0 %v831
        %985 = vmatprep.subr.bf16.mxu0 0
        %986 = vmatpush2.bf16.msra.mxu0 %v830
        %987 = vmatprep.subr.bf16.mxu0 0
        %988 = vmatpush2.bf16.msra.mxu0 %v829
        %989 = vmatprep.subr.bf16.mxu0 0
        %990 = vmatpush2.bf16.msra.mxu0 %v828
        %991 = vmatprep.subr.bf16.mxu0 0
        %992 = vmatpush2.bf16.msra.mxu0 %v827
        %993 = vmatprep.subr.bf16.mxu0 0
        %994 = vmatpush2.bf16.msra.mxu0 %v826
        %995 = vmatprep.mubr.bf16.mxu0 %v613
        %996 = vmatmul.mubr.bf16.gmra.mxu0 %v612
        %v997 = vpop.f32.mrf.mxu0
        %v998 = vadd.f32 %v901, %v997
        %v999 = vpop.f32.mrf.mxu0
        %v1000 = vpop.f32.mrf.mxu0
        %v1001 = vadd.f32 %v904, %v1000
        %v1002 = vpop.f32.mrf.mxu0
        %1003 = vmatprep.mubr.bf16.mxu0 %v617
        %1004 = vmatmul.mubr.bf16.gmra.mxu0 %v616
        %v1005 = vpop.f32.mrf.mxu0
        %v1006 = vadd.f32 %v909, %v1005
        %v1007 = vpop.f32.mrf.mxu0
        %v1008 = vpop.f32.mrf.mxu0
        %v1009 = vadd.f32 %v912, %v1008
        %v1010 = vpop.f32.mrf.mxu0
        %1011 = vmatprep.mubr.bf16.mxu0 %v621
        %1012 = vmatmul.mubr.bf16.gmra.mxu0 %v620
        %v1013 = vpop.f32.mrf.mxu0
        %v1014 = vadd.f32 %v917, %v1013
        %v1015 = vpop.f32.mrf.mxu0
        %v1016 = vpop.f32.mrf.mxu0
        %v1017 = vadd.f32 %v920, %v1016
        %v1018 = vpop.f32.mrf.mxu0
        %1019 = vmatprep.mubr.bf16.mxu0 %v625
        %1020 = vmatmul.mubr.bf16.gmra.mxu0 %v624
        %v1021 = vpop.f32.mrf.mxu0
        %v1022 = vadd.f32 %v925, %v1021
        %v1023 = vpop.f32.mrf.mxu0
        %v1024 = vpop.f32.mrf.mxu0
        %v1025 = vadd.f32 %v928, %v1024
        %v1026 = vpop.f32.mrf.mxu0
        %1027 = vmatprep.mubr.bf16.mxu0 %v629
        %1028 = vmatmul.mubr.bf16.gmra.mxu0 %v628
        %v1029 = vpop.f32.mrf.mxu0
        %v1030 = vadd.f32 %v933, %v1029
        %v1031 = vpop.f32.mrf.mxu0
        %v1032 = vpop.f32.mrf.mxu0
        %v1033 = vadd.f32 %v936, %v1032
        %v1034 = vpop.f32.mrf.mxu0
        %1035 = vmatprep.mubr.bf16.mxu0 %v633
        %1036 = vmatmul.mubr.bf16.gmra.mxu0 %v632
        %v1037 = vpop.f32.mrf.mxu0
        %v1038 = vadd.f32 %v941, %v1037
        %v1039 = vpop.f32.mrf.mxu0
        %v1040 = vpop.f32.mrf.mxu0
        %v1041 = vadd.f32 %v944, %v1040
        %v1042 = vpop.f32.mrf.mxu0
        %1043 = vmatprep.mubr.bf16.mxu0 %v637
        %1044 = vmatmul.mubr.bf16.gmra.mxu0 %v636
        %v1045 = vpop.f32.mrf.mxu0
        %v1046 = vadd.f32 %v949, %v1045
        %v1047 = vpop.f32.mrf.mxu0
        %v1048 = vpop.f32.mrf.mxu0
        %v1049 = vadd.f32 %v952, %v1048
        %v1050 = vpop.f32.mrf.mxu0
        %1051 = vmatprep.mubr.bf16.mxu0 %v641
        %1052 = vmatmul.mubr.bf16.gmra.mxu0 %v640
        %v1053 = vpop.f32.mrf.mxu0
        %v1054 = vadd.f32 %v957, %v1053
        %v1055 = vpop.f32.mrf.mxu0
        %v1056 = vpop.f32.mrf.mxu0
        %v1057 = vadd.f32 %v960, %v1056
        %v1058 = vpop.f32.mrf.mxu0
        %1059 = vdwg.mxu0
        %v1060 = vadd.f32 %v402, %v998
        %v1061 = vadd.f32 %v403, %v1001
        %v1062 = vadd.f32 %v404, %v1006
        %v1063 = vadd.f32 %v405, %v1009
        %v1064 = vadd.f32 %v406, %v1014
        %v1065 = vadd.f32 %v407, %v1017
        %v1066 = vadd.f32 %v408, %v1022
        %v1067 = vadd.f32 %v409, %v1025
        %v1068 = vadd.f32 %v410, %v1030
        %v1069 = vadd.f32 %v411, %v1033
        %v1070 = vadd.f32 %v412, %v1038
        %v1071 = vadd.f32 %v413, %v1041
        %v1072 = vadd.f32 %v414, %v1046
        %v1073 = vadd.f32 %v415, %v1049
        %v1074 = vadd.f32 %v416, %v1054
        %v1075 = vadd.f32 %v417, %v1057
        %1076 = vst [vmem:[#allocation2] sm:$0xff] %v1060
        %1077 = vst [vmem:[#allocation2 + $0x8] sm:$0xff] %v1061
        %1078 = vst [vmem:[#allocation2 + $0x10] sm:$0xff] %v1062
        %1079 = vst [vmem:[#allocation2 + $0x18] sm:$0xff] %v1063
        %1080 = vst [vmem:[#allocation2 + $0x20] sm:$0xff] %v1064
        %1081 = vst [vmem:[#allocation2 + $0x28] sm:$0xff] %v1065
        %1082 = vst [vmem:[#allocation2 + $0x30] sm:$0xff] %v1066
        %1083 = vst [vmem:[#allocation2 + $0x38] sm:$0xff] %v1067
        %1084 = vst [vmem:[#allocation2 + $0x40] sm:$0xff] %v1068
        %1085 = vst [vmem:[#allocation2 + $0x48] sm:$0xff] %v1069
        %1086 = vst [vmem:[#allocation2 + $0x50] sm:$0xff] %v1070
        %1087 = vst [vmem:[#allocation2 + $0x58] sm:$0xff] %v1071
        %1088 = vst [vmem:[#allocation2 + $0x60] sm:$0xff] %v1072
        %1089 = vst [vmem:[#allocation2 + $0x68] sm:$0xff] %v1073
        %1090 = vst [vmem:[#allocation2 + $0x70] sm:$0xff] %v1074
        %1091 = vst [vmem:[#allocation2 + $0x78] sm:$0xff] %v1075
        %p1092 = scmp.eq.s32.totalorder %s23, 1
        // Predicated region
        $region60: #{_lambda_.29} parent=50 // pred_check
          %p1093 = pneg %p1092
        $region61: #{_lambda_.29} parent=50 // pred_check_branch
          %1095 = sbr.rel (%p1093) target = $region63
        $region62: #{_lambda_.29} parent=50 // pred_region
          %v1096 = vld [vmem:[#allocation2] sm:$0xff]
          %v1097 = vld [vmem:[#allocation2 + $0x8] sm:$0xff]
          %v1098 = vld [vmem:[#allocation2 + $0x10] sm:$0xff]
          %v1099 = vld [vmem:[#allocation2 + $0x18] sm:$0xff]
          %v1100 = vld [vmem:[#allocation2 + $0x20] sm:$0xff]
          %v1101 = vld [vmem:[#allocation2 + $0x28] sm:$0xff]
          %v1102 = vld [vmem:[#allocation2 + $0x30] sm:$0xff]
          %v1103 = vld [vmem:[#allocation2 + $0x38] sm:$0xff]
          %v1104 = vld [vmem:[#allocation2 + $0x40] sm:$0xff]
          %v1105 = vld [vmem:[#allocation2 + $0x48] sm:$0xff]
          %v1106 = vld [vmem:[#allocation2 + $0x50] sm:$0xff]
          %v1107 = vld [vmem:[#allocation2 + $0x58] sm:$0xff]
          %v1108 = vld [vmem:[#allocation2 + $0x60] sm:$0xff]
          %v1109 = vld [vmem:[#allocation2 + $0x68] sm:$0xff]
          %v1110 = vld [vmem:[#allocation2 + $0x70] sm:$0xff]
          %v1111 = vld [vmem:[#allocation2 + $0x78] sm:$0xff]
          %v1112 = vpack.c.bf16 %v1097, %v1096
          %v1113 = vpack.c.bf16 %v1099, %v1098
          %v1114 = vpack.c.bf16 %v1101, %v1100
          %v1115 = vpack.c.bf16 %v1103, %v1102
          %v1116 = vpack.c.bf16 %v1105, %v1104
          %v1117 = vpack.c.bf16 %v1107, %v1106
          %v1118 = vpack.c.bf16 %v1109, %v1108
          %v1119 = vpack.c.bf16 %v1111, %v1110
          %v1128 = vunpack.c.l.b16 %v1112
          %v1129 = vunpack.c.h.b16 %v1112
          %v1130 = vunpack.c.l.b16 %v1113
          %v1131 = vunpack.c.h.b16 %v1113
          %v1132 = vunpack.c.l.b16 %v1114
          %v1133 = vunpack.c.h.b16 %v1114
          %v1134 = vunpack.c.l.b16 %v1115
          %v1135 = vunpack.c.h.b16 %v1115
          %v1136 = vunpack.c.l.b16 %v1116
          %v1137 = vunpack.c.h.b16 %v1116
          %v1138 = vunpack.c.l.b16 %v1117
          %v1139 = vunpack.c.h.b16 %v1117
          %v1140 = vunpack.c.l.b16 %v1118
          %v1141 = vunpack.c.h.b16 %v1118
          %v1142 = vunpack.c.l.b16 %v1119
          %v1143 = vunpack.c.h.b16 %v1119
          %v1144 = vpack.c.b16 %v1128, %v1128
          %v1145 = vpack.c.b16 %v1129, %v1129
          %v1146 = vpack.c.b16 %v1130, %v1130
          %v1147 = vpack.c.b16 %v1131, %v1131
          %v1148 = vpack.c.b16 %v1132, %v1132
          %v1149 = vpack.c.b16 %v1133, %v1133
          %v1150 = vpack.c.b16 %v1134, %v1134
          %v1151 = vpack.c.b16 %v1135, %v1135
          %v1152 = vpack.c.b16 %v1136, %v1136
          %v1153 = vpack.c.b16 %v1137, %v1137
          %v1154 = vpack.c.b16 %v1138, %v1138
          %v1155 = vpack.c.b16 %v1139, %v1139
          %v1156 = vpack.c.b16 %v1140, %v1140
          %v1157 = vpack.c.b16 %v1141, %v1141
          %v1158 = vpack.c.b16 %v1142, %v1142
          %v1159 = vpack.c.b16 %v1143, %v1143
          %1176 = vst [vmem:[%s372] sm:$0xf] %v1144
          %1177 = vst [vmem:[%s372 + $0x4] sm:$0xf] %v1145
          %1178 = vst [vmem:[%s372 + $0x8] sm:$0xf] %v1146
          %1179 = vst [vmem:[%s372 + $0xc] sm:$0xf] %v1147
          %1180 = vst [vmem:[%s372 + $0x10] sm:$0xf] %v1148
          %1181 = vst [vmem:[%s372 + $0x14] sm:$0xf] %v1149
          %1182 = vst [vmem:[%s372 + $0x18] sm:$0xf] %v1150
          %1183 = vst [vmem:[%s372 + $0x1c] sm:$0xf] %v1151
          %1184 = vst [vmem:[%s372 + $0x20] sm:$0xf] %v1152
          %1185 = vst [vmem:[%s372 + $0x24] sm:$0xf] %v1153
          %1186 = vst [vmem:[%s372 + $0x28] sm:$0xf] %v1154
          %1187 = vst [vmem:[%s372 + $0x2c] sm:$0xf] %v1155
          %1188 = vst [vmem:[%s372 + $0x30] sm:$0xf] %v1156
          %1189 = vst [vmem:[%s372 + $0x34] sm:$0xf] %v1157
          %1190 = vst [vmem:[%s372 + $0x38] sm:$0xf] %v1158
          %1191 = vst [vmem:[%s372 + $0x3c] sm:$0xf] %v1159
          %v1192 = vadd.f32 %v1096, %v1097
          %v1193 = vadd.f32 %v1192, %v1098
          %v1194 = vadd.f32 %v1193, %v1099
          %v1195 = vadd.f32 %v1194, %v1100
          %v1196 = vadd.f32 %v1195, %v1101
          %v1197 = vadd.f32 %v1196, %v1102
          %v1198 = vadd.f32 %v1197, %v1103
          %v1199 = vadd.f32 %v1198, %v1104
          %v1200 = vadd.f32 %v1199, %v1105
          %v1201 = vadd.f32 %v1200, %v1106
          %v1202 = vadd.f32 %v1201, %v1107
          %v1203 = vadd.f32 %v1202, %v1108
          %v1204 = vadd.f32 %v1203, %v1109
          %v1205 = vadd.f32 %v1204, %v1110
          %v1206 = vadd.f32 %v1205, %v1111
          %v1207 = vrot.slane %v1206, 4
          %v1208 = vadd.f32 %v1206, %v1207
          %v1209 = vrot.slane %v1208, 2
          %v1210 = vadd.f32 %v1208, %v1209
          %v1211 = vrot.slane %v1210, 1
          %v1212 = vadd.f32 %v1210, %v1211
          %v1213 = vmul.f32 %v1096, %v1096
          %v1214 = vmul.f32 %v1097, %v1097
          %v1215 = vmul.f32 %v1098, %v1098
          %v1216 = vmul.f32 %v1099, %v1099
          %v1217 = vmul.f32 %v1100, %v1100
          %v1218 = vmul.f32 %v1101, %v1101
          %v1219 = vmul.f32 %v1102, %v1102
          %v1220 = vmul.f32 %v1103, %v1103
          %v1221 = vmul.f32 %v1104, %v1104
          %v1222 = vmul.f32 %v1105, %v1105
          %v1223 = vmul.f32 %v1106, %v1106
          %v1224 = vmul.f32 %v1107, %v1107
          %v1225 = vmul.f32 %v1108, %v1108
          %v1226 = vmul.f32 %v1109, %v1109
          %v1227 = vmul.f32 %v1110, %v1110
          %v1228 = vmul.f32 %v1111, %v1111
          %v1229 = vadd.f32 %v1213, %v1214
          %v1230 = vadd.f32 %v1229, %v1215
          %v1231 = vadd.f32 %v1230, %v1216
          %v1232 = vadd.f32 %v1231, %v1217
          %v1233 = vadd.f32 %v1232, %v1218
          %v1234 = vadd.f32 %v1233, %v1219
          %v1235 = vadd.f32 %v1234, %v1220
          %v1236 = vadd.f32 %v1235, %v1221
          %v1237 = vadd.f32 %v1236, %v1222
          %v1238 = vadd.f32 %v1237, %v1223
          %v1239 = vadd.f32 %v1238, %v1224
          %v1240 = vadd.f32 %v1239, %v1225
          %v1241 = vadd.f32 %v1240, %v1226
          %v1242 = vadd.f32 %v1241, %v1227
          %v1243 = vadd.f32 %v1242, %v1228
          %v1244 = vrot.slane %v1243, 4
          %v1245 = vadd.f32 %v1243, %v1244
          %v1246 = vrot.slane %v1245, 2
          %v1247 = vadd.f32 %v1245, %v1246
          %v1248 = vrot.slane %v1247, 1
          %v1249 = vadd.f32 %v1247, %v1248
          %v1250 = vlaneseq
          %v1251 = vshrl.u32 %v1250, 7
          %vm1252 = vcmp.eq.s32.totalorder %v1251, 0
          %v1253 = vsel %vm1252, %v1212, 0.0
          %vm1254 = vcmp.eq.s32.totalorder %v1251, 1
          %v1255 = vsel %vm1254, %v1249, 0.0
          %v1256 = vadd.f32 %v1253, %v1255
          %1257 = vst [vmem:[%s380] sm:$0xff] %v1256
        $region63: #{_lambda_.29} parent=50 // pred_fallthru
          _
        %s1258 = smul.u32 16, %s21
        %p1259 = scmp.lt.s32.totalorder %s1258, 15
        %s1260 = scalar_select %p1259, %s1258, 15
        %p1261 = scmp.lt.s32.totalorder %s22, 0
        %s1262 = scalar_select %p1261, %s22, 0
        %s1263 = sadd.s32 %s1262, %s1260
        %s1264 = smul.addr %s1263, 4
        %s1265 = scalar_lea.vmem %s3, %s1264
        %p1266 = scmp.lt.s32.totalorder %s21, 0
        %s1267 = scalar_select %p1266, %s21, 0
        %p1268 = scmp.lt.s32.totalorder %s22, 0
        %s1269 = scalar_select %p1268, %s22, 0
        %s1270 = sadd.s32 %s1269, %s1267
        %s1271 = smul.addr %s1270, 8
        %s1272 = scalar_lea.vmem %s4, %s1271
        // Predicated region
        $region64: #{_lambda_.29} parent=50 // pred_check
          %p1273 = pneg %p137
        $region65: #{_lambda_.29} parent=50 // pred_check_branch
          %1275 = sbr.rel (%p1273) target = $region67
        $region66: #{_lambda_.29} parent=50 // pred_region
          %s1276 = smul.u32 16, %s21
        $region67: #{_lambda_.29} parent=50 // pred_fallthru
          _
        // Predicated region
        $region68: #{_lambda_.29} parent=50 // pred_check
          %p1277 = pneg %p165
        $region69: #{_lambda_.29} parent=50 // pred_check_branch
          %1279 = sbr.rel (%p1277) target = $region71
        $region70: #{_lambda_.29} parent=50 // pred_region
          _
        $region71: #{_lambda_.29} parent=50 // pred_fallthru
          _
        // Predicated region
        $region72: #{_lambda_.29} parent=50 // pred_check
          %p1280 = pneg %p137
        $region73: #{_lambda_.29} parent=50 // pred_check_branch
          %1282 = sbr.rel (%p1280) target = $region75
        $region74: #{_lambda_.29} parent=50 // pred_region
          %s1283 = smul.u32 16, %s21
          %p1284 = scmp.lt.s32.totalorder %s1283, 15
          %s1285 = scalar_select %p1284, %s1283, 15
          %p1286 = scmp.lt.s32.totalorder %s22, 0
          %s1287 = scalar_select %p1286, %s22, 0
          %s1288 = sadd.s32 %s1287, %s1285
          %s1289 = smul.addr %s1288, 4
          %s1290 = scalar_lea.vmem %s3, %s1289
        $region75: #{_lambda_.29} parent=50 // pred_fallthru
          _
        // Predicated region
        $region76: #{_lambda_.29} parent=50 // pred_check
          %p1291 = pneg %p165
        $region77: #{_lambda_.29} parent=50 // pred_check_branch
          %1293 = sbr.rel (%p1291) target = $region79
        $region78: #{_lambda_.29} parent=50 // pred_region
          %p1294 = scmp.lt.s32.totalorder %s21, 0
          %s1295 = scalar_select %p1294, %s21, 0
          %p1296 = scmp.lt.s32.totalorder %s22, 0
          %s1297 = scalar_select %p1296, %s22, 0
          %s1298 = sadd.s32 %s1297, %s1295
          %s1299 = smul.addr %s1298, 8
          %s1300 = scalar_lea.vmem %s4, %s1299
        $region79: #{_lambda_.29} parent=50 // pred_fallthru
          _
      $region51: #{_lambda_.29} parent=5 // pred_fallthru
        _
      %p1301 = scmp.le.s32.totalorder 2, %s11
      // Predicated region
      $region80: #{_lambda_.29} parent=5 // pred_check
        %p1302 = pneg %p1301
      $region81: #{_lambda_.29} parent=5 // pred_check_branch
        %1304 = sbr.rel (%p1302) target = $region83
      $region82: #{_lambda_.29} parent=5 // pred_region
        %s1305 = ssub.s32 %s11, 2
      $region83: #{_lambda_.29} parent=5 // pred_fallthru
        _
    $region6: #{_lambda_.29} parent=1 // loop_footer
      %s15 = sadd.s32 1, %s11
    $region7: #{_lambda_.29} parent=1 // loop_footer_branch
      %10 = sbr.rel target = $region3
    $region8: #{_lambda_.29} parent=1 // loop_exit
      _

// kernel: _lambda_.31
$region0: #{_lambda_.31}
  #allocation0 [shape = 'u32[]', space=smem, size = 0x4, offset = 0x4, fixed_abs, tag = 'smem constant byte address 0x4 - core index']
  #allocation1 [shape = 'u32[144,128]{1,0:T(1,128)}', space=vmem, size = 0x12000, scoped, tag = 'internal scratch']
  #allocation2 [shape = 'f32[128,128]{1,0:T(8,128)}', space=vmem, size = 0x10000, scoped, tag = 'scratch operand']
  %s0 = inlined_call_operand.vmem [shape: bf16[128,2048], index: 0, kind: input, shape index: {}]
  %s1 = inlined_call_operand.vmem [shape: bf16[2048,128], index: 1, kind: input, shape index: {}]
  %s2 = inlined_call_operand.vmem [shape: f32[1,128], index: 2, kind: input, shape index: {}]
  %s3 = inlined_call_operand.vmem [shape: f32[128,128], index: 3, kind: output, shape index: {}]
  %s4 = sld [smem:[#allocation0]]
  $region76: #{_lambda_.31} parent=0
    _
  %s6 = ssub.s32 1, %s4
  %s7 = scalar_select 0, %s6, %s4
  $region1: #{_lambda_.31} parent=0
    #allocation3 [shape = 'u8[262144]{0}', space=vmem, size = 0x40000, scoped, tag = 'input window, operand 0']
    loop: start=0, step=1, limit=6
    $region2: #{_lambda_.31} parent=1 // loop_pre_header
      _
    $region3: #{_lambda_.31} parent=1 // loop_header
      %s9 = sphi 0, %s13
      %p10 = scmp.ge.s32.totalorder %s9, 6
      %s16 = sphi 0, %s35
      %s17 = sphi 0, %s31
      %s18 = sphi 0, %s27
      %s19 = sphi 0, %s16
      %s20 = sphi 0, %s17
      %s21 = sphi 0, %s18
      %s22 = sphi 0, %s19
      %s23 = sphi 0, %s20
      %s24 = sphi 0, %s21
      %s40 = sphi 0, %s42
      %s43 = sphi 0, %s40
      %s44 = sphi 0, %s43
      %s60 = sphi 0, %s44
      %s68 = sphi 0, %s70
      %s71 = sphi 0, %s68
      %s72 = sphi 0, %s71
      %s88 = sphi 0, %s72
      %s94 = sphi 0, %s96
      %s97 = sphi 0, %s94
      %s98 = sphi 0, %s97
      %s114 = sphi 0, %s98
      %s122 = sphi 0, %s124
      %s125 = sphi 0, %s122
      %s126 = sphi 0, %s125
      %s142 = sphi 0, %s126
    $region4: #{_lambda_.31} parent=1 // loop_header_branch
      %12 = sbr.rel (%p10) target = $region8
    $region5: #{_lambda_.31} parent=1 // loop_body
      %s14 = ssub.s32 %s9, 1
      %s15 = ssub.s32 %s9, 2
      %s25 = sadd.s32 1, %s18
      %p26 = scmp.ge.s32.totalorder %s25, 4
      %s27 = scalar_select %p26, 0, %s25
      %s28 = sadd.s32 1, %s17
      %s29 = scalar_select %p26, %s28, %s17
      %p30 = scmp.ge.s32.totalorder %s29, 1
      %s31 = scalar_select %p30, 0, %s29
      %s32 = sadd.s32 1, %s16
      %s33 = scalar_select %p30, %s32, %s16
      %p34 = scmp.ge.s32.totalorder %s33, 1
      %s35 = scalar_select %p34, 0, %s33
      %s36 = ssub.s32 %s16, %s35
      %s37 = ssub.s32 %s18, %s27
      %s38 = sor.u32 %s36, %s37
      %p39 = scmp.eq.s32.totalorder %s38, 0
      %s41 = sadd.s32 %s40, 1
      %s42 = scalar_select %p39, %s40, %s41
      %p45 = pneg %p39
      %p46 = scmp.eq.s32.totalorder %s9, 3
      %p47 = por %p45, %p46
      %p48 = scmp.ne.s32.totalorder %s40, %s43
      %p49 = scmp.eq.s32.totalorder %s9, 0
      %p50 = por %p48, %p49
      %p51 = scmp.ne.s32.totalorder %s40, %s43
      %p52 = scmp.eq.s32.totalorder %s14, 3
      %p53 = por %p51, %p52
      %p54 = scmp.ne.s32.totalorder %s43, %s44
      %p55 = scmp.eq.s32.totalorder %s14, 0
      %p56 = por %p54, %p55
      %p57 = scmp.ne.s32.totalorder %s43, %s44
      %p58 = scmp.eq.s32.totalorder %s15, 3
      %p59 = por %p57, %p58
      %p61 = scmp.ne.s32.totalorder %s44, %s60
      %p62 = scmp.eq.s32.totalorder %s15, 0
      %p63 = por %p61, %p62
      %s64 = ssub.s32 %s18, %s27
      %s65 = ssub.s32 %s17, %s31
      %s66 = sor.u32 %s64, %s65
      %p67 = scmp.eq.s32.totalorder %s66, 0
      %s69 = sadd.s32 %s68, 1
      %s70 = scalar_select %p67, %s68, %s69
      %p73 = pneg %p67
      %p74 = scmp.eq.s32.totalorder %s9, 3
      %p75 = por %p73, %p74
      %p76 = scmp.ne.s32.totalorder %s68, %s71
      %p77 = scmp.eq.s32.totalorder %s9, 0
      %p78 = por %p76, %p77
      %p79 = scmp.ne.s32.totalorder %s68, %s71
      %p80 = scmp.eq.s32.totalorder %s14, 3
      %p81 = por %p79, %p80
      %p82 = scmp.ne.s32.totalorder %s71, %s72
      %p83 = scmp.eq.s32.totalorder %s14, 0
      %p84 = por %p82, %p83
      %p85 = scmp.ne.s32.totalorder %s71, %s72
      %p86 = scmp.eq.s32.totalorder %s15, 3
      %p87 = por %p85, %p86
      %p89 = scmp.ne.s32.totalorder %s72, %s88
      %p90 = scmp.eq.s32.totalorder %s15, 0
      %p91 = por %p89, %p90
      %s92 = ssub.s32 %s17, %s31
      %p93 = scmp.eq.s32.totalorder %s92, 0
      %s95 = sadd.s32 %s94, 1
      %s96 = scalar_select %p93, %s94, %s95
      %p99 = pneg %p93
      %p100 = scmp.eq.s32.totalorder %s9, 3
      %p101 = por %p99, %p100
      %p102 = scmp.ne.s32.totalorder %s94, %s97
      %p103 = scmp.eq.s32.totalorder %s9, 0
      %p104 = por %p102, %p103
      %p105 = scmp.ne.s32.totalorder %s94, %s97
      %p106 = scmp.eq.s32.totalorder %s14, 3
      %p107 = por %p105, %p106
      %p108 = scmp.ne.s32.totalorder %s97, %s98
      %p109 = scmp.eq.s32.totalorder %s14, 0
      %p110 = por %p108, %p109
      %p111 = scmp.ne.s32.totalorder %s97, %s98
      %p112 = scmp.eq.s32.totalorder %s15, 3
      %p113 = por %p111, %p112
      %p115 = scmp.ne.s32.totalorder %s98, %s114
      %p116 = scmp.eq.s32.totalorder %s15, 0
      %p117 = por %p115, %p116
      %s118 = ssub.s32 %s16, %s35
      %s119 = ssub.s32 %s17, %s31
      %s120 = sor.u32 %s118, %s119
      %p121 = scmp.eq.s32.totalorder %s120, 0
      %s123 = sadd.s32 %s122, 1
      %s124 = scalar_select %p121, %s122, %s123
      %p127 = pneg %p121
      %p128 = scmp.eq.s32.totalorder %s9, 3
      %p129 = por %p127, %p128
      %p130 = scmp.ne.s32.totalorder %s122, %s125
      %p131 = scmp.eq.s32.totalorder %s9, 0
      %p132 = por %p130, %p131
      %p133 = scmp.ne.s32.totalorder %s122, %s125
      %p134 = scmp.eq.s32.totalorder %s14, 3
      %p135 = por %p133, %p134
      %p136 = scmp.ne.s32.totalorder %s125, %s126
      %p137 = scmp.eq.s32.totalorder %s14, 0
      %p138 = por %p136, %p137
      %p139 = scmp.ne.s32.totalorder %s125, %s126
      %p140 = scmp.eq.s32.totalorder %s15, 3
      %p141 = por %p139, %p140
      %p143 = scmp.ne.s32.totalorder %s126, %s142
      %p144 = scmp.eq.s32.totalorder %s15, 0
      %p145 = por %p143, %p144
      %p146 = scmp.le.s32.totalorder 1, %s9
      %p147 = scmp.lt.s32.totalorder %s9, 5
      %p148 = pnand %p146, %p147
      %p149 = pneg %p148
      // Predicated region
      $region9: #{_lambda_.31} parent=5 // pred_check
        _
      $region10: #{_lambda_.31} parent=5 // pred_check_branch
        %151 = sbr.rel (%p148) target = $region12
      $region11: #{_lambda_.31} parent=5 // pred_region
        %s152 = ssub.s32 %s9, 1
        // Predicated region
        $region13: #{_lambda_.31} parent=11 // pred_check
          %p153 = pneg %p110
        $region14: #{_lambda_.31} parent=11 // pred_check_branch
          %155 = sbr.rel (%p153) target = $region16
        $region15: #{_lambda_.31} parent=11 // pred_region
          %p156 = scmp.lt.s32.totalorder %s20, 0
          %s157 = scalar_select %p156, %s20, 0
          %s158 = scalar_lea.vmem %s2, %s157
        $region16: #{_lambda_.31} parent=11 // pred_fallthru
          _
      $region12: #{_lambda_.31} parent=5 // pred_fallthru
        _
      %p159 = scmp.lt.s32.totalorder %s9, 4
      // Predicated region
      $region17: #{_lambda_.31} parent=5 // pred_check
        %p160 = pneg %p159
      $region18: #{_lambda_.31} parent=5 // pred_check_branch
        %162 = sbr.rel (%p160) target = $region20
      $region19: #{_lambda_.31} parent=5 // pred_region
        // Predicated region
        $region21: #{_lambda_.31} parent=19 // pred_check
          %p163 = pneg %p50
        $region22: #{_lambda_.31} parent=19 // pred_check_branch
          %165 = sbr.rel (%p163) target = $region24
        $region23: #{_lambda_.31} parent=19 // pred_region
          %s166 = sand.u32 %s40, 1
          %s167 = sand.u32 %s40, 1
          %s168 = smul.addr %s167, 256
          %s169 = scalar_lea.vmem [#allocation3], %s168
          %s170 = smul.u32 16, %s16
          %s171 = smul.u32 4, %s18
          %s172 = smul.addr %s170, 16
          %s173 = sadd.s32 %s171, %s172
          %s174 = smul.addr %s173, 4
          %s175 = scalar_lea.vmem %s0, %s174
          // Predicated region
          $region25: #{_lambda_.31} parent=23 // pred_check
            _
          $region26: #{_lambda_.31} parent=23 // pred_check_branch
            %177 = sbr.rel (0) target = $region28
          $region27: #{_lambda_.31} parent=23 // pred_region
            // Predicated region
            $region29: #{_lambda_.31} parent=27 // pred_check
              _
            $region30: #{_lambda_.31} parent=27 // pred_check_branch
              %179 = sbr.rel (0) target = $region32
            $region31: #{_lambda_.31} parent=27 // pred_region
              loop: start=0, step=1, limit=1
              $region33: #{_lambda_.31} parent=31 // loop_pre_header
                _
              $region34: #{_lambda_.31} parent=31 // loop_header
                %s181 = sphi 0, %s185
                %p182 = scmp.ge.s32.totalorder %s181, 1
                %s186 = sphi %s175, %s175
                %s187 = sphi %s169, %s169
              $region35: #{_lambda_.31} parent=31 // loop_header_branch
                %184 = sbr.rel (%p182) target = $region39
              $region36: #{_lambda_.31} parent=31 // loop_body
                %v188 = vld [vmem:[%s186] sm:$0xff]
                %189 = vst [vmem:[%s187] sm:$0xff] %v188
                %v190 = vld [vmem:[%s186 + $0x8] sm:$0xff]
                %191 = vst [vmem:[%s187 + $0x8] sm:$0xff] %v190
                %v192 = vld [vmem:[%s186 + $0x40] sm:$0xff]
                %193 = vst [vmem:[%s187 + $0x10] sm:$0xff] %v192
                %v194 = vld [vmem:[%s186 + $0x48] sm:$0xff]
                %195 = vst [vmem:[%s187 + $0x18] sm:$0xff] %v194
                %v196 = vld [vmem:[%s186 + $0x80] sm:$0xff]
                %197 = vst [vmem:[%s187 + $0x20] sm:$0xff] %v196
                %v198 = vld [vmem:[%s186 + $0x88] sm:$0xff]
                %199 = vst [vmem:[%s187 + $0x28] sm:$0xff] %v198
                %v200 = vld [vmem:[%s186 + $0xc0] sm:$0xff]
                %201 = vst [vmem:[%s187 + $0x30] sm:$0xff] %v200
                %v202 = vld [vmem:[%s186 + $0xc8] sm:$0xff]
                %203 = vst [vmem:[%s187 + $0x38] sm:$0xff] %v202
                %v204 = vld [vmem:[%s186 + $0x100] sm:$0xff]
                %205 = vst [vmem:[%s187 + $0x40] sm:$0xff] %v204
                %v206 = vld [vmem:[%s186 + $0x108] sm:$0xff]
                %207 = vst [vmem:[%s187 + $0x48] sm:$0xff] %v206
                %v208 = vld [vmem:[%s186 + $0x140] sm:$0xff]
                %209 = vst [vmem:[%s187 + $0x50] sm:$0xff] %v208
                %v210 = vld [vmem:[%s186 + $0x148] sm:$0xff]
                %211 = vst [vmem:[%s187 + $0x58] sm:$0xff] %v210
                %v212 = vld [vmem:[%s186 + $0x180] sm:$0xff]
                %213 = vst [vmem:[%s187 + $0x60] sm:$0xff] %v212
                %v214 = vld [vmem:[%s186 + $0x188] sm:$0xff]
                %215 = vst [vmem:[%s187 + $0x68] sm:$0xff] %v214
                %v216 = vld [vmem:[%s186 + $0x1c0] sm:$0xff]
                %217 = vst [vmem:[%s187 + $0x70] sm:$0xff] %v216
                %v218 = vld [vmem:[%s186 + $0x1c8] sm:$0xff]
                %219 = vst [vmem:[%s187 + $0x78] sm:$0xff] %v218
                %v220 = vld [vmem:[%s186 + $0x200] sm:$0xff]
                %221 = vst [vmem:[%s187 + $0x80] sm:$0xff] %v220
                %v222 = vld [vmem:[%s186 + $0x208] sm:$0xff]
                %223 = vst [vmem:[%s187 + $0x88] sm:$0xff] %v222
                %v224 = vld [vmem:[%s186 + $0x240] sm:$0xff]
                %225 = vst [vmem:[%s187 + $0x90] sm:$0xff] %v224
                %v226 = vld [vmem:[%s186 + $0x248] sm:$0xff]
                %227 = vst [vmem:[%s187 + $0x98] sm:$0xff] %v226
                %v228 = vld [vmem:[%s186 + $0x280] sm:$0xff]
                %229 = vst [vmem:[%s187 + $0xa0] sm:$0xff] %v228
                %v230 = vld [vmem:[%s186 + $0x288] sm:$0xff]
                %231 = vst [vmem:[%s187 + $0xa8] sm:$0xff] %v230
                %v232 = vld [vmem:[%s186 + $0x2c0] sm:$0xff]
                %233 = vst [vmem:[%s187 + $0xb0] sm:$0xff] %v232
                %v234 = vld [vmem:[%s186 + $0x2c8] sm:$0xff]
                %235 = vst [vmem:[%s187 + $0xb8] sm:$0xff] %v234
                %v236 = vld [vmem:[%s186 + $0x300] sm:$0xff]
                %237 = vst [vmem:[%s187 + $0xc0] sm:$0xff] %v236
                %v238 = vld [vmem:[%s186 + $0x308] sm:$0xff]
                %239 = vst [vmem:[%s187 + $0xc8] sm:$0xff] %v238
                %v240 = vld [vmem:[%s186 + $0x340] sm:$0xff]
                %241 = vst [vmem:[%s187 + $0xd0] sm:$0xff] %v240
                %v242 = vld [vmem:[%s186 + $0x348] sm:$0xff]
                %243 = vst [vmem:[%s187 + $0xd8] sm:$0xff] %v242
                %v244 = vld [vmem:[%s186 + $0x380] sm:$0xff]
                %245 = vst [vmem:[%s187 + $0xe0] sm:$0xff] %v244
                %v246 = vld [vmem:[%s186 + $0x388] sm:$0xff]
                %247 = vst [vmem:[%s187 + $0xe8] sm:$0xff] %v246
                %v248 = vld [vmem:[%s186 + $0x3c0] sm:$0xff]
                %249 = vst [vmem:[%s187 + $0xf0] sm:$0xff] %v248
                %v250 = vld [vmem:[%s186 + $0x3c8] sm:$0xff]
                %251 = vst [vmem:[%s187 + $0xf8] sm:$0xff] %v250
              $region37: #{_lambda_.31} parent=31 // loop_footer
                %s185 = sadd.s32 1, %s181
              $region38: #{_lambda_.31} parent=31 // loop_footer_branch
                %180 = sbr.rel target = $region34
              $region39: #{_lambda_.31} parent=31 // loop_exit
                _
            $region32: #{_lambda_.31} parent=27 // pred_fallthru
              _
            // Predicated region
            $region40: #{_lambda_.31} parent=27 // pred_check
              _
            $region41: #{_lambda_.31} parent=27 // pred_check_branch
              %253 = sbr.rel target = $region43
            $region42: #{_lambda_.31} parent=27 // pred_region
              _
            $region43: #{_lambda_.31} parent=27 // pred_fallthru
              _
          $region28: #{_lambda_.31} parent=23 // pred_fallthru
            _
          %254 = vnop
        $region24: #{_lambda_.31} parent=19 // pred_fallthru
          _
        // Predicated region
        $region44: #{_lambda_.31} parent=19 // pred_check
          %p255 = pneg %p78
        $region45: #{_lambda_.31} parent=19 // pred_check_branch
          %257 = sbr.rel (%p255) target = $region47
        $region46: #{_lambda_.31} parent=19 // pred_region
          %s258 = smul.u32 64, %s18
          %p259 = scmp.lt.s32.totalorder %s258, 255
          %s260 = scalar_select %p259, %s258, 255
          %p261 = scmp.lt.s32.totalorder %s17, 0
          %s262 = scalar_select %p261, %s17, 0
          %s263 = sadd.s32 %s262, %s260
          %s264 = smul.addr %s263, 4
          %s265 = scalar_lea.vmem %s1, %s264
          %s266 = smul.u32 64, %s18
        $region47: #{_lambda_.31} parent=19 // pred_fallthru
          _
      $region20: #{_lambda_.31} parent=5 // pred_fallthru
        _
      %p267 = scmp.le.s32.totalorder 1, %s9
      %p268 = scmp.lt.s32.totalorder %s9, 5
      %p269 = pnand %p267, %p268
      %p270 = pneg %p269
      // Predicated region
      $region48: #{_lambda_.31} parent=5 // pred_check
        _
      $region49: #{_lambda_.31} parent=5 // pred_check_branch
        %272 = sbr.rel (%p269) target = $region51
      $region50: #{_lambda_.31} parent=5 // pred_region
        %s273 = ssub.s32 %s9, 1
        %s274 = sand.u32 %s43, 1
        %s275 = sand.u32 %s43, 1
        %s276 = smul.addr %s275, 256
        %s277 = scalar_lea.vmem [#allocation3], %s276
        // Predicated region
        $region52: #{_lambda_.31} parent=50 // pred_check
          %p278 = pneg %p56
        $region53: #{_lambda_.31} parent=50 // pred_check_branch
          %280 = sbr.rel (%p278) target = $region55
        $region54: #{_lambda_.31} parent=50 // pred_region
          _
        $region55: #{_lambda_.31} parent=50 // pred_fallthru
          _
        %s281 = sand.u32 %s43, 1
        %s282 = sand.u32 %s43, 1
        %s283 = smul.addr %s282, 256
        %s284 = scalar_lea.vmem [#allocation3], %s283
        %p285 = pneg %p56
        %p286 = pneg %p53
        %s287 = smul.u32 64, %s21
        %p288 = scmp.lt.s32.totalorder %s287, 255
        %s289 = scalar_select %p288, %s287, 255
        %p290 = scmp.lt.s32.totalorder %s20, 0
        %s291 = scalar_select %p290, %s20, 0
        %s292 = sadd.s32 %s291, %s289
        %s293 = smul.addr %s292, 4
        %s294 = scalar_lea.vmem %s1, %s293
        %p295 = pneg %p84
        %p296 = pneg %p81
        %p297 = scmp.lt.s32.totalorder %s20, 0
        %s298 = scalar_select %p297, %s20, 0
        %s299 = scalar_lea.vmem %s2, %s298
        %p300 = pneg %p110
        %p301 = pneg %p107
        %p302 = pneg %p138
        %p303 = pneg %p135
        %s304 = smul.u32 16, %s19
        %p305 = scmp.lt.s32.totalorder %s304, 15
        %s306 = scalar_select %p305, %s304, 15
        %p307 = scmp.lt.s32.totalorder %s20, 0
        %s308 = scalar_select %p307, %s20, 0
        %s309 = sadd.s32 %s308, %s306
        %s310 = smul.addr %s309, 8
        %s311 = scalar_lea.vmem %s3, %s310
        %s312 = smul.u32 16, %s19
        %s313 = smul.u32 4, %s21
        %s314 = smul.u32 64, %s21
        %p315 = scmp.lt.s32.totalorder %s314, 255
        %s316 = scalar_select %p315, %s314, 255
        %p317 = scmp.lt.s32.totalorder %s20, 0
        %s318 = scalar_select %p317, %s20, 0
        %s319 = sadd.s32 %s318, %s316
        %s320 = smul.addr %s319, 4
        %s321 = scalar_lea.vmem %s1, %s320
        %s322 = smul.u32 64, %s21
        %p323 = scmp.lt.s32.totalorder %s20, 0
        %s324 = scalar_select %p323, %s20, 0
        %s325 = scalar_lea.vmem %s2, %s324
        %s326 = smul.u32 16, %s19
        %p327 = scmp.lt.s32.totalorder %s326, 15
        %s328 = scalar_select %p327, %s326, 15
        %p329 = scmp.lt.s32.totalorder %s20, 0
        %s330 = scalar_select %p329, %s20, 0
        %s331 = sadd.s32 %s330, %s328
        %s332 = smul.addr %s331, 8
        %s333 = scalar_lea.vmem %s3, %s332
        %s334 = smul.u32 16, %s19
        %p336 = scmp.eq.s32.totalorder %s21, 0
        // Predicated region
        $region56: #{_lambda_.31} parent=50 // pred_check
          %p337 = pneg %p336
        $region57: #{_lambda_.31} parent=50 // pred_check_branch
          %339 = sbr.rel (%p337) target = $region59
        $region58: #{_lambda_.31} parent=50 // pred_region
          %340 = vst [vmem:[#allocation2] sm:$0xff] 0.0
          %341 = vst [vmem:[#allocation2 + $0x8] sm:$0xff] 0.0
          %342 = vst [vmem:[#allocation2 + $0x10] sm:$0xff] 0.0
          %343 = vst [vmem:[#allocation2 + $0x18] sm:$0xff] 0.0
          %344 = vst [vmem:[#allocation2 + $0x20] sm:$0xff] 0.0
          %345 = vst [vmem:[#allocation2 + $0x28] sm:$0xff] 0.0
          %346 = vst [vmem:[#allocation2 + $0x30] sm:$0xff] 0.0
          %347 = vst [vmem:[#allocation2 + $0x38] sm:$0xff] 0.0
          %348 = vst [vmem:[#allocation2 + $0x40] sm:$0xff] 0.0
          %349 = vst [vmem:[#allocation2 + $0x48] sm:$0xff] 0.0
          %350 = vst [vmem:[#allocation2 + $0x50] sm:$0xff] 0.0
          %351 = vst [vmem:[#allocation2 + $0x58] sm:$0xff] 0.0
          %352 = vst [vmem:[#allocation2 + $0x60] sm:$0xff] 0.0
          %353 = vst [vmem:[#allocation2 + $0x68] sm:$0xff] 0.0
          %354 = vst [vmem:[#allocation2 + $0x70] sm:$0xff] 0.0
          %355 = vst [vmem:[#allocation2 + $0x78] sm:$0xff] 0.0
        $region59: #{_lambda_.31} parent=50 // pred_fallthru
          _
        %v356 = vld [vmem:[#allocation2] sm:$0xff]
        %v357 = vld [vmem:[#allocation2 + $0x8] sm:$0xff]
        %v358 = vld [vmem:[#allocation2 + $0x10] sm:$0xff]
        %v359 = vld [vmem:[#allocation2 + $0x18] sm:$0xff]
        %v360 = vld [vmem:[#allocation2 + $0x20] sm:$0xff]
        %v361 = vld [vmem:[#allocation2 + $0x28] sm:$0xff]
        %v362 = vld [vmem:[#allocation2 + $0x30] sm:$0xff]
        %v363 = vld [vmem:[#allocation2 + $0x38] sm:$0xff]
        %v364 = vld [vmem:[#allocation2 + $0x40] sm:$0xff]
        %v365 = vld [vmem:[#allocation2 + $0x48] sm:$0xff]
        %v366 = vld [vmem:[#allocation2 + $0x50] sm:$0xff]
        %v367 = vld [vmem:[#allocation2 + $0x58] sm:$0xff]
        %v368 = vld [vmem:[#allocation2 + $0x60] sm:$0xff]
        %v369 = vld [vmem:[#allocation2 + $0x68] sm:$0xff]
        %v370 = vld [vmem:[#allocation2 + $0x70] sm:$0xff]
        %v371 = vld [vmem:[#allocation2 + $0x78] sm:$0xff]
        %v372 = vld [vmem:[%s277] sm:$0xff]
        %v373 = vld [vmem:[%s277 + $0x8] sm:$0xff]
        %v374 = vld [vmem:[%s277 + $0x10] sm:$0xff]
        %v375 = vld [vmem:[%s277 + $0x18] sm:$0xff]
        %v376 = vld [vmem:[%s277 + $0x20] sm:$0xff]
        %v377 = vld [vmem:[%s277 + $0x28] sm:$0xff]
        %v378 = vld [vmem:[%s277 + $0x30] sm:$0xff]
        %v379 = vld [vmem:[%s277 + $0x38] sm:$0xff]
        %v380 = vld [vmem:[%s277 + $0x40] sm:$0xff]
        %v381 = vld [vmem:[%s277 + $0x48] sm:$0xff]
        %v382 = vld [vmem:[%s277 + $0x50] sm:$0xff]
        %v383 = vld [vmem:[%s277 + $0x58] sm:$0xff]
        %v384 = vld [vmem:[%s277 + $0x60] sm:$0xff]
        %v385 = vld [vmem:[%s277 + $0x68] sm:$0xff]
        %v386 = vld [vmem:[%s277 + $0x70] sm:$0xff]
        %v387 = vld [vmem:[%s277 + $0x78] sm:$0xff]
        %v388 = vld [vmem:[%s277 + $0x80] sm:$0xff]
        %v389 = vld [vmem:[%s277 + $0x88] sm:$0xff]
        %v390 = vld [vmem:[%s277 + $0x90] sm:$0xff]
        %v391 = vld [vmem:[%s277 + $0x98] sm:$0xff]
        %v392 = vld [vmem:[%s277 + $0xa0] sm:$0xff]
        %v393 = vld [vmem:[%s277 + $0xa8] sm:$0xff]
        %v394 = vld [vmem:[%s277 + $0xb0] sm:$0xff]
        %v395 = vld [vmem:[%s277 + $0xb8] sm:$0xff]
        %v396 = vld [vmem:[%s277 + $0xc0] sm:$0xff]
        %v397 = vld [vmem:[%s277 + $0xc8] sm:$0xff]
        %v398 = vld [vmem:[%s277 + $0xd0] sm:$0xff]
        %v399 = vld [vmem:[%s277 + $0xd8] sm:$0xff]
        %v400 = vld [vmem:[%s277 + $0xe0] sm:$0xff]
        %v401 = vld [vmem:[%s277 + $0xe8] sm:$0xff]
        %v402 = vld [vmem:[%s277 + $0xf0] sm:$0xff]
        %v403 = vld [vmem:[%s277 + $0xf8] sm:$0xff]
        %v404 = vld [vmem:[%s321] sm:$0xf]
        %v405 = vld [vmem:[%s321 + $0x4] sm:$0xf]
        %v406 = vld [vmem:[%s321 + $0x8] sm:$0xf]
        %v407 = vld [vmem:[%s321 + $0xc] sm:$0xf]
        %v408 = vld [vmem:[%s321 + $0x10] sm:$0xf]
        %v409 = vld [vmem:[%s321 + $0x14] sm:$0xf]
        %v410 = vld [vmem:[%s321 + $0x18] sm:$0xf]
        %v411 = vld [vmem:[%s321 + $0x1c] sm:$0xf]
        %v412 = vld [vmem:[%s321 + $0x20] sm:$0xf]
        %v413 = vld [vmem:[%s321 + $0x24] sm:$0xf]
        %v414 = vld [vmem:[%s321 + $0x28] sm:$0xf]
        %v415 = vld [vmem:[%s321 + $0x2c] sm:$0xf]
        %v416 = vld [vmem:[%s321 + $0x30] sm:$0xf]
        %v417 = vld [vmem:[%s321 + $0x34] sm:$0xf]
        %v418 = vld [vmem:[%s321 + $0x38] sm:$0xf]
        %v419 = vld [vmem:[%s321 + $0x3c] sm:$0xf]
        %v420 = vld [vmem:[%s321 + $0x40] sm:$0xf]
        %v421 = vld [vmem:[%s321 + $0x44] sm:$0xf]
        %v422 = vld [vmem:[%s321 + $0x48] sm:$0xf]
        %v423 = vld [vmem:[%s321 + $0x4c] sm:$0xf]
        %v424 = vld [vmem:[%s321 + $0x50] sm:$0xf]
        %v425 = vld [vmem:[%s321 + $0x54] sm:$0xf]
        %v426 = vld [vmem:[%s321 + $0x58] sm:$0xf]
        %v427 = vld [vmem:[%s321 + $0x5c] sm:$0xf]
        %v428 = vld [vmem:[%s321 + $0x60] sm:$0xf]
        %v429 = vld [vmem:[%s321 + $0x64] sm:$0xf]
        %v430 = vld [vmem:[%s321 + $0x68] sm:$0xf]
        %v431 = vld [vmem:[%s321 + $0x6c] sm:$0xf]
        %v432 = vld [vmem:[%s321 + $0x70] sm:$0xf]
        %v433 = vld [vmem:[%s321 + $0x74] sm:$0xf]
        %v434 = vld [vmem:[%s321 + $0x78] sm:$0xf]
        %v435 = vld [vmem:[%s321 + $0x7c] sm:$0xf]
        %v436 = vld [vmem:[%s321 + $0x80] sm:$0xf]
        %v437 = vld [vmem:[%s321 + $0x84] sm:$0xf]
        %v438 = vld [vmem:[%s321 + $0x88] sm:$0xf]
        %v439 = vld [vmem:[%s321 + $0x8c] sm:$0xf]
        %v440 = vld [vmem:[%s321 + $0x90] sm:$0xf]
        %v441 = vld [vmem:[%s321 + $0x94] sm:$0xf]
        %v442 = vld [vmem:[%s321 + $0x98] sm:$0xf]
        %v443 = vld [vmem:[%s321 + $0x9c] sm:$0xf]
        %v444 = vld [vmem:[%s321 + $0xa0] sm:$0xf]
        %v445 = vld [vmem:[%s321 + $0xa4] sm:$0xf]
        %v446 = vld [vmem:[%s321 + $0xa8] sm:$0xf]
        %v447 = vld [vmem:[%s321 + $0xac] sm:$0xf]
        %v448 = vld [vmem:[%s321 + $0xb0] sm:$0xf]
        %v449 = vld [vmem:[%s321 + $0xb4] sm:$0xf]
        %v450 = vld [vmem:[%s321 + $0xb8] sm:$0xf]
        %v451 = vld [vmem:[%s321 + $0xbc] sm:$0xf]
        %v452 = vld [vmem:[%s321 + $0xc0] sm:$0xf]
        %v453 = vld [vmem:[%s321 + $0xc4] sm:$0xf]
        %v454 = vld [vmem:[%s321 + $0xc8] sm:$0xf]
        %v455 = vld [vmem:[%s321 + $0xcc] sm:$0xf]
        %v456 = vld [vmem:[%s321 + $0xd0] sm:$0xf]
        %v457 = vld [vmem:[%s321 + $0xd4] sm:$0xf]
        %v458 = vld [vmem:[%s321 + $0xd8] sm:$0xf]
        %v459 = vld [vmem:[%s321 + $0xdc] sm:$0xf]
        %v460 = vld [vmem:[%s321 + $0xe0] sm:$0xf]
        %v461 = vld [vmem:[%s321 + $0xe4] sm:$0xf]
        %v462 = vld [vmem:[%s321 + $0xe8] sm:$0xf]
        %v463 = vld [vmem:[%s321 + $0xec] sm:$0xf]
        %v464 = vld [vmem:[%s321 + $0xf0] sm:$0xf]
        %v465 = vld [vmem:[%s321 + $0xf4] sm:$0xf]
        %v466 = vld [vmem:[%s321 + $0xf8] sm:$0xf]
        %v467 = vld [vmem:[%s321 + $0xfc] sm:$0xf]
        %v500 = vunpack.c.l.b16 %v372
        %v501 = vunpack.c.h.b16 %v372
        %v502 = vunpack.c.l.b16 %v373
        %v503 = vunpack.c.h.b16 %v373
        %v504 = vunpack.c.l.b16 %v374
        %v505 = vunpack.c.h.b16 %v374
        %v506 = vunpack.c.l.b16 %v375
        %v507 = vunpack.c.h.b16 %v375
        %v508 = vunpack.c.l.b16 %v376
        %v509 = vunpack.c.h.b16 %v376
        %v510 = vunpack.c.l.b16 %v377
        %v511 = vunpack.c.h.b16 %v377
        %v512 = vunpack.c.l.b16 %v378
        %v513 = vunpack.c.h.b16 %v378
        %v514 = vunpack.c.l.b16 %v379
        %v515 = vunpack.c.h.b16 %v379
        %v516 = vunpack.c.l.b16 %v380
        %v517 = vunpack.c.h.b16 %v380
        %v518 = vunpack.c.l.b16 %v381
        %v519 = vunpack.c.h.b16 %v381
        %v520 = vunpack.c.l.b16 %v382
        %v521 = vunpack.c.h.b16 %v382
        %v522 = vunpack.c.l.b16 %v383
        %v523 = vunpack.c.h.b16 %v383
        %v524 = vunpack.c.l.b16 %v384
        %v525 = vunpack.c.h.b16 %v384
        %v526 = vunpack.c.l.b16 %v385
        %v527 = vunpack.c.h.b16 %v385
        %v528 = vunpack.c.l.b16 %v386
        %v529 = vunpack.c.h.b16 %v386
        %v530 = vunpack.c.l.b16 %v387
        %v531 = vunpack.c.h.b16 %v387
        %v532 = vunpack.c.l.b16 %v388
        %v533 = vunpack.c.h.b16 %v388
        %v534 = vunpack.c.l.b16 %v389
        %v535 = vunpack.c.h.b16 %v389
        %v536 = vunpack.c.l.b16 %v390
        %v537 = vunpack.c.h.b16 %v390
        %v538 = vunpack.c.l.b16 %v391
        %v539 = vunpack.c.h.b16 %v391
        %v540 = vunpack.c.l.b16 %v392
        %v541 = vunpack.c.h.b16 %v392
        %v542 = vunpack.c.l.b16 %v393
        %v543 = vunpack.c.h.b16 %v393
        %v544 = vunpack.c.l.b16 %v394
        %v545 = vunpack.c.h.b16 %v394
        %v546 = vunpack.c.l.b16 %v395
        %v547 = vunpack.c.h.b16 %v395
        %v548 = vunpack.c.l.b16 %v396
        %v549 = vunpack.c.h.b16 %v396
        %v550 = vunpack.c.l.b16 %v397
        %v551 = vunpack.c.h.b16 %v397
        %v552 = vunpack.c.l.b16 %v398
        %v553 = vunpack.c.h.b16 %v398
        %v554 = vunpack.c.l.b16 %v399
        %v555 = vunpack.c.h.b16 %v399
        %v556 = vunpack.c.l.b16 %v400
        %v557 = vunpack.c.h.b16 %v400
        %v558 = vunpack.c.l.b16 %v401
        %v559 = vunpack.c.h.b16 %v401
        %v560 = vunpack.c.l.b16 %v402
        %v561 = vunpack.c.h.b16 %v402
        %v562 = vunpack.c.l.b16 %v403
        %v563 = vunpack.c.h.b16 %v403
        %v564 = vpack.c.b16 %v504, %v500
        %v565 = vpack.c.b16 %v505, %v501
        %v566 = vpack.c.b16 %v506, %v502
        %v567 = vpack.c.b16 %v507, %v503
        %v568 = vpack.c.b16 %v512, %v508
        %v569 = vpack.c.b16 %v513, %v509
        %v570 = vpack.c.b16 %v514, %v510
        %v571 = vpack.c.b16 %v515, %v511
        %v572 = vpack.c.b16 %v520, %v516
        %v573 = vpack.c.b16 %v521, %v517
        %v574 = vpack.c.b16 %v522, %v518
        %v575 = vpack.c.b16 %v523, %v519
        %v576 = vpack.c.b16 %v528, %v524
        %v577 = vpack.c.b16 %v529, %v525
        %v578 = vpack.c.b16 %v530, %v526
        %v579 = vpack.c.b16 %v531, %v527
        %v580 = vpack.c.b16 %v536, %v532
        %v581 = vpack.c.b16 %v537, %v533
        %v582 = vpack.c.b16 %v538, %v534
        %v583 = vpack.c.b16 %v539, %v535
        %v584 = vpack.c.b16 %v544, %v540
        %v585 = vpack.c.b16 %v545, %v541
        %v586 = vpack.c.b16 %v546, %v542
        %v587 = vpack.c.b16 %v547, %v543
        %v588 = vpack.c.b16 %v552, %v548
        %v589 = vpack.c.b16 %v553, %v549
        %v590 = vpack.c.b16 %v554, %v550
        %v591 = vpack.c.b16 %v555, %v551
        %v592 = vpack.c.b16 %v560, %v556
        %v593 = vpack.c.b16 %v561, %v557
        %v594 = vpack.c.b16 %v562, %v558
        %v595 = vpack.c.b16 %v563, %v559
        %v692 = vunpack.c.l.b16 %v404
        %v693 = vunpack.c.l.b16 %v405
        %v694 = vunpack.c.l.b16 %v406
        %v695 = vunpack.c.l.b16 %v407
        %v696 = vunpack.c.l.b16 %v408
        %v697 = vunpack.c.l.b16 %v409
        %v698 = vunpack.c.l.b16 %v410
        %v699 = vunpack.c.l.b16 %v411
        %v700 = vunpack.c.l.b16 %v412
        %v701 = vunpack.c.l.b16 %v413
        %v702 = vunpack.c.l.b16 %v414
        %v703 = vunpack.c.l.b16 %v415
        %v704 = vunpack.c.l.b16 %v416
        %v705 = vunpack.c.l.b16 %v417
        %v706 = vunpack.c.l.b16 %v418
        %v707 = vunpack.c.l.b16 %v419
        %v708 = vunpack.c.l.b16 %v420
        %v709 = vunpack.c.l.b16 %v421
        %v710 = vunpack.c.l.b16 %v422
        %v711 = vunpack.c.l.b16 %v423
        %v712 = vunpack.c.l.b16 %v424
        %v713 = vunpack.c.l.b16 %v425
        %v714 = vunpack.c.l.b16 %v426
        %v715 = vunpack.c.l.b16 %v427
        %v716 = vunpack.c.l.b16 %v428
        %v717 = vunpack.c.l.b16 %v429
        %v718 = vunpack.c.l.b16 %v430
        %v719 = vunpack.c.l.b16 %v431
        %v720 = vunpack.c.l.b16 %v432
        %v721 = vunpack.c.l.b16 %v433
        %v722 = vunpack.c.l.b16 %v434
        %v723 = vunpack.c.l.b16 %v435
        %v724 = vunpack.c.l.b16 %v436
        %v725 = vunpack.c.l.b16 %v437
        %v726 = vunpack.c.l.b16 %v438
        %v727 = vunpack.c.l.b16 %v439
        %v728 = vunpack.c.l.b16 %v440
        %v729 = vunpack.c.l.b16 %v441
        %v730 = vunpack.c.l.b16 %v442
        %v731 = vunpack.c.l.b16 %v443
        %v732 = vunpack.c.l.b16 %v444
        %v733 = vunpack.c.l.b16 %v445
        %v734 = vunpack.c.l.b16 %v446
        %v735 = vunpack.c.l.b16 %v447
        %v736 = vunpack.c.l.b16 %v448
        %v737 = vunpack.c.l.b16 %v449
        %v738 = vunpack.c.l.b16 %v450
        %v739 = vunpack.c.l.b16 %v451
        %v740 = vunpack.c.l.b16 %v452
        %v741 = vunpack.c.l.b16 %v453
        %v742 = vunpack.c.l.b16 %v454
        %v743 = vunpack.c.l.b16 %v455
        %v744 = vunpack.c.l.b16 %v456
        %v745 = vunpack.c.l.b16 %v457
        %v746 = vunpack.c.l.b16 %v458
        %v747 = vunpack.c.l.b16 %v459
        %v748 = vunpack.c.l.b16 %v460
        %v749 = vunpack.c.l.b16 %v461
        %v750 = vunpack.c.l.b16 %v462
        %v751 = vunpack.c.l.b16 %v463
        %v752 = vunpack.c.l.b16 %v464
        %v753 = vunpack.c.l.b16 %v465
        %v754 = vunpack.c.l.b16 %v466
        %v755 = vunpack.c.l.b16 %v467
        %v756 = vpack.c.b16 %v693, %v692
        %v757 = vpack.c.b16 %v695, %v694
        %v758 = vpack.c.b16 %v697, %v696
        %v759 = vpack.c.b16 %v699, %v698
        %v760 = vpack.c.b16 %v701, %v700
        %v761 = vpack.c.b16 %v703, %v702
        %v762 = vpack.c.b16 %v705, %v704
        %v763 = vpack.c.b16 %v707, %v706
        %v764 = vpack.c.b16 %v709, %v708
        %v765 = vpack.c.b16 %v711, %v710
        %v766 = vpack.c.b16 %v713, %v712
        %v767 = vpack.c.b16 %v715, %v714
        %v768 = vpack.c.b16 %v717, %v716
        %v769 = vpack.c.b16 %v719, %v718
        %v770 = vpack.c.b16 %v721, %v720
        %v771 = vpack.c.b16 %v723, %v722
        %v772 = vpack.c.b16 %v725, %v724
        %v773 = vpack.c.b16 %v727, %v726
        %v774 = vpack.c.b16 %v729, %v728
        %v775 = vpack.c.b16 %v731, %v730
        %v776 = vpack.c.b16 %v733, %v732
        %v777 = vpack.c.b16 %v735, %v734
        %v778 = vpack.c.b16 %v737, %v736
        %v779 = vpack.c.b16 %v739, %v738
        %v780 = vpack.c.b16 %v741, %v740
        %v781 = vpack.c.b16 %v743, %v742
        %v782 = vpack.c.b16 %v745, %v744
        %v783 = vpack.c.b16 %v747, %v746
        %v784 = vpack.c.b16 %v749, %v748
        %v785 = vpack.c.b16 %v751, %v750
        %v786 = vpack.c.b16 %v753, %v752
        %v787 = vpack.c.b16 %v755, %v754
        %820 = vmatprep.subr.bf16.mxu0 0
        %821 = vmatpush1.bf16.msra.mxu0 %v763
        %822 = vmatprep.subr.bf16.mxu0 0
        %823 = vmatpush1.bf16.msra.mxu0 %v762
        %824 = vmatprep.subr.bf16.mxu0 0
        %825 = vmatpush1.bf16.msra.mxu0 %v761
        %826 = vmatprep.subr.bf16.mxu0 0
        %827 = vmatpush1.bf16.msra.mxu0 %v760
        %828 = vmatprep.subr.bf16.mxu0 0
        %829 = vmatpush1.bf16.msra.mxu0 %v759
        %830 = vmatprep.subr.bf16.mxu0 0
        %831 = vmatpush1.bf16.msra.mxu0 %v758
        %832 = vmatprep.subr.bf16.mxu0 0
        %833 = vmatpush1.bf16.msra.mxu0 %v757
        %834 = vmatprep.subr.bf16.mxu0 0
        %835 = vmatpush1.bf16.msra.mxu0 %v756
        %836 = vmatprep.subr.bf16.mxu0 0
        %837 = vmatpush2.bf16.msra.mxu0 %v771
        %838 = vmatprep.subr.bf16.mxu0 0
        %839 = vmatpush2.bf16.msra.mxu0 %v770
        %840 = vmatprep.subr.bf16.mxu0 0
        %841 = vmatpush2.bf16.msra.mxu0 %v769
        %842 = vmatprep.subr.bf16.mxu0 0
        %843 = vmatpush2.bf16.msra.mxu0 %v768
        %844 = vmatprep.subr.bf16.mxu0 0
        %845 = vmatpush2.bf16.msra.mxu0 %v767
        %846 = vmatprep.subr.bf16.mxu0 0
        %847 = vmatpush2.bf16.msra.mxu0 %v766
        %848 = vmatprep.subr.bf16.mxu0 0
        %849 = vmatpush2.bf16.msra.mxu0 %v765
        %850 = vmatprep.subr.bf16.mxu0 0
        %851 = vmatpush2.bf16.msra.mxu0 %v764
        %852 = vmatprep.mubr.bf16.mxu0 %v565
        %853 = vmatmul.mubr.bf16.gmra.mxu0 %v564
        %v854 = vpop.f32.mrf.mxu0
        %v855 = vadd.f32 0.0, %v854
        %v856 = vpop.f32.mrf.mxu0
        %v857 = vpop.f32.mrf.mxu0
        %v858 = vadd.f32 0.0, %v857
        %v859 = vpop.f32.mrf.mxu0
        %860 = vmatprep.mubr.bf16.mxu0 %v569
        %861 = vmatmul.mubr.bf16.gmra.mxu0 %v568
        %v862 = vpop.f32.mrf.mxu0
        %v863 = vadd.f32 0.0, %v862
        %v864 = vpop.f32.mrf.mxu0
        %v865 = vpop.f32.mrf.mxu0
        %v866 = vadd.f32 0.0, %v865
        %v867 = vpop.f32.mrf.mxu0
        %868 = vmatprep.mubr.bf16.mxu0 %v573
        %869 = vmatmul.mubr.bf16.gmra.mxu0 %v572
        %v870 = vpop.f32.mrf.mxu0
        %v871 = vadd.f32 0.0, %v870
        %v872 = vpop.f32.mrf.mxu0
        %v873 = vpop.f32.mrf.mxu0
        %v874 = vadd.f32 0.0, %v873
        %v875 = vpop.f32.mrf.mxu0
        %876 = vmatprep.mubr.bf16.mxu0 %v577
        %877 = vmatmul.mubr.bf16.gmra.mxu0 %v576
        %v878 = vpop.f32.mrf.mxu0
        %v879 = vadd.f32 0.0, %v878
        %v880 = vpop.f32.mrf.mxu0
        %v881 = vpop.f32.mrf.mxu0
        %v882 = vadd.f32 0.0, %v881
        %v883 = vpop.f32.mrf.mxu0
        %884 = vmatprep.mubr.bf16.mxu0 %v581
        %885 = vmatmul.mubr.bf16.gmra.mxu0 %v580
        %v886 = vpop.f32.mrf.mxu0
        %v887 = vadd.f32 0.0, %v886
        %v888 = vpop.f32.mrf.mxu0
        %v889 = vpop.f32.mrf.mxu0
        %v890 = vadd.f32 0.0, %v889
        %v891 = vpop.f32.mrf.mxu0
        %892 = vmatprep.mubr.bf16.mxu0 %v585
        %893 = vmatmul.mubr.bf16.gmra.mxu0 %v584
        %v894 = vpop.f32.mrf.mxu0
        %v895 = vadd.f32 0.0, %v894
        %v896 = vpop.f32.mrf.mxu0
        %v897 = vpop.f32.mrf.mxu0
        %v898 = vadd.f32 0.0, %v897
        %v899 = vpop.f32.mrf.mxu0
        %900 = vmatprep.mubr.bf16.mxu0 %v589
        %901 = vmatmul.mubr.bf16.gmra.mxu0 %v588
        %v902 = vpop.f32.mrf.mxu0
        %v903 = vadd.f32 0.0, %v902
        %v904 = vpop.f32.mrf.mxu0
        %v905 = vpop.f32.mrf.mxu0
        %v906 = vadd.f32 0.0, %v905
        %v907 = vpop.f32.mrf.mxu0
        %908 = vmatprep.mubr.bf16.mxu0 %v593
        %909 = vmatmul.mubr.bf16.gmra.mxu0 %v592
        %v910 = vpop.f32.mrf.mxu0
        %v911 = vadd.f32 0.0, %v910
        %v912 = vpop.f32.mrf.mxu0
        %v913 = vpop.f32.mrf.mxu0
        %v914 = vadd.f32 0.0, %v913
        %v915 = vpop.f32.mrf.mxu0
        %916 = vdwg.mxu0
        %917 = vmatprep.subr.bf16.mxu0 0
        %918 = vmatpush1.bf16.msra.mxu0 %v779
        %919 = vmatprep.subr.bf16.mxu0 0
        %920 = vmatpush1.bf16.msra.mxu0 %v778
        %921 = vmatprep.subr.bf16.mxu0 0
        %922 = vmatpush1.bf16.msra.mxu0 %v777
        %923 = vmatprep.subr.bf16.mxu0 0
        %924 = vmatpush1.bf16.msra.mxu0 %v776
        %925 = vmatprep.subr.bf16.mxu0 0
        %926 = vmatpush1.bf16.msra.mxu0 %v775
        %927 = vmatprep.subr.bf16.mxu0 0
        %928 = vmatpush1.bf16.msra.mxu0 %v774
        %929 = vmatprep.subr.bf16.mxu0 0
        %930 = vmatpush1.bf16.msra.mxu0 %v773
        %931 = vmatprep.subr.bf16.mxu0 0
        %932 = vmatpush1.bf16.msra.mxu0 %v772
        %933 = vmatprep.subr.bf16.mxu0 0
        %934 = vmatpush2.bf16.msra.mxu0 %v787
        %935 = vmatprep.subr.bf16.mxu0 0
        %936 = vmatpush2.bf16.msra.mxu0 %v786
        %937 = vmatprep.subr.bf16.mxu0 0
        %938 = vmatpush2.bf16.msra.mxu0 %v785
        %939 = vmatprep.subr.bf16.mxu0 0
        %940 = vmatpush2.bf16.msra.mxu0 %v784
        %941 = vmatprep.subr.bf16.mxu0 0
        %942 = vmatpush2.bf16.msra.mxu0 %v783
        %943 = vmatprep.subr.bf16.mxu0 0
        %944 = vmatpush2.bf16.msra.mxu0 %v782
        %945 = vmatprep.subr.bf16.mxu0 0
        %946 = vmatpush2.bf16.msra.mxu0 %v781
        %947 = vmatprep.subr.bf16.mxu0 0
        %948 = vmatpush2.bf16.msra.mxu0 %v780
        %949 = vmatprep.mubr.bf16.mxu0 %v567
        %950 = vmatmul.mubr.bf16.gmra.mxu0 %v566
        %v951 = vpop.f32.mrf.mxu0
        %v952 = vadd.f32 %v855, %v951
        %v953 = vpop.f32.mrf.mxu0
        %v954 = vpop.f32.mrf.mxu0
        %v955 = vadd.f32 %v858, %v954
        %v956 = vpop.f32.mrf.mxu0
        %957 = vmatprep.mubr.bf16.mxu0 %v571
        %958 = vmatmul.mubr.bf16.gmra.mxu0 %v570
        %v959 = vpop.f32.mrf.mxu0
        %v960 = vadd.f32 %v863, %v959
        %v961 = vpop.f32.mrf.mxu0
        %v962 = vpop.f32.mrf.mxu0
        %v963 = vadd.f32 %v866, %v962
        %v964 = vpop.f32.mrf.mxu0
        %965 = vmatprep.mubr.bf16.mxu0 %v575
        %966 = vmatmul.mubr.bf16.gmra.mxu0 %v574
        %v967 = vpop.f32.mrf.mxu0
        %v968 = vadd.f32 %v871, %v967
        %v969 = vpop.f32.mrf.mxu0
        %v970 = vpop.f32.mrf.mxu0
        %v971 = vadd.f32 %v874, %v970
        %v972 = vpop.f32.mrf.mxu0
        %973 = vmatprep.mubr.bf16.mxu0 %v579
        %974 = vmatmul.mubr.bf16.gmra.mxu0 %v578
        %v975 = vpop.f32.mrf.mxu0
        %v976 = vadd.f32 %v879, %v975
        %v977 = vpop.f32.mrf.mxu0
        %v978 = vpop.f32.mrf.mxu0
        %v979 = vadd.f32 %v882, %v978
        %v980 = vpop.f32.mrf.mxu0
        %981 = vmatprep.mubr.bf16.mxu0 %v583
        %982 = vmatmul.mubr.bf16.gmra.mxu0 %v582
        %v983 = vpop.f32.mrf.mxu0
        %v984 = vadd.f32 %v887, %v983
        %v985 = vpop.f32.mrf.mxu0
        %v986 = vpop.f32.mrf.mxu0
        %v987 = vadd.f32 %v890, %v986
        %v988 = vpop.f32.mrf.mxu0
        %989 = vmatprep.mubr.bf16.mxu0 %v587
        %990 = vmatmul.mubr.bf16.gmra.mxu0 %v586
        %v991 = vpop.f32.mrf.mxu0
        %v992 = vadd.f32 %v895, %v991
        %v993 = vpop.f32.mrf.mxu0
        %v994 = vpop.f32.mrf.mxu0
        %v995 = vadd.f32 %v898, %v994
        %v996 = vpop.f32.mrf.mxu0
        %997 = vmatprep.mubr.bf16.mxu0 %v591
        %998 = vmatmul.mubr.bf16.gmra.mxu0 %v590
        %v999 = vpop.f32.mrf.mxu0
        %v1000 = vadd.f32 %v903, %v999
        %v1001 = vpop.f32.mrf.mxu0
        %v1002 = vpop.f32.mrf.mxu0
        %v1003 = vadd.f32 %v906, %v1002
        %v1004 = vpop.f32.mrf.mxu0
        %1005 = vmatprep.mubr.bf16.mxu0 %v595
        %1006 = vmatmul.mubr.bf16.gmra.mxu0 %v594
        %v1007 = vpop.f32.mrf.mxu0
        %v1008 = vadd.f32 %v911, %v1007
        %v1009 = vpop.f32.mrf.mxu0
        %v1010 = vpop.f32.mrf.mxu0
        %v1011 = vadd.f32 %v914, %v1010
        %v1012 = vpop.f32.mrf.mxu0
        %1013 = vdwg.mxu0
        %v1014 = vadd.f32 %v356, %v952
        %v1015 = vadd.f32 %v357, %v955
        %v1016 = vadd.f32 %v358, %v960
        %v1017 = vadd.f32 %v359, %v963
        %v1018 = vadd.f32 %v360, %v968
        %v1019 = vadd.f32 %v361, %v971
        %v1020 = vadd.f32 %v362, %v976
        %v1021 = vadd.f32 %v363, %v979
        %v1022 = vadd.f32 %v364, %v984
        %v1023 = vadd.f32 %v365, %v987
        %v1024 = vadd.f32 %v366, %v992
        %v1025 = vadd.f32 %v367, %v995
        %v1026 = vadd.f32 %v368, %v1000
        %v1027 = vadd.f32 %v369, %v1003
        %v1028 = vadd.f32 %v370, %v1008
        %v1029 = vadd.f32 %v371, %v1011
        %1030 = vst [vmem:[#allocation2] sm:$0xff] %v1014
        %1031 = vst [vmem:[#allocation2 + $0x8] sm:$0xff] %v1015
        %1032 = vst [vmem:[#allocation2 + $0x10] sm:$0xff] %v1016
        %1033 = vst [vmem:[#allocation2 + $0x18] sm:$0xff] %v1017
        %1034 = vst [vmem:[#allocation2 + $0x20] sm:$0xff] %v1018
        %1035 = vst [vmem:[#allocation2 + $0x28] sm:$0xff] %v1019
        %1036 = vst [vmem:[#allocation2 + $0x30] sm:$0xff] %v1020
        %1037 = vst [vmem:[#allocation2 + $0x38] sm:$0xff] %v1021
        %1038 = vst [vmem:[#allocation2 + $0x40] sm:$0xff] %v1022
        %1039 = vst [vmem:[#allocation2 + $0x48] sm:$0xff] %v1023
        %1040 = vst [vmem:[#allocation2 + $0x50] sm:$0xff] %v1024
        %1041 = vst [vmem:[#allocation2 + $0x58] sm:$0xff] %v1025
        %1042 = vst [vmem:[#allocation2 + $0x60] sm:$0xff] %v1026
        %1043 = vst [vmem:[#allocation2 + $0x68] sm:$0xff] %v1027
        %1044 = vst [vmem:[#allocation2 + $0x70] sm:$0xff] %v1028
        %1045 = vst [vmem:[#allocation2 + $0x78] sm:$0xff] %v1029
        %p1046 = scmp.eq.s32.totalorder %s21, 3
        // Predicated region
        $region60: #{_lambda_.31} parent=50 // pred_check
          %p1047 = pneg %p1046
        $region61: #{_lambda_.31} parent=50 // pred_check_branch
          %1049 = sbr.rel (%p1047) target = $region63
        $region62: #{_lambda_.31} parent=50 // pred_region
          %v1050 = vld [vmem:[#allocation2] sm:$0xff]
          %v1051 = vld [vmem:[#allocation2 + $0x8] sm:$0xff]
          %v1052 = vld [vmem:[#allocation2 + $0x10] sm:$0xff]
          %v1053 = vld [vmem:[#allocation2 + $0x18] sm:$0xff]
          %v1054 = vld [vmem:[#allocation2 + $0x20] sm:$0xff]
          %v1055 = vld [vmem:[#allocation2 + $0x28] sm:$0xff]
          %v1056 = vld [vmem:[#allocation2 + $0x30] sm:$0xff]
          %v1057 = vld [vmem:[#allocation2 + $0x38] sm:$0xff]
          %v1058 = vld [vmem:[#allocation2 + $0x40] sm:$0xff]
          %v1059 = vld [vmem:[#allocation2 + $0x48] sm:$0xff]
          %v1060 = vld [vmem:[#allocation2 + $0x50] sm:$0xff]
          %v1061 = vld [vmem:[#allocation2 + $0x58] sm:$0xff]
          %v1062 = vld [vmem:[#allocation2 + $0x60] sm:$0xff]
          %v1063 = vld [vmem:[#allocation2 + $0x68] sm:$0xff]
          %v1064 = vld [vmem:[#allocation2 + $0x70] sm:$0xff]
          %v1065 = vld [vmem:[#allocation2 + $0x78] sm:$0xff]
          %v1066 = vld [vmem:[%s325] sm:$0x1]
          %v1068 = vlaneseq
          %v1069 = vshrl.u32 %v1068, 7
          %v1070 = vsub.s32 0, %v1069
          %v1071 = vrot.slane %v1066, %v1070
          %v1073 = vadd.f32 %v1050, %v1071
          %v1074 = vadd.f32 %v1051, %v1071
          %v1075 = vadd.f32 %v1052, %v1071
          %v1076 = vadd.f32 %v1053, %v1071
          %v1077 = vadd.f32 %v1054, %v1071
          %v1078 = vadd.f32 %v1055, %v1071
          %v1079 = vadd.f32 %v1056, %v1071
          %v1080 = vadd.f32 %v1057, %v1071
          %v1081 = vadd.f32 %v1058, %v1071
          %v1082 = vadd.f32 %v1059, %v1071
          %v1083 = vadd.f32 %v1060, %v1071
          %v1084 = vadd.f32 %v1061, %v1071
          %v1085 = vadd.f32 %v1062, %v1071
          %v1086 = vadd.f32 %v1063, %v1071
          %v1087 = vadd.f32 %v1064, %v1071
          %v1088 = vadd.f32 %v1065, %v1071
          %1089 = vst [vmem:[%s333] sm:$0xff] %v1073
          %1090 = vst [vmem:[%s333 + $0x8] sm:$0xff] %v1074
          %1091 = vst [vmem:[%s333 + $0x10] sm:$0xff] %v1075
          %1092 = vst [vmem:[%s333 + $0x18] sm:$0xff] %v1076
          %1093 = vst [vmem:[%s333 + $0x20] sm:$0xff] %v1077
          %1094 = vst [vmem:[%s333 + $0x28] sm:$0xff] %v1078
          %1095 = vst [vmem:[%s333 + $0x30] sm:$0xff] %v1079
          %1096 = vst [vmem:[%s333 + $0x38] sm:$0xff] %v1080
          %1097 = vst [vmem:[%s333 + $0x40] sm:$0xff] %v1081
          %1098 = vst [vmem:[%s333 + $0x48] sm:$0xff] %v1082
          %1099 = vst [vmem:[%s333 + $0x50] sm:$0xff] %v1083
          %1100 = vst [vmem:[%s333 + $0x58] sm:$0xff] %v1084
          %1101 = vst [vmem:[%s333 + $0x60] sm:$0xff] %v1085
          %1102 = vst [vmem:[%s333 + $0x68] sm:$0xff] %v1086
          %1103 = vst [vmem:[%s333 + $0x70] sm:$0xff] %v1087
          %1104 = vst [vmem:[%s333 + $0x78] sm:$0xff] %v1088
        $region63: #{_lambda_.31} parent=50 // pred_fallthru
          _
        %s1105 = smul.u32 16, %s19
        %p1106 = scmp.lt.s32.totalorder %s1105, 15
        %s1107 = scalar_select %p1106, %s1105, 15
        %p1108 = scmp.lt.s32.totalorder %s20, 0
        %s1109 = scalar_select %p1108, %s20, 0
        %s1110 = sadd.s32 %s1109, %s1107
        %s1111 = smul.addr %s1110, 8
        %s1112 = scalar_lea.vmem %s3, %s1111
        // Predicated region
        $region64: #{_lambda_.31} parent=50 // pred_check
          %p1113 = pneg %p135
        $region65: #{_lambda_.31} parent=50 // pred_check_branch
          %1115 = sbr.rel (%p1113) target = $region67
        $region66: #{_lambda_.31} parent=50 // pred_region
          %s1116 = smul.u32 16, %s19
        $region67: #{_lambda_.31} parent=50 // pred_fallthru
          _
        // Predicated region
        $region68: #{_lambda_.31} parent=50 // pred_check
          %p1117 = pneg %p135
        $region69: #{_lambda_.31} parent=50 // pred_check_branch
          %1119 = sbr.rel (%p1117) target = $region71
        $region70: #{_lambda_.31} parent=50 // pred_region
          %s1120 = smul.u32 16, %s19
          %p1121 = scmp.lt.s32.totalorder %s1120, 15
          %s1122 = scalar_select %p1121, %s1120, 15
          %p1123 = scmp.lt.s32.totalorder %s20, 0
          %s1124 = scalar_select %p1123, %s20, 0
          %s1125 = sadd.s32 %s1124, %s1122
          %s1126 = smul.addr %s1125, 8
          %s1127 = scalar_lea.vmem %s3, %s1126
        $region71: #{_lambda_.31} parent=50 // pred_fallthru
          _
      $region51: #{_lambda_.31} parent=5 // pred_fallthru
        _
      %p1128 = scmp.le.s32.totalorder 2, %s9
      // Predicated region
      $region72: #{_lambda_.31} parent=5 // pred_check
        %p1129 = pneg %p1128
      $region73: #{_lambda_.31} parent=5 // pred_check_branch
        %1131 = sbr.rel (%p1129) target = $region75
      $region74: #{_lambda_.31} parent=5 // pred_region
        %s1132 = ssub.s32 %s9, 2
      $region75: #{_lambda_.31} parent=5 // pred_fallthru
        _
    $region6: #{_lambda_.31} parent=1 // loop_footer
      %s13 = sadd.s32 1, %s9
    $region7: #{_lambda_.31} parent=1 // loop_footer_branch
      %8 = sbr.rel target = $region3
    $region8: #{_lambda_.31} parent=1 // loop_exit
      _

// kernel: _lambda_.16
$region0: #{_lambda_.16}
  #allocation0 [shape = 'u32[]', space=smem, size = 0x4, offset = 0x4, fixed_abs, tag = 'smem constant byte address 0x4 - core index']
  #allocation1 [shape = 'u32[144,128]{1,0:T(1,128)}', space=vmem, size = 0x12000, scoped, tag = 'internal scratch']
  #allocation2 [shape = 'f32[512,128]{1,0:T(8,128)}', space=vmem, size = 0x40000, scoped, tag = 'scratch operand']
  %s0 = inlined_call_operand.vmem [shape: bf16[512,128], index: 0, kind: input, shape index: {}]
  %s1 = inlined_call_operand.vmem [shape: bf16[128,128], index: 1, kind: input, shape index: {}]
  %s2 = inlined_call_operand.vmem [shape: f32[1,128], index: 2, kind: input, shape index: {}]
  %s3 = inlined_call_operand.vmem [shape: bf16[512,128], index: 3, kind: output, shape index: {}]
  %s4 = sld [smem:[#allocation0]]
  $region30: #{_lambda_.16} parent=0
    _
  %s6 = ssub.s32 1, %s4
  %s7 = scalar_select 0, %s6, %s4
  // Predicated region
  $region2: #{_lambda_.16} parent=0 // pred_check
    _
  $region3: #{_lambda_.16} parent=0 // pred_check_branch
    %9 = sbr.rel (0) target = $region5
  $region4: #{_lambda_.16} parent=0 // pred_region
    _
  $region5: #{_lambda_.16} parent=0 // pred_fallthru
    _
  // Predicated region
  $region6: #{_lambda_.16} parent=0 // pred_check
    _
  $region7: #{_lambda_.16} parent=0 // pred_check_branch
    %11 = sbr.rel (0) target = $region9
  $region8: #{_lambda_.16} parent=0 // pred_region
    _
  $region9: #{_lambda_.16} parent=0 // pred_fallthru
    _
  // Predicated region
  $region10: #{_lambda_.16} parent=0 // pred_check
    _
  $region11: #{_lambda_.16} parent=0 // pred_check_branch
    %13 = sbr.rel (0) target = $region13
  $region12: #{_lambda_.16} parent=0 // pred_region
    _
  $region13: #{_lambda_.16} parent=0 // pred_fallthru
    _
  %p15 = scmp.eq.s32.totalorder 0, 0
  // Predicated region
  $region14: #{_lambda_.16} parent=0 // pred_check
    %p16 = pneg %p15
  $region15: #{_lambda_.16} parent=0 // pred_check_branch
    %18 = sbr.rel (%p16) target = $region17
  $region16: #{_lambda_.16} parent=0 // pred_region
    %19 = vst [vmem:[#allocation2] sm:$0xff] 0.0
    %20 = vst [vmem:[#allocation2 + $0x8] sm:$0xff] 0.0
    %21 = vst [vmem:[#allocation2 + $0x10] sm:$0xff] 0.0
    %22 = vst [vmem:[#allocation2 + $0x18] sm:$0xff] 0.0
    %23 = vst [vmem:[#allocation2 + $0x20] sm:$0xff] 0.0
    %24 = vst [vmem:[#allocation2 + $0x28] sm:$0xff] 0.0
    %25 = vst [vmem:[#allocation2 + $0x30] sm:$0xff] 0.0
    %26 = vst [vmem:[#allocation2 + $0x38] sm:$0xff] 0.0
    %27 = vst [vmem:[#allocation2 + $0x40] sm:$0xff] 0.0
    %28 = vst [vmem:[#allocation2 + $0x48] sm:$0xff] 0.0
    %29 = vst [vmem:[#allocation2 + $0x50] sm:$0xff] 0.0
    %30 = vst [vmem:[#allocation2 + $0x58] sm:$0xff] 0.0
    %31 = vst [vmem:[#allocation2 + $0x60] sm:$0xff] 0.0
    %32 = vst [vmem:[#allocation2 + $0x68] sm:$0xff] 0.0
    %33 = vst [vmem:[#allocation2 + $0x70] sm:$0xff] 0.0
    %34 = vst [vmem:[#allocation2 + $0x78] sm:$0xff] 0.0
    %35 = vst [vmem:[#allocation2 + $0x80] sm:$0xff] 0.0
    %36 = vst [vmem:[#allocation2 + $0x88] sm:$0xff] 0.0
    %37 = vst [vmem:[#allocation2 + $0x90] sm:$0xff] 0.0
    %38 = vst [vmem:[#allocation2 + $0x98] sm:$0xff] 0.0
    %39 = vst [vmem:[#allocation2 + $0xa0] sm:$0xff] 0.0
    %40 = vst [vmem:[#allocation2 + $0xa8] sm:$0xff] 0.0
    %41 = vst [vmem:[#allocation2 + $0xb0] sm:$0xff] 0.0
    %42 = vst [vmem:[#allocation2 + $0xb8] sm:$0xff] 0.0
    %43 = vst [vmem:[#allocation2 + $0xc0] sm:$0xff] 0.0
    %44 = vst [vmem:[#allocation2 + $0xc8] sm:$0xff] 0.0
    %45 = vst [vmem:[#allocation2 + $0xd0] sm:$0xff] 0.0
    %46 = vst [vmem:[#allocation2 + $0xd8] sm:$0xff] 0.0
    %47 = vst [vmem:[#allocation2 + $0xe0] sm:$0xff] 0.0
    %48 = vst [vmem:[#allocation2 + $0xe8] sm:$0xff] 0.0
    %49 = vst [vmem:[#allocation2 + $0xf0] sm:$0xff] 0.0
    %50 = vst [vmem:[#allocation2 + $0xf8] sm:$0xff] 0.0
    %51 = vst [vmem:[#allocation2 + $0x100] sm:$0xff] 0.0
    %52 = vst [vmem:[#allocation2 + $0x108] sm:$0xff] 0.0
    %53 = vst [vmem:[#allocation2 + $0x110] sm:$0xff] 0.0
    %54 = vst [vmem:[#allocation2 + $0x118] sm:$0xff] 0.0
    %55 = vst [vmem:[#allocation2 + $0x120] sm:$0xff] 0.0
    %56 = vst [vmem:[#allocation2 + $0x128] sm:$0xff] 0.0
    %57 = vst [vmem:[#allocation2 + $0x130] sm:$0xff] 0.0
    %58 = vst [vmem:[#allocation2 + $0x138] sm:$0xff] 0.0
    %59 = vst [vmem:[#allocation2 + $0x140] sm:$0xff] 0.0
    %60 = vst [vmem:[#allocation2 + $0x148] sm:$0xff] 0.0
    %61 = vst [vmem:[#allocation2 + $0x150] sm:$0xff] 0.0
    %62 = vst [vmem:[#allocation2 + $0x158] sm:$0xff] 0.0
    %63 = vst [vmem:[#allocation2 + $0x160] sm:$0xff] 0.0
    %64 = vst [vmem:[#allocation2 + $0x168] sm:$0xff] 0.0
    %65 = vst [vmem:[#allocation2 + $0x170] sm:$0xff] 0.0
    %66 = vst [vmem:[#allocation2 + $0x178] sm:$0xff] 0.0
    %67 = vst [vmem:[#allocation2 + $0x180] sm:$0xff] 0.0
    %68 = vst [vmem:[#allocation2 + $0x188] sm:$0xff] 0.0
    %69 = vst [vmem:[#allocation2 + $0x190] sm:$0xff] 0.0
    %70 = vst [vmem:[#allocation2 + $0x198] sm:$0xff] 0.0
    %71 = vst [vmem:[#allocation2 + $0x1a0] sm:$0xff] 0.0
    %72 = vst [vmem:[#allocation2 + $0x1a8] sm:$0xff] 0.0
    %73 = vst [vmem:[#allocation2 + $0x1b0] sm:$0xff] 0.0
    %74 = vst [vmem:[#allocation2 + $0x1b8] sm:$0xff] 0.0
    %75 = vst [vmem:[#allocation2 + $0x1c0] sm:$0xff] 0.0
    %76 = vst [vmem:[#allocation2 + $0x1c8] sm:$0xff] 0.0
    %77 = vst [vmem:[#allocation2 + $0x1d0] sm:$0xff] 0.0
    %78 = vst [vmem:[#allocation2 + $0x1d8] sm:$0xff] 0.0
    %79 = vst [vmem:[#allocation2 + $0x1e0] sm:$0xff] 0.0
    %80 = vst [vmem:[#allocation2 + $0x1e8] sm:$0xff] 0.0
    %81 = vst [vmem:[#allocation2 + $0x1f0] sm:$0xff] 0.0
    %82 = vst [vmem:[#allocation2 + $0x1f8] sm:$0xff] 0.0
  $region17: #{_lambda_.16} parent=0 // pred_fallthru
    _
  %v83 = vld [vmem:[#allocation2] sm:$0xff]
  %v84 = vld [vmem:[#allocation2 + $0x8] sm:$0xff]
  %v85 = vld [vmem:[#allocation2 + $0x10] sm:$0xff]
  %v86 = vld [vmem:[#allocation2 + $0x18] sm:$0xff]
  %v87 = vld [vmem:[#allocation2 + $0x20] sm:$0xff]
  %v88 = vld [vmem:[#allocation2 + $0x28] sm:$0xff]
  %v89 = vld [vmem:[#allocation2 + $0x30] sm:$0xff]
  %v90 = vld [vmem:[#allocation2 + $0x38] sm:$0xff]
  %v91 = vld [vmem:[#allocation2 + $0x40] sm:$0xff]
  %v92 = vld [vmem:[#allocation2 + $0x48] sm:$0xff]
  %v93 = vld [vmem:[#allocation2 + $0x50] sm:$0xff]
  %v94 = vld [vmem:[#allocation2 + $0x58] sm:$0xff]
  %v95 = vld [vmem:[#allocation2 + $0x60] sm:$0xff]
  %v96 = vld [vmem:[#allocation2 + $0x68] sm:$0xff]
  %v97 = vld [vmem:[#allocation2 + $0x70] sm:$0xff]
  %v98 = vld [vmem:[#allocation2 + $0x78] sm:$0xff]
  %v99 = vld [vmem:[#allocation2 + $0x80] sm:$0xff]
  %v100 = vld [vmem:[#allocation2 + $0x88] sm:$0xff]
  %v101 = vld [vmem:[#allocation2 + $0x90] sm:$0xff]
  %v102 = vld [vmem:[#allocation2 + $0x98] sm:$0xff]
  %v103 = vld [vmem:[#allocation2 + $0xa0] sm:$0xff]
  %v104 = vld [vmem:[#allocation2 + $0xa8] sm:$0xff]
  %v105 = vld [vmem:[#allocation2 + $0xb0] sm:$0xff]
  %v106 = vld [vmem:[#allocation2 + $0xb8] sm:$0xff]
  %v107 = vld [vmem:[#allocation2 + $0xc0] sm:$0xff]
  %v108 = vld [vmem:[#allocation2 + $0xc8] sm:$0xff]
  %v109 = vld [vmem:[#allocation2 + $0xd0] sm:$0xff]
  %v110 = vld [vmem:[#allocation2 + $0xd8] sm:$0xff]
  %v111 = vld [vmem:[#allocation2 + $0xe0] sm:$0xff]
  %v112 = vld [vmem:[#allocation2 + $0xe8] sm:$0xff]
  %v113 = vld [vmem:[#allocation2 + $0xf0] sm:$0xff]
  %v114 = vld [vmem:[#allocation2 + $0xf8] sm:$0xff]
  %v115 = vld [vmem:[#allocation2 + $0x100] sm:$0xff]
  %v116 = vld [vmem:[#allocation2 + $0x108] sm:$0xff]
  %v117 = vld [vmem:[#allocation2 + $0x110] sm:$0xff]
  %v118 = vld [vmem:[#allocation2 + $0x118] sm:$0xff]
  %v119 = vld [vmem:[#allocation2 + $0x120] sm:$0xff]
  %v120 = vld [vmem:[#allocation2 + $0x128] sm:$0xff]
  %v121 = vld [vmem:[#allocation2 + $0x130] sm:$0xff]
  %v122 = vld [vmem:[#allocation2 + $0x138] sm:$0xff]
  %v123 = vld [vmem:[#allocation2 + $0x140] sm:$0xff]
  %v124 = vld [vmem:[#allocation2 + $0x148] sm:$0xff]
  %v125 = vld [vmem:[#allocation2 + $0x150] sm:$0xff]
  %v126 = vld [vmem:[#allocation2 + $0x158] sm:$0xff]
  %v127 = vld [vmem:[#allocation2 + $0x160] sm:$0xff]
  %v128 = vld [vmem:[#allocation2 + $0x168] sm:$0xff]
  %v129 = vld [vmem:[#allocation2 + $0x170] sm:$0xff]
  %v130 = vld [vmem:[#allocation2 + $0x178] sm:$0xff]
  %v131 = vld [vmem:[#allocation2 + $0x180] sm:$0xff]
  %v132 = vld [vmem:[#allocation2 + $0x188] sm:$0xff]
  %v133 = vld [vmem:[#allocation2 + $0x190] sm:$0xff]
  %v134 = vld [vmem:[#allocation2 + $0x198] sm:$0xff]
  %v135 = vld [vmem:[#allocation2 + $0x1a0] sm:$0xff]
  %v136 = vld [vmem:[#allocation2 + $0x1a8] sm:$0xff]
  %v137 = vld [vmem:[#allocation2 + $0x1b0] sm:$0xff]
  %v138 = vld [vmem:[#allocation2 + $0x1b8] sm:$0xff]
  %v139 = vld [vmem:[#allocation2 + $0x1c0] sm:$0xff]
  %v140 = vld [vmem:[#allocation2 + $0x1c8] sm:$0xff]
  %v141 = vld [vmem:[#allocation2 + $0x1d0] sm:$0xff]
  %v142 = vld [vmem:[#allocation2 + $0x1d8] sm:$0xff]
  %v143 = vld [vmem:[#allocation2 + $0x1e0] sm:$0xff]
  %v144 = vld [vmem:[#allocation2 + $0x1e8] sm:$0xff]
  %v145 = vld [vmem:[#allocation2 + $0x1f0] sm:$0xff]
  %v146 = vld [vmem:[#allocation2 + $0x1f8] sm:$0xff]
  %v147 = vld [vmem:[%s0] sm:$0xf]
  %v148 = vld [vmem:[%s0 + $0x4] sm:$0xf]
  %v149 = vld [vmem:[%s0 + $0x8] sm:$0xf]
  %v150 = vld [vmem:[%s0 + $0xc] sm:$0xf]
  %v151 = vld [vmem:[%s0 + $0x10] sm:$0xf]
  %v152 = vld [vmem:[%s0 + $0x14] sm:$0xf]
  %v153 = vld [vmem:[%s0 + $0x18] sm:$0xf]
  %v154 = vld [vmem:[%s0 + $0x1c] sm:$0xf]
  %v155 = vld [vmem:[%s0 + $0x20] sm:$0xf]
  %v156 = vld [vmem:[%s0 + $0x24] sm:$0xf]
  %v157 = vld [vmem:[%s0 + $0x28] sm:$0xf]
  %v158 = vld [vmem:[%s0 + $0x2c] sm:$0xf]
  %v159 = vld [vmem:[%s0 + $0x30] sm:$0xf]
  %v160 = vld [vmem:[%s0 + $0x34] sm:$0xf]
  %v161 = vld [vmem:[%s0 + $0x38] sm:$0xf]
  %v162 = vld [vmem:[%s0 + $0x3c] sm:$0xf]
  %v163 = vld [vmem:[%s0 + $0x40] sm:$0xf]
  %v164 = vld [vmem:[%s0 + $0x44] sm:$0xf]
  %v165 = vld [vmem:[%s0 + $0x48] sm:$0xf]
  %v166 = vld [vmem:[%s0 + $0x4c] sm:$0xf]
  %v167 = vld [vmem:[%s0 + $0x50] sm:$0xf]
  %v168 = vld [vmem:[%s0 + $0x54] sm:$0xf]
  %v169 = vld [vmem:[%s0 + $0x58] sm:$0xf]
  %v170 = vld [vmem:[%s0 + $0x5c] sm:$0xf]
  %v171 = vld [vmem:[%s0 + $0x60] sm:$0xf]
  %v172 = vld [vmem:[%s0 + $0x64] sm:$0xf]
  %v173 = vld [vmem:[%s0 + $0x68] sm:$0xf]
  %v174 = vld [vmem:[%s0 + $0x6c] sm:$0xf]
  %v175 = vld [vmem:[%s0 + $0x70] sm:$0xf]
  %v176 = vld [vmem:[%s0 + $0x74] sm:$0xf]
  %v177 = vld [vmem:[%s0 + $0x78] sm:$0xf]
  %v178 = vld [vmem:[%s0 + $0x7c] sm:$0xf]
  %v179 = vld [vmem:[%s0 + $0x80] sm:$0xf]
  %v180 = vld [vmem:[%s0 + $0x84] sm:$0xf]
  %v181 = vld [vmem:[%s0 + $0x88] sm:$0xf]
  %v182 = vld [vmem:[%s0 + $0x8c] sm:$0xf]
  %v183 = vld [vmem:[%s0 + $0x90] sm:$0xf]
  %v184 = vld [vmem:[%s0 + $0x94] sm:$0xf]
  %v185 = vld [vmem:[%s0 + $0x98] sm:$0xf]
  %v186 = vld [vmem:[%s0 + $0x9c] sm:$0xf]
  %v187 = vld [vmem:[%s0 + $0xa0] sm:$0xf]
  %v188 = vld [vmem:[%s0 + $0xa4] sm:$0xf]
  %v189 = vld [vmem:[%s0 + $0xa8] sm:$0xf]
  %v190 = vld [vmem:[%s0 + $0xac] sm:$0xf]
  %v191 = vld [vmem:[%s0 + $0xb0] sm:$0xf]
  %v192 = vld [vmem:[%s0 + $0xb4] sm:$0xf]
  %v193 = vld [vmem:[%s0 + $0xb8] sm:$0xf]
  %v194 = vld [vmem:[%s0 + $0xbc] sm:$0xf]
  %v195 = vld [vmem:[%s0 + $0xc0] sm:$0xf]
  %v196 = vld [vmem:[%s0 + $0xc4] sm:$0xf]
  %v197 = vld [vmem:[%s0 + $0xc8] sm:$0xf]
  %v198 = vld [vmem:[%s0 + $0xcc] sm:$0xf]
  %v199 = vld [vmem:[%s0 + $0xd0] sm:$0xf]
  %v200 = vld [vmem:[%s0 + $0xd4] sm:$0xf]
  %v201 = vld [vmem:[%s0 + $0xd8] sm:$0xf]
  %v202 = vld [vmem:[%s0 + $0xdc] sm:$0xf]
  %v203 = vld [vmem:[%s0 + $0xe0] sm:$0xf]
  %v204 = vld [vmem:[%s0 + $0xe4] sm:$0xf]
  %v205 = vld [vmem:[%s0 + $0xe8] sm:$0xf]
  %v206 = vld [vmem:[%s0 + $0xec] sm:$0xf]
  %v207 = vld [vmem:[%s0 + $0xf0] sm:$0xf]
  %v208 = vld [vmem:[%s0 + $0xf4] sm:$0xf]
  %v209 = vld [vmem:[%s0 + $0xf8] sm:$0xf]
  %v210 = vld [vmem:[%s0 + $0xfc] sm:$0xf]
  %v211 = vld [vmem:[%s1] sm:$0xf]
  %v212 = vld [vmem:[%s1 + $0x4] sm:$0xf]
  %v213 = vld [vmem:[%s1 + $0x8] sm:$0xf]
  %v214 = vld [vmem:[%s1 + $0xc] sm:$0xf]
  %v215 = vld [vmem:[%s1 + $0x10] sm:$0xf]
  %v216 = vld [vmem:[%s1 + $0x14] sm:$0xf]
  %v217 = vld [vmem:[%s1 + $0x18] sm:$0xf]
  %v218 = vld [vmem:[%s1 + $0x1c] sm:$0xf]
  %v219 = vld [vmem:[%s1 + $0x20] sm:$0xf]
  %v220 = vld [vmem:[%s1 + $0x24] sm:$0xf]
  %v221 = vld [vmem:[%s1 + $0x28] sm:$0xf]
  %v222 = vld [vmem:[%s1 + $0x2c] sm:$0xf]
  %v223 = vld [vmem:[%s1 + $0x30] sm:$0xf]
  %v224 = vld [vmem:[%s1 + $0x34] sm:$0xf]
  %v225 = vld [vmem:[%s1 + $0x38] sm:$0xf]
  %v226 = vld [vmem:[%s1 + $0x3c] sm:$0xf]
  %v291 = vunpack.c.l.b16 %v147
  %v292 = vunpack.c.l.b16 %v148
  %v293 = vunpack.c.l.b16 %v149
  %v294 = vunpack.c.l.b16 %v150
  %v295 = vunpack.c.l.b16 %v151
  %v296 = vunpack.c.l.b16 %v152
  %v297 = vunpack.c.l.b16 %v153
  %v298 = vunpack.c.l.b16 %v154
  %v299 = vunpack.c.l.b16 %v155
  %v300 = vunpack.c.l.b16 %v156
  %v301 = vunpack.c.l.b16 %v157
  %v302 = vunpack.c.l.b16 %v158
  %v303 = vunpack.c.l.b16 %v159
  %v304 = vunpack.c.l.b16 %v160
  %v305 = vunpack.c.l.b16 %v161
  %v306 = vunpack.c.l.b16 %v162
  %v307 = vunpack.c.l.b16 %v163
  %v308 = vunpack.c.l.b16 %v164
  %v309 = vunpack.c.l.b16 %v165
  %v310 = vunpack.c.l.b16 %v166
  %v311 = vunpack.c.l.b16 %v167
  %v312 = vunpack.c.l.b16 %v168
  %v313 = vunpack.c.l.b16 %v169
  %v314 = vunpack.c.l.b16 %v170
  %v315 = vunpack.c.l.b16 %v171
  %v316 = vunpack.c.l.b16 %v172
  %v317 = vunpack.c.l.b16 %v173
  %v318 = vunpack.c.l.b16 %v174
  %v319 = vunpack.c.l.b16 %v175
  %v320 = vunpack.c.l.b16 %v176
  %v321 = vunpack.c.l.b16 %v177
  %v322 = vunpack.c.l.b16 %v178
  %v323 = vunpack.c.l.b16 %v179
  %v324 = vunpack.c.l.b16 %v180
  %v325 = vunpack.c.l.b16 %v181
  %v326 = vunpack.c.l.b16 %v182
  %v327 = vunpack.c.l.b16 %v183
  %v328 = vunpack.c.l.b16 %v184
  %v329 = vunpack.c.l.b16 %v185
  %v330 = vunpack.c.l.b16 %v186
  %v331 = vunpack.c.l.b16 %v187
  %v332 = vunpack.c.l.b16 %v188
  %v333 = vunpack.c.l.b16 %v189
  %v334 = vunpack.c.l.b16 %v190
  %v335 = vunpack.c.l.b16 %v191
  %v336 = vunpack.c.l.b16 %v192
  %v337 = vunpack.c.l.b16 %v193
  %v338 = vunpack.c.l.b16 %v194
  %v339 = vunpack.c.l.b16 %v195
  %v340 = vunpack.c.l.b16 %v196
  %v341 = vunpack.c.l.b16 %v197
  %v342 = vunpack.c.l.b16 %v198
  %v343 = vunpack.c.l.b16 %v199
  %v344 = vunpack.c.l.b16 %v200
  %v345 = vunpack.c.l.b16 %v201
  %v346 = vunpack.c.l.b16 %v202
  %v347 = vunpack.c.l.b16 %v203
  %v348 = vunpack.c.l.b16 %v204
  %v349 = vunpack.c.l.b16 %v205
  %v350 = vunpack.c.l.b16 %v206
  %v351 = vunpack.c.l.b16 %v207
  %v352 = vunpack.c.l.b16 %v208
  %v353 = vunpack.c.l.b16 %v209
  %v354 = vunpack.c.l.b16 %v210
  %v355 = vpack.c.b16 %v292, %v291
  %v356 = vpack.c.b16 %v294, %v293
  %v357 = vpack.c.b16 %v296, %v295
  %v358 = vpack.c.b16 %v298, %v297
  %v359 = vpack.c.b16 %v300, %v299
  %v360 = vpack.c.b16 %v302, %v301
  %v361 = vpack.c.b16 %v304, %v303
  %v362 = vpack.c.b16 %v306, %v305
  %v363 = vpack.c.b16 %v308, %v307
  %v364 = vpack.c.b16 %v310, %v309
  %v365 = vpack.c.b16 %v312, %v311
  %v366 = vpack.c.b16 %v314, %v313
  %v367 = vpack.c.b16 %v316, %v315
  %v368 = vpack.c.b16 %v318, %v317
  %v369 = vpack.c.b16 %v320, %v319
  %v370 = vpack.c.b16 %v322, %v321
  %v371 = vpack.c.b16 %v324, %v323
  %v372 = vpack.c.b16 %v326, %v325
  %v373 = vpack.c.b16 %v328, %v327
  %v374 = vpack.c.b16 %v330, %v329
  %v375 = vpack.c.b16 %v332, %v331
  %v376 = vpack.c.b16 %v334, %v333
  %v377 = vpack.c.b16 %v336, %v335
  %v378 = vpack.c.b16 %v338, %v337
  %v379 = vpack.c.b16 %v340, %v339
  %v380 = vpack.c.b16 %v342, %v341
  %v381 = vpack.c.b16 %v344, %v343
  %v382 = vpack.c.b16 %v346, %v345
  %v383 = vpack.c.b16 %v348, %v347
  %v384 = vpack.c.b16 %v350, %v349
  %v385 = vpack.c.b16 %v352, %v351
  %v386 = vpack.c.b16 %v354, %v353
  %v435 = vunpack.c.l.b16 %v211
  %v436 = vunpack.c.l.b16 %v212
  %v437 = vunpack.c.l.b16 %v213
  %v438 = vunpack.c.l.b16 %v214
  %v439 = vunpack.c.l.b16 %v215
  %v440 = vunpack.c.l.b16 %v216
  %v441 = vunpack.c.l.b16 %v217
  %v442 = vunpack.c.l.b16 %v218
  %v443 = vunpack.c.l.b16 %v219
  %v444 = vunpack.c.l.b16 %v220
  %v445 = vunpack.c.l.b16 %v221
  %v446 = vunpack.c.l.b16 %v222
  %v447 = vunpack.c.l.b16 %v223
  %v448 = vunpack.c.l.b16 %v224
  %v449 = vunpack.c.l.b16 %v225
  %v450 = vunpack.c.l.b16 %v226
  %v451 = vpack.c.b16 %v436, %v435
  %v452 = vpack.c.b16 %v438, %v437
  %v453 = vpack.c.b16 %v440, %v439
  %v454 = vpack.c.b16 %v442, %v441
  %v455 = vpack.c.b16 %v444, %v443
  %v456 = vpack.c.b16 %v446, %v445
  %v457 = vpack.c.b16 %v448, %v447
  %v458 = vpack.c.b16 %v450, %v449
  %467 = vmatprep.subr.bf16.mxu0 0
  %468 = vmatpush1.bf16.msra.mxu0 %v458
  %469 = vmatprep.subr.bf16.mxu0 0
  %470 = vmatpush1.bf16.msra.mxu0 %v457
  %471 = vmatprep.subr.bf16.mxu0 0
  %472 = vmatpush1.bf16.msra.mxu0 %v456
  %473 = vmatprep.subr.bf16.mxu0 0
  %474 = vmatpush1.bf16.msra.mxu0 %v455
  %475 = vmatprep.subr.bf16.mxu0 0
  %476 = vmatpush1.bf16.msra.mxu0 %v454
  %477 = vmatprep.subr.bf16.mxu0 0
  %478 = vmatpush1.bf16.msra.mxu0 %v453
  %479 = vmatprep.subr.bf16.mxu0 0
  %480 = vmatpush1.bf16.msra.mxu0 %v452
  %481 = vmatprep.subr.bf16.mxu0 0
  %482 = vmatpush1.bf16.msra.mxu0 %v451
  %483 = vmatprep.subr.bf16.mxu0 0
  %484 = vmatpush2.bf16.msra.mxu0 0
  %485 = vmatprep.subr.bf16.mxu0 0
  %486 = vmatpush2.bf16.msra.mxu0 0
  %487 = vmatprep.subr.bf16.mxu0 0
  %488 = vmatpush2.bf16.msra.mxu0 0
  %489 = vmatprep.subr.bf16.mxu0 0
  %490 = vmatpush2.bf16.msra.mxu0 0
  %491 = vmatprep.subr.bf16.mxu0 0
  %492 = vmatpush2.bf16.msra.mxu0 0
  %493 = vmatprep.subr.bf16.mxu0 0
  %494 = vmatpush2.bf16.msra.mxu0 0
  %495 = vmatprep.subr.bf16.mxu0 0
  %496 = vmatpush2.bf16.msra.mxu0 0
  %497 = vmatprep.subr.bf16.mxu0 0
  %498 = vmatpush2.bf16.msra.mxu0 0
  %499 = vmatprep.mubr.bf16.mxu0 0
  %500 = vmatmul.mubr.bf16.gmra.mxu0 %v355
  %v501 = vpop.f32.mrf.mxu0
  %v502 = vadd.f32 0.0, %v501
  %v503 = vpop.f32.mrf.mxu0
  %v504 = vpop.f32.mrf.mxu0
  %v505 = vadd.f32 0.0, %v504
  %v506 = vpop.f32.mrf.mxu0
  %507 = vmatprep.mubr.bf16.mxu0 0
  %508 = vmatmul.mubr.bf16.gmra.mxu0 %v356
  %v509 = vpop.f32.mrf.mxu0
  %v510 = vadd.f32 0.0, %v509
  %v511 = vpop.f32.mrf.mxu0
  %v512 = vpop.f32.mrf.mxu0
  %v513 = vadd.f32 0.0, %v512
  %v514 = vpop.f32.mrf.mxu0
  %515 = vmatprep.mubr.bf16.mxu0 0
  %516 = vmatmul.mubr.bf16.gmra.mxu0 %v357
  %v517 = vpop.f32.mrf.mxu0
  %v518 = vadd.f32 0.0, %v517
  %v519 = vpop.f32.mrf.mxu0
  %v520 = vpop.f32.mrf.mxu0
  %v521 = vadd.f32 0.0, %v520
  %v522 = vpop.f32.mrf.mxu0
  %523 = vmatprep.mubr.bf16.mxu0 0
  %524 = vmatmul.mubr.bf16.gmra.mxu0 %v358
  %v525 = vpop.f32.mrf.mxu0
  %v526 = vadd.f32 0.0, %v525
  %v527 = vpop.f32.mrf.mxu0
  %v528 = vpop.f32.mrf.mxu0
  %v529 = vadd.f32 0.0, %v528
  %v530 = vpop.f32.mrf.mxu0
  %531 = vmatprep.mubr.bf16.mxu0 0
  %532 = vmatmul.mubr.bf16.gmra.mxu0 %v359
  %v533 = vpop.f32.mrf.mxu0
  %v534 = vadd.f32 0.0, %v533
  %v535 = vpop.f32.mrf.mxu0
  %v536 = vpop.f32.mrf.mxu0
  %v537 = vadd.f32 0.0, %v536
  %v538 = vpop.f32.mrf.mxu0
  %539 = vmatprep.mubr.bf16.mxu0 0
  %540 = vmatmul.mubr.bf16.gmra.mxu0 %v360
  %v541 = vpop.f32.mrf.mxu0
  %v542 = vadd.f32 0.0, %v541
  %v543 = vpop.f32.mrf.mxu0
  %v544 = vpop.f32.mrf.mxu0
  %v545 = vadd.f32 0.0, %v544
  %v546 = vpop.f32.mrf.mxu0
  %547 = vmatprep.mubr.bf16.mxu0 0
  %548 = vmatmul.mubr.bf16.gmra.mxu0 %v361
  %v549 = vpop.f32.mrf.mxu0
  %v550 = vadd.f32 0.0, %v549
  %v551 = vpop.f32.mrf.mxu0
  %v552 = vpop.f32.mrf.mxu0
  %v553 = vadd.f32 0.0, %v552
  %v554 = vpop.f32.mrf.mxu0
  %555 = vmatprep.mubr.bf16.mxu0 0
  %556 = vmatmul.mubr.bf16.gmra.mxu0 %v362
  %v557 = vpop.f32.mrf.mxu0
  %v558 = vadd.f32 0.0, %v557
  %v559 = vpop.f32.mrf.mxu0
  %v560 = vpop.f32.mrf.mxu0
  %v561 = vadd.f32 0.0, %v560
  %v562 = vpop.f32.mrf.mxu0
  %563 = vmatprep.mubr.bf16.mxu0 0
  %564 = vmatmul.mubr.bf16.gmra.mxu0 %v363
  %v565 = vpop.f32.mrf.mxu0
  %v566 = vadd.f32 0.0, %v565
  %v567 = vpop.f32.mrf.mxu0
  %v568 = vpop.f32.mrf.mxu0
  %v569 = vadd.f32 0.0, %v568
  %v570 = vpop.f32.mrf.mxu0
  %571 = vmatprep.mubr.bf16.mxu0 0
  %572 = vmatmul.mubr.bf16.gmra.mxu0 %v364
  %v573 = vpop.f32.mrf.mxu0
  %v574 = vadd.f32 0.0, %v573
  %v575 = vpop.f32.mrf.mxu0
  %v576 = vpop.f32.mrf.mxu0
  %v577 = vadd.f32 0.0, %v576
  %v578 = vpop.f32.mrf.mxu0
  %579 = vmatprep.mubr.bf16.mxu0 0
  %580 = vmatmul.mubr.bf16.gmra.mxu0 %v365
  %v581 = vpop.f32.mrf.mxu0
  %v582 = vadd.f32 0.0, %v581
  %v583 = vpop.f32.mrf.mxu0
  %v584 = vpop.f32.mrf.mxu0
  %v585 = vadd.f32 0.0, %v584
  %v586 = vpop.f32.mrf.mxu0
  %587 = vmatprep.mubr.bf16.mxu0 0
  %588 = vmatmul.mubr.bf16.gmra.mxu0 %v366
  %v589 = vpop.f32.mrf.mxu0
  %v590 = vadd.f32 0.0, %v589
  %v591 = vpop.f32.mrf.mxu0
  %v592 = vpop.f32.mrf.mxu0
  %v593 = vadd.f32 0.0, %v592
  %v594 = vpop.f32.mrf.mxu0
  %595 = vmatprep.mubr.bf16.mxu0 0
  %596 = vmatmul.mubr.bf16.gmra.mxu0 %v367
  %v597 = vpop.f32.mrf.mxu0
  %v598 = vadd.f32 0.0, %v597
  %v599 = vpop.f32.mrf.mxu0
  %v600 = vpop.f32.mrf.mxu0
  %v601 = vadd.f32 0.0, %v600
  %v602 = vpop.f32.mrf.mxu0
  %603 = vmatprep.mubr.bf16.mxu0 0
  %604 = vmatmul.mubr.bf16.gmra.mxu0 %v368
  %v605 = vpop.f32.mrf.mxu0
  %v606 = vadd.f32 0.0, %v605
  %v607 = vpop.f32.mrf.mxu0
  %v608 = vpop.f32.mrf.mxu0
  %v609 = vadd.f32 0.0, %v608
  %v610 = vpop.f32.mrf.mxu0
  %611 = vmatprep.mubr.bf16.mxu0 0
  %612 = vmatmul.mubr.bf16.gmra.mxu0 %v369
  %v613 = vpop.f32.mrf.mxu0
  %v614 = vadd.f32 0.0, %v613
  %v615 = vpop.f32.mrf.mxu0
  %v616 = vpop.f32.mrf.mxu0
  %v617 = vadd.f32 0.0, %v616
  %v618 = vpop.f32.mrf.mxu0
  %619 = vmatprep.mubr.bf16.mxu0 0
  %620 = vmatmul.mubr.bf16.gmra.mxu0 %v370
  %v621 = vpop.f32.mrf.mxu0
  %v622 = vadd.f32 0.0, %v621
  %v623 = vpop.f32.mrf.mxu0
  %v624 = vpop.f32.mrf.mxu0
  %v625 = vadd.f32 0.0, %v624
  %v626 = vpop.f32.mrf.mxu0
  %627 = vmatprep.mubr.bf16.mxu0 0
  %628 = vmatmul.mubr.bf16.gmra.mxu0 %v371
  %v629 = vpop.f32.mrf.mxu0
  %v630 = vadd.f32 0.0, %v629
  %v631 = vpop.f32.mrf.mxu0
  %v632 = vpop.f32.mrf.mxu0
  %v633 = vadd.f32 0.0, %v632
  %v634 = vpop.f32.mrf.mxu0
  %635 = vmatprep.mubr.bf16.mxu0 0
  %636 = vmatmul.mubr.bf16.gmra.mxu0 %v372
  %v637 = vpop.f32.mrf.mxu0
  %v638 = vadd.f32 0.0, %v637
  %v639 = vpop.f32.mrf.mxu0
  %v640 = vpop.f32.mrf.mxu0
  %v641 = vadd.f32 0.0, %v640
  %v642 = vpop.f32.mrf.mxu0
  %643 = vmatprep.mubr.bf16.mxu0 0
  %644 = vmatmul.mubr.bf16.gmra.mxu0 %v373
  %v645 = vpop.f32.mrf.mxu0
  %v646 = vadd.f32 0.0, %v645
  %v647 = vpop.f32.mrf.mxu0
  %v648 = vpop.f32.mrf.mxu0
  %v649 = vadd.f32 0.0, %v648
  %v650 = vpop.f32.mrf.mxu0
  %651 = vmatprep.mubr.bf16.mxu0 0
  %652 = vmatmul.mubr.bf16.gmra.mxu0 %v374
  %v653 = vpop.f32.mrf.mxu0
  %v654 = vadd.f32 0.0, %v653
  %v655 = vpop.f32.mrf.mxu0
  %v656 = vpop.f32.mrf.mxu0
  %v657 = vadd.f32 0.0, %v656
  %v658 = vpop.f32.mrf.mxu0
  %659 = vmatprep.mubr.bf16.mxu0 0
  %660 = vmatmul.mubr.bf16.gmra.mxu0 %v375
  %v661 = vpop.f32.mrf.mxu0
  %v662 = vadd.f32 0.0, %v661
  %v663 = vpop.f32.mrf.mxu0
  %v664 = vpop.f32.mrf.mxu0
  %v665 = vadd.f32 0.0, %v664
  %v666 = vpop.f32.mrf.mxu0
  %667 = vmatprep.mubr.bf16.mxu0 0
  %668 = vmatmul.mubr.bf16.gmra.mxu0 %v376
  %v669 = vpop.f32.mrf.mxu0
  %v670 = vadd.f32 0.0, %v669
  %v671 = vpop.f32.mrf.mxu0
  %v672 = vpop.f32.mrf.mxu0
  %v673 = vadd.f32 0.0, %v672
  %v674 = vpop.f32.mrf.mxu0
  %675 = vmatprep.mubr.bf16.mxu0 0
  %676 = vmatmul.mubr.bf16.gmra.mxu0 %v377
  %v677 = vpop.f32.mrf.mxu0
  %v678 = vadd.f32 0.0, %v677
  %v679 = vpop.f32.mrf.mxu0
  %v680 = vpop.f32.mrf.mxu0
  %v681 = vadd.f32 0.0, %v680
  %v682 = vpop.f32.mrf.mxu0
  %683 = vmatprep.mubr.bf16.mxu0 0
  %684 = vmatmul.mubr.bf16.gmra.mxu0 %v378
  %v685 = vpop.f32.mrf.mxu0
  %v686 = vadd.f32 0.0, %v685
  %v687 = vpop.f32.mrf.mxu0
  %v688 = vpop.f32.mrf.mxu0
  %v689 = vadd.f32 0.0, %v688
  %v690 = vpop.f32.mrf.mxu0
  %691 = vmatprep.mubr.bf16.mxu0 0
  %692 = vmatmul.mubr.bf16.gmra.mxu0 %v379
  %v693 = vpop.f32.mrf.mxu0
  %v694 = vadd.f32 0.0, %v693
  %v695 = vpop.f32.mrf.mxu0
  %v696 = vpop.f32.mrf.mxu0
  %v697 = vadd.f32 0.0, %v696
  %v698 = vpop.f32.mrf.mxu0
  %699 = vmatprep.mubr.bf16.mxu0 0
  %700 = vmatmul.mubr.bf16.gmra.mxu0 %v380
  %v701 = vpop.f32.mrf.mxu0
  %v702 = vadd.f32 0.0, %v701
  %v703 = vpop.f32.mrf.mxu0
  %v704 = vpop.f32.mrf.mxu0
  %v705 = vadd.f32 0.0, %v704
  %v706 = vpop.f32.mrf.mxu0
  %707 = vmatprep.mubr.bf16.mxu0 0
  %708 = vmatmul.mubr.bf16.gmra.mxu0 %v381
  %v709 = vpop.f32.mrf.mxu0
  %v710 = vadd.f32 0.0, %v709
  %v711 = vpop.f32.mrf.mxu0
  %v712 = vpop.f32.mrf.mxu0
  %v713 = vadd.f32 0.0, %v712
  %v714 = vpop.f32.mrf.mxu0
  %715 = vmatprep.mubr.bf16.mxu0 0
  %716 = vmatmul.mubr.bf16.gmra.mxu0 %v382
  %v717 = vpop.f32.mrf.mxu0
  %v718 = vadd.f32 0.0, %v717
  %v719 = vpop.f32.mrf.mxu0
  %v720 = vpop.f32.mrf.mxu0
  %v721 = vadd.f32 0.0, %v720
  %v722 = vpop.f32.mrf.mxu0
  %723 = vmatprep.mubr.bf16.mxu0 0
  %724 = vmatmul.mubr.bf16.gmra.mxu0 %v383
  %v725 = vpop.f32.mrf.mxu0
  %v726 = vadd.f32 0.0, %v725
  %v727 = vpop.f32.mrf.mxu0
  %v728 = vpop.f32.mrf.mxu0
  %v729 = vadd.f32 0.0, %v728
  %v730 = vpop.f32.mrf.mxu0
  %731 = vmatprep.mubr.bf16.mxu0 0
  %732 = vmatmul.mubr.bf16.gmra.mxu0 %v384
  %v733 = vpop.f32.mrf.mxu0
  %v734 = vadd.f32 0.0, %v733
  %v735 = vpop.f32.mrf.mxu0
  %v736 = vpop.f32.mrf.mxu0
  %v737 = vadd.f32 0.0, %v736
  %v738 = vpop.f32.mrf.mxu0
  %739 = vmatprep.mubr.bf16.mxu0 0
  %740 = vmatmul.mubr.bf16.gmra.mxu0 %v385
  %v741 = vpop.f32.mrf.mxu0
  %v742 = vadd.f32 0.0, %v741
  %v743 = vpop.f32.mrf.mxu0
  %v744 = vpop.f32.mrf.mxu0
  %v745 = vadd.f32 0.0, %v744
  %v746 = vpop.f32.mrf.mxu0
  %747 = vmatprep.mubr.bf16.mxu0 0
  %748 = vmatmul.mubr.bf16.gmra.mxu0 %v386
  %v749 = vpop.f32.mrf.mxu0
  %v750 = vadd.f32 0.0, %v749
  %v751 = vpop.f32.mrf.mxu0
  %v752 = vpop.f32.mrf.mxu0
  %v753 = vadd.f32 0.0, %v752
  %v754 = vpop.f32.mrf.mxu0
  %755 = vdwg.mxu0
  %v756 = vadd.f32 %v83, %v502
  %v757 = vadd.f32 %v84, %v505
  %v758 = vadd.f32 %v85, %v510
  %v759 = vadd.f32 %v86, %v513
  %v760 = vadd.f32 %v87, %v518
  %v761 = vadd.f32 %v88, %v521
  %v762 = vadd.f32 %v89, %v526
  %v763 = vadd.f32 %v90, %v529
  %v764 = vadd.f32 %v91, %v534
  %v765 = vadd.f32 %v92, %v537
  %v766 = vadd.f32 %v93, %v542
  %v767 = vadd.f32 %v94, %v545
  %v768 = vadd.f32 %v95, %v550
  %v769 = vadd.f32 %v96, %v553
  %v770 = vadd.f32 %v97, %v558
  %v771 = vadd.f32 %v98, %v561
  %v772 = vadd.f32 %v99, %v566
  %v773 = vadd.f32 %v100, %v569
  %v774 = vadd.f32 %v101, %v574
  %v775 = vadd.f32 %v102, %v577
  %v776 = vadd.f32 %v103, %v582
  %v777 = vadd.f32 %v104, %v585
  %v778 = vadd.f32 %v105, %v590
  %v779 = vadd.f32 %v106, %v593
  %v780 = vadd.f32 %v107, %v598
  %v781 = vadd.f32 %v108, %v601
  %v782 = vadd.f32 %v109, %v606
  %v783 = vadd.f32 %v110, %v609
  %v784 = vadd.f32 %v111, %v614
  %v785 = vadd.f32 %v112, %v617
  %v786 = vadd.f32 %v113, %v622
  %v787 = vadd.f32 %v114, %v625
  %v788 = vadd.f32 %v115, %v630
  %v789 = vadd.f32 %v116, %v633
  %v790 = vadd.f32 %v117, %v638
  %v791 = vadd.f32 %v118, %v641
  %v792 = vadd.f32 %v119, %v646
  %v793 = vadd.f32 %v120, %v649
  %v794 = vadd.f32 %v121, %v654
  %v795 = vadd.f32 %v122, %v657
  %v796 = vadd.f32 %v123, %v662
  %v797 = vadd.f32 %v124, %v665
  %v798 = vadd.f32 %v125, %v670
  %v799 = vadd.f32 %v126, %v673
  %v800 = vadd.f32 %v127, %v678
  %v801 = vadd.f32 %v128, %v681
  %v802 = vadd.f32 %v129, %v686
  %v803 = vadd.f32 %v130, %v689
  %v804 = vadd.f32 %v131, %v694
  %v805 = vadd.f32 %v132, %v697
  %v806 = vadd.f32 %v133, %v702
  %v807 = vadd.f32 %v134, %v705
  %v808 = vadd.f32 %v135, %v710
  %v809 = vadd.f32 %v136, %v713
  %v810 = vadd.f32 %v137, %v718
  %v811 = vadd.f32 %v138, %v721
  %v812 = vadd.f32 %v139, %v726
  %v813 = vadd.f32 %v140, %v729
  %v814 = vadd.f32 %v141, %v734
  %v815 = vadd.f32 %v142, %v737
  %v816 = vadd.f32 %v143, %v742
  %v817 = vadd.f32 %v144, %v745
  %v818 = vadd.f32 %v145, %v750
  %v819 = vadd.f32 %v146, %v753
  %820 = vst [vmem:[#allocation2] sm:$0xff] %v756
  %821 = vst [vmem:[#allocation2 + $0x8] sm:$0xff] %v757
  %822 = vst [vmem:[#allocation2 + $0x10] sm:$0xff] %v758
  %823 = vst [vmem:[#allocation2 + $0x18] sm:$0xff] %v759
  %824 = vst [vmem:[#allocation2 + $0x20] sm:$0xff] %v760
  %825 = vst [vmem:[#allocation2 + $0x28] sm:$0xff] %v761
  %826 = vst [vmem:[#allocation2 + $0x30] sm:$0xff] %v762
  %827 = vst [vmem:[#allocation2 + $0x38] sm:$0xff] %v763
  %828 = vst [vmem:[#allocation2 + $0x40] sm:$0xff] %v764
  %829 = vst [vmem:[#allocation2 + $0x48] sm:$0xff] %v765
  %830 = vst [vmem:[#allocation2 + $0x50] sm:$0xff] %v766
  %831 = vst [vmem:[#allocation2 + $0x58] sm:$0xff] %v767
  %832 = vst [vmem:[#allocation2 + $0x60] sm:$0xff] %v768
  %833 = vst [vmem:[#allocation2 + $0x68] sm:$0xff] %v769
  %834 = vst [vmem:[#allocation2 + $0x70] sm:$0xff] %v770
  %835 = vst [vmem:[#allocation2 + $0x78] sm:$0xff] %v771
  %836 = vst [vmem:[#allocation2 + $0x80] sm:$0xff] %v772
  %837 = vst [vmem:[#allocation2 + $0x88] sm:$0xff] %v773
  %838 = vst [vmem:[#allocation2 + $0x90] sm:$0xff] %v774
  %839 = vst [vmem:[#allocation2 + $0x98] sm:$0xff] %v775
  %840 = vst [vmem:[#allocation2 + $0xa0] sm:$0xff] %v776
  %841 = vst [vmem:[#allocation2 + $0xa8] sm:$0xff] %v777
  %842 = vst [vmem:[#allocation2 + $0xb0] sm:$0xff] %v778
  %843 = vst [vmem:[#allocation2 + $0xb8] sm:$0xff] %v779
  %844 = vst [vmem:[#allocation2 + $0xc0] sm:$0xff] %v780
  %845 = vst [vmem:[#allocation2 + $0xc8] sm:$0xff] %v781
  %846 = vst [vmem:[#allocation2 + $0xd0] sm:$0xff] %v782
  %847 = vst [vmem:[#allocation2 + $0xd8] sm:$0xff] %v783
  %848 = vst [vmem:[#allocation2 + $0xe0] sm:$0xff] %v784
  %849 = vst [vmem:[#allocation2 + $0xe8] sm:$0xff] %v785
  %850 = vst [vmem:[#allocation2 + $0xf0] sm:$0xff] %v786
  %851 = vst [vmem:[#allocation2 + $0xf8] sm:$0xff] %v787
  %852 = vst [vmem:[#allocation2 + $0x100] sm:$0xff] %v788
  %853 = vst [vmem:[#allocation2 + $0x108] sm:$0xff] %v789
  %854 = vst [vmem:[#allocation2 + $0x110] sm:$0xff] %v790
  %855 = vst [vmem:[#allocation2 + $0x118] sm:$0xff] %v791
  %856 = vst [vmem:[#allocation2 + $0x120] sm:$0xff] %v792
  %857 = vst [vmem:[#allocation2 + $0x128] sm:$0xff] %v793
  %858 = vst [vmem:[#allocation2 + $0x130] sm:$0xff] %v794
  %859 = vst [vmem:[#allocation2 + $0x138] sm:$0xff] %v795
  %860 = vst [vmem:[#allocation2 + $0x140] sm:$0xff] %v796
  %861 = vst [vmem:[#allocation2 + $0x148] sm:$0xff] %v797
  %862 = vst [vmem:[#allocation2 + $0x150] sm:$0xff] %v798
  %863 = vst [vmem:[#allocation2 + $0x158] sm:$0xff] %v799
  %864 = vst [vmem:[#allocation2 + $0x160] sm:$0xff] %v800
  %865 = vst [vmem:[#allocation2 + $0x168] sm:$0xff] %v801
  %866 = vst [vmem:[#allocation2 + $0x170] sm:$0xff] %v802
  %867 = vst [vmem:[#allocation2 + $0x178] sm:$0xff] %v803
  %868 = vst [vmem:[#allocation2 + $0x180] sm:$0xff] %v804
  %869 = vst [vmem:[#allocation2 + $0x188] sm:$0xff] %v805
  %870 = vst [vmem:[#allocation2 + $0x190] sm:$0xff] %v806
  %871 = vst [vmem:[#allocation2 + $0x198] sm:$0xff] %v807
  %872 = vst [vmem:[#allocation2 + $0x1a0] sm:$0xff] %v808
  %873 = vst [vmem:[#allocation2 + $0x1a8] sm:$0xff] %v809
  %874 = vst [vmem:[#allocation2 + $0x1b0] sm:$0xff] %v810
  %875 = vst [vmem:[#allocation2 + $0x1b8] sm:$0xff] %v811
  %876 = vst [vmem:[#allocation2 + $0x1c0] sm:$0xff] %v812
  %877 = vst [vmem:[#allocation2 + $0x1c8] sm:$0xff] %v813
  %878 = vst [vmem:[#allocation2 + $0x1d0] sm:$0xff] %v814
  %879 = vst [vmem:[#allocation2 + $0x1d8] sm:$0xff] %v815
  %880 = vst [vmem:[#allocation2 + $0x1e0] sm:$0xff] %v816
  %881 = vst [vmem:[#allocation2 + $0x1e8] sm:$0xff] %v817
  %882 = vst [vmem:[#allocation2 + $0x1f0] sm:$0xff] %v818
  %883 = vst [vmem:[#allocation2 + $0x1f8] sm:$0xff] %v819
  // Predicated region
  $region18: #{_lambda_.16} parent=0 // pred_check
    %p884 = pneg %p15
  $region19: #{_lambda_.16} parent=0 // pred_check_branch
    %886 = sbr.rel (%p884) target = $region21
  $region20: #{_lambda_.16} parent=0 // pred_region
    %v887 = vld [vmem:[#allocation2] sm:$0xff]
    %v888 = vld [vmem:[#allocation2 + $0x8] sm:$0xff]
    %v889 = vld [vmem:[#allocation2 + $0x10] sm:$0xff]
    %v890 = vld [vmem:[#allocation2 + $0x18] sm:$0xff]
    %v891 = vld [vmem:[#allocation2 + $0x20] sm:$0xff]
    %v892 = vld [vmem:[#allocation2 + $0x28] sm:$0xff]
    %v893 = vld [vmem:[#allocation2 + $0x30] sm:$0xff]
    %v894 = vld [vmem:[#allocation2 + $0x38] sm:$0xff]
    %v895 = vld [vmem:[#allocation2 + $0x40] sm:$0xff]
    %v896 = vld [vmem:[#allocation2 + $0x48] sm:$0xff]
    %v897 = vld [vmem:[#allocation2 + $0x50] sm:$0xff]
    %v898 = vld [vmem:[#allocation2 + $0x58] sm:$0xff]
    %v899 = vld [vmem:[#allocation2 + $0x60] sm:$0xff]
    %v900 = vld [vmem:[#allocation2 + $0x68] sm:$0xff]
    %v901 = vld [vmem:[#allocation2 + $0x70] sm:$0xff]
    %v902 = vld [vmem:[#allocation2 + $0x78] sm:$0xff]
    %v903 = vld [vmem:[#allocation2 + $0x80] sm:$0xff]
    %v904 = vld [vmem:[#allocation2 + $0x88] sm:$0xff]
    %v905 = vld [vmem:[#allocation2 + $0x90] sm:$0xff]
    %v906 = vld [vmem:[#allocation2 + $0x98] sm:$0xff]
    %v907 = vld [vmem:[#allocation2 + $0xa0] sm:$0xff]
    %v908 = vld [vmem:[#allocation2 + $0xa8] sm:$0xff]
    %v909 = vld [vmem:[#allocation2 + $0xb0] sm:$0xff]
    %v910 = vld [vmem:[#allocation2 + $0xb8] sm:$0xff]
    %v911 = vld [vmem:[#allocation2 + $0xc0] sm:$0xff]
    %v912 = vld [vmem:[#allocation2 + $0xc8] sm:$0xff]
    %v913 = vld [vmem:[#allocation2 + $0xd0] sm:$0xff]
    %v914 = vld [vmem:[#allocation2 + $0xd8] sm:$0xff]
    %v915 = vld [vmem:[#allocation2 + $0xe0] sm:$0xff]
    %v916 = vld [vmem:[#allocation2 + $0xe8] sm:$0xff]
    %v917 = vld [vmem:[#allocation2 + $0xf0] sm:$0xff]
    %v918 = vld [vmem:[#allocation2 + $0xf8] sm:$0xff]
    %v919 = vld [vmem:[#allocation2 + $0x100] sm:$0xff]
    %v920 = vld [vmem:[#allocation2 + $0x108] sm:$0xff]
    %v921 = vld [vmem:[#allocation2 + $0x110] sm:$0xff]
    %v922 = vld [vmem:[#allocation2 + $0x118] sm:$0xff]
    %v923 = vld [vmem:[#allocation2 + $0x120] sm:$0xff]
    %v924 = vld [vmem:[#allocation2 + $0x128] sm:$0xff]
    %v925 = vld [vmem:[#allocation2 + $0x130] sm:$0xff]
    %v926 = vld [vmem:[#allocation2 + $0x138] sm:$0xff]
    %v927 = vld [vmem:[#allocation2 + $0x140] sm:$0xff]
    %v928 = vld [vmem:[#allocation2 + $0x148] sm:$0xff]
    %v929 = vld [vmem:[#allocation2 + $0x150] sm:$0xff]
    %v930 = vld [vmem:[#allocation2 + $0x158] sm:$0xff]
    %v931 = vld [vmem:[#allocation2 + $0x160] sm:$0xff]
    %v932 = vld [vmem:[#allocation2 + $0x168] sm:$0xff]
    %v933 = vld [vmem:[#allocation2 + $0x170] sm:$0xff]
    %v934 = vld [vmem:[#allocation2 + $0x178] sm:$0xff]
    %v935 = vld [vmem:[#allocation2 + $0x180] sm:$0xff]
    %v936 = vld [vmem:[#allocation2 + $0x188] sm:$0xff]
    %v937 = vld [vmem:[#allocation2 + $0x190] sm:$0xff]
    %v938 = vld [vmem:[#allocation2 + $0x198] sm:$0xff]
    %v939 = vld [vmem:[#allocation2 + $0x1a0] sm:$0xff]
    %v940 = vld [vmem:[#allocation2 + $0x1a8] sm:$0xff]
    %v941 = vld [vmem:[#allocation2 + $0x1b0] sm:$0xff]
    %v942 = vld [vmem:[#allocation2 + $0x1b8] sm:$0xff]
    %v943 = vld [vmem:[#allocation2 + $0x1c0] sm:$0xff]
    %v944 = vld [vmem:[#allocation2 + $0x1c8] sm:$0xff]
    %v945 = vld [vmem:[#allocation2 + $0x1d0] sm:$0xff]
    %v946 = vld [vmem:[#allocation2 + $0x1d8] sm:$0xff]
    %v947 = vld [vmem:[#allocation2 + $0x1e0] sm:$0xff]
    %v948 = vld [vmem:[#allocation2 + $0x1e8] sm:$0xff]
    %v949 = vld [vmem:[#allocation2 + $0x1f0] sm:$0xff]
    %v950 = vld [vmem:[#allocation2 + $0x1f8] sm:$0xff]
    %v951 = vld [vmem:[%s2] sm:$0x1]
    %v953 = vlaneseq
    %v954 = vshrl.u32 %v953, 7
    %v955 = vsub.s32 0, %v954
    %v956 = vrot.slane %v951, %v955
    %v958 = vadd.f32 %v887, %v956
    %v959 = vadd.f32 %v888, %v956
    %v960 = vadd.f32 %v889, %v956
    %v961 = vadd.f32 %v890, %v956
    %v962 = vadd.f32 %v891, %v956
    %v963 = vadd.f32 %v892, %v956
    %v964 = vadd.f32 %v893, %v956
    %v965 = vadd.f32 %v894, %v956
    %v966 = vadd.f32 %v895, %v956
    %v967 = vadd.f32 %v896, %v956
    %v968 = vadd.f32 %v897, %v956
    %v969 = vadd.f32 %v898, %v956
    %v970 = vadd.f32 %v899, %v956
    %v971 = vadd.f32 %v900, %v956
    %v972 = vadd.f32 %v901, %v956
    %v973 = vadd.f32 %v902, %v956
    %v974 = vadd.f32 %v903, %v956
    %v975 = vadd.f32 %v904, %v956
    %v976 = vadd.f32 %v905, %v956
    %v977 = vadd.f32 %v906, %v956
    %v978 = vadd.f32 %v907, %v956
    %v979 = vadd.f32 %v908, %v956
    %v980 = vadd.f32 %v909, %v956
    %v981 = vadd.f32 %v910, %v956
    %v982 = vadd.f32 %v911, %v956
    %v983 = vadd.f32 %v912, %v956
    %v984 = vadd.f32 %v913, %v956
    %v985 = vadd.f32 %v914, %v956
    %v986 = vadd.f32 %v915, %v956
    %v987 = vadd.f32 %v916, %v956
    %v988 = vadd.f32 %v917, %v956
    %v989 = vadd.f32 %v918, %v956
    %v990 = vadd.f32 %v919, %v956
    %v991 = vadd.f32 %v920, %v956
    %v992 = vadd.f32 %v921, %v956
    %v993 = vadd.f32 %v922, %v956
    %v994 = vadd.f32 %v923, %v956
    %v995 = vadd.f32 %v924, %v956
    %v996 = vadd.f32 %v925, %v956
    %v997 = vadd.f32 %v926, %v956
    %v998 = vadd.f32 %v927, %v956
    %v999 = vadd.f32 %v928, %v956
    %v1000 = vadd.f32 %v929, %v956
    %v1001 = vadd.f32 %v930, %v956
    %v1002 = vadd.f32 %v931, %v956
    %v1003 = vadd.f32 %v932, %v956
    %v1004 = vadd.f32 %v933, %v956
    %v1005 = vadd.f32 %v934, %v956
    %v1006 = vadd.f32 %v935, %v956
    %v1007 = vadd.f32 %v936, %v956
    %v1008 = vadd.f32 %v937, %v956
    %v1009 = vadd.f32 %v938, %v956
    %v1010 = vadd.f32 %v939, %v956
    %v1011 = vadd.f32 %v940, %v956
    %v1012 = vadd.f32 %v941, %v956
    %v1013 = vadd.f32 %v942, %v956
    %v1014 = vadd.f32 %v943, %v956
    %v1015 = vadd.f32 %v944, %v956
    %v1016 = vadd.f32 %v945, %v956
    %v1017 = vadd.f32 %v946, %v956
    %v1018 = vadd.f32 %v947, %v956
    %v1019 = vadd.f32 %v948, %v956
    %v1020 = vadd.f32 %v949, %v956
    %v1021 = vadd.f32 %v950, %v956
    %vm1022 = vcmp.ge.f32.partialorder %v958, 0.0
    %vm1023 = vcmp.ge.f32.partialorder %v959, 0.0
    %vm1024 = vcmp.ge.f32.partialorder %v960, 0.0
    %vm1025 = vcmp.ge.f32.partialorder %v961, 0.0
    %vm1026 = vcmp.ge.f32.partialorder %v962, 0.0
    %vm1027 = vcmp.ge.f32.partialorder %v963, 0.0
    %vm1028 = vcmp.ge.f32.partialorder %v964, 0.0
    %vm1029 = vcmp.ge.f32.partialorder %v965, 0.0
    %vm1030 = vcmp.ge.f32.partialorder %v966, 0.0
    %vm1031 = vcmp.ge.f32.partialorder %v967, 0.0
    %vm1032 = vcmp.ge.f32.partialorder %v968, 0.0
    %vm1033 = vcmp.ge.f32.partialorder %v969, 0.0
    %vm1034 = vcmp.ge.f32.partialorder %v970, 0.0
    %vm1035 = vcmp.ge.f32.partialorder %v971, 0.0
    %vm1036 = vcmp.ge.f32.partialorder %v972, 0.0
    %vm1037 = vcmp.ge.f32.partialorder %v973, 0.0
    %vm1038 = vcmp.ge.f32.partialorder %v974, 0.0
    %vm1039 = vcmp.ge.f32.partialorder %v975, 0.0
    %vm1040 = vcmp.ge.f32.partialorder %v976, 0.0
    %vm1041 = vcmp.ge.f32.partialorder %v977, 0.0
    %vm1042 = vcmp.ge.f32.partialorder %v978, 0.0
    %vm1043 = vcmp.ge.f32.partialorder %v979, 0.0
    %vm1044 = vcmp.ge.f32.partialorder %v980, 0.0
    %vm1045 = vcmp.ge.f32.partialorder %v981, 0.0
    %vm1046 = vcmp.ge.f32.partialorder %v982, 0.0
    %vm1047 = vcmp.ge.f32.partialorder %v983, 0.0
    %vm1048 = vcmp.ge.f32.partialorder %v984, 0.0
    %vm1049 = vcmp.ge.f32.partialorder %v985, 0.0
    %vm1050 = vcmp.ge.f32.partialorder %v986, 0.0
    %vm1051 = vcmp.ge.f32.partialorder %v987, 0.0
    %vm1052 = vcmp.ge.f32.partialorder %v988, 0.0
    %vm1053 = vcmp.ge.f32.partialorder %v989, 0.0
    %vm1054 = vcmp.ge.f32.partialorder %v990, 0.0
    %vm1055 = vcmp.ge.f32.partialorder %v991, 0.0
    %vm1056 = vcmp.ge.f32.partialorder %v992, 0.0
    %vm1057 = vcmp.ge.f32.partialorder %v993, 0.0
    %vm1058 = vcmp.ge.f32.partialorder %v994, 0.0
    %vm1059 = vcmp.ge.f32.partialorder %v995, 0.0
    %vm1060 = vcmp.ge.f32.partialorder %v996, 0.0
    %vm1061 = vcmp.ge.f32.partialorder %v997, 0.0
    %vm1062 = vcmp.ge.f32.partialorder %v998, 0.0
    %vm1063 = vcmp.ge.f32.partialorder %v999, 0.0
    %vm1064 = vcmp.ge.f32.partialorder %v1000, 0.0
    %vm1065 = vcmp.ge.f32.partialorder %v1001, 0.0
    %vm1066 = vcmp.ge.f32.partialorder %v1002, 0.0
    %vm1067 = vcmp.ge.f32.partialorder %v1003, 0.0
    %vm1068 = vcmp.ge.f32.partialorder %v1004, 0.0
    %vm1069 = vcmp.ge.f32.partialorder %v1005, 0.0
    %vm1070 = vcmp.ge.f32.partialorder %v1006, 0.0
    %vm1071 = vcmp.ge.f32.partialorder %v1007, 0.0
    %vm1072 = vcmp.ge.f32.partialorder %v1008, 0.0
    %vm1073 = vcmp.ge.f32.partialorder %v1009, 0.0
    %vm1074 = vcmp.ge.f32.partialorder %v1010, 0.0
    %vm1075 = vcmp.ge.f32.partialorder %v1011, 0.0
    %vm1076 = vcmp.ge.f32.partialorder %v1012, 0.0
    %vm1077 = vcmp.ge.f32.partialorder %v1013, 0.0
    %vm1078 = vcmp.ge.f32.partialorder %v1014, 0.0
    %vm1079 = vcmp.ge.f32.partialorder %v1015, 0.0
    %vm1080 = vcmp.ge.f32.partialorder %v1016, 0.0
    %vm1081 = vcmp.ge.f32.partialorder %v1017, 0.0
    %vm1082 = vcmp.ge.f32.partialorder %v1018, 0.0
    %vm1083 = vcmp.ge.f32.partialorder %v1019, 0.0
    %vm1084 = vcmp.ge.f32.partialorder %v1020, 0.0
    %vm1085 = vcmp.ge.f32.partialorder %v1021, 0.0
    %v1086 = vmul.f32 %v958, 0.2
    %v1087 = vmul.f32 %v959, 0.2
    %v1088 = vmul.f32 %v960, 0.2
    %v1089 = vmul.f32 %v961, 0.2
    %v1090 = vmul.f32 %v962, 0.2
    %v1091 = vmul.f32 %v963, 0.2
    %v1092 = vmul.f32 %v964, 0.2
    %v1093 = vmul.f32 %v965, 0.2
    %v1094 = vmul.f32 %v966, 0.2
    %v1095 = vmul.f32 %v967, 0.2
    %v1096 = vmul.f32 %v968, 0.2
    %v1097 = vmul.f32 %v969, 0.2
    %v1098 = vmul.f32 %v970, 0.2
    %v1099 = vmul.f32 %v971, 0.2
    %v1100 = vmul.f32 %v972, 0.2
    %v1101 = vmul.f32 %v973, 0.2
    %v1102 = vmul.f32 %v974, 0.2
    %v1103 = vmul.f32 %v975, 0.2
    %v1104 = vmul.f32 %v976, 0.2
    %v1105 = vmul.f32 %v977, 0.2
    %v1106 = vmul.f32 %v978, 0.2
    %v1107 = vmul.f32 %v979, 0.2
    %v1108 = vmul.f32 %v980, 0.2
    %v1109 = vmul.f32 %v981, 0.2
    %v1110 = vmul.f32 %v982, 0.2
    %v1111 = vmul.f32 %v983, 0.2
    %v1112 = vmul.f32 %v984, 0.2
    %v1113 = vmul.f32 %v985, 0.2
    %v1114 = vmul.f32 %v986, 0.2
    %v1115 = vmul.f32 %v987, 0.2
    %v1116 = vmul.f32 %v988, 0.2
    %v1117 = vmul.f32 %v989, 0.2
    %v1118 = vmul.f32 %v990, 0.2
    %v1119 = vmul.f32 %v991, 0.2
    %v1120 = vmul.f32 %v992, 0.2
    %v1121 = vmul.f32 %v993, 0.2
    %v1122 = vmul.f32 %v994, 0.2
    %v1123 = vmul.f32 %v995, 0.2
    %v1124 = vmul.f32 %v996, 0.2
    %v1125 = vmul.f32 %v997, 0.2
    %v1126 = vmul.f32 %v998, 0.2
    %v1127 = vmul.f32 %v999, 0.2
    %v1128 = vmul.f32 %v1000, 0.2
    %v1129 = vmul.f32 %v1001, 0.2
    %v1130 = vmul.f32 %v1002, 0.2
    %v1131 = vmul.f32 %v1003, 0.2
    %v1132 = vmul.f32 %v1004, 0.2
    %v1133 = vmul.f32 %v1005, 0.2
    %v1134 = vmul.f32 %v1006, 0.2
    %v1135 = vmul.f32 %v1007, 0.2
    %v1136 = vmul.f32 %v1008, 0.2
    %v1137 = vmul.f32 %v1009, 0.2
    %v1138 = vmul.f32 %v1010, 0.2
    %v1139 = vmul.f32 %v1011, 0.2
    %v1140 = vmul.f32 %v1012, 0.2
    %v1141 = vmul.f32 %v1013, 0.2
    %v1142 = vmul.f32 %v1014, 0.2
    %v1143 = vmul.f32 %v1015, 0.2
    %v1144 = vmul.f32 %v1016, 0.2
    %v1145 = vmul.f32 %v1017, 0.2
    %v1146 = vmul.f32 %v1018, 0.2
    %v1147 = vmul.f32 %v1019, 0.2
    %v1148 = vmul.f32 %v1020, 0.2
    %v1149 = vmul.f32 %v1021, 0.2
    %v1150 = vsel %vm1022, %v958, %v1086
    %v1151 = vsel %vm1023, %v959, %v1087
    %v1152 = vsel %vm1024, %v960, %v1088
    %v1153 = vsel %vm1025, %v961, %v1089
    %v1154 = vsel %vm1026, %v962, %v1090
    %v1155 = vsel %vm1027, %v963, %v1091
    %v1156 = vsel %vm1028, %v964, %v1092
    %v1157 = vsel %vm1029, %v965, %v1093
    %v1158 = vsel %vm1030, %v966, %v1094
    %v1159 = vsel %vm1031, %v967, %v1095
    %v1160 = vsel %vm1032, %v968, %v1096
    %v1161 = vsel %vm1033, %v969, %v1097
    %v1162 = vsel %vm1034, %v970, %v1098
    %v1163 = vsel %vm1035, %v971, %v1099
    %v1164 = vsel %vm1036, %v972, %v1100
    %v1165 = vsel %vm1037, %v973, %v1101
    %v1166 = vsel %vm1038, %v974, %v1102
    %v1167 = vsel %vm1039, %v975, %v1103
    %v1168 = vsel %vm1040, %v976, %v1104
    %v1169 = vsel %vm1041, %v977, %v1105
    %v1170 = vsel %vm1042, %v978, %v1106
    %v1171 = vsel %vm1043, %v979, %v1107
    %v1172 = vsel %vm1044, %v980, %v1108
    %v1173 = vsel %vm1045, %v981, %v1109
    %v1174 = vsel %vm1046, %v982, %v1110
    %v1175 = vsel %vm1047, %v983, %v1111
    %v1176 = vsel %vm1048, %v984, %v1112
    %v1177 = vsel %vm1049, %v985, %v1113
    %v1178 = vsel %vm1050, %v986, %v1114
    %v1179 = vsel %vm1051, %v987, %v1115
    %v1180 = vsel %vm1052, %v988, %v1116
    %v1181 = vsel %vm1053, %v989, %v1117
    %v1182 = vsel %vm1054, %v990, %v1118
    %v1183 = vsel %vm1055, %v991, %v1119
    %v1184 = vsel %vm1056, %v992, %v1120
    %v1185 = vsel %vm1057, %v993, %v1121
    %v1186 = vsel %vm1058, %v994, %v1122
    %v1187 = vsel %vm1059, %v995, %v1123
    %v1188 = vsel %vm1060, %v996, %v1124
    %v1189 = vsel %vm1061, %v997, %v1125
    %v1190 = vsel %vm1062, %v998, %v1126
    %v1191 = vsel %vm1063, %v999, %v1127
    %v1192 = vsel %vm1064, %v1000, %v1128
    %v1193 = vsel %vm1065, %v1001, %v1129
    %v1194 = vsel %vm1066, %v1002, %v1130
    %v1195 = vsel %vm1067, %v1003, %v1131
    %v1196 = vsel %vm1068, %v1004, %v1132
    %v1197 = vsel %vm1069, %v1005, %v1133
    %v1198 = vsel %vm1070, %v1006, %v1134
    %v1199 = vsel %vm1071, %v1007, %v1135
    %v1200 = vsel %vm1072, %v1008, %v1136
    %v1201 = vsel %vm1073, %v1009, %v1137
    %v1202 = vsel %vm1074, %v1010, %v1138
    %v1203 = vsel %vm1075, %v1011, %v1139
    %v1204 = vsel %vm1076, %v1012, %v1140
    %v1205 = vsel %vm1077, %v1013, %v1141
    %v1206 = vsel %vm1078, %v1014, %v1142
    %v1207 = vsel %vm1079, %v1015, %v1143
    %v1208 = vsel %vm1080, %v1016, %v1144
    %v1209 = vsel %vm1081, %v1017, %v1145
    %v1210 = vsel %vm1082, %v1018, %v1146
    %v1211 = vsel %vm1083, %v1019, %v1147
    %v1212 = vsel %vm1084, %v1020, %v1148
    %v1213 = vsel %vm1085, %v1021, %v1149
    %v1214 = vpack.c.bf16 %v1151, %v1150
    %v1215 = vpack.c.bf16 %v1153, %v1152
    %v1216 = vpack.c.bf16 %v1155, %v1154
    %v1217 = vpack.c.bf16 %v1157, %v1156
    %v1218 = vpack.c.bf16 %v1159, %v1158
    %v1219 = vpack.c.bf16 %v1161, %v1160
    %v1220 = vpack.c.bf16 %v1163, %v1162
    %v1221 = vpack.c.bf16 %v1165, %v1164
    %v1222 = vpack.c.bf16 %v1167, %v1166
    %v1223 = vpack.c.bf16 %v1169, %v1168
    %v1224 = vpack.c.bf16 %v1171, %v1170
    %v1225 = vpack.c.bf16 %v1173, %v1172
    %v1226 = vpack.c.bf16 %v1175, %v1174
    %v1227 = vpack.c.bf16 %v1177, %v1176
    %v1228 = vpack.c.bf16 %v1179, %v1178
    %v1229 = vpack.c.bf16 %v1181, %v1180
    %v1230 = vpack.c.bf16 %v1183, %v1182
    %v1231 = vpack.c.bf16 %v1185, %v1184
    %v1232 = vpack.c.bf16 %v1187, %v1186
    %v1233 = vpack.c.bf16 %v1189, %v1188
    %v1234 = vpack.c.bf16 %v1191, %v1190
    %v1235 = vpack.c.bf16 %v1193, %v1192
    %v1236 = vpack.c.bf16 %v1195, %v1194
    %v1237 = vpack.c.bf16 %v1197, %v1196
    %v1238 = vpack.c.bf16 %v1199, %v1198
    %v1239 = vpack.c.bf16 %v1201, %v1200
    %v1240 = vpack.c.bf16 %v1203, %v1202
    %v1241 = vpack.c.bf16 %v1205, %v1204
    %v1242 = vpack.c.bf16 %v1207, %v1206
    %v1243 = vpack.c.bf16 %v1209, %v1208
    %v1244 = vpack.c.bf16 %v1211, %v1210
    %v1245 = vpack.c.bf16 %v1213, %v1212
    %v1278 = vunpack.c.l.b16 %v1214
    %v1279 = vunpack.c.h.b16 %v1214
    %v1280 = vunpack.c.l.b16 %v1215
    %v1281 = vunpack.c.h.b16 %v1215
    %v1282 = vunpack.c.l.b16 %v1216
    %v1283 = vunpack.c.h.b16 %v1216
    %v1284 = vunpack.c.l.b16 %v1217
    %v1285 = vunpack.c.h.b16 %v1217
    %v1286 = vunpack.c.l.b16 %v1218
    %v1287 = vunpack.c.h.b16 %v1218
    %v1288 = vunpack.c.l.b16 %v1219
    %v1289 = vunpack.c.h.b16 %v1219
    %v1290 = vunpack.c.l.b16 %v1220
    %v1291 = vunpack.c.h.b16 %v1220
    %v1292 = vunpack.c.l.b16 %v1221
    %v1293 = vunpack.c.h.b16 %v1221
    %v1294 = vunpack.c.l.b16 %v1222
    %v1295 = vunpack.c.h.b16 %v1222
    %v1296 = vunpack.c.l.b16 %v1223
    %v1297 = vunpack.c.h.b16 %v1223
    %v1298 = vunpack.c.l.b16 %v1224
    %v1299 = vunpack.c.h.b16 %v1224
    %v1300 = vunpack.c.l.b16 %v1225
    %v1301 = vunpack.c.h.b16 %v1225
    %v1302 = vunpack.c.l.b16 %v1226
    %v1303 = vunpack.c.h.b16 %v1226
    %v1304 = vunpack.c.l.b16 %v1227
    %v1305 = vunpack.c.h.b16 %v1227
    %v1306 = vunpack.c.l.b16 %v1228
    %v1307 = vunpack.c.h.b16 %v1228
    %v1308 = vunpack.c.l.b16 %v1229
    %v1309 = vunpack.c.h.b16 %v1229
    %v1310 = vunpack.c.l.b16 %v1230
    %v1311 = vunpack.c.h.b16 %v1230
    %v1312 = vunpack.c.l.b16 %v1231
    %v1313 = vunpack.c.h.b16 %v1231
    %v1314 = vunpack.c.l.b16 %v1232
    %v1315 = vunpack.c.h.b16 %v1232
    %v1316 = vunpack.c.l.b16 %v1233
    %v1317 = vunpack.c.h.b16 %v1233
    %v1318 = vunpack.c.l.b16 %v1234
    %v1319 = vunpack.c.h.b16 %v1234
    %v1320 = vunpack.c.l.b16 %v1235
    %v1321 = vunpack.c.h.b16 %v1235
    %v1322 = vunpack.c.l.b16 %v1236
    %v1323 = vunpack.c.h.b16 %v1236
    %v1324 = vunpack.c.l.b16 %v1237
    %v1325 = vunpack.c.h.b16 %v1237
    %v1326 = vunpack.c.l.b16 %v1238
    %v1327 = vunpack.c.h.b16 %v1238
    %v1328 = vunpack.c.l.b16 %v1239
    %v1329 = vunpack.c.h.b16 %v1239
    %v1330 = vunpack.c.l.b16 %v1240
    %v1331 = vunpack.c.h.b16 %v1240
    %v1332 = vunpack.c.l.b16 %v1241
    %v1333 = vunpack.c.h.b16 %v1241
    %v1334 = vunpack.c.l.b16 %v1242
    %v1335 = vunpack.c.h.b16 %v1242
    %v1336 = vunpack.c.l.b16 %v1243
    %v1337 = vunpack.c.h.b16 %v1243
    %v1338 = vunpack.c.l.b16 %v1244
    %v1339 = vunpack.c.h.b16 %v1244
    %v1340 = vunpack.c.l.b16 %v1245
    %v1341 = vunpack.c.h.b16 %v1245
    %v1342 = vpack.c.b16 %v1278, %v1278
    %v1343 = vpack.c.b16 %v1279, %v1279
    %v1344 = vpack.c.b16 %v1280, %v1280
    %v1345 = vpack.c.b16 %v1281, %v1281
    %v1346 = vpack.c.b16 %v1282, %v1282
    %v1347 = vpack.c.b16 %v1283, %v1283
    %v1348 = vpack.c.b16 %v1284, %v1284
    %v1349 = vpack.c.b16 %v1285, %v1285
    %v1350 = vpack.c.b16 %v1286, %v1286
    %v1351 = vpack.c.b16 %v1287, %v1287
    %v1352 = vpack.c.b16 %v1288, %v1288
    %v1353 = vpack.c.b16 %v1289, %v1289
    %v1354 = vpack.c.b16 %v1290, %v1290
    %v1355 = vpack.c.b16 %v1291, %v1291
    %v1356 = vpack.c.b16 %v1292, %v1292
    %v1357 = vpack.c.b16 %v1293, %v1293
    %v1358 = vpack.c.b16 %v1294, %v1294
    %v1359 = vpack.c.b16 %v1295, %v1295
    %v1360 = vpack.c.b16 %v1296, %v1296
    %v1361 = vpack.c.b16 %v1297, %v1297
    %v1362 = vpack.c.b16 %v1298, %v1298
    %v1363 = vpack.c.b16 %v1299, %v1299
    %v1364 = vpack.c.b16 %v1300, %v1300
    %v1365 = vpack.c.b16 %v1301, %v1301
    %v1366 = vpack.c.b16 %v1302, %v1302
    %v1367 = vpack.c.b16 %v1303, %v1303
    %v1368 = vpack.c.b16 %v1304, %v1304
    %v1369 = vpack.c.b16 %v1305, %v1305
    %v1370 = vpack.c.b16 %v1306, %v1306
    %v1371 = vpack.c.b16 %v1307, %v1307
    %v1372 = vpack.c.b16 %v1308, %v1308
    %v1373 = vpack.c.b16 %v1309, %v1309
    %v1374 = vpack.c.b16 %v1310, %v1310
    %v1375 = vpack.c.b16 %v1311, %v1311
    %v1376 = vpack.c.b16 %v1312, %v1312
    %v1377 = vpack.c.b16 %v1313, %v1313
    %v1378 = vpack.c.b16 %v1314, %v1314
    %v1379 = vpack.c.b16 %v1315, %v1315
    %v1380 = vpack.c.b16 %v1316, %v1316
    %v1381 = vpack.c.b16 %v1317, %v1317
    %v1382 = vpack.c.b16 %v1318, %v1318
    %v1383 = vpack.c.b16 %v1319, %v1319
    %v1384 = vpack.c.b16 %v1320, %v1320
    %v1385 = vpack.c.b16 %v1321, %v1321
    %v1386 = vpack.c.b16 %v1322, %v1322
    %v1387 = vpack.c.b16 %v1323, %v1323
    %v1388 = vpack.c.b16 %v1324, %v1324
    %v1389 = vpack.c.b16 %v1325, %v1325
    %v1390 = vpack.c.b16 %v1326, %v1326
    %v1391 = vpack.c.b16 %v1327, %v1327
    %v1392 = vpack.c.b16 %v1328, %v1328
    %v1393 = vpack.c.b16 %v1329, %v1329
    %v1394 = vpack.c.b16 %v1330, %v1330
    %v1395 = vpack.c.b16 %v1331, %v1331
    %v1396 = vpack.c.b16 %v1332, %v1332
    %v1397 = vpack.c.b16 %v1333, %v1333
    %v1398 = vpack.c.b16 %v1334, %v1334
    %v1399 = vpack.c.b16 %v1335, %v1335
    %v1400 = vpack.c.b16 %v1336, %v1336
    %v1401 = vpack.c.b16 %v1337, %v1337
    %v1402 = vpack.c.b16 %v1338, %v1338
    %v1403 = vpack.c.b16 %v1339, %v1339
    %v1404 = vpack.c.b16 %v1340, %v1340
    %v1405 = vpack.c.b16 %v1341, %v1341
    %1470 = vst [vmem:[%s3] sm:$0xf] %v1342
    %1471 = vst [vmem:[%s3 + $0x4] sm:$0xf] %v1343
    %1472 = vst [vmem:[%s3 + $0x8] sm:$0xf] %v1344
    %1473 = vst [vmem:[%s3 + $0xc] sm:$0xf] %v1345
    %1474 = vst [vmem:[%s3 + $0x10] sm:$0xf] %v1346
    %1475 = vst [vmem:[%s3 + $0x14] sm:$0xf] %v1347
    %1476 = vst [vmem:[%s3 + $0x18] sm:$0xf] %v1348
    %1477 = vst [vmem:[%s3 + $0x1c] sm:$0xf] %v1349
    %1478 = vst [vmem:[%s3 + $0x20] sm:$0xf] %v1350
    %1479 = vst [vmem:[%s3 + $0x24] sm:$0xf] %v1351
    %1480 = vst [vmem:[%s3 + $0x28] sm:$0xf] %v1352
    %1481 = vst [vmem:[%s3 + $0x2c] sm:$0xf] %v1353
    %1482 = vst [vmem:[%s3 + $0x30] sm:$0xf] %v1354
    %1483 = vst [vmem:[%s3 + $0x34] sm:$0xf] %v1355
    %1484 = vst [vmem:[%s3 + $0x38] sm:$0xf] %v1356
    %1485 = vst [vmem:[%s3 + $0x3c] sm:$0xf] %v1357
    %1486 = vst [vmem:[%s3 + $0x40] sm:$0xf] %v1358
    %1487 = vst [vmem:[%s3 + $0x44] sm:$0xf] %v1359
    %1488 = vst [vmem:[%s3 + $0x48] sm:$0xf] %v1360
    %1489 = vst [vmem:[%s3 + $0x4c] sm:$0xf] %v1361
    %1490 = vst [vmem:[%s3 + $0x50] sm:$0xf] %v1362
    %1491 = vst [vmem:[%s3 + $0x54] sm:$0xf] %v1363
    %1492 = vst [vmem:[%s3 + $0x58] sm:$0xf] %v1364
    %1493 = vst [vmem:[%s3 + $0x5c] sm:$0xf] %v1365
    %1494 = vst [vmem:[%s3 + $0x60] sm:$0xf] %v1366
    %1495 = vst [vmem:[%s3 + $0x64] sm:$0xf] %v1367
    %1496 = vst [vmem:[%s3 + $0x68] sm:$0xf] %v1368
    %1497 = vst [vmem:[%s3 + $0x6c] sm:$0xf] %v1369
    %1498 = vst [vmem:[%s3 + $0x70] sm:$0xf] %v1370
    %1499 = vst [vmem:[%s3 + $0x74] sm:$0xf] %v1371
    %1500 = vst [vmem:[%s3 + $0x78] sm:$0xf] %v1372
    %1501 = vst [vmem:[%s3 + $0x7c] sm:$0xf] %v1373
    %1502 = vst [vmem:[%s3 + $0x80] sm:$0xf] %v1374
    %1503 = vst [vmem:[%s3 + $0x84] sm:$0xf] %v1375
    %1504 = vst [vmem:[%s3 + $0x88] sm:$0xf] %v1376
    %1505 = vst [vmem:[%s3 + $0x8c] sm:$0xf] %v1377
    %1506 = vst [vmem:[%s3 + $0x90] sm:$0xf] %v1378
    %1507 = vst [vmem:[%s3 + $0x94] sm:$0xf] %v1379
    %1508 = vst [vmem:[%s3 + $0x98] sm:$0xf] %v1380
    %1509 = vst [vmem:[%s3 + $0x9c] sm:$0xf] %v1381
    %1510 = vst [vmem:[%s3 + $0xa0] sm:$0xf] %v1382
    %1511 = vst [vmem:[%s3 + $0xa4] sm:$0xf] %v1383
    %1512 = vst [vmem:[%s3 + $0xa8] sm:$0xf] %v1384
    %1513 = vst [vmem:[%s3 + $0xac] sm:$0xf] %v1385
    %1514 = vst [vmem:[%s3 + $0xb0] sm:$0xf] %v1386
    %1515 = vst [vmem:[%s3 + $0xb4] sm:$0xf] %v1387
    %1516 = vst [vmem:[%s3 + $0xb8] sm:$0xf] %v1388
    %1517 = vst [vmem:[%s3 + $0xbc] sm:$0xf] %v1389
    %1518 = vst [vmem:[%s3 + $0xc0] sm:$0xf] %v1390
    %1519 = vst [vmem:[%s3 + $0xc4] sm:$0xf] %v1391
    %1520 = vst [vmem:[%s3 + $0xc8] sm:$0xf] %v1392
    %1521 = vst [vmem:[%s3 + $0xcc] sm:$0xf] %v1393
    %1522 = vst [vmem:[%s3 + $0xd0] sm:$0xf] %v1394
    %1523 = vst [vmem:[%s3 + $0xd4] sm:$0xf] %v1395
    %1524 = vst [vmem:[%s3 + $0xd8] sm:$0xf] %v1396
    %1525 = vst [vmem:[%s3 + $0xdc] sm:$0xf] %v1397
    %1526 = vst [vmem:[%s3 + $0xe0] sm:$0xf] %v1398
    %1527 = vst [vmem:[%s3 + $0xe4] sm:$0xf] %v1399
    %1528 = vst [vmem:[%s3 + $0xe8] sm:$0xf] %v1400
    %1529 = vst [vmem:[%s3 + $0xec] sm:$0xf] %v1401
    %1530 = vst [vmem:[%s3 + $0xf0] sm:$0xf] %v1402
    %1531 = vst [vmem:[%s3 + $0xf4] sm:$0xf] %v1403
    %1532 = vst [vmem:[%s3 + $0xf8] sm:$0xf] %v1404
    %1533 = vst [vmem:[%s3 + $0xfc] sm:$0xf] %v1405
  $region21: #{_lambda_.16} parent=0 // pred_fallthru
    _
  // Predicated region
  $region22: #{_lambda_.16} parent=0 // pred_check
    _
  $region23: #{_lambda_.16} parent=0 // pred_check_branch
    %1535 = sbr.rel (0) target = $region25
  $region24: #{_lambda_.16} parent=0 // pred_region
    _
  $region25: #{_lambda_.16} parent=0 // pred_fallthru
    _
  // Predicated region
  $region26: #{_lambda_.16} parent=0 // pred_check
    _
  $region27: #{_lambda_.16} parent=0 // pred_check_branch
    %1537 = sbr.rel (0) target = $region29
  $region28: #{_lambda_.16} parent=0 // pred_region
    _
  $region29: #{_lambda_.16} parent=0 // pred_fallthru
    _

// kernel: _lambda_.17
$region0: #{_lambda_.17}
  #allocation0 [shape = 'u32[]', space=smem, size = 0x4, offset = 0x4, fixed_abs, tag = 'smem constant byte address 0x4 - core index']
  #allocation1 [shape = 'u32[144,128]{1,0:T(1,128)}', space=vmem, size = 0x12000, scoped, tag = 'internal scratch']
  #allocation2 [shape = 'f32[128,128]{1,0:T(8,128)}', space=vmem, size = 0x10000, scoped, tag = 'scratch operand']
  %s0 = inlined_call_operand.vmem [shape: bf16[128,256], index: 0, kind: input, shape index: {}]
  %s1 = inlined_call_operand.vmem [shape: bf16[256,128], index: 1, kind: input, shape index: {}]
  %s2 = inlined_call_operand.vmem [shape: f32[1,128], index: 2, kind: input, shape index: {}]
  %s3 = inlined_call_operand.vmem [shape: bf16[128,128], index: 3, kind: output, shape index: {0}]
  %s4 = inlined_call_operand.vmem [shape: f32[1,8,128], index: 4, kind: output, shape index: {1}]
  %5 = xla_tuple %s3, %s4
  %s6 = sld [smem:[#allocation0]]
  $region38: #{_lambda_.17} parent=0
    _
  %s8 = ssub.s32 1, %s6
  %s9 = scalar_select 0, %s8, %s6
  // Predicated region
  $region2: #{_lambda_.17} parent=0 // pred_check
    _
  $region3: #{_lambda_.17} parent=0 // pred_check_branch
    %11 = sbr.rel (0) target = $region5
  $region4: #{_lambda_.17} parent=0 // pred_region
    _
  $region5: #{_lambda_.17} parent=0 // pred_fallthru
    _
  // Predicated region
  $region6: #{_lambda_.17} parent=0 // pred_check
    _
  $region7: #{_lambda_.17} parent=0 // pred_check_branch
    %13 = sbr.rel (0) target = $region9
  $region8: #{_lambda_.17} parent=0 // pred_region
    _
  $region9: #{_lambda_.17} parent=0 // pred_fallthru
    _
  // Predicated region
  $region10: #{_lambda_.17} parent=0 // pred_check
    _
  $region11: #{_lambda_.17} parent=0 // pred_check_branch
    %15 = sbr.rel (0) target = $region13
  $region12: #{_lambda_.17} parent=0 // pred_region
    _
  $region13: #{_lambda_.17} parent=0 // pred_fallthru
    _
  %p17 = scmp.eq.s32.totalorder 0, 0
  // Predicated region
  $region14: #{_lambda_.17} parent=0 // pred_check
    %p18 = pneg %p17
  $region15: #{_lambda_.17} parent=0 // pred_check_branch
    %20 = sbr.rel (%p18) target = $region17
  $region16: #{_lambda_.17} parent=0 // pred_region
    %21 = vst [vmem:[#allocation2] sm:$0xff] 0.0
    %22 = vst [vmem:[#allocation2 + $0x8] sm:$0xff] 0.0
    %23 = vst [vmem:[#allocation2 + $0x10] sm:$0xff] 0.0
    %24 = vst [vmem:[#allocation2 + $0x18] sm:$0xff] 0.0
    %25 = vst [vmem:[#allocation2 + $0x20] sm:$0xff] 0.0
    %26 = vst [vmem:[#allocation2 + $0x28] sm:$0xff] 0.0
    %27 = vst [vmem:[#allocation2 + $0x30] sm:$0xff] 0.0
    %28 = vst [vmem:[#allocation2 + $0x38] sm:$0xff] 0.0
    %29 = vst [vmem:[#allocation2 + $0x40] sm:$0xff] 0.0
    %30 = vst [vmem:[#allocation2 + $0x48] sm:$0xff] 0.0
    %31 = vst [vmem:[#allocation2 + $0x50] sm:$0xff] 0.0
    %32 = vst [vmem:[#allocation2 + $0x58] sm:$0xff] 0.0
    %33 = vst [vmem:[#allocation2 + $0x60] sm:$0xff] 0.0
    %34 = vst [vmem:[#allocation2 + $0x68] sm:$0xff] 0.0
    %35 = vst [vmem:[#allocation2 + $0x70] sm:$0xff] 0.0
    %36 = vst [vmem:[#allocation2 + $0x78] sm:$0xff] 0.0
  $region17: #{_lambda_.17} parent=0 // pred_fallthru
    _
  %v37 = vld [vmem:[#allocation2] sm:$0xff]
  %v38 = vld [vmem:[#allocation2 + $0x8] sm:$0xff]
  %v39 = vld [vmem:[#allocation2 + $0x10] sm:$0xff]
  %v40 = vld [vmem:[#allocation2 + $0x18] sm:$0xff]
  %v41 = vld [vmem:[#allocation2 + $0x20] sm:$0xff]
  %v42 = vld [vmem:[#allocation2 + $0x28] sm:$0xff]
  %v43 = vld [vmem:[#allocation2 + $0x30] sm:$0xff]
  %v44 = vld [vmem:[#allocation2 + $0x38] sm:$0xff]
  %v45 = vld [vmem:[#allocation2 + $0x40] sm:$0xff]
  %v46 = vld [vmem:[#allocation2 + $0x48] sm:$0xff]
  %v47 = vld [vmem:[#allocation2 + $0x50] sm:$0xff]
  %v48 = vld [vmem:[#allocation2 + $0x58] sm:$0xff]
  %v49 = vld [vmem:[#allocation2 + $0x60] sm:$0xff]
  %v50 = vld [vmem:[#allocation2 + $0x68] sm:$0xff]
  %v51 = vld [vmem:[#allocation2 + $0x70] sm:$0xff]
  %v52 = vld [vmem:[#allocation2 + $0x78] sm:$0xff]
  %v53 = vld [vmem:[%s0] sm:$0xff]
  %v54 = vld [vmem:[%s0 + $0x8] sm:$0xff]
  %v55 = vld [vmem:[%s0 + $0x10] sm:$0xff]
  %v56 = vld [vmem:[%s0 + $0x18] sm:$0xff]
  %v57 = vld [vmem:[%s0 + $0x20] sm:$0xff]
  %v58 = vld [vmem:[%s0 + $0x28] sm:$0xff]
  %v59 = vld [vmem:[%s0 + $0x30] sm:$0xff]
  %v60 = vld [vmem:[%s0 + $0x38] sm:$0xff]
  %v61 = vld [vmem:[%s0 + $0x40] sm:$0xff]
  %v62 = vld [vmem:[%s0 + $0x48] sm:$0xff]
  %v63 = vld [vmem:[%s0 + $0x50] sm:$0xff]
  %v64 = vld [vmem:[%s0 + $0x58] sm:$0xff]
  %v65 = vld [vmem:[%s0 + $0x60] sm:$0xff]
  %v66 = vld [vmem:[%s0 + $0x68] sm:$0xff]
  %v67 = vld [vmem:[%s0 + $0x70] sm:$0xff]
  %v68 = vld [vmem:[%s0 + $0x78] sm:$0xff]
  %v69 = vld [vmem:[%s1] sm:$0xf]
  %v70 = vld [vmem:[%s1 + $0x4] sm:$0xf]
  %v71 = vld [vmem:[%s1 + $0x8] sm:$0xf]
  %v72 = vld [vmem:[%s1 + $0xc] sm:$0xf]
  %v73 = vld [vmem:[%s1 + $0x10] sm:$0xf]
  %v74 = vld [vmem:[%s1 + $0x14] sm:$0xf]
  %v75 = vld [vmem:[%s1 + $0x18] sm:$0xf]
  %v76 = vld [vmem:[%s1 + $0x1c] sm:$0xf]
  %v77 = vld [vmem:[%s1 + $0x20] sm:$0xf]
  %v78 = vld [vmem:[%s1 + $0x24] sm:$0xf]
  %v79 = vld [vmem:[%s1 + $0x28] sm:$0xf]
  %v80 = vld [vmem:[%s1 + $0x2c] sm:$0xf]
  %v81 = vld [vmem:[%s1 + $0x30] sm:$0xf]
  %v82 = vld [vmem:[%s1 + $0x34] sm:$0xf]
  %v83 = vld [vmem:[%s1 + $0x38] sm:$0xf]
  %v84 = vld [vmem:[%s1 + $0x3c] sm:$0xf]
  %v85 = vld [vmem:[%s1 + $0x40] sm:$0xf]
  %v86 = vld [vmem:[%s1 + $0x44] sm:$0xf]
  %v87 = vld [vmem:[%s1 + $0x48] sm:$0xf]
  %v88 = vld [vmem:[%s1 + $0x4c] sm:$0xf]
  %v89 = vld [vmem:[%s1 + $0x50] sm:$0xf]
  %v90 = vld [vmem:[%s1 + $0x54] sm:$0xf]
  %v91 = vld [vmem:[%s1 + $0x58] sm:$0xf]
  %v92 = vld [vmem:[%s1 + $0x5c] sm:$0xf]
  %v93 = vld [vmem:[%s1 + $0x60] sm:$0xf]
  %v94 = vld [vmem:[%s1 + $0x64] sm:$0xf]
  %v95 = vld [vmem:[%s1 + $0x68] sm:$0xf]
  %v96 = vld [vmem:[%s1 + $0x6c] sm:$0xf]
  %v97 = vld [vmem:[%s1 + $0x70] sm:$0xf]
  %v98 = vld [vmem:[%s1 + $0x74] sm:$0xf]
  %v99 = vld [vmem:[%s1 + $0x78] sm:$0xf]
  %v100 = vld [vmem:[%s1 + $0x7c] sm:$0xf]
  %v117 = vunpack.c.l.b16 %v53
  %v118 = vunpack.c.h.b16 %v53
  %v119 = vunpack.c.l.b16 %v54
  %v120 = vunpack.c.h.b16 %v54
  %v121 = vunpack.c.l.b16 %v55
  %v122 = vunpack.c.h.b16 %v55
  %v123 = vunpack.c.l.b16 %v56
  %v124 = vunpack.c.h.b16 %v56
  %v125 = vunpack.c.l.b16 %v57
  %v126 = vunpack.c.h.b16 %v57
  %v127 = vunpack.c.l.b16 %v58
  %v128 = vunpack.c.h.b16 %v58
  %v129 = vunpack.c.l.b16 %v59
  %v130 = vunpack.c.h.b16 %v59
  %v131 = vunpack.c.l.b16 %v60
  %v132 = vunpack.c.h.b16 %v60
  %v133 = vunpack.c.l.b16 %v61
  %v134 = vunpack.c.h.b16 %v61
  %v135 = vunpack.c.l.b16 %v62
  %v136 = vunpack.c.h.b16 %v62
  %v137 = vunpack.c.l.b16 %v63
  %v138 = vunpack.c.h.b16 %v63
  %v139 = vunpack.c.l.b16 %v64
  %v140 = vunpack.c.h.b16 %v64
  %v141 = vunpack.c.l.b16 %v65
  %v142 = vunpack.c.h.b16 %v65
  %v143 = vunpack.c.l.b16 %v66
  %v144 = vunpack.c.h.b16 %v66
  %v145 = vunpack.c.l.b16 %v67
  %v146 = vunpack.c.h.b16 %v67
  %v147 = vunpack.c.l.b16 %v68
  %v148 = vunpack.c.h.b16 %v68
  %v149 = vpack.c.b16 %v119, %v117
  %v150 = vpack.c.b16 %v120, %v118
  %v151 = vpack.c.b16 %v123, %v121
  %v152 = vpack.c.b16 %v124, %v122
  %v153 = vpack.c.b16 %v127, %v125
  %v154 = vpack.c.b16 %v128, %v126
  %v155 = vpack.c.b16 %v131, %v129
  %v156 = vpack.c.b16 %v132, %v130
  %v157 = vpack.c.b16 %v135, %v133
  %v158 = vpack.c.b16 %v136, %v134
  %v159 = vpack.c.b16 %v139, %v137
  %v160 = vpack.c.b16 %v140, %v138
  %v161 = vpack.c.b16 %v143, %v141
  %v162 = vpack.c.b16 %v144, %v142
  %v163 = vpack.c.b16 %v147, %v145
  %v164 = vpack.c.b16 %v148, %v146
  %v213 = vunpack.c.l.b16 %v69
  %v214 = vunpack.c.l.b16 %v70
  %v215 = vunpack.c.l.b16 %v71
  %v216 = vunpack.c.l.b16 %v72
  %v217 = vunpack.c.l.b16 %v73
  %v218 = vunpack.c.l.b16 %v74
  %v219 = vunpack.c.l.b16 %v75
  %v220 = vunpack.c.l.b16 %v76
  %v221 = vunpack.c.l.b16 %v77
  %v222 = vunpack.c.l.b16 %v78
  %v223 = vunpack.c.l.b16 %v79
  %v224 = vunpack.c.l.b16 %v80
  %v225 = vunpack.c.l.b16 %v81
  %v226 = vunpack.c.l.b16 %v82
  %v227 = vunpack.c.l.b16 %v83
  %v228 = vunpack.c.l.b16 %v84
  %v229 = vunpack.c.l.b16 %v85
  %v230 = vunpack.c.l.b16 %v86
  %v231 = vunpack.c.l.b16 %v87
  %v232 = vunpack.c.l.b16 %v88
  %v233 = vunpack.c.l.b16 %v89
  %v234 = vunpack.c.l.b16 %v90
  %v235 = vunpack.c.l.b16 %v91
  %v236 = vunpack.c.l.b16 %v92
  %v237 = vunpack.c.l.b16 %v93
  %v238 = vunpack.c.l.b16 %v94
  %v239 = vunpack.c.l.b16 %v95
  %v240 = vunpack.c.l.b16 %v96
  %v241 = vunpack.c.l.b16 %v97
  %v242 = vunpack.c.l.b16 %v98
  %v243 = vunpack.c.l.b16 %v99
  %v244 = vunpack.c.l.b16 %v100
  %v245 = vpack.c.b16 %v214, %v213
  %v246 = vpack.c.b16 %v216, %v215
  %v247 = vpack.c.b16 %v218, %v217
  %v248 = vpack.c.b16 %v220, %v219
  %v249 = vpack.c.b16 %v222, %v221
  %v250 = vpack.c.b16 %v224, %v223
  %v251 = vpack.c.b16 %v226, %v225
  %v252 = vpack.c.b16 %v228, %v227
  %v253 = vpack.c.b16 %v230, %v229
  %v254 = vpack.c.b16 %v232, %v231
  %v255 = vpack.c.b16 %v234, %v233
  %v256 = vpack.c.b16 %v236, %v235
  %v257 = vpack.c.b16 %v238, %v237
  %v258 = vpack.c.b16 %v240, %v239
  %v259 = vpack.c.b16 %v242, %v241
  %v260 = vpack.c.b16 %v244, %v243
  %277 = vmatprep.subr.bf16.mxu0 0
  %278 = vmatpush1.bf16.msra.mxu0 %v252
  %279 = vmatprep.subr.bf16.mxu0 0
  %280 = vmatpush1.bf16.msra.mxu0 %v251
  %281 = vmatprep.subr.bf16.mxu0 0
  %282 = vmatpush1.bf16.msra.mxu0 %v250
  %283 = vmatprep.subr.bf16.mxu0 0
  %284 = vmatpush1.bf16.msra.mxu0 %v249
  %285 = vmatprep.subr.bf16.mxu0 0
  %286 = vmatpush1.bf16.msra.mxu0 %v248
  %287 = vmatprep.subr.bf16.mxu0 0
  %288 = vmatpush1.bf16.msra.mxu0 %v247
  %289 = vmatprep.subr.bf16.mxu0 0
  %290 = vmatpush1.bf16.msra.mxu0 %v246
  %291 = vmatprep.subr.bf16.mxu0 0
  %292 = vmatpush1.bf16.msra.mxu0 %v245
  %293 = vmatprep.subr.bf16.mxu0 0
  %294 = vmatpush2.bf16.msra.mxu0 %v260
  %295 = vmatprep.subr.bf16.mxu0 0
  %296 = vmatpush2.bf16.msra.mxu0 %v259
  %297 = vmatprep.subr.bf16.mxu0 0
  %298 = vmatpush2.bf16.msra.mxu0 %v258
  %299 = vmatprep.subr.bf16.mxu0 0
  %300 = vmatpush2.bf16.msra.mxu0 %v257
  %301 = vmatprep.subr.bf16.mxu0 0
  %302 = vmatpush2.bf16.msra.mxu0 %v256
  %303 = vmatprep.subr.bf16.mxu0 0
  %304 = vmatpush2.bf16.msra.mxu0 %v255
  %305 = vmatprep.subr.bf16.mxu0 0
  %306 = vmatpush2.bf16.msra.mxu0 %v254
  %307 = vmatprep.subr.bf16.mxu0 0
  %308 = vmatpush2.bf16.msra.mxu0 %v253
  %309 = vmatprep.mubr.bf16.mxu0 %v150
  %310 = vmatmul.mubr.bf16.gmra.mxu0 %v149
  %v311 = vpop.f32.mrf.mxu0
  %v312 = vadd.f32 0.0, %v311
  %v313 = vpop.f32.mrf.mxu0
  %v314 = vpop.f32.mrf.mxu0
  %v315 = vadd.f32 0.0, %v314
  %v316 = vpop.f32.mrf.mxu0
  %317 = vmatprep.mubr.bf16.mxu0 %v152
  %318 = vmatmul.mubr.bf16.gmra.mxu0 %v151
  %v319 = vpop.f32.mrf.mxu0
  %v320 = vadd.f32 0.0, %v319
  %v321 = vpop.f32.mrf.mxu0
  %v322 = vpop.f32.mrf.mxu0
  %v323 = vadd.f32 0.0, %v322
  %v324 = vpop.f32.mrf.mxu0
  %325 = vmatprep.mubr.bf16.mxu0 %v154
  %326 = vmatmul.mubr.bf16.gmra.mxu0 %v153
  %v327 = vpop.f32.mrf.mxu0
  %v328 = vadd.f32 0.0, %v327
  %v329 = vpop.f32.mrf.mxu0
  %v330 = vpop.f32.mrf.mxu0
  %v331 = vadd.f32 0.0, %v330
  %v332 = vpop.f32.mrf.mxu0
  %333 = vmatprep.mubr.bf16.mxu0 %v156
  %334 = vmatmul.mubr.bf16.gmra.mxu0 %v155
  %v335 = vpop.f32.mrf.mxu0
  %v336 = vadd.f32 0.0, %v335
  %v337 = vpop.f32.mrf.mxu0
  %v338 = vpop.f32.mrf.mxu0
  %v339 = vadd.f32 0.0, %v338
  %v340 = vpop.f32.mrf.mxu0
  %341 = vmatprep.mubr.bf16.mxu0 %v158
  %342 = vmatmul.mubr.bf16.gmra.mxu0 %v157
  %v343 = vpop.f32.mrf.mxu0
  %v344 = vadd.f32 0.0, %v343
  %v345 = vpop.f32.mrf.mxu0
  %v346 = vpop.f32.mrf.mxu0
  %v347 = vadd.f32 0.0, %v346
  %v348 = vpop.f32.mrf.mxu0
  %349 = vmatprep.mubr.bf16.mxu0 %v160
  %350 = vmatmul.mubr.bf16.gmra.mxu0 %v159
  %v351 = vpop.f32.mrf.mxu0
  %v352 = vadd.f32 0.0, %v351
  %v353 = vpop.f32.mrf.mxu0
  %v354 = vpop.f32.mrf.mxu0
  %v355 = vadd.f32 0.0, %v354
  %v356 = vpop.f32.mrf.mxu0
  %357 = vmatprep.mubr.bf16.mxu0 %v162
  %358 = vmatmul.mubr.bf16.gmra.mxu0 %v161
  %v359 = vpop.f32.mrf.mxu0
  %v360 = vadd.f32 0.0, %v359
  %v361 = vpop.f32.mrf.mxu0
  %v362 = vpop.f32.mrf.mxu0
  %v363 = vadd.f32 0.0, %v362
  %v364 = vpop.f32.mrf.mxu0
  %365 = vmatprep.mubr.bf16.mxu0 %v164
  %366 = vmatmul.mubr.bf16.gmra.mxu0 %v163
  %v367 = vpop.f32.mrf.mxu0
  %v368 = vadd.f32 0.0, %v367
  %v369 = vpop.f32.mrf.mxu0
  %v370 = vpop.f32.mrf.mxu0
  %v371 = vadd.f32 0.0, %v370
  %v372 = vpop.f32.mrf.mxu0
  %373 = vdwg.mxu0
  %v374 = vadd.f32 %v37, %v312
  %v375 = vadd.f32 %v38, %v315
  %v376 = vadd.f32 %v39, %v320
  %v377 = vadd.f32 %v40, %v323
  %v378 = vadd.f32 %v41, %v328
  %v379 = vadd.f32 %v42, %v331
  %v380 = vadd.f32 %v43, %v336
  %v381 = vadd.f32 %v44, %v339
  %v382 = vadd.f32 %v45, %v344
  %v383 = vadd.f32 %v46, %v347
  %v384 = vadd.f32 %v47, %v352
  %v385 = vadd.f32 %v48, %v355
  %v386 = vadd.f32 %v49, %v360
  %v387 = vadd.f32 %v50, %v363
  %v388 = vadd.f32 %v51, %v368
  %v389 = vadd.f32 %v52, %v371
  %390 = vst [vmem:[#allocation2] sm:$0xff] %v374
  %391 = vst [vmem:[#allocation2 + $0x8] sm:$0xff] %v375
  %392 = vst [vmem:[#allocation2 + $0x10] sm:$0xff] %v376
  %393 = vst [vmem:[#allocation2 + $0x18] sm:$0xff] %v377
  %394 = vst [vmem:[#allocation2 + $0x20] sm:$0xff] %v378
  %395 = vst [vmem:[#allocation2 + $0x28] sm:$0xff] %v379
  %396 = vst [vmem:[#allocation2 + $0x30] sm:$0xff] %v380
  %397 = vst [vmem:[#allocation2 + $0x38] sm:$0xff] %v381
  %398 = vst [vmem:[#allocation2 + $0x40] sm:$0xff] %v382
  %399 = vst [vmem:[#allocation2 + $0x48] sm:$0xff] %v383
  %400 = vst [vmem:[#allocation2 + $0x50] sm:$0xff] %v384
  %401 = vst [vmem:[#allocation2 + $0x58] sm:$0xff] %v385
  %402 = vst [vmem:[#allocation2 + $0x60] sm:$0xff] %v386
  %403 = vst [vmem:[#allocation2 + $0x68] sm:$0xff] %v387
  %404 = vst [vmem:[#allocation2 + $0x70] sm:$0xff] %v388
  %405 = vst [vmem:[#allocation2 + $0x78] sm:$0xff] %v389
  // Predicated region
  $region18: #{_lambda_.17} parent=0 // pred_check
    %p406 = pneg %p17
  $region19: #{_lambda_.17} parent=0 // pred_check_branch
    %408 = sbr.rel (%p406) target = $region21
  $region20: #{_lambda_.17} parent=0 // pred_region
    %v409 = vld [vmem:[#allocation2] sm:$0xff]
    %v410 = vld [vmem:[#allocation2 + $0x8] sm:$0xff]
    %v411 = vld [vmem:[#allocation2 + $0x10] sm:$0xff]
    %v412 = vld [vmem:[#allocation2 + $0x18] sm:$0xff]
    %v413 = vld [vmem:[#allocation2 + $0x20] sm:$0xff]
    %v414 = vld [vmem:[#allocation2 + $0x28] sm:$0xff]
    %v415 = vld [vmem:[#allocation2 + $0x30] sm:$0xff]
    %v416 = vld [vmem:[#allocation2 + $0x38] sm:$0xff]
    %v417 = vld [vmem:[#allocation2 + $0x40] sm:$0xff]
    %v418 = vld [vmem:[#allocation2 + $0x48] sm:$0xff]
    %v419 = vld [vmem:[#allocation2 + $0x50] sm:$0xff]
    %v420 = vld [vmem:[#allocation2 + $0x58] sm:$0xff]
    %v421 = vld [vmem:[#allocation2 + $0x60] sm:$0xff]
    %v422 = vld [vmem:[#allocation2 + $0x68] sm:$0xff]
    %v423 = vld [vmem:[#allocation2 + $0x70] sm:$0xff]
    %v424 = vld [vmem:[#allocation2 + $0x78] sm:$0xff]
    %v425 = vpack.c.bf16 %v410, %v409
    %v426 = vpack.c.bf16 %v412, %v411
    %v427 = vpack.c.bf16 %v414, %v413
    %v428 = vpack.c.bf16 %v416, %v415
    %v429 = vpack.c.bf16 %v418, %v417
    %v430 = vpack.c.bf16 %v420, %v419
    %v431 = vpack.c.bf16 %v422, %v421
    %v432 = vpack.c.bf16 %v424, %v423
    %v441 = vunpack.c.l.b16 %v425
    %v442 = vunpack.c.h.b16 %v425
    %v443 = vunpack.c.l.b16 %v426
    %v444 = vunpack.c.h.b16 %v426
    %v445 = vunpack.c.l.b16 %v427
    %v446 = vunpack.c.h.b16 %v427
    %v447 = vunpack.c.l.b16 %v428
    %v448 = vunpack.c.h.b16 %v428
    %v449 = vunpack.c.l.b16 %v429
    %v450 = vunpack.c.h.b16 %v429
    %v451 = vunpack.c.l.b16 %v430
    %v452 = vunpack.c.h.b16 %v430
    %v453 = vunpack.c.l.b16 %v431
    %v454 = vunpack.c.h.b16 %v431
    %v455 = vunpack.c.l.b16 %v432
    %v456 = vunpack.c.h.b16 %v432
    %v457 = vpack.c.b16 %v441, %v441
    %v458 = vpack.c.b16 %v442, %v442
    %v459 = vpack.c.b16 %v443, %v443
    %v460 = vpack.c.b16 %v444, %v444
    %v461 = vpack.c.b16 %v445, %v445
    %v462 = vpack.c.b16 %v446, %v446
    %v463 = vpack.c.b16 %v447, %v447
    %v464 = vpack.c.b16 %v448, %v448
    %v465 = vpack.c.b16 %v449, %v449
    %v466 = vpack.c.b16 %v450, %v450
    %v467 = vpack.c.b16 %v451, %v451
    %v468 = vpack.c.b16 %v452, %v452
    %v469 = vpack.c.b16 %v453, %v453
    %v470 = vpack.c.b16 %v454, %v454
    %v471 = vpack.c.b16 %v455, %v455
    %v472 = vpack.c.b16 %v456, %v456
    %489 = vst [vmem:[%s3] sm:$0xf] %v457
    %490 = vst [vmem:[%s3 + $0x4] sm:$0xf] %v458
    %491 = vst [vmem:[%s3 + $0x8] sm:$0xf] %v459
    %492 = vst [vmem:[%s3 + $0xc] sm:$0xf] %v460
    %493 = vst [vmem:[%s3 + $0x10] sm:$0xf] %v461
    %494 = vst [vmem:[%s3 + $0x14] sm:$0xf] %v462
    %495 = vst [vmem:[%s3 + $0x18] sm:$0xf] %v463
    %496 = vst [vmem:[%s3 + $0x1c] sm:$0xf] %v464
    %497 = vst [vmem:[%s3 + $0x20] sm:$0xf] %v465
    %498 = vst [vmem:[%s3 + $0x24] sm:$0xf] %v466
    %499 = vst [vmem:[%s3 + $0x28] sm:$0xf] %v467
    %500 = vst [vmem:[%s3 + $0x2c] sm:$0xf] %v468
    %501 = vst [vmem:[%s3 + $0x30] sm:$0xf] %v469
    %502 = vst [vmem:[%s3 + $0x34] sm:$0xf] %v470
    %503 = vst [vmem:[%s3 + $0x38] sm:$0xf] %v471
    %504 = vst [vmem:[%s3 + $0x3c] sm:$0xf] %v472
    %v505 = vadd.f32 %v409, %v410
    %v506 = vadd.f32 %v505, %v411
    %v507 = vadd.f32 %v506, %v412
    %v508 = vadd.f32 %v507, %v413
    %v509 = vadd.f32 %v508, %v414
    %v510 = vadd.f32 %v509, %v415
    %v511 = vadd.f32 %v510, %v416
    %v512 = vadd.f32 %v511, %v417
    %v513 = vadd.f32 %v512, %v418
    %v514 = vadd.f32 %v513, %v419
    %v515 = vadd.f32 %v514, %v420
    %v516 = vadd.f32 %v515, %v421
    %v517 = vadd.f32 %v516, %v422
    %v518 = vadd.f32 %v517, %v423
    %v519 = vadd.f32 %v518, %v424
    %v520 = vrot.slane %v519, 4
    %v521 = vadd.f32 %v519, %v520
    %v522 = vrot.slane %v521, 2
    %v523 = vadd.f32 %v521, %v522
    %v524 = vrot.slane %v523, 1
    %v525 = vadd.f32 %v523, %v524
    %v526 = vmul.f32 %v409, %v409
    %v527 = vmul.f32 %v410, %v410
    %v528 = vmul.f32 %v411, %v411
    %v529 = vmul.f32 %v412, %v412
    %v530 = vmul.f32 %v413, %v413
    %v531 = vmul.f32 %v414, %v414
    %v532 = vmul.f32 %v415, %v415
    %v533 = vmul.f32 %v416, %v416
    %v534 = vmul.f32 %v417, %v417
    %v535 = vmul.f32 %v418, %v418
    %v536 = vmul.f32 %v419, %v419
    %v537 = vmul.f32 %v420, %v420
    %v538 = vmul.f32 %v421, %v421
    %v539 = vmul.f32 %v422, %v422
    %v540 = vmul.f32 %v423, %v423
    %v541 = vmul.f32 %v424, %v424
    %v542 = vadd.f32 %v526, %v527
    %v543 = vadd.f32 %v542, %v528
    %v544 = vadd.f32 %v543, %v529
    %v545 = vadd.f32 %v544, %v530
    %v546 = vadd.f32 %v545, %v531
    %v547 = vadd.f32 %v546, %v532
    %v548 = vadd.f32 %v547, %v533
    %v549 = vadd.f32 %v548, %v534
    %v550 = vadd.f32 %v549, %v535
    %v551 = vadd.f32 %v550, %v536
    %v552 = vadd.f32 %v551, %v537
    %v553 = vadd.f32 %v552, %v538
    %v554 = vadd.f32 %v553, %v539
    %v555 = vadd.f32 %v554, %v540
    %v556 = vadd.f32 %v555, %v541
    %v557 = vrot.slane %v556, 4
    %v558 = vadd.f32 %v556, %v557
    %v559 = vrot.slane %v558, 2
    %v560 = vadd.f32 %v558, %v559
    %v561 = vrot.slane %v560, 1
    %v562 = vadd.f32 %v560, %v561
    %v563 = vlaneseq
    %v564 = vshrl.u32 %v563, 7
    %vm565 = vcmp.eq.s32.totalorder %v564, 0
    %v566 = vsel %vm565, %v525, 0.0
    %vm567 = vcmp.eq.s32.totalorder %v564, 1
    %v568 = vsel %vm567, %v562, 0.0
    %v569 = vadd.f32 %v566, %v568
    %570 = vst [vmem:[%s4] sm:$0xff] %v569
  $region21: #{_lambda_.17} parent=0 // pred_fallthru
    _
  // Predicated region
  $region22: #{_lambda_.17} parent=0 // pred_check
    _
  $region23: #{_lambda_.17} parent=0 // pred_check_branch
    %572 = sbr.rel (0) target = $region25
  $region24: #{_lambda_.17} parent=0 // pred_region
    _
  $region25: #{_lambda_.17} parent=0 // pred_fallthru
    _
  // Predicated region
  $region26: #{_lambda_.17} parent=0 // pred_check
    _
  $region27: #{_lambda_.17} parent=0 // pred_check_branch
    %574 = sbr.rel (0) target = $region29
  $region28: #{_lambda_.17} parent=0 // pred_region
    _
  $region29: #{_lambda_.17} parent=0 // pred_fallthru
    _
  // Predicated region
  $region30: #{_lambda_.17} parent=0 // pred_check
    _
  $region31: #{_lambda_.17} parent=0 // pred_check_branch
    %576 = sbr.rel (0) target = $region33
  $region32: #{_lambda_.17} parent=0 // pred_region
    _
  $region33: #{_lambda_.17} parent=0 // pred_fallthru
    _
  // Predicated region
  $region34: #{_lambda_.17} parent=0 // pred_check
    _
  $region35: #{_lambda_.17} parent=0 // pred_check_branch
    %578 = sbr.rel (0) target = $region37
  $region36: #{_lambda_.17} parent=0 // pred_region
    _
  $region37: #{_lambda_.17} parent=0 // pred_fallthru
    _

</llo_original>
